<compile_context>
chip_gen: v5e
topology: v5e:2x2
jax: 0.10.0
libtpu: 0.0.40
codegen_flags: <defaults>
</compile_context>

<pallas_src>
import functools

import jax
import jax.numpy as jnp
from jax import lax
from jax.experimental import pallas as pl
from jax.experimental.pallas import tpu as pltpu

_ACT = jnp.bfloat16                  # inter-op activation / MXU operand dtype
_SINGLE_BUFFER_BYTES = 4 << 20       # constant-weight blocks above this are single-buffered


def _round_up(x, m):
    return ((x + m - 1) // m) * m


def _tpu_budgets():
    """(vmem_limit_bytes, row_target) tuned per TPU generation."""
    vmem = 0
    try:
        info = pltpu.get_tpu_info()
        vmem = int(getattr(info, "vmem_capacity_bytes", 0) or getattr(info, "vmem_bytes", 0) or 0)
    except Exception:
        vmem = 0
    if vmem >= (120 << 20):          # v5e / v6e: 128 MiB physical VMEM -> big tiles
        return 100 << 20, 1024
    if vmem > 0:                     # v7x: 64 MiB per TensorCore -> smaller tiles
        return 48 << 20, 384
    return 48 << 20, 512             # unknown chip: conservative limit, mid row target


_VMEM_LIMIT, _ROW_TARGET = _tpu_budgets()


def _compiler_params():
    return pltpu.CompilerParams(dimension_semantics=("parallel",),
                                vmem_limit_bytes=_VMEM_LIMIT)


def _const_spec(c):
    """Grid-resident (constant index_map) block for a 2-D weight/bias/LN parameter."""
    nbytes = int(c.size) * c.dtype.itemsize
    if nbytes >= _SINGLE_BUFFER_BYTES:
        # Large fused-MLP / QKV weights: single-buffer so they fit v7x's 64 MiB VMEM.
        return pl.BlockSpec(c.shape, lambda i: (0, 0), pipeline_mode=pl.Buffered(1))
    return pl.BlockSpec(c.shape, lambda i: (0, 0))


def _pick_row_block(B, S, target):
    """Rows per grid step = kb*S with kb | B, multiple of 8, <= target.  Falls back to a
    single full block (always legal) if no aligned divisor exists — no padding needed."""
    best = None
    for kb in range(1, B + 1):
        if B % kb:
            continue
        rows = kb * S
        if rows % 8:
            continue
        if rows <= max(target, S):
            best = rows
    return best if best is not None else B * S


# ---------------------------- in-kernel helpers ----------------------------

def _ln_rows(x, g, b, eps):
    """LayerNorm over the last axis; x f32, g/b (1, d) f32."""
    mean = jnp.mean(x, axis=-1, keepdims=True)
    var = jnp.mean(jnp.square(x - mean), axis=-1, keepdims=True)
    return (x - mean) * lax.rsqrt(var + eps) * g + b


def _mha_proj(qkv, wo, *, n_head, valid):
    """Multi-head softmax(QK^T)V followed by the output projection, per head.

    qkv: (S, 3d) bf16 slab laid out [q | k | v]; wo: (d, d) bf16.
    Returns (S, d) f32 == concat_heads(attn) @ wo  (computed as a per-head sum so no
    lane concatenation is materialized).  Key columns >= `valid` are masked out."""
    S, d3 = qkv.shape
    d = d3 // 3
    hd = d // n_head
    scale = hd ** -0.5
    if valid is not None and valid < S:
        col = lax.broadcasted_iota(jnp.int32, (1, S), 1)
        key_bias = jnp.where(col < valid, 0.0, -1e30).astype(jnp.float32)
    else:
        key_bias = None
    acc = jnp.zeros((S, d), jnp.float32)
    for h in range(n_head):
        q = qkv[:, h * hd:(h + 1) * hd]
        k = qkv[:, d + h * hd:d + (h + 1) * hd]
        v = qkv[:, 2 * d + h * hd:2 * d + (h + 1) * hd]
        s = lax.dot_general(q, k, (((1,), (1,)), ((), ())),
                            preferred_element_type=jnp.float32) * scale
        if key_bias is not None:
            s = s + key_bias
        s = s - jnp.max(s, axis=-1, keepdims=True)
        p = jnp.exp(s)
        p = p * pl.reciprocal(jnp.sum(p, axis=-1, keepdims=True), approx=True)
        o_h = jnp.dot(p.astype(qkv.dtype), v, preferred_element_type=jnp.float32)       # (S, hd)
        acc = acc + jnp.dot(o_h.astype(wo.dtype), wo[h * hd:(h + 1) * hd, :],
                            preferred_element_type=jnp.float32)
    return acc


# ---------------------------- Pallas kernels ----------------------------

def _linear_kernel(x_ref, w_ref, b_ref, o_ref):
    x = x_ref[...].astype(w_ref.dtype)
    acc = jnp.dot(x, w_ref[...], preferred_element_type=jnp.float32)
    o_ref[...] = (acc + b_ref[...]).astype(o_ref.dtype)


def _layernorm_kernel(x_ref, g_ref, bt_ref, o_ref, *, eps):
    x = x_ref[...].astype(jnp.float32)
    o_ref[...] = _ln_rows(x, g_ref[...], bt_ref[...], eps).astype(o_ref.dtype)


def _ln_linear_kernel(x_ref, g_ref, bt_ref, w_ref, b_ref, o_ref, *, eps):
    """out = LayerNorm(x) @ w + b  (ln_post + CLS projection)."""
    x = x_ref[...].astype(jnp.float32)
    xn = _ln_rows(x, g_ref[...], bt_ref[...], eps).astype(w_ref.dtype)
    o = jnp.dot(xn, w_ref[...], preferred_element_type=jnp.float32) + b_ref[...]
    o_ref[...] = o.astype(o_ref.dtype)


def _ln_mlp_res_kernel(x_ref, g_ref, bt_ref, w1_ref, b1_ref, w2_ref, b2_ref, o_ref, *, eps):
    """out = x + c_proj(QuickGELU(c_fc(LayerNorm(x))))   (fully fused MLP block)."""
    x = x_ref[...].astype(jnp.float32)
    xn = _ln_rows(x, g_ref[...], bt_ref[...], eps).astype(w1_ref.dtype)
    h = jnp.dot(xn, w1_ref[...], preferred_element_type=jnp.float32) + b1_ref[...]
    h = h * jax.nn.sigmoid(1.702 * h)                       # QuickGELU
    o = jnp.dot(h.astype(w2_ref.dtype), w2_ref[...], preferred_element_type=jnp.float32) + b2_ref[...]
    o_ref[...] = (x + o).astype(o_ref.dtype)                # residual in f32


def _attn_block_kernel(x_ref, g_ref, bt_ref, wqkv_ref, bqkv_ref, wo_ref, bo_ref, o_ref,
                       *, n_head, eps, valid):
    """One full attention residual block for one sample:
       out = x + out_proj(MHA(LayerNorm(x)))   on a (1, S, d) block."""
    x = x_ref[0].astype(jnp.float32)                         # (S, d)
    xn = _ln_rows(x, g_ref[...], bt_ref[...], eps).astype(wqkv_ref.dtype)
    qkv = (jnp.dot(xn, wqkv_ref[...], preferred_element_type=jnp.float32)
           + bqkv_ref[...]).astype(_ACT)                     # (S, 3d)
    o = _mha_proj(qkv, wo_ref[...], n_head=n_head, valid=valid) + bo_ref[...]
    o_ref[0] = (x + o).astype(o_ref.dtype)


def _msg_block_kernel(cls_ref, wfc_ref, bfc_ref, g_ref, bt_ref, wqkv_ref, bqkv_ref,
                      wo_ref, bo_ref, o_ref, *, n_head, eps):
    """Whole message path for one video, fused:
       msg = message_fc(cls);  out = msg + out_proj(MHA(message_ln(msg)))."""
    cls = cls_ref[0].astype(wfc_ref.dtype)                   # (T, d)
    msg = jnp.dot(cls, wfc_ref[...], preferred_element_type=jnp.float32) + bfc_ref[...]
    xn = _ln_rows(msg, g_ref[...], bt_ref[...], eps).astype(wqkv_ref.dtype)
    qkv = (jnp.dot(xn, wqkv_ref[...], preferred_element_type=jnp.float32)
           + bqkv_ref[...]).astype(_ACT)
    o = _mha_proj(qkv, wo_ref[...], n_head=n_head, valid=None) + bo_ref[...]
    o_ref[0] = (msg + o).astype(o_ref.dtype)


# ---------------------------- pallas_call wrappers ----------------------------

def _rowcall(kernel, rows2d, consts2d, out_last, out_dtype, B, S):
    """Row-tiled call over a (B*S, K) slab; tiles exactly divide the rows (no padding)."""
    M = B * S
    tm = _pick_row_block(B, S, _ROW_TARGET)
    grid = M // tm
    in_specs = ([pl.BlockSpec((tm, a.shape[-1]), lambda i: (i, 0)) for a in rows2d]
                + [_const_spec(c) for c in consts2d])
    out_spec = pl.BlockSpec((tm, out_last), lambda i: (i, 0))
    return pl.pallas_call(
        kernel, grid=(grid,), in_specs=in_specs, out_specs=out_spec,
        out_shape=jax.ShapeDtypeStruct((M, out_last), out_dtype),
        compiler_params=_compiler_params(),
    )(*rows2d, *consts2d)


def _samplecall(kernel, x3d, consts2d, out_dtype):
    """Per-sample call: grid over the leading axis, block (1, S, d) (last two dims full)."""
    B, S, d = x3d.shape
    in_specs = ([pl.BlockSpec((1, S, d), lambda i: (i, 0, 0))]
                + [_const_spec(c) for c in consts2d])
    out_spec = pl.BlockSpec((1, S, d), lambda i: (i, 0, 0))
    return pl.pallas_call(
        kernel, grid=(B,), in_specs=in_specs, out_specs=out_spec,
        out_shape=jax.ShapeDtypeStruct((B, S, d), out_dtype),
        compiler_params=_compiler_params(),
    )(x3d, *consts2d)


def pl_patch_embed(patches, w):
    """patches (BT, gg, Cpp) @ w (Cpp, d)  — the stride==kernel conv as a matmul."""
    BT, gg, Cpp = patches.shape
    d = w.shape[1]
    out = _rowcall(_linear_kernel, [patches.reshape(BT * gg, Cpp)],
                   [w, jnp.zeros((1, d), jnp.float32)], d, _ACT, BT, gg)
    return out.reshape(BT, gg, d)


def pl_layernorm3(x, g, b, eps=1e-5):
    B, S, d = x.shape
    consts = [g.reshape(1, d).astype(jnp.float32), b.reshape(1, d).astype(jnp.float32)]
    out = _rowcall(functools.partial(_layernorm_kernel, eps=eps),
                   [x.reshape(B * S, d)], consts, d, _ACT, B, S)
    return out.reshape(B, S, d)


def pl_ln_mlp_res3(x, g, bt, w1, b1, w2, b2, eps=1e-5):
    B, S, d = x.shape
    H = w1.shape[1]
    consts = [g.reshape(1, d).astype(jnp.float32), bt.reshape(1, d).astype(jnp.float32),
              w1, b1.reshape(1, H).astype(jnp.float32),
              w2, b2.reshape(1, d).astype(jnp.float32)]
    out = _rowcall(functools.partial(_ln_mlp_res_kernel, eps=eps),
                   [x.reshape(B * S, d)], consts, d, _ACT, B, S)
    return out.reshape(B, S, d)


def pl_ln_linear(x2d, g, bt, w, b=None, eps=1e-5, out_dtype=jnp.float32):
    M, d = x2d.shape
    N = w.shape[1]
    b = jnp.zeros((N,), jnp.float32) if b is None else b
    consts = [g.reshape(1, d).astype(jnp.float32), bt.reshape(1, d).astype(jnp.float32),
              w, b.reshape(1, N).astype(jnp.float32)]
    return _rowcall(functools.partial(_ln_linear_kernel, eps=eps), [x2d], consts,
                    N, out_dtype, 1, M)


def pl_attn_block(x, attn_p, ln_g, ln_b, *, n_head, valid, eps=1e-5):
    """x (B, S, d) -> x + out_proj(MHA(LN1(x))); key columns >= valid masked (padding)."""
    d = x.shape[-1]
    consts = [ln_g.reshape(1, d).astype(jnp.float32), ln_b.reshape(1, d).astype(jnp.float32),
              attn_p["in_w"], attn_p["in_b"].reshape(1, 3 * d).astype(jnp.float32),
              attn_p["out_w"], attn_p["out_b"].reshape(1, d).astype(jnp.float32)]
    kern = functools.partial(_attn_block_kernel, n_head=n_head, eps=eps, valid=valid)
    return _samplecall(kern, x, consts, _ACT)


def pl_msg_block(cls3, p, *, n_head, eps=1e-5):
    """cls3 (b, T, d) raw CLS tokens -> message tokens (b, T, d), whole path in one kernel."""
    d = cls3.shape[-1]
    consts = [p["msg_fc_w"], p["msg_fc_b"].reshape(1, d).astype(jnp.float32),
              p["msg_ln_g"].reshape(1, d).astype(jnp.float32),
              p["msg_ln_b"].reshape(1, d).astype(jnp.float32),
              p["msg_attn"]["in_w"], p["msg_attn"]["in_b"].reshape(1, 3 * d).astype(jnp.float32),
              p["msg_attn"]["out_w"], p["msg_attn"]["out_b"].reshape(1, d).astype(jnp.float32)]
    kern = functools.partial(_msg_block_kernel, n_head=n_head, eps=eps)
    return _samplecall(kern, cls3, consts, _ACT)


# ---------------------------- model glue (plain JAX, batch-first) ----------------------------

def cross_frame_block_forward(x, p, *, T, n_head, n_tokens):
    """CrossFramelAttentionBlock.forward on the persistent (BT, S, d) buffer.
    Rows 0..n_tokens-1 hold [CLS, patches]; row n_tokens is the message slot;
    rows beyond n_tokens are sublane padding (masked in attention, never read)."""
    BT, S, d = x.shape
    b = BT // T
    cls3 = x[:, 0, :].reshape(b, T, d)                          # raw CLS of each frame
    msg = pl_msg_block(cls3, p, n_head=n_head).reshape(BT, d)   # fused message path
    x = x.at[:, n_tokens, :].set(msg)                           # in-place msg slot (no concat)
    x = pl_attn_block(x, p["attn"], p["ln1_g"], p["ln1_b"],
                      n_head=n_head, valid=n_tokens + 1)        # fused LN1+MHA+proj+residual
    # MLP runs over all S rows; the msg/pad rows' results are never read (overwritten / discarded)
    x = pl_ln_mlp_res3(x, p["ln2_g"], p["ln2_b"],
                       p["mlp_w1"], p["mlp_b1"], p["mlp_w2"], p["mlp_b2"])
    return x


def cross_frame_transformer_forward(x, params, *, T, n_head, patch_size):
    """CrossFrameCommunicationTransformer.forward.  x: (B*T, 3, H, W) NCHW f32."""
    BT, C, H, W = x.shape
    g = H // patch_size
    d = params["conv_w"].shape[1]
    L = g * g + 1                        # CLS + patch tokens
    S = _round_up(L + 1, 8)              # + message slot, padded to a sublane multiple

    # patch-embedding conv (stride == kernel, no bias) == per-patch flatten + matmul
    # TODO(synk): fold the patch gather into the Pallas linear via an index_map over (g, g)
    # blocks to drop this one-time XLA transpose of the input pixels.
    patches = x.reshape(BT, C, g, patch_size, g, patch_size)
    patches = patches.transpose(0, 2, 4, 1, 3, 5).reshape(BT, g * g, C * patch_size * patch_size)
    feat = pl_patch_embed(patches.astype(_ACT), params["conv_w"])        # (BT, g*g, d)

    cls = jnp.broadcast_to(params["cls"].astype(_ACT)[None, None, :], (BT, 1, d))
    pad = jnp.zeros((BT, S - L, d), _ACT)
    pos = jnp.concatenate([params["pos"].astype(_ACT), jnp.zeros((S - L, d), _ACT)], axis=0)
    xs = jnp.concatenate([cls, feat, pad], axis=1) + pos[None]           # one-time build
    xs = pl_layernorm3(xs, params["ln_pre_g"], params["ln_pre_b"])

    for blk in params["blocks"]:
        xs = cross_frame_block_forward(xs, blk, T=T, n_head=n_head, n_tokens=L)

    # ln_post fused with the output projection (CLS token only)
    cls_x = pl_ln_linear(xs[:, 0, :], params["ln_post_g"], params["ln_post_b"],
                         params["proj"], out_dtype=jnp.float32)
    tokens = xs[:, 1:L, :].astype(jnp.float32)
    return cls_x, tokens


# ---------------------------- deterministic parameter init ----------------------------

def init_params(key, *, width, layers, output_dim, patch_size, input_resolution):
    d = width
    n_pos = (input_resolution // patch_size) ** 2 + 1
    k_iter = iter(jax.random.split(key, 1024))

    def nrm(shape, std=0.02, dtype=_ACT):
        return (std * jax.random.normal(next(k_iter), shape)).astype(dtype)

    scale = d ** -0.5
    params = {
        "conv_w": nrm((3 * patch_size * patch_size, d)),
        "cls": nrm((d,), std=scale, dtype=jnp.float32),
        "pos": nrm((n_pos, d), std=scale, dtype=jnp.float32),
        "ln_pre_g": jnp.ones((d,), jnp.float32), "ln_pre_b": jnp.zeros((d,), jnp.float32),
        "ln_post_g": jnp.ones((d,), jnp.float32), "ln_post_b": jnp.zeros((d,), jnp.float32),
        "proj": nrm((d, output_dim), std=scale),
        "blocks": [],
    }
    for _ in range(layers):
        params["blocks"].append({
            "msg_fc_w": nrm((d, d)), "msg_fc_b": jnp.zeros((d,), jnp.float32),
            "msg_ln_g": jnp.ones((d,), jnp.float32), "msg_ln_b": jnp.zeros((d,), jnp.float32),
            "msg_attn": {"in_w": nrm((d, 3 * d)), "in_b": jnp.zeros((3 * d,), jnp.float32),
                         "out_w": nrm((d, d)), "out_b": jnp.zeros((d,), jnp.float32)},
            "attn": {"in_w": nrm((d, 3 * d)), "in_b": jnp.zeros((3 * d,), jnp.float32),
                     "out_w": nrm((d, d)), "out_b": jnp.zeros((d,), jnp.float32)},
            "ln1_g": jnp.ones((d,), jnp.float32), "ln1_b": jnp.zeros((d,), jnp.float32),
            "ln2_g": jnp.ones((d,), jnp.float32), "ln2_b": jnp.zeros((d,), jnp.float32),
            "mlp_w1": nrm((d, 4 * d)), "mlp_b1": jnp.zeros((4 * d,), jnp.float32),
            "mlp_w2": nrm((4 * d, d)), "mlp_b2": jnp.zeros((d,), jnp.float32),
        })
    return params


# ---------------------------- main ----------------------------

if __name__ == "__main__":
    key = jax.random.PRNGKey(0)
    # small shapes that still exercise multi-step grids (attention grid = BT = 4, msg grid = 2)
    B, T = 2, 2
    input_resolution, patch_size = 32, 4
    width, layers, heads, output_dim = 64, 2, 4, 32

    k_param, k_x = jax.random.split(key)
    params = init_params(k_param, width=width, layers=layers,
                         output_dim=output_dim, patch_size=patch_size,
                         input_resolution=input_resolution)
    x = jax.random.normal(k_x, (B * T, 3, input_resolution, input_resolution), jnp.float32)

    fwd = jax.jit(functools.partial(cross_frame_transformer_forward,
                                    T=T, n_head=heads, patch_size=patch_size))
    cls_x, tokens = fwd(x, params)
    jax.block_until_ready((cls_x, tokens))

    assert cls_x.shape == (B * T, output_dim)
    assert tokens.shape == (B * T, (input_resolution // patch_size) ** 2, width)
    assert bool(jnp.all(jnp.isfinite(cls_x))) and bool(jnp.all(jnp.isfinite(tokens)))
    print("KERNEL_OK")
</pallas_src>

<mosaic_0001>
module attributes {stable_mosaic.version = 11 : i64} {
  func.func @_linear_kernel(%arg0: i32, %arg1: memref<256x48xbf16, #tpu.memory_space<vmem>>, %arg2: memref<48x64xbf16, #tpu.memory_space<vmem>>, %arg3: memref<1x64xf32, #tpu.memory_space<vmem>>, %arg4: memref<256x64xbf16, #tpu.memory_space<vmem>>) attributes {dimension_semantics = [#tpu.dimension_semantics<parallel>], iteration_bounds = array<i64: 1>, scalar_prefetch = 0 : i64, scratch_operands = 0 : i64, tpu.core_type = #tpu.core_type<tc>, window_params = [{transform_indices = @transform_0, window_bounds = array<i64: 256, 48>}, {pipeline_mode = #tpu.pipeline_mode<synchronous>, transform_indices = @transform_1, window_bounds = array<i64: 48, 64>}, {pipeline_mode = #tpu.pipeline_mode<synchronous>, transform_indices = @transform_2, window_bounds = array<i64: 1, 64>}, {transform_indices = @transform_3, window_bounds = array<i64: 256, 64>}]} {
    %c0 = arith.constant 0 : index
    %c0_0 = arith.constant 0 : index
    %0 = vector.load %arg1[%c0, %c0_0] : memref<256x48xbf16, #tpu.memory_space<vmem>>, vector<256x48xbf16>
    %c0_1 = arith.constant 0 : index
    %c0_2 = arith.constant 0 : index
    %1 = vector.load %arg2[%c0_1, %c0_2] : memref<48x64xbf16, #tpu.memory_space<vmem>>, vector<48x64xbf16>
    %cst = arith.constant dense<0.000000e+00> : vector<256x64xf32>
    %2 = tpu.matmul %0, %1, %cst {dimension_numbers = #tpu.dot_dimension_numbers<[1], [0], [0], [1], [0, 0, 1, 1], [], []>} : vector<256x48xbf16>, vector<48x64xbf16>, vector<256x64xf32> -> vector<256x64xf32>
    %c0_3 = arith.constant 0 : index
    %c0_4 = arith.constant 0 : index
    %3 = vector.load %arg3[%c0_3, %c0_4] : memref<1x64xf32, #tpu.memory_space<vmem>>, vector<1x64xf32>
    %4 = vector.broadcast %3 : vector<1x64xf32> to vector<256x64xf32>
    %5 = arith.addf %2, %4 : vector<256x64xf32>
    %6 = arith.truncf %5 : vector<256x64xf32> to vector<256x64xbf16>
    %c0_5 = arith.constant 0 : index
    %c0_6 = arith.constant 0 : index
    %7 = vector.load %arg4[%c0_5, %c0_6] : memref<256x64xbf16, #tpu.memory_space<vmem>>, vector<256x64xbf16>
    tpu.vector_store %arg4[%c0_5, %c0_6], %6 {strides = array<i32>} : memref<256x64xbf16, #tpu.memory_space<vmem>>, vector<256x64xbf16>,
    return
  }
  func.func @transform_0(%arg0: i32) -> (i32, i32) {
    %c0_i32 = arith.constant 0 : i32
    %c0_i32_0 = arith.constant 0 : i32
    return %arg0, %c0_i32 : i32, i32
  }
  func.func @transform_1(%arg0: i32) -> (i32, i32) {
    %c0_i32 = arith.constant 0 : i32
    %c0_i32_0 = arith.constant 0 : i32
    %c0_i32_1 = arith.constant 0 : i32
    return %c0_i32, %c0_i32_0 : i32, i32
  }
  func.func @transform_2(%arg0: i32) -> (i32, i32) {
    %c0_i32 = arith.constant 0 : i32
    %c0_i32_0 = arith.constant 0 : i32
    %c0_i32_1 = arith.constant 0 : i32
    return %c0_i32, %c0_i32_0 : i32, i32
  }
  func.func @transform_3(%arg0: i32) -> (i32, i32) {
    %c0_i32 = arith.constant 0 : i32
    %c0_i32_0 = arith.constant 0 : i32
    return %arg0, %c0_i32 : i32, i32
  }
}

module attributes {stable_mosaic.version = 11 : i64} {
  func.func @_layernorm_kernel(%arg0: i32, %arg1: memref<288x64xbf16, #tpu.memory_space<vmem>>, %arg2: memref<1x64xf32, #tpu.memory_space<vmem>>, %arg3: memref<1x64xf32, #tpu.memory_space<vmem>>, %arg4: memref<288x64xbf16, #tpu.memory_space<vmem>>) attributes {dimension_semantics = [#tpu.dimension_semantics<parallel>], iteration_bounds = array<i64: 1>, scalar_prefetch = 0 : i64, scratch_operands = 0 : i64, tpu.core_type = #tpu.core_type<tc>, window_params = [{transform_indices = @transform_0, window_bounds = array<i64: 288, 64>}, {pipeline_mode = #tpu.pipeline_mode<synchronous>, transform_indices = @transform_1, window_bounds = array<i64: 1, 64>}, {pipeline_mode = #tpu.pipeline_mode<synchronous>, transform_indices = @transform_2, window_bounds = array<i64: 1, 64>}, {transform_indices = @transform_3, window_bounds = array<i64: 288, 64>}]} {
    %c0 = arith.constant 0 : index
    %c0_0 = arith.constant 0 : index
    %0 = vector.load %arg1[%c0, %c0_0] : memref<288x64xbf16, #tpu.memory_space<vmem>>, vector<288x64xbf16>
    %1 = arith.extf %0 : vector<288x64xbf16> to vector<288x64xf32>
    %c0_1 = arith.constant 0 : index
    %c0_2 = arith.constant 0 : index
    %2 = vector.load %arg2[%c0_1, %c0_2] : memref<1x64xf32, #tpu.memory_space<vmem>>, vector<1x64xf32>
    %c0_3 = arith.constant 0 : index
    %c0_4 = arith.constant 0 : index
    %3 = vector.load %arg3[%c0_3, %c0_4] : memref<1x64xf32, #tpu.memory_space<vmem>>, vector<1x64xf32>
    %cst = arith.constant dense<0.000000e+00> : vector<288xf32>
    %4 = vector.multi_reduction <add>, %1, %cst [1] : vector<288x64xf32> to vector<288xf32>
    %5 = vector.shape_cast %4 : vector<288xf32> to vector<288x1xf32>
    %cst_5 = arith.constant 6.400000e+01 : f32
    %6 = vector.broadcast %cst_5 : f32 to vector<288x1xf32>
    %7 = arith.divf %5, %6 : vector<288x1xf32>
    %8 = vector.broadcast %7 : vector<288x1xf32> to vector<288x64xf32>
    %9 = arith.subf %1, %8 : vector<288x64xf32>
    %10 = arith.mulf %9, %9 : vector<288x64xf32>
    %cst_6 = arith.constant dense<0.000000e+00> : vector<288xf32>
    %11 = vector.multi_reduction <add>, %10, %cst_6 [1] : vector<288x64xf32> to vector<288xf32>
    %12 = vector.shape_cast %11 : vector<288xf32> to vector<288x1xf32>
    %cst_7 = arith.constant 6.400000e+01 : f32
    %13 = vector.broadcast %cst_7 : f32 to vector<288x1xf32>
    %14 = arith.divf %12, %13 : vector<288x1xf32>
    %15 = vector.broadcast %7 : vector<288x1xf32> to vector<288x64xf32>
    %16 = arith.subf %1, %15 : vector<288x64xf32>
    %cst_8 = arith.constant 9.99999974E-6 : f32
    %17 = vector.broadcast %cst_8 : f32 to vector<288x1xf32>
    %18 = arith.addf %14, %17 : vector<288x1xf32>
    %19 = math.rsqrt %18 : vector<288x1xf32>
    %20 = vector.broadcast %19 : vector<288x1xf32> to vector<288x64xf32>
    %21 = arith.mulf %16, %20 : vector<288x64xf32>
    %22 = vector.broadcast %2 : vector<1x64xf32> to vector<288x64xf32>
    %23 = arith.mulf %21, %22 : vector<288x64xf32>
    %24 = vector.broadcast %3 : vector<1x64xf32> to vector<288x64xf32>
    %25 = arith.addf %23, %24 : vector<288x64xf32>
    %26 = arith.truncf %25 : vector<288x64xf32> to vector<288x64xbf16>
    %c0_9 = arith.constant 0 : index
    %c0_10 = arith.constant 0 : index
    %27 = vector.load %arg4[%c0_9, %c0_10] : memref<288x64xbf16, #tpu.memory_space<vmem>>, vector<288x64xbf16>
    tpu.vector_store %arg4[%c0_9, %c0_10], %26 {strides = array<i32>} : memref<288x64xbf16, #tpu.memory_space<vmem>>, vector<288x64xbf16>,
    return
  }
  func.func @transform_0(%arg0: i32) -> (i32, i32) {
    %c0_i32 = arith.constant 0 : i32
    %c0_i32_0 = arith.constant 0 : i32
    return %arg0, %c0_i32 : i32, i32
  }
  func.func @transform_1(%arg0: i32) -> (i32, i32) {
    %c0_i32 = arith.constant 0 : i32
    %c0_i32_0 = arith.constant 0 : i32
    %c0_i32_1 = arith.constant 0 : i32
    return %c0_i32, %c0_i32_0 : i32, i32
  }
  func.func @transform_2(%arg0: i32) -> (i32, i32) {
    %c0_i32 = arith.constant 0 : i32
    %c0_i32_0 = arith.constant 0 : i32
    %c0_i32_1 = arith.constant 0 : i32
    return %c0_i32, %c0_i32_0 : i32, i32
  }
  func.func @transform_3(%arg0: i32) -> (i32, i32) {
    %c0_i32 = arith.constant 0 : i32
    %c0_i32_0 = arith.constant 0 : i32
    return %arg0, %c0_i32 : i32, i32
  }
}

module attributes {stable_mosaic.version = 11 : i64} {
  func.func @_msg_block_kernel(%arg0: i32, %arg1: memref<1x2x64xbf16, #tpu.memory_space<vmem>>, %arg2: memref<64x64xbf16, #tpu.memory_space<vmem>>, %arg3: memref<1x64xf32, #tpu.memory_space<vmem>>, %arg4: memref<1x64xf32, #tpu.memory_space<vmem>>, %arg5: memref<1x64xf32, #tpu.memory_space<vmem>>, %arg6: memref<64x192xbf16, #tpu.memory_space<vmem>>, %arg7: memref<1x192xf32, #tpu.memory_space<vmem>>, %arg8: memref<64x64xbf16, #tpu.memory_space<vmem>>, %arg9: memref<1x64xf32, #tpu.memory_space<vmem>>, %arg10: memref<1x2x64xbf16, #tpu.memory_space<vmem>>) attributes {dimension_semantics = [#tpu.dimension_semantics<parallel>], iteration_bounds = array<i64: 2>, scalar_prefetch = 0 : i64, scratch_operands = 0 : i64, tpu.core_type = #tpu.core_type<tc>, window_params = [{transform_indices = @transform_0, window_bounds = array<i64: 1, 2, 64>}, {pipeline_mode = #tpu.pipeline_mode<synchronous>, transform_indices = @transform_1, window_bounds = array<i64: 64, 64>}, {pipeline_mode = #tpu.pipeline_mode<synchronous>, transform_indices = @transform_2, window_bounds = array<i64: 1, 64>}, {pipeline_mode = #tpu.pipeline_mode<synchronous>, transform_indices = @transform_3, window_bounds = array<i64: 1, 64>}, {pipeline_mode = #tpu.pipeline_mode<synchronous>, transform_indices = @transform_4, window_bounds = array<i64: 1, 64>}, {pipeline_mode = #tpu.pipeline_mode<synchronous>, transform_indices = @transform_5, window_bounds = array<i64: 64, 192>}, {pipeline_mode = #tpu.pipeline_mode<synchronous>, transform_indices = @transform_6, window_bounds = array<i64: 1, 192>}, {pipeline_mode = #tpu.pipeline_mode<synchronous>, transform_indices = @transform_7, window_bounds = array<i64: 64, 64>}, {pipeline_mode = #tpu.pipeline_mode<synchronous>, transform_indices = @transform_8, window_bounds = array<i64: 1, 64>}, {transform_indices = @transform_9, window_bounds = array<i64: 1, 2, 64>}]} {
    %c0 = arith.constant 0 : index
    %c0_0 = arith.constant 0 : index
    %c0_1 = arith.constant 0 : index
    %0 = vector.load %arg1[%c0, %c0_0, %c0_1] : memref<1x2x64xbf16, #tpu.memory_space<vmem>>, vector<1x2x64xbf16>
    %1 = vector.shape_cast %0 : vector<1x2x64xbf16> to vector<2x64xbf16>
    %c0_2 = arith.constant 0 : index
    %c0_3 = arith.constant 0 : index
    %2 = vector.load %arg2[%c0_2, %c0_3] : memref<64x64xbf16, #tpu.memory_space<vmem>>, vector<64x64xbf16>
    %cst = arith.constant dense<0.000000e+00> : vector<2x64xf32>
    %3 = tpu.matmul %1, %2, %cst {dimension_numbers = #tpu.dot_dimension_numbers<[1], [0], [0], [1], [0, 0, 1, 1], [], []>} : vector<2x64xbf16>, vector<64x64xbf16>, vector<2x64xf32> -> vector<2x64xf32>
    %c0_4 = arith.constant 0 : index
    %c0_5 = arith.constant 0 : index
    %4 = vector.load %arg3[%c0_4, %c0_5] : memref<1x64xf32, #tpu.memory_space<vmem>>, vector<1x64xf32>
    %5 = vector.broadcast %4 : vector<1x64xf32> to vector<2x64xf32>
    %6 = arith.addf %3, %5 : vector<2x64xf32>
    %c0_6 = arith.constant 0 : index
    %c0_7 = arith.constant 0 : index
    %7 = vector.load %arg4[%c0_6, %c0_7] : memref<1x64xf32, #tpu.memory_space<vmem>>, vector<1x64xf32>
    %c0_8 = arith.constant 0 : index
    %c0_9 = arith.constant 0 : index
    %8 = vector.load %arg5[%c0_8, %c0_9] : memref<1x64xf32, #tpu.memory_space<vmem>>, vector<1x64xf32>
    %cst_10 = arith.constant dense<0.000000e+00> : vector<2xf32>
    %9 = vector.multi_reduction <add>, %6, %cst_10 [1] : vector<2x64xf32> to vector<2xf32>
    %10 = vector.shape_cast %9 : vector<2xf32> to vector<2x1xf32>
    %cst_11 = arith.constant 6.400000e+01 : f32
    %11 = vector.broadcast %cst_11 : f32 to vector<2x1xf32>
    %12 = arith.divf %10, %11 : vector<2x1xf32>
    %13 = vector.broadcast %12 : vector<2x1xf32> to vector<2x64xf32>
    %14 = arith.subf %6, %13 : vector<2x64xf32>
    %15 = arith.mulf %14, %14 : vector<2x64xf32>
    %cst_12 = arith.constant dense<0.000000e+00> : vector<2xf32>
    %16 = vector.multi_reduction <add>, %15, %cst_12 [1] : vector<2x64xf32> to vector<2xf32>
    %17 = vector.shape_cast %16 : vector<2xf32> to vector<2x1xf32>
    %cst_13 = arith.constant 6.400000e+01 : f32
    %18 = vector.broadcast %cst_13 : f32 to vector<2x1xf32>
    %19 = arith.divf %17, %18 : vector<2x1xf32>
    %20 = vector.broadcast %12 : vector<2x1xf32> to vector<2x64xf32>
    %21 = arith.subf %6, %20 : vector<2x64xf32>
    %cst_14 = arith.constant 9.99999974E-6 : f32
    %22 = vector.broadcast %cst_14 : f32 to vector<2x1xf32>
    %23 = arith.addf %19, %22 : vector<2x1xf32>
    %24 = math.rsqrt %23 : vector<2x1xf32>
    %25 = vector.broadcast %24 : vector<2x1xf32> to vector<2x64xf32>
    %26 = arith.mulf %21, %25 : vector<2x64xf32>
    %27 = vector.broadcast %7 : vector<1x64xf32> to vector<2x64xf32>
    %28 = arith.mulf %26, %27 : vector<2x64xf32>
    %29 = vector.broadcast %8 : vector<1x64xf32> to vector<2x64xf32>
    %30 = arith.addf %28, %29 : vector<2x64xf32>
    %31 = arith.truncf %30 : vector<2x64xf32> to vector<2x64xbf16>
    %c0_15 = arith.constant 0 : index
    %c0_16 = arith.constant 0 : index
    %32 = vector.load %arg6[%c0_15, %c0_16] : memref<64x192xbf16, #tpu.memory_space<vmem>>, vector<64x192xbf16>
    %cst_17 = arith.constant dense<0.000000e+00> : vector<2x192xf32>
    %33 = tpu.matmul %31, %32, %cst_17 {dimension_numbers = #tpu.dot_dimension_numbers<[1], [0], [0], [1], [0, 0, 1, 1], [], []>} : vector<2x64xbf16>, vector<64x192xbf16>, vector<2x192xf32> -> vector<2x192xf32>
    %c0_18 = arith.constant 0 : index
    %c0_19 = arith.constant 0 : index
    %34 = vector.load %arg7[%c0_18, %c0_19] : memref<1x192xf32, #tpu.memory_space<vmem>>, vector<1x192xf32>
    %35 = vector.broadcast %34 : vector<1x192xf32> to vector<2x192xf32>
    %36 = arith.addf %33, %35 : vector<2x192xf32>
    %37 = arith.truncf %36 : vector<2x192xf32> to vector<2x192xbf16>
    %c0_20 = arith.constant 0 : index
    %c0_21 = arith.constant 0 : index
    %38 = vector.load %arg8[%c0_20, %c0_21] : memref<64x64xbf16, #tpu.memory_space<vmem>>, vector<64x64xbf16>
    %cst_22 = arith.constant 0.000000e+00 : f32
    %39 = vector.broadcast %cst_22 : f32 to vector<2x64xf32>
    %40 = vector.extract_strided_slice %37 {offsets = [0, 0], sizes = [2, 16], strides = [1, 1]} : vector<2x192xbf16> to vector<2x16xbf16>
    %41 = vector.extract_strided_slice %37 {offsets = [0, 64], sizes = [2, 16], strides = [1, 1]} : vector<2x192xbf16> to vector<2x16xbf16>
    %42 = vector.extract_strided_slice %37 {offsets = [0, 128], sizes = [2, 16], strides = [1, 1]} : vector<2x192xbf16> to vector<2x16xbf16>
    %cst_23 = arith.constant dense<0.000000e+00> : vector<2x2xf32>
    %43 = tpu.matmul %40, %41, %cst_23 {dimension_numbers = #tpu.dot_dimension_numbers<[1], [1], [0], [0], [0, 0, 1, 0], [], []>} : vector<2x16xbf16>, vector<2x16xbf16>, vector<2x2xf32> -> vector<2x2xf32>
    %cst_24 = arith.constant 2.500000e-01 : f32
    %44 = vector.broadcast %cst_24 : f32 to vector<2x2xf32>
    %45 = arith.mulf %43, %44 : vector<2x2xf32>
    %cst_25 = arith.constant dense<0xFF800000> : vector<2xf32>
    %46 = vector.multi_reduction <maximumf>, %45, %cst_25 [1] : vector<2x2xf32> to vector<2xf32>
    %47 = vector.shape_cast %46 : vector<2xf32> to vector<2x1xf32>
    %48 = vector.broadcast %47 : vector<2x1xf32> to vector<2x2xf32>
    %49 = arith.subf %45, %48 : vector<2x2xf32>
    %50 = math.exp %49 : vector<2x2xf32>
    %cst_26 = arith.constant dense<0.000000e+00> : vector<2xf32>
    %51 = vector.multi_reduction <add>, %50, %cst_26 [1] : vector<2x2xf32> to vector<2xf32>
    %52 = vector.shape_cast %51 : vector<2xf32> to vector<2x1xf32>
    %53 = tpu.reciprocal %52 {approx = true} : vector<2x1xf32> -> vector<2x1xf32>
    %54 = vector.broadcast %53 : vector<2x1xf32> to vector<2x2xf32>
    %55 = arith.mulf %50, %54 : vector<2x2xf32>
    %56 = arith.truncf %55 : vector<2x2xf32> to vector<2x2xbf16>
    %cst_27 = arith.constant dense<0.000000e+00> : vector<2x16xf32>
    %57 = tpu.matmul %56, %42, %cst_27 {dimension_numbers = #tpu.dot_dimension_numbers<[1], [0], [0], [1], [0, 0, 1, 1], [], []>} : vector<2x2xbf16>, vector<2x16xbf16>, vector<2x16xf32> -> vector<2x16xf32>
    %58 = arith.truncf %57 : vector<2x16xf32> to vector<2x16xbf16>
    %59 = vector.extract_strided_slice %38 {offsets = [0, 0], sizes = [16, 64], strides = [1, 1]} : vector<64x64xbf16> to vector<16x64xbf16>
    %cst_28 = arith.constant dense<0.000000e+00> : vector<2x64xf32>
    %60 = tpu.matmul %58, %59, %cst_28 {dimension_numbers = #tpu.dot_dimension_numbers<[1], [0], [0], [1], [0, 0, 1, 1], [], []>} : vector<2x16xbf16>, vector<16x64xbf16>, vector<2x64xf32> -> vector<2x64xf32>
    %61 = arith.addf %39, %60 : vector<2x64xf32>
    %62 = vector.extract_strided_slice %37 {offsets = [0, 16], sizes = [2, 16], strides = [1, 1]} : vector<2x192xbf16> to vector<2x16xbf16>
    %63 = vector.extract_strided_slice %37 {offsets = [0, 80], sizes = [2, 16], strides = [1, 1]} : vector<2x192xbf16> to vector<2x16xbf16>
    %64 = vector.extract_strided_slice %37 {offsets = [0, 144], sizes = [2, 16], strides = [1, 1]} : vector<2x192xbf16> to vector<2x16xbf16>
    %cst_29 = arith.constant dense<0.000000e+00> : vector<2x2xf32>
    %65 = tpu.matmul %62, %63, %cst_29 {dimension_numbers = #tpu.dot_dimension_numbers<[1], [1], [0], [0], [0, 0, 1, 0], [], []>} : vector<2x16xbf16>, vector<2x16xbf16>, vector<2x2xf32> -> vector<2x2xf32>
    %cst_30 = arith.constant 2.500000e-01 : f32
    %66 = vector.broadcast %cst_30 : f32 to vector<2x2xf32>
    %67 = arith.mulf %65, %66 : vector<2x2xf32>
    %cst_31 = arith.constant dense<0xFF800000> : vector<2xf32>
    %68 = vector.multi_reduction <maximumf>, %67, %cst_31 [1] : vector<2x2xf32> to vector<2xf32>
    %69 = vector.shape_cast %68 : vector<2xf32> to vector<2x1xf32>
    %70 = vector.broadcast %69 : vector<2x1xf32> to vector<2x2xf32>
    %71 = arith.subf %67, %70 : vector<2x2xf32>
    %72 = math.exp %71 : vector<2x2xf32>
    %cst_32 = arith.constant dense<0.000000e+00> : vector<2xf32>
    %73 = vector.multi_reduction <add>, %72, %cst_32 [1] : vector<2x2xf32> to vector<2xf32>
    %74 = vector.shape_cast %73 : vector<2xf32> to vector<2x1xf32>
    %75 = tpu.reciprocal %74 {approx = true} : vector<2x1xf32> -> vector<2x1xf32>
    %76 = vector.broadcast %75 : vector<2x1xf32> to vector<2x2xf32>
    %77 = arith.mulf %72, %76 : vector<2x2xf32>
    %78 = arith.truncf %77 : vector<2x2xf32> to vector<2x2xbf16>
    %cst_33 = arith.constant dense<0.000000e+00> : vector<2x16xf32>
    %79 = tpu.matmul %78, %64, %cst_33 {dimension_numbers = #tpu.dot_dimension_numbers<[1], [0], [0], [1], [0, 0, 1, 1], [], []>} : vector<2x2xbf16>, vector<2x16xbf16>, vector<2x16xf32> -> vector<2x16xf32>
    %80 = arith.truncf %79 : vector<2x16xf32> to vector<2x16xbf16>
    %81 = vector.extract_strided_slice %38 {offsets = [16, 0], sizes = [16, 64], strides = [1, 1]} : vector<64x64xbf16> to vector<16x64xbf16>
    %cst_34 = arith.constant dense<0.000000e+00> : vector<2x64xf32>
    %82 = tpu.matmul %80, %81, %cst_34 {dimension_numbers = #tpu.dot_dimension_numbers<[1], [0], [0], [1], [0, 0, 1, 1], [], []>} : vector<2x16xbf16>, vector<16x64xbf16>, vector<2x64xf32> -> vector<2x64xf32>
    %83 = arith.addf %61, %82 : vector<2x64xf32>
    %84 = vector.extract_strided_slice %37 {offsets = [0, 32], sizes = [2, 16], strides = [1, 1]} : vector<2x192xbf16> to vector<2x16xbf16>
    %85 = vector.extract_strided_slice %37 {offsets = [0, 96], sizes = [2, 16], strides = [1, 1]} : vector<2x192xbf16> to vector<2x16xbf16>
    %86 = vector.extract_strided_slice %37 {offsets = [0, 160], sizes = [2, 16], strides = [1, 1]} : vector<2x192xbf16> to vector<2x16xbf16>
    %cst_35 = arith.constant dense<0.000000e+00> : vector<2x2xf32>
    %87 = tpu.matmul %84, %85, %cst_35 {dimension_numbers = #tpu.dot_dimension_numbers<[1], [1], [0], [0], [0, 0, 1, 0], [], []>} : vector<2x16xbf16>, vector<2x16xbf16>, vector<2x2xf32> -> vector<2x2xf32>
    %cst_36 = arith.constant 2.500000e-01 : f32
    %88 = vector.broadcast %cst_36 : f32 to vector<2x2xf32>
    %89 = arith.mulf %87, %88 : vector<2x2xf32>
    %cst_37 = arith.constant dense<0xFF800000> : vector<2xf32>
    %90 = vector.multi_reduction <maximumf>, %89, %cst_37 [1] : vector<2x2xf32> to vector<2xf32>
    %91 = vector.shape_cast %90 : vector<2xf32> to vector<2x1xf32>
    %92 = vector.broadcast %91 : vector<2x1xf32> to vector<2x2xf32>
    %93 = arith.subf %89, %92 : vector<2x2xf32>
    %94 = math.exp %93 : vector<2x2xf32>
    %cst_38 = arith.constant dense<0.000000e+00> : vector<2xf32>
    %95 = vector.multi_reduction <add>, %94, %cst_38 [1] : vector<2x2xf32> to vector<2xf32>
    %96 = vector.shape_cast %95 : vector<2xf32> to vector<2x1xf32>
    %97 = tpu.reciprocal %96 {approx = true} : vector<2x1xf32> -> vector<2x1xf32>
    %98 = vector.broadcast %97 : vector<2x1xf32> to vector<2x2xf32>
    %99 = arith.mulf %94, %98 : vector<2x2xf32>
    %100 = arith.truncf %99 : vector<2x2xf32> to vector<2x2xbf16>
    %cst_39 = arith.constant dense<0.000000e+00> : vector<2x16xf32>
    %101 = tpu.matmul %100, %86, %cst_39 {dimension_numbers = #tpu.dot_dimension_numbers<[1], [0], [0], [1], [0, 0, 1, 1], [], []>} : vector<2x2xbf16>, vector<2x16xbf16>, vector<2x16xf32> -> vector<2x16xf32>
    %102 = arith.truncf %101 : vector<2x16xf32> to vector<2x16xbf16>
    %103 = vector.extract_strided_slice %38 {offsets = [32, 0], sizes = [16, 64], strides = [1, 1]} : vector<64x64xbf16> to vector<16x64xbf16>
    %cst_40 = arith.constant dense<0.000000e+00> : vector<2x64xf32>
    %104 = tpu.matmul %102, %103, %cst_40 {dimension_numbers = #tpu.dot_dimension_numbers<[1], [0], [0], [1], [0, 0, 1, 1], [], []>} : vector<2x16xbf16>, vector<16x64xbf16>, vector<2x64xf32> -> vector<2x64xf32>
    %105 = arith.addf %83, %104 : vector<2x64xf32>
    %106 = vector.extract_strided_slice %37 {offsets = [0, 48], sizes = [2, 16], strides = [1, 1]} : vector<2x192xbf16> to vector<2x16xbf16>
    %107 = vector.extract_strided_slice %37 {offsets = [0, 112], sizes = [2, 16], strides = [1, 1]} : vector<2x192xbf16> to vector<2x16xbf16>
    %108 = vector.extract_strided_slice %37 {offsets = [0, 176], sizes = [2, 16], strides = [1, 1]} : vector<2x192xbf16> to vector<2x16xbf16>
    %cst_41 = arith.constant dense<0.000000e+00> : vector<2x2xf32>
    %109 = tpu.matmul %106, %107, %cst_41 {dimension_numbers = #tpu.dot_dimension_numbers<[1], [1], [0], [0], [0, 0, 1, 0], [], []>} : vector<2x16xbf16>, vector<2x16xbf16>, vector<2x2xf32> -> vector<2x2xf32>
    %cst_42 = arith.constant 2.500000e-01 : f32
    %110 = vector.broadcast %cst_42 : f32 to vector<2x2xf32>
    %111 = arith.mulf %109, %110 : vector<2x2xf32>
    %cst_43 = arith.constant dense<0xFF800000> : vector<2xf32>
    %112 = vector.multi_reduction <maximumf>, %111, %cst_43 [1] : vector<2x2xf32> to vector<2xf32>
    %113 = vector.shape_cast %112 : vector<2xf32> to vector<2x1xf32>
    %114 = vector.broadcast %113 : vector<2x1xf32> to vector<2x2xf32>
    %115 = arith.subf %111, %114 : vector<2x2xf32>
    %116 = math.exp %115 : vector<2x2xf32>
    %cst_44 = arith.constant dense<0.000000e+00> : vector<2xf32>
    %117 = vector.multi_reduction <add>, %116, %cst_44 [1] : vector<2x2xf32> to vector<2xf32>
    %118 = vector.shape_cast %117 : vector<2xf32> to vector<2x1xf32>
    %119 = tpu.reciprocal %118 {approx = true} : vector<2x1xf32> -> vector<2x1xf32>
    %120 = vector.broadcast %119 : vector<2x1xf32> to vector<2x2xf32>
    %121 = arith.mulf %116, %120 : vector<2x2xf32>
    %122 = arith.truncf %121 : vector<2x2xf32> to vector<2x2xbf16>
    %cst_45 = arith.constant dense<0.000000e+00> : vector<2x16xf32>
    %123 = tpu.matmul %122, %108, %cst_45 {dimension_numbers = #tpu.dot_dimension_numbers<[1], [0], [0], [1], [0, 0, 1, 1], [], []>} : vector<2x2xbf16>, vector<2x16xbf16>, vector<2x16xf32> -> vector<2x16xf32>
    %124 = arith.truncf %123 : vector<2x16xf32> to vector<2x16xbf16>
    %125 = vector.extract_strided_slice %38 {offsets = [48, 0], sizes = [16, 64], strides = [1, 1]} : vector<64x64xbf16> to vector<16x64xbf16>
    %cst_46 = arith.constant dense<0.000000e+00> : vector<2x64xf32>
    %126 = tpu.matmul %124, %125, %cst_46 {dimension_numbers = #tpu.dot_dimension_numbers<[1], [0], [0], [1], [0, 0, 1, 1], [], []>} : vector<2x16xbf16>, vector<16x64xbf16>, vector<2x64xf32> -> vector<2x64xf32>
    %127 = arith.addf %105, %126 : vector<2x64xf32>
    %c0_47 = arith.constant 0 : index
    %c0_48 = arith.constant 0 : index
    %128 = vector.load %arg9[%c0_47, %c0_48] : memref<1x64xf32, #tpu.memory_space<vmem>>, vector<1x64xf32>
    %129 = vector.broadcast %128 : vector<1x64xf32> to vector<2x64xf32>
    %130 = arith.addf %127, %129 : vector<2x64xf32>
    %131 = arith.addf %6, %130 : vector<2x64xf32>
    %132 = arith.truncf %131 : vector<2x64xf32> to vector<2x64xbf16>
    %c0_49 = arith.constant 0 : index
    %c0_50 = arith.constant 0 : index
    %c0_51 = arith.constant 0 : index
    %133 = vector.load %arg10[%c0_49, %c0_50, %c0_51] : memref<1x2x64xbf16, #tpu.memory_space<vmem>>, vector<1x2x64xbf16>
    %134 = vector.shape_cast %133 : vector<1x2x64xbf16> to vector<2x64xbf16>
    %135 = vector.shape_cast %132 : vector<2x64xbf16> to vector<1x2x64xbf16>
    tpu.vector_store %arg10[%c0_49, %c0_50, %c0_51], %135 {strides = array<i32>} : memref<1x2x64xbf16, #tpu.memory_space<vmem>>, vector<1x2x64xbf16>,
    return
  }
  func.func @transform_0(%arg0: i32) -> (i32, i32, i32) {
    %c0_i32 = arith.constant 0 : i32
    %c0_i32_0 = arith.constant 0 : i32
    %c0_i32_1 = arith.constant 0 : i32
    return %arg0, %c0_i32, %c0_i32_0 : i32, i32, i32
  }
  func.func @transform_1(%arg0: i32) -> (i32, i32) {
    %c0_i32 = arith.constant 0 : i32
    %c0_i32_0 = arith.constant 0 : i32
    %c0_i32_1 = arith.constant 0 : i32
    return %c0_i32, %c0_i32_0 : i32, i32
  }
  func.func @transform_2(%arg0: i32) -> (i32, i32) {
    %c0_i32 = arith.constant 0 : i32
    %c0_i32_0 = arith.constant 0 : i32
    %c0_i32_1 = arith.constant 0 : i32
    return %c0_i32, %c0_i32_0 : i32, i32
  }
  func.func @transform_3(%arg0: i32) -> (i32, i32) {
    %c0_i32 = arith.constant 0 : i32
    %c0_i32_0 = arith.constant 0 : i32
    %c0_i32_1 = arith.constant 0 : i32
    return %c0_i32, %c0_i32_0 : i32, i32
  }
  func.func @transform_4(%arg0: i32) -> (i32, i32) {
    %c0_i32 = arith.constant 0 : i32
    %c0_i32_0 = arith.constant 0 : i32
    %c0_i32_1 = arith.constant 0 : i32
    return %c0_i32, %c0_i32_0 : i32, i32
  }
  func.func @transform_5(%arg0: i32) -> (i32, i32) {
    %c0_i32 = arith.constant 0 : i32
    %c0_i32_0 = arith.constant 0 : i32
    %c0_i32_1 = arith.constant 0 : i32
    return %c0_i32, %c0_i32_0 : i32, i32
  }
  func.func @transform_6(%arg0: i32) -> (i32, i32) {
    %c0_i32 = arith.constant 0 : i32
    %c0_i32_0 = arith.constant 0 : i32
    %c0_i32_1 = arith.constant 0 : i32
    return %c0_i32, %c0_i32_0 : i32, i32
  }
  func.func @transform_7(%arg0: i32) -> (i32, i32) {
    %c0_i32 = arith.constant 0 : i32
    %c0_i32_0 = arith.constant 0 : i32
    %c0_i32_1 = arith.constant 0 : i32
    return %c0_i32, %c0_i32_0 : i32, i32
  }
  func.func @transform_8(%arg0: i32) -> (i32, i32) {
    %c0_i32 = arith.constant 0 : i32
    %c0_i32_0 = arith.constant 0 : i32
    %c0_i32_1 = arith.constant 0 : i32
    return %c0_i32, %c0_i32_0 : i32, i32
  }
  func.func @transform_9(%arg0: i32) -> (i32, i32, i32) {
    %c0_i32 = arith.constant 0 : i32
    %c0_i32_0 = arith.constant 0 : i32
    %c0_i32_1 = arith.constant 0 : i32
    return %arg0, %c0_i32, %c0_i32_0 : i32, i32, i32
  }
}

module attributes {stable_mosaic.version = 11 : i64} {
  func.func @_attn_block_kernel(%arg0: i32, %arg1: memref<1x72x64xbf16, #tpu.memory_space<vmem>>, %arg2: memref<1x64xf32, #tpu.memory_space<vmem>>, %arg3: memref<1x64xf32, #tpu.memory_space<vmem>>, %arg4: memref<64x192xbf16, #tpu.memory_space<vmem>>, %arg5: memref<1x192xf32, #tpu.memory_space<vmem>>, %arg6: memref<64x64xbf16, #tpu.memory_space<vmem>>, %arg7: memref<1x64xf32, #tpu.memory_space<vmem>>, %arg8: memref<1x72x64xbf16, #tpu.memory_space<vmem>>) attributes {dimension_semantics = [#tpu.dimension_semantics<parallel>], iteration_bounds = array<i64: 4>, scalar_prefetch = 0 : i64, scratch_operands = 0 : i64, tpu.core_type = #tpu.core_type<tc>, window_params = [{transform_indices = @transform_0, window_bounds = array<i64: 1, 72, 64>}, {pipeline_mode = #tpu.pipeline_mode<synchronous>, transform_indices = @transform_1, window_bounds = array<i64: 1, 64>}, {pipeline_mode = #tpu.pipeline_mode<synchronous>, transform_indices = @transform_2, window_bounds = array<i64: 1, 64>}, {pipeline_mode = #tpu.pipeline_mode<synchronous>, transform_indices = @transform_3, window_bounds = array<i64: 64, 192>}, {pipeline_mode = #tpu.pipeline_mode<synchronous>, transform_indices = @transform_4, window_bounds = array<i64: 1, 192>}, {pipeline_mode = #tpu.pipeline_mode<synchronous>, transform_indices = @transform_5, window_bounds = array<i64: 64, 64>}, {pipeline_mode = #tpu.pipeline_mode<synchronous>, transform_indices = @transform_6, window_bounds = array<i64: 1, 64>}, {transform_indices = @transform_7, window_bounds = array<i64: 1, 72, 64>}]} {
    %c0 = arith.constant 0 : index
    %c0_0 = arith.constant 0 : index
    %c0_1 = arith.constant 0 : index
    %0 = vector.load %arg1[%c0, %c0_0, %c0_1] : memref<1x72x64xbf16, #tpu.memory_space<vmem>>, vector<1x72x64xbf16>
    %1 = vector.shape_cast %0 : vector<1x72x64xbf16> to vector<72x64xbf16>
    %2 = arith.extf %1 : vector<72x64xbf16> to vector<72x64xf32>
    %c0_2 = arith.constant 0 : index
    %c0_3 = arith.constant 0 : index
    %3 = vector.load %arg2[%c0_2, %c0_3] : memref<1x64xf32, #tpu.memory_space<vmem>>, vector<1x64xf32>
    %c0_4 = arith.constant 0 : index
    %c0_5 = arith.constant 0 : index
    %4 = vector.load %arg3[%c0_4, %c0_5] : memref<1x64xf32, #tpu.memory_space<vmem>>, vector<1x64xf32>
    %cst = arith.constant dense<0.000000e+00> : vector<72xf32>
    %5 = vector.multi_reduction <add>, %2, %cst [1] : vector<72x64xf32> to vector<72xf32>
    %6 = vector.shape_cast %5 : vector<72xf32> to vector<72x1xf32>
    %cst_6 = arith.constant 6.400000e+01 : f32
    %7 = vector.broadcast %cst_6 : f32 to vector<72x1xf32>
    %8 = arith.divf %6, %7 : vector<72x1xf32>
    %9 = vector.broadcast %8 : vector<72x1xf32> to vector<72x64xf32>
    %10 = arith.subf %2, %9 : vector<72x64xf32>
    %11 = arith.mulf %10, %10 : vector<72x64xf32>
    %cst_7 = arith.constant dense<0.000000e+00> : vector<72xf32>
    %12 = vector.multi_reduction <add>, %11, %cst_7 [1] : vector<72x64xf32> to vector<72xf32>
    %13 = vector.shape_cast %12 : vector<72xf32> to vector<72x1xf32>
    %cst_8 = arith.constant 6.400000e+01 : f32
    %14 = vector.broadcast %cst_8 : f32 to vector<72x1xf32>
    %15 = arith.divf %13, %14 : vector<72x1xf32>
    %16 = vector.broadcast %8 : vector<72x1xf32> to vector<72x64xf32>
    %17 = arith.subf %2, %16 : vector<72x64xf32>
    %cst_9 = arith.constant 9.99999974E-6 : f32
    %18 = vector.broadcast %cst_9 : f32 to vector<72x1xf32>
    %19 = arith.addf %15, %18 : vector<72x1xf32>
    %20 = math.rsqrt %19 : vector<72x1xf32>
    %21 = vector.broadcast %20 : vector<72x1xf32> to vector<72x64xf32>
    %22 = arith.mulf %17, %21 : vector<72x64xf32>
    %23 = vector.broadcast %3 : vector<1x64xf32> to vector<72x64xf32>
    %24 = arith.mulf %22, %23 : vector<72x64xf32>
    %25 = vector.broadcast %4 : vector<1x64xf32> to vector<72x64xf32>
    %26 = arith.addf %24, %25 : vector<72x64xf32>
    %27 = arith.truncf %26 : vector<72x64xf32> to vector<72x64xbf16>
    %c0_10 = arith.constant 0 : index
    %c0_11 = arith.constant 0 : index
    %28 = vector.load %arg4[%c0_10, %c0_11] : memref<64x192xbf16, #tpu.memory_space<vmem>>, vector<64x192xbf16>
    %cst_12 = arith.constant dense<0.000000e+00> : vector<72x192xf32>
    %29 = tpu.matmul %27, %28, %cst_12 {dimension_numbers = #tpu.dot_dimension_numbers<[1], [0], [0], [1], [0, 0, 1, 1], [], []>} : vector<72x64xbf16>, vector<64x192xbf16>, vector<72x192xf32> -> vector<72x192xf32>
    %c0_13 = arith.constant 0 : index
    %c0_14 = arith.constant 0 : index
    %30 = vector.load %arg5[%c0_13, %c0_14] : memref<1x192xf32, #tpu.memory_space<vmem>>, vector<1x192xf32>
    %31 = vector.broadcast %30 : vector<1x192xf32> to vector<72x192xf32>
    %32 = arith.addf %29, %31 : vector<72x192xf32>
    %33 = arith.truncf %32 : vector<72x192xf32> to vector<72x192xbf16>
    %c0_15 = arith.constant 0 : index
    %c0_16 = arith.constant 0 : index
    %34 = vector.load %arg6[%c0_15, %c0_16] : memref<64x64xbf16, #tpu.memory_space<vmem>>, vector<64x64xbf16>
    %35 = tpu.iota {dimensions = array<i32: 1>} : vector<1x72xi32>
    %c66_i32 = arith.constant 66 : i32
    %36 = vector.broadcast %c66_i32 : i32 to vector<1x72xi32>
    %37 = arith.cmpi slt, %35, %36 : vector<1x72xi32>
    %cst_17 = arith.constant 0.000000e+00 : f32
    %cst_18 = arith.constant -1.000000e+30 : f32
    %38 = vector.broadcast %cst_17 : f32 to vector<1x72xf32>
    %39 = vector.broadcast %cst_18 : f32 to vector<1x72xf32>
    %40 = arith.select %37, %38, %39 : vector<1x72xi1>, vector<1x72xf32>
    %cst_19 = arith.constant 0.000000e+00 : f32
    %41 = vector.broadcast %cst_19 : f32 to vector<72x64xf32>
    %42 = vector.extract_strided_slice %33 {offsets = [0, 0], sizes = [72, 16], strides = [1, 1]} : vector<72x192xbf16> to vector<72x16xbf16>
    %43 = vector.extract_strided_slice %33 {offsets = [0, 64], sizes = [72, 16], strides = [1, 1]} : vector<72x192xbf16> to vector<72x16xbf16>
    %44 = vector.extract_strided_slice %33 {offsets = [0, 128], sizes = [72, 16], strides = [1, 1]} : vector<72x192xbf16> to vector<72x16xbf16>
    %cst_20 = arith.constant dense<0.000000e+00> : vector<72x72xf32>
    %45 = tpu.matmul %42, %43, %cst_20 {dimension_numbers = #tpu.dot_dimension_numbers<[1], [1], [0], [0], [0, 0, 1, 0], [], []>} : vector<72x16xbf16>, vector<72x16xbf16>, vector<72x72xf32> -> vector<72x72xf32>
    %cst_21 = arith.constant 2.500000e-01 : f32
    %46 = vector.broadcast %cst_21 : f32 to vector<72x72xf32>
    %47 = arith.mulf %45, %46 : vector<72x72xf32>
    %48 = vector.broadcast %40 : vector<1x72xf32> to vector<72x72xf32>
    %49 = arith.addf %47, %48 : vector<72x72xf32>
    %cst_22 = arith.constant dense<0xFF800000> : vector<72xf32>
    %50 = vector.multi_reduction <maximumf>, %49, %cst_22 [1] : vector<72x72xf32> to vector<72xf32>
    %51 = vector.shape_cast %50 : vector<72xf32> to vector<72x1xf32>
    %52 = vector.broadcast %51 : vector<72x1xf32> to vector<72x72xf32>
    %53 = arith.subf %49, %52 : vector<72x72xf32>
    %54 = math.exp %53 : vector<72x72xf32>
    %cst_23 = arith.constant dense<0.000000e+00> : vector<72xf32>
    %55 = vector.multi_reduction <add>, %54, %cst_23 [1] : vector<72x72xf32> to vector<72xf32>
    %56 = vector.shape_cast %55 : vector<72xf32> to vector<72x1xf32>
    %57 = tpu.reciprocal %56 {approx = true} : vector<72x1xf32> -> vector<72x1xf32>
    %58 = vector.broadcast %57 : vector<72x1xf32> to vector<72x72xf32>
    %59 = arith.mulf %54, %58 : vector<72x72xf32>
    %60 = arith.truncf %59 : vector<72x72xf32> to vector<72x72xbf16>
    %cst_24 = arith.constant dense<0.000000e+00> : vector<72x16xf32>
    %61 = tpu.matmul %60, %44, %cst_24 {dimension_numbers = #tpu.dot_dimension_numbers<[1], [0], [0], [1], [0, 0, 1, 1], [], []>} : vector<72x72xbf16>, vector<72x16xbf16>, vector<72x16xf32> -> vector<72x16xf32>
    %62 = arith.truncf %61 : vector<72x16xf32> to vector<72x16xbf16>
    %63 = vector.extract_strided_slice %34 {offsets = [0, 0], sizes = [16, 64], strides = [1, 1]} : vector<64x64xbf16> to vector<16x64xbf16>
    %cst_25 = arith.constant dense<0.000000e+00> : vector<72x64xf32>
    %64 = tpu.matmul %62, %63, %cst_25 {dimension_numbers = #tpu.dot_dimension_numbers<[1], [0], [0], [1], [0, 0, 1, 1], [], []>} : vector<72x16xbf16>, vector<16x64xbf16>, vector<72x64xf32> -> vector<72x64xf32>
    %65 = arith.addf %41, %64 : vector<72x64xf32>
    %66 = vector.extract_strided_slice %33 {offsets = [0, 16], sizes = [72, 16], strides = [1, 1]} : vector<72x192xbf16> to vector<72x16xbf16>
    %67 = vector.extract_strided_slice %33 {offsets = [0, 80], sizes = [72, 16], strides = [1, 1]} : vector<72x192xbf16> to vector<72x16xbf16>
    %68 = vector.extract_strided_slice %33 {offsets = [0, 144], sizes = [72, 16], strides = [1, 1]} : vector<72x192xbf16> to vector<72x16xbf16>
    %cst_26 = arith.constant dense<0.000000e+00> : vector<72x72xf32>
    %69 = tpu.matmul %66, %67, %cst_26 {dimension_numbers = #tpu.dot_dimension_numbers<[1], [1], [0], [0], [0, 0, 1, 0], [], []>} : vector<72x16xbf16>, vector<72x16xbf16>, vector<72x72xf32> -> vector<72x72xf32>
    %cst_27 = arith.constant 2.500000e-01 : f32
    %70 = vector.broadcast %cst_27 : f32 to vector<72x72xf32>
    %71 = arith.mulf %69, %70 : vector<72x72xf32>
    %72 = vector.broadcast %40 : vector<1x72xf32> to vector<72x72xf32>
    %73 = arith.addf %71, %72 : vector<72x72xf32>
    %cst_28 = arith.constant dense<0xFF800000> : vector<72xf32>
    %74 = vector.multi_reduction <maximumf>, %73, %cst_28 [1] : vector<72x72xf32> to vector<72xf32>
    %75 = vector.shape_cast %74 : vector<72xf32> to vector<72x1xf32>
    %76 = vector.broadcast %75 : vector<72x1xf32> to vector<72x72xf32>
    %77 = arith.subf %73, %76 : vector<72x72xf32>
    %78 = math.exp %77 : vector<72x72xf32>
    %cst_29 = arith.constant dense<0.000000e+00> : vector<72xf32>
    %79 = vector.multi_reduction <add>, %78, %cst_29 [1] : vector<72x72xf32> to vector<72xf32>
    %80 = vector.shape_cast %79 : vector<72xf32> to vector<72x1xf32>
    %81 = tpu.reciprocal %80 {approx = true} : vector<72x1xf32> -> vector<72x1xf32>
    %82 = vector.broadcast %81 : vector<72x1xf32> to vector<72x72xf32>
    %83 = arith.mulf %78, %82 : vector<72x72xf32>
    %84 = arith.truncf %83 : vector<72x72xf32> to vector<72x72xbf16>
    %cst_30 = arith.constant dense<0.000000e+00> : vector<72x16xf32>
    %85 = tpu.matmul %84, %68, %cst_30 {dimension_numbers = #tpu.dot_dimension_numbers<[1], [0], [0], [1], [0, 0, 1, 1], [], []>} : vector<72x72xbf16>, vector<72x16xbf16>, vector<72x16xf32> -> vector<72x16xf32>
    %86 = arith.truncf %85 : vector<72x16xf32> to vector<72x16xbf16>
    %87 = vector.extract_strided_slice %34 {offsets = [16, 0], sizes = [16, 64], strides = [1, 1]} : vector<64x64xbf16> to vector<16x64xbf16>
    %cst_31 = arith.constant dense<0.000000e+00> : vector<72x64xf32>
    %88 = tpu.matmul %86, %87, %cst_31 {dimension_numbers = #tpu.dot_dimension_numbers<[1], [0], [0], [1], [0, 0, 1, 1], [], []>} : vector<72x16xbf16>, vector<16x64xbf16>, vector<72x64xf32> -> vector<72x64xf32>
    %89 = arith.addf %65, %88 : vector<72x64xf32>
    %90 = vector.extract_strided_slice %33 {offsets = [0, 32], sizes = [72, 16], strides = [1, 1]} : vector<72x192xbf16> to vector<72x16xbf16>
    %91 = vector.extract_strided_slice %33 {offsets = [0, 96], sizes = [72, 16], strides = [1, 1]} : vector<72x192xbf16> to vector<72x16xbf16>
    %92 = vector.extract_strided_slice %33 {offsets = [0, 160], sizes = [72, 16], strides = [1, 1]} : vector<72x192xbf16> to vector<72x16xbf16>
    %cst_32 = arith.constant dense<0.000000e+00> : vector<72x72xf32>
    %93 = tpu.matmul %90, %91, %cst_32 {dimension_numbers = #tpu.dot_dimension_numbers<[1], [1], [0], [0], [0, 0, 1, 0], [], []>} : vector<72x16xbf16>, vector<72x16xbf16>, vector<72x72xf32> -> vector<72x72xf32>
    %cst_33 = arith.constant 2.500000e-01 : f32
    %94 = vector.broadcast %cst_33 : f32 to vector<72x72xf32>
    %95 = arith.mulf %93, %94 : vector<72x72xf32>
    %96 = vector.broadcast %40 : vector<1x72xf32> to vector<72x72xf32>
    %97 = arith.addf %95, %96 : vector<72x72xf32>
    %cst_34 = arith.constant dense<0xFF800000> : vector<72xf32>
    %98 = vector.multi_reduction <maximumf>, %97, %cst_34 [1] : vector<72x72xf32> to vector<72xf32>
    %99 = vector.shape_cast %98 : vector<72xf32> to vector<72x1xf32>
    %100 = vector.broadcast %99 : vector<72x1xf32> to vector<72x72xf32>
    %101 = arith.subf %97, %100 : vector<72x72xf32>
    %102 = math.exp %101 : vector<72x72xf32>
    %cst_35 = arith.constant dense<0.000000e+00> : vector<72xf32>
    %103 = vector.multi_reduction <add>, %102, %cst_35 [1] : vector<72x72xf32> to vector<72xf32>
    %104 = vector.shape_cast %103 : vector<72xf32> to vector<72x1xf32>
    %105 = tpu.reciprocal %104 {approx = true} : vector<72x1xf32> -> vector<72x1xf32>
    %106 = vector.broadcast %105 : vector<72x1xf32> to vector<72x72xf32>
    %107 = arith.mulf %102, %106 : vector<72x72xf32>
    %108 = arith.truncf %107 : vector<72x72xf32> to vector<72x72xbf16>
    %cst_36 = arith.constant dense<0.000000e+00> : vector<72x16xf32>
    %109 = tpu.matmul %108, %92, %cst_36 {dimension_numbers = #tpu.dot_dimension_numbers<[1], [0], [0], [1], [0, 0, 1, 1], [], []>} : vector<72x72xbf16>, vector<72x16xbf16>, vector<72x16xf32> -> vector<72x16xf32>
    %110 = arith.truncf %109 : vector<72x16xf32> to vector<72x16xbf16>
    %111 = vector.extract_strided_slice %34 {offsets = [32, 0], sizes = [16, 64], strides = [1, 1]} : vector<64x64xbf16> to vector<16x64xbf16>
    %cst_37 = arith.constant dense<0.000000e+00> : vector<72x64xf32>
    %112 = tpu.matmul %110, %111, %cst_37 {dimension_numbers = #tpu.dot_dimension_numbers<[1], [0], [0], [1], [0, 0, 1, 1], [], []>} : vector<72x16xbf16>, vector<16x64xbf16>, vector<72x64xf32> -> vector<72x64xf32>
    %113 = arith.addf %89, %112 : vector<72x64xf32>
    %114 = vector.extract_strided_slice %33 {offsets = [0, 48], sizes = [72, 16], strides = [1, 1]} : vector<72x192xbf16> to vector<72x16xbf16>
    %115 = vector.extract_strided_slice %33 {offsets = [0, 112], sizes = [72, 16], strides = [1, 1]} : vector<72x192xbf16> to vector<72x16xbf16>
    %116 = vector.extract_strided_slice %33 {offsets = [0, 176], sizes = [72, 16], strides = [1, 1]} : vector<72x192xbf16> to vector<72x16xbf16>
    %cst_38 = arith.constant dense<0.000000e+00> : vector<72x72xf32>
    %117 = tpu.matmul %114, %115, %cst_38 {dimension_numbers = #tpu.dot_dimension_numbers<[1], [1], [0], [0], [0, 0, 1, 0], [], []>} : vector<72x16xbf16>, vector<72x16xbf16>, vector<72x72xf32> -> vector<72x72xf32>
    %cst_39 = arith.constant 2.500000e-01 : f32
    %118 = vector.broadcast %cst_39 : f32 to vector<72x72xf32>
    %119 = arith.mulf %117, %118 : vector<72x72xf32>
    %120 = vector.broadcast %40 : vector<1x72xf32> to vector<72x72xf32>
    %121 = arith.addf %119, %120 : vector<72x72xf32>
    %cst_40 = arith.constant dense<0xFF800000> : vector<72xf32>
    %122 = vector.multi_reduction <maximumf>, %121, %cst_40 [1] : vector<72x72xf32> to vector<72xf32>
    %123 = vector.shape_cast %122 : vector<72xf32> to vector<72x1xf32>
    %124 = vector.broadcast %123 : vector<72x1xf32> to vector<72x72xf32>
    %125 = arith.subf %121, %124 : vector<72x72xf32>
    %126 = math.exp %125 : vector<72x72xf32>
    %cst_41 = arith.constant dense<0.000000e+00> : vector<72xf32>
    %127 = vector.multi_reduction <add>, %126, %cst_41 [1] : vector<72x72xf32> to vector<72xf32>
    %128 = vector.shape_cast %127 : vector<72xf32> to vector<72x1xf32>
    %129 = tpu.reciprocal %128 {approx = true} : vector<72x1xf32> -> vector<72x1xf32>
    %130 = vector.broadcast %129 : vector<72x1xf32> to vector<72x72xf32>
    %131 = arith.mulf %126, %130 : vector<72x72xf32>
    %132 = arith.truncf %131 : vector<72x72xf32> to vector<72x72xbf16>
    %cst_42 = arith.constant dense<0.000000e+00> : vector<72x16xf32>
    %133 = tpu.matmul %132, %116, %cst_42 {dimension_numbers = #tpu.dot_dimension_numbers<[1], [0], [0], [1], [0, 0, 1, 1], [], []>} : vector<72x72xbf16>, vector<72x16xbf16>, vector<72x16xf32> -> vector<72x16xf32>
    %134 = arith.truncf %133 : vector<72x16xf32> to vector<72x16xbf16>
    %135 = vector.extract_strided_slice %34 {offsets = [48, 0], sizes = [16, 64], strides = [1, 1]} : vector<64x64xbf16> to vector<16x64xbf16>
    %cst_43 = arith.constant dense<0.000000e+00> : vector<72x64xf32>
    %136 = tpu.matmul %134, %135, %cst_43 {dimension_numbers = #tpu.dot_dimension_numbers<[1], [0], [0], [1], [0, 0, 1, 1], [], []>} : vector<72x16xbf16>, vector<16x64xbf16>, vector<72x64xf32> -> vector<72x64xf32>
    %137 = arith.addf %113, %136 : vector<72x64xf32>
    %c0_44 = arith.constant 0 : index
    %c0_45 = arith.constant 0 : index
    %138 = vector.load %arg7[%c0_44, %c0_45] : memref<1x64xf32, #tpu.memory_space<vmem>>, vector<1x64xf32>
    %139 = vector.broadcast %138 : vector<1x64xf32> to vector<72x64xf32>
    %140 = arith.addf %137, %139 : vector<72x64xf32>
    %141 = arith.addf %2, %140 : vector<72x64xf32>
    %142 = arith.truncf %141 : vector<72x64xf32> to vector<72x64xbf16>
    %c0_46 = arith.constant 0 : index
    %c0_47 = arith.constant 0 : index
    %c0_48 = arith.constant 0 : index
    %143 = vector.load %arg8[%c0_46, %c0_47, %c0_48] : memref<1x72x64xbf16, #tpu.memory_space<vmem>>, vector<1x72x64xbf16>
    %144 = vector.shape_cast %143 : vector<1x72x64xbf16> to vector<72x64xbf16>
    %145 = vector.shape_cast %142 : vector<72x64xbf16> to vector<1x72x64xbf16>
    tpu.vector_store %arg8[%c0_46, %c0_47, %c0_48], %145 {strides = array<i32>} : memref<1x72x64xbf16, #tpu.memory_space<vmem>>, vector<1x72x64xbf16>,
    return
  }
  func.func @transform_0(%arg0: i32) -> (i32, i32, i32) {
    %c0_i32 = arith.constant 0 : i32
    %c0_i32_0 = arith.constant 0 : i32
    %c0_i32_1 = arith.constant 0 : i32
    return %arg0, %c0_i32, %c0_i32_0 : i32, i32, i32
  }
  func.func @transform_1(%arg0: i32) -> (i32, i32) {
    %c0_i32 = arith.constant 0 : i32
    %c0_i32_0 = arith.constant 0 : i32
    %c0_i32_1 = arith.constant 0 : i32
    return %c0_i32, %c0_i32_0 : i32, i32
  }
  func.func @transform_2(%arg0: i32) -> (i32, i32) {
    %c0_i32 = arith.constant 0 : i32
    %c0_i32_0 = arith.constant 0 : i32
    %c0_i32_1 = arith.constant 0 : i32
    return %c0_i32, %c0_i32_0 : i32, i32
  }
  func.func @transform_3(%arg0: i32) -> (i32, i32) {
    %c0_i32 = arith.constant 0 : i32
    %c0_i32_0 = arith.constant 0 : i32
    %c0_i32_1 = arith.constant 0 : i32
    return %c0_i32, %c0_i32_0 : i32, i32
  }
  func.func @transform_4(%arg0: i32) -> (i32, i32) {
    %c0_i32 = arith.constant 0 : i32
    %c0_i32_0 = arith.constant 0 : i32
    %c0_i32_1 = arith.constant 0 : i32
    return %c0_i32, %c0_i32_0 : i32, i32
  }
  func.func @transform_5(%arg0: i32) -> (i32, i32) {
    %c0_i32 = arith.constant 0 : i32
    %c0_i32_0 = arith.constant 0 : i32
    %c0_i32_1 = arith.constant 0 : i32
    return %c0_i32, %c0_i32_0 : i32, i32
  }
  func.func @transform_6(%arg0: i32) -> (i32, i32) {
    %c0_i32 = arith.constant 0 : i32
    %c0_i32_0 = arith.constant 0 : i32
    %c0_i32_1 = arith.constant 0 : i32
    return %c0_i32, %c0_i32_0 : i32, i32
  }
  func.func @transform_7(%arg0: i32) -> (i32, i32, i32) {
    %c0_i32 = arith.constant 0 : i32
    %c0_i32_0 = arith.constant 0 : i32
    %c0_i32_1 = arith.constant 0 : i32
    return %arg0, %c0_i32, %c0_i32_0 : i32, i32, i32
  }
}

module attributes {stable_mosaic.version = 11 : i64} {
  func.func @_ln_mlp_res_kernel(%arg0: i32, %arg1: memref<288x64xbf16, #tpu.memory_space<vmem>>, %arg2: memref<1x64xf32, #tpu.memory_space<vmem>>, %arg3: memref<1x64xf32, #tpu.memory_space<vmem>>, %arg4: memref<64x256xbf16, #tpu.memory_space<vmem>>, %arg5: memref<1x256xf32, #tpu.memory_space<vmem>>, %arg6: memref<256x64xbf16, #tpu.memory_space<vmem>>, %arg7: memref<1x64xf32, #tpu.memory_space<vmem>>, %arg8: memref<288x64xbf16, #tpu.memory_space<vmem>>) attributes {dimension_semantics = [#tpu.dimension_semantics<parallel>], iteration_bounds = array<i64: 1>, scalar_prefetch = 0 : i64, scratch_operands = 0 : i64, tpu.core_type = #tpu.core_type<tc>, window_params = [{transform_indices = @transform_0, window_bounds = array<i64: 288, 64>}, {pipeline_mode = #tpu.pipeline_mode<synchronous>, transform_indices = @transform_1, window_bounds = array<i64: 1, 64>}, {pipeline_mode = #tpu.pipeline_mode<synchronous>, transform_indices = @transform_2, window_bounds = array<i64: 1, 64>}, {pipeline_mode = #tpu.pipeline_mode<synchronous>, transform_indices = @transform_3, window_bounds = array<i64: 64, 256>}, {pipeline_mode = #tpu.pipeline_mode<synchronous>, transform_indices = @transform_4, window_bounds = array<i64: 1, 256>}, {pipeline_mode = #tpu.pipeline_mode<synchronous>, transform_indices = @transform_5, window_bounds = array<i64: 256, 64>}, {pipeline_mode = #tpu.pipeline_mode<synchronous>, transform_indices = @transform_6, window_bounds = array<i64: 1, 64>}, {transform_indices = @transform_7, window_bounds = array<i64: 288, 64>}]} {
    %c0 = arith.constant 0 : index
    %c0_0 = arith.constant 0 : index
    %0 = vector.load %arg1[%c0, %c0_0] : memref<288x64xbf16, #tpu.memory_space<vmem>>, vector<288x64xbf16>
    %1 = arith.extf %0 : vector<288x64xbf16> to vector<288x64xf32>
    %c0_1 = arith.constant 0 : index
    %c0_2 = arith.constant 0 : index
    %2 = vector.load %arg2[%c0_1, %c0_2] : memref<1x64xf32, #tpu.memory_space<vmem>>, vector<1x64xf32>
    %c0_3 = arith.constant 0 : index
    %c0_4 = arith.constant 0 : index
    %3 = vector.load %arg3[%c0_3, %c0_4] : memref<1x64xf32, #tpu.memory_space<vmem>>, vector<1x64xf32>
    %cst = arith.constant dense<0.000000e+00> : vector<288xf32>
    %4 = vector.multi_reduction <add>, %1, %cst [1] : vector<288x64xf32> to vector<288xf32>
    %5 = vector.shape_cast %4 : vector<288xf32> to vector<288x1xf32>
    %cst_5 = arith.constant 6.400000e+01 : f32
    %6 = vector.broadcast %cst_5 : f32 to vector<288x1xf32>
    %7 = arith.divf %5, %6 : vector<288x1xf32>
    %8 = vector.broadcast %7 : vector<288x1xf32> to vector<288x64xf32>
    %9 = arith.subf %1, %8 : vector<288x64xf32>
    %10 = arith.mulf %9, %9 : vector<288x64xf32>
    %cst_6 = arith.constant dense<0.000000e+00> : vector<288xf32>
    %11 = vector.multi_reduction <add>, %10, %cst_6 [1] : vector<288x64xf32> to vector<288xf32>
    %12 = vector.shape_cast %11 : vector<288xf32> to vector<288x1xf32>
    %cst_7 = arith.constant 6.400000e+01 : f32
    %13 = vector.broadcast %cst_7 : f32 to vector<288x1xf32>
    %14 = arith.divf %12, %13 : vector<288x1xf32>
    %15 = vector.broadcast %7 : vector<288x1xf32> to vector<288x64xf32>
    %16 = arith.subf %1, %15 : vector<288x64xf32>
    %cst_8 = arith.constant 9.99999974E-6 : f32
    %17 = vector.broadcast %cst_8 : f32 to vector<288x1xf32>
    %18 = arith.addf %14, %17 : vector<288x1xf32>
    %19 = math.rsqrt %18 : vector<288x1xf32>
    %20 = vector.broadcast %19 : vector<288x1xf32> to vector<288x64xf32>
    %21 = arith.mulf %16, %20 : vector<288x64xf32>
    %22 = vector.broadcast %2 : vector<1x64xf32> to vector<288x64xf32>
    %23 = arith.mulf %21, %22 : vector<288x64xf32>
    %24 = vector.broadcast %3 : vector<1x64xf32> to vector<288x64xf32>
    %25 = arith.addf %23, %24 : vector<288x64xf32>
    %26 = arith.truncf %25 : vector<288x64xf32> to vector<288x64xbf16>
    %c0_9 = arith.constant 0 : index
    %c0_10 = arith.constant 0 : index
    %27 = vector.load %arg4[%c0_9, %c0_10] : memref<64x256xbf16, #tpu.memory_space<vmem>>, vector<64x256xbf16>
    %cst_11 = arith.constant dense<0.000000e+00> : vector<288x256xf32>
    %28 = tpu.matmul %26, %27, %cst_11 {dimension_numbers = #tpu.dot_dimension_numbers<[1], [0], [0], [1], [0, 0, 1, 1], [], []>} : vector<288x64xbf16>, vector<64x256xbf16>, vector<288x256xf32> -> vector<288x256xf32>
    %c0_12 = arith.constant 0 : index
    %c0_13 = arith.constant 0 : index
    %29 = vector.load %arg5[%c0_12, %c0_13] : memref<1x256xf32, #tpu.memory_space<vmem>>, vector<1x256xf32>
    %30 = vector.broadcast %29 : vector<1x256xf32> to vector<288x256xf32>
    %31 = arith.addf %28, %30 : vector<288x256xf32>
    %cst_14 = arith.constant 1.702000e+00 : f32
    %32 = vector.broadcast %cst_14 : f32 to vector<288x256xf32>
    %33 = arith.mulf %32, %31 : vector<288x256xf32>
    %34 = arith.negf %33 : vector<288x256xf32>
    %35 = math.exp %34 : vector<288x256xf32>
    %cst_15 = arith.constant 1.000000e+00 : f32
    %36 = vector.broadcast %cst_15 : f32 to vector<288x256xf32>
    %37 = arith.addf %36, %35 : vector<288x256xf32>
    %38 = arith.divf %36, %37 : vector<288x256xf32>
    %39 = arith.mulf %31, %38 : vector<288x256xf32>
    %40 = arith.truncf %39 : vector<288x256xf32> to vector<288x256xbf16>
    %c0_16 = arith.constant 0 : index
    %c0_17 = arith.constant 0 : index
    %41 = vector.load %arg6[%c0_16, %c0_17] : memref<256x64xbf16, #tpu.memory_space<vmem>>, vector<256x64xbf16>
    %cst_18 = arith.constant dense<0.000000e+00> : vector<288x64xf32>
    %42 = tpu.matmul %40, %41, %cst_18 {dimension_numbers = #tpu.dot_dimension_numbers<[1], [0], [0], [1], [0, 0, 1, 1], [], []>} : vector<288x256xbf16>, vector<256x64xbf16>, vector<288x64xf32> -> vector<288x64xf32>
    %c0_19 = arith.constant 0 : index
    %c0_20 = arith.constant 0 : index
    %43 = vector.load %arg7[%c0_19, %c0_20] : memref<1x64xf32, #tpu.memory_space<vmem>>, vector<1x64xf32>
    %44 = vector.broadcast %43 : vector<1x64xf32> to vector<288x64xf32>
    %45 = arith.addf %42, %44 : vector<288x64xf32>
    %46 = arith.addf %1, %45 : vector<288x64xf32>
    %47 = arith.truncf %46 : vector<288x64xf32> to vector<288x64xbf16>
    %c0_21 = arith.constant 0 : index
    %c0_22 = arith.constant 0 : index
    %48 = vector.load %arg8[%c0_21, %c0_22] : memref<288x64xbf16, #tpu.memory_space<vmem>>, vector<288x64xbf16>
    tpu.vector_store %arg8[%c0_21, %c0_22], %47 {strides = array<i32>} : memref<288x64xbf16, #tpu.memory_space<vmem>>, vector<288x64xbf16>,
    return
  }
  func.func @transform_0(%arg0: i32) -> (i32, i32) {
    %c0_i32 = arith.constant 0 : i32
    %c0_i32_0 = arith.constant 0 : i32
    return %arg0, %c0_i32 : i32, i32
  }
  func.func @transform_1(%arg0: i32) -> (i32, i32) {
    %c0_i32 = arith.constant 0 : i32
    %c0_i32_0 = arith.constant 0 : i32
    %c0_i32_1 = arith.constant 0 : i32
    return %c0_i32, %c0_i32_0 : i32, i32
  }
  func.func @transform_2(%arg0: i32) -> (i32, i32) {
    %c0_i32 = arith.constant 0 : i32
    %c0_i32_0 = arith.constant 0 : i32
    %c0_i32_1 = arith.constant 0 : i32
    return %c0_i32, %c0_i32_0 : i32, i32
  }
  func.func @transform_3(%arg0: i32) -> (i32, i32) {
    %c0_i32 = arith.constant 0 : i32
    %c0_i32_0 = arith.constant 0 : i32
    %c0_i32_1 = arith.constant 0 : i32
    return %c0_i32, %c0_i32_0 : i32, i32
  }
  func.func @transform_4(%arg0: i32) -> (i32, i32) {
    %c0_i32 = arith.constant 0 : i32
    %c0_i32_0 = arith.constant 0 : i32
    %c0_i32_1 = arith.constant 0 : i32
    return %c0_i32, %c0_i32_0 : i32, i32
  }
  func.func @transform_5(%arg0: i32) -> (i32, i32) {
    %c0_i32 = arith.constant 0 : i32
    %c0_i32_0 = arith.constant 0 : i32
    %c0_i32_1 = arith.constant 0 : i32
    return %c0_i32, %c0_i32_0 : i32, i32
  }
  func.func @transform_6(%arg0: i32) -> (i32, i32) {
    %c0_i32 = arith.constant 0 : i32
    %c0_i32_0 = arith.constant 0 : i32
    %c0_i32_1 = arith.constant 0 : i32
    return %c0_i32, %c0_i32_0 : i32, i32
  }
  func.func @transform_7(%arg0: i32) -> (i32, i32) {
    %c0_i32 = arith.constant 0 : i32
    %c0_i32_0 = arith.constant 0 : i32
    return %arg0, %c0_i32 : i32, i32
  }
}

module attributes {stable_mosaic.version = 11 : i64} {
  func.func @_ln_linear_kernel(%arg0: i32, %arg1: memref<4x64xbf16, #tpu.memory_space<vmem>>, %arg2: memref<1x64xf32, #tpu.memory_space<vmem>>, %arg3: memref<1x64xf32, #tpu.memory_space<vmem>>, %arg4: memref<64x32xbf16, #tpu.memory_space<vmem>>, %arg5: memref<1x32xf32, #tpu.memory_space<vmem>>, %arg6: memref<4x32xf32, #tpu.memory_space<vmem>>) attributes {dimension_semantics = [#tpu.dimension_semantics<parallel>], iteration_bounds = array<i64: 1>, scalar_prefetch = 0 : i64, scratch_operands = 0 : i64, tpu.core_type = #tpu.core_type<tc>, window_params = [{transform_indices = @transform_0, window_bounds = array<i64: 4, 64>}, {pipeline_mode = #tpu.pipeline_mode<synchronous>, transform_indices = @transform_1, window_bounds = array<i64: 1, 64>}, {pipeline_mode = #tpu.pipeline_mode<synchronous>, transform_indices = @transform_2, window_bounds = array<i64: 1, 64>}, {pipeline_mode = #tpu.pipeline_mode<synchronous>, transform_indices = @transform_3, window_bounds = array<i64: 64, 32>}, {pipeline_mode = #tpu.pipeline_mode<synchronous>, transform_indices = @transform_4, window_bounds = array<i64: 1, 32>}, {transform_indices = @transform_5, window_bounds = array<i64: 4, 32>}]} {
    %c0 = arith.constant 0 : index
    %c0_0 = arith.constant 0 : index
    %0 = vector.load %arg1[%c0, %c0_0] : memref<4x64xbf16, #tpu.memory_space<vmem>>, vector<4x64xbf16>
    %1 = arith.extf %0 : vector<4x64xbf16> to vector<4x64xf32>
    %c0_1 = arith.constant 0 : index
    %c0_2 = arith.constant 0 : index
    %2 = vector.load %arg2[%c0_1, %c0_2] : memref<1x64xf32, #tpu.memory_space<vmem>>, vector<1x64xf32>
    %c0_3 = arith.constant 0 : index
    %c0_4 = arith.constant 0 : index
    %3 = vector.load %arg3[%c0_3, %c0_4] : memref<1x64xf32, #tpu.memory_space<vmem>>, vector<1x64xf32>
    %cst = arith.constant dense<0.000000e+00> : vector<4xf32>
    %4 = vector.multi_reduction <add>, %1, %cst [1] : vector<4x64xf32> to vector<4xf32>
    %5 = vector.shape_cast %4 : vector<4xf32> to vector<4x1xf32>
    %cst_5 = arith.constant 6.400000e+01 : f32
    %6 = vector.broadcast %cst_5 : f32 to vector<4x1xf32>
    %7 = arith.divf %5, %6 : vector<4x1xf32>
    %8 = vector.broadcast %7 : vector<4x1xf32> to vector<4x64xf32>
    %9 = arith.subf %1, %8 : vector<4x64xf32>
    %10 = arith.mulf %9, %9 : vector<4x64xf32>
    %cst_6 = arith.constant dense<0.000000e+00> : vector<4xf32>
    %11 = vector.multi_reduction <add>, %10, %cst_6 [1] : vector<4x64xf32> to vector<4xf32>
    %12 = vector.shape_cast %11 : vector<4xf32> to vector<4x1xf32>
    %cst_7 = arith.constant 6.400000e+01 : f32
    %13 = vector.broadcast %cst_7 : f32 to vector<4x1xf32>
    %14 = arith.divf %12, %13 : vector<4x1xf32>
    %15 = vector.broadcast %7 : vector<4x1xf32> to vector<4x64xf32>
    %16 = arith.subf %1, %15 : vector<4x64xf32>
    %cst_8 = arith.constant 9.99999974E-6 : f32
    %17 = vector.broadcast %cst_8 : f32 to vector<4x1xf32>
    %18 = arith.addf %14, %17 : vector<4x1xf32>
    %19 = math.rsqrt %18 : vector<4x1xf32>
    %20 = vector.broadcast %19 : vector<4x1xf32> to vector<4x64xf32>
    %21 = arith.mulf %16, %20 : vector<4x64xf32>
    %22 = vector.broadcast %2 : vector<1x64xf32> to vector<4x64xf32>
    %23 = arith.mulf %21, %22 : vector<4x64xf32>
    %24 = vector.broadcast %3 : vector<1x64xf32> to vector<4x64xf32>
    %25 = arith.addf %23, %24 : vector<4x64xf32>
    %26 = arith.truncf %25 : vector<4x64xf32> to vector<4x64xbf16>
    %c0_9 = arith.constant 0 : index
    %c0_10 = arith.constant 0 : index
    %27 = vector.load %arg4[%c0_9, %c0_10] : memref<64x32xbf16, #tpu.memory_space<vmem>>, vector<64x32xbf16>
    %cst_11 = arith.constant dense<0.000000e+00> : vector<4x32xf32>
    %28 = tpu.matmul %26, %27, %cst_11 {dimension_numbers = #tpu.dot_dimension_numbers<[1], [0], [0], [1], [0, 0, 1, 1], [], []>} : vector<4x64xbf16>, vector<64x32xbf16>, vector<4x32xf32> -> vector<4x32xf32>
    %c0_12 = arith.constant 0 : index
    %c0_13 = arith.constant 0 : index
    %29 = vector.load %arg5[%c0_12, %c0_13] : memref<1x32xf32, #tpu.memory_space<vmem>>, vector<1x32xf32>
    %30 = vector.broadcast %29 : vector<1x32xf32> to vector<4x32xf32>
    %31 = arith.addf %28, %30 : vector<4x32xf32>
    %c0_14 = arith.constant 0 : index
    %c0_15 = arith.constant 0 : index
    %32 = vector.load %arg6[%c0_14, %c0_15] : memref<4x32xf32, #tpu.memory_space<vmem>>, vector<4x32xf32>
    tpu.vector_store %arg6[%c0_14, %c0_15], %31 {strides = array<i32>} : memref<4x32xf32, #tpu.memory_space<vmem>>, vector<4x32xf32>,
    return
  }
  func.func @transform_0(%arg0: i32) -> (i32, i32) {
    %c0_i32 = arith.constant 0 : i32
    %c0_i32_0 = arith.constant 0 : i32
    return %arg0, %c0_i32 : i32, i32
  }
  func.func @transform_1(%arg0: i32) -> (i32, i32) {
    %c0_i32 = arith.constant 0 : i32
    %c0_i32_0 = arith.constant 0 : i32
    %c0_i32_1 = arith.constant 0 : i32
    return %c0_i32, %c0_i32_0 : i32, i32
  }
  func.func @transform_2(%arg0: i32) -> (i32, i32) {
    %c0_i32 = arith.constant 0 : i32
    %c0_i32_0 = arith.constant 0 : i32
    %c0_i32_1 = arith.constant 0 : i32
    return %c0_i32, %c0_i32_0 : i32, i32
  }
  func.func @transform_3(%arg0: i32) -> (i32, i32) {
    %c0_i32 = arith.constant 0 : i32
    %c0_i32_0 = arith.constant 0 : i32
    %c0_i32_1 = arith.constant 0 : i32
    return %c0_i32, %c0_i32_0 : i32, i32
  }
  func.func @transform_4(%arg0: i32) -> (i32, i32) {
    %c0_i32 = arith.constant 0 : i32
    %c0_i32_0 = arith.constant 0 : i32
    %c0_i32_1 = arith.constant 0 : i32
    return %c0_i32, %c0_i32_0 : i32, i32
  }
  func.func @transform_5(%arg0: i32) -> (i32, i32) {
    %c0_i32 = arith.constant 0 : i32
    %c0_i32_0 = arith.constant 0 : i32
    return %arg0, %c0_i32 : i32, i32
  }
}

</mosaic_0001>

<llo_original>
// kernel: cross_frame_transformer_forward.9
$region0: #{cross_frame_transformer_forward.9}
  #allocation0 [shape = 'u32[]', space=smem, size = 0x4, offset = 0x4, fixed_abs, tag = 'smem constant byte address 0x4 - core index']
  #allocation1 [shape = 'u32[72,128]{1,0:T(1,128)}', space=vmem, size = 0x9000, scoped, tag = 'internal scratch']
  %s0 = inlined_call_operand.vmem [shape: bf16[256,48], index: 0, kind: input, shape index: {}]
  %s1 = inlined_call_operand.vmem [shape: bf16[48,64], index: 1, kind: input, shape index: {}]
  %s2 = inlined_call_operand.vmem [shape: f32[1,64], index: 2, kind: input, shape index: {}]
  %s3 = inlined_call_operand.vmem [shape: bf16[256,64], index: 3, kind: output, shape index: {}]
  %s4 = sld [smem:[#allocation0]]
  $region22: #{cross_frame_transformer_forward.9} parent=0
    _
  %s6 = ssub.s32 1, %s4
  %s7 = scalar_select 0, %s6, %s4
  // Predicated region
  $region2: #{cross_frame_transformer_forward.9} parent=0 // pred_check
    _
  $region3: #{cross_frame_transformer_forward.9} parent=0 // pred_check_branch
    %9 = sbr.rel (0) target = $region5
  $region4: #{cross_frame_transformer_forward.9} parent=0 // pred_region
    _
  $region5: #{cross_frame_transformer_forward.9} parent=0 // pred_fallthru
    _
  // Predicated region
  $region6: #{cross_frame_transformer_forward.9} parent=0 // pred_check
    _
  $region7: #{cross_frame_transformer_forward.9} parent=0 // pred_check_branch
    %11 = sbr.rel (0) target = $region9
  $region8: #{cross_frame_transformer_forward.9} parent=0 // pred_region
    _
  $region9: #{cross_frame_transformer_forward.9} parent=0 // pred_fallthru
    _
  // Predicated region
  $region10: #{cross_frame_transformer_forward.9} parent=0 // pred_check
    _
  $region11: #{cross_frame_transformer_forward.9} parent=0 // pred_check_branch
    %13 = sbr.rel (0) target = $region13
  $region12: #{cross_frame_transformer_forward.9} parent=0 // pred_region
    _
  $region13: #{cross_frame_transformer_forward.9} parent=0 // pred_fallthru
    _
  %v15 = vld [vmem:[%s0] sm:$0xf]
  %v16 = vld [vmem:[%s0 + $0x4] sm:$0xf]
  %v17 = vld [vmem:[%s0 + $0x8] sm:$0xf]
  %v18 = vld [vmem:[%s0 + $0xc] sm:$0xf]
  %v19 = vld [vmem:[%s0 + $0x10] sm:$0xf]
  %v20 = vld [vmem:[%s0 + $0x14] sm:$0xf]
  %v21 = vld [vmem:[%s0 + $0x18] sm:$0xf]
  %v22 = vld [vmem:[%s0 + $0x1c] sm:$0xf]
  %v23 = vld [vmem:[%s0 + $0x20] sm:$0xf]
  %v24 = vld [vmem:[%s0 + $0x24] sm:$0xf]
  %v25 = vld [vmem:[%s0 + $0x28] sm:$0xf]
  %v26 = vld [vmem:[%s0 + $0x2c] sm:$0xf]
  %v27 = vld [vmem:[%s0 + $0x30] sm:$0xf]
  %v28 = vld [vmem:[%s0 + $0x34] sm:$0xf]
  %v29 = vld [vmem:[%s0 + $0x38] sm:$0xf]
  %v30 = vld [vmem:[%s0 + $0x3c] sm:$0xf]
  %v31 = vld [vmem:[%s0 + $0x40] sm:$0xf]
  %v32 = vld [vmem:[%s0 + $0x44] sm:$0xf]
  %v33 = vld [vmem:[%s0 + $0x48] sm:$0xf]
  %v34 = vld [vmem:[%s0 + $0x4c] sm:$0xf]
  %v35 = vld [vmem:[%s0 + $0x50] sm:$0xf]
  %v36 = vld [vmem:[%s0 + $0x54] sm:$0xf]
  %v37 = vld [vmem:[%s0 + $0x58] sm:$0xf]
  %v38 = vld [vmem:[%s0 + $0x5c] sm:$0xf]
  %v39 = vld [vmem:[%s0 + $0x60] sm:$0xf]
  %v40 = vld [vmem:[%s0 + $0x64] sm:$0xf]
  %v41 = vld [vmem:[%s0 + $0x68] sm:$0xf]
  %v42 = vld [vmem:[%s0 + $0x6c] sm:$0xf]
  %v43 = vld [vmem:[%s0 + $0x70] sm:$0xf]
  %v44 = vld [vmem:[%s0 + $0x74] sm:$0xf]
  %v45 = vld [vmem:[%s0 + $0x78] sm:$0xf]
  %v46 = vld [vmem:[%s0 + $0x7c] sm:$0xf]
  %v47 = vld [vmem:[%s1] sm:$0xf]
  %v48 = vld [vmem:[%s1 + $0x4] sm:$0xf]
  %v49 = vld [vmem:[%s1 + $0x8] sm:$0xf]
  %v50 = vld [vmem:[%s1 + $0xc] sm:$0xf]
  %v51 = vld [vmem:[%s1 + $0x10] sm:$0xf]
  %v52 = vld [vmem:[%s1 + $0x14] sm:$0xf]
  %v53 = vld [vmem:[%s2] sm:$0x1]
  %v55 = vperm.slane %v53, 0
  %v89 = vunpack.c.l.b16 %v15
  %v90 = vunpack.c.l.b16 %v16
  %v91 = vunpack.c.l.b16 %v17
  %v92 = vunpack.c.l.b16 %v18
  %v93 = vunpack.c.l.b16 %v19
  %v94 = vunpack.c.l.b16 %v20
  %v95 = vunpack.c.l.b16 %v21
  %v96 = vunpack.c.l.b16 %v22
  %v97 = vunpack.c.l.b16 %v23
  %v98 = vunpack.c.l.b16 %v24
  %v99 = vunpack.c.l.b16 %v25
  %v100 = vunpack.c.l.b16 %v26
  %v101 = vunpack.c.l.b16 %v27
  %v102 = vunpack.c.l.b16 %v28
  %v103 = vunpack.c.l.b16 %v29
  %v104 = vunpack.c.l.b16 %v30
  %v105 = vunpack.c.l.b16 %v31
  %v106 = vunpack.c.l.b16 %v32
  %v107 = vunpack.c.l.b16 %v33
  %v108 = vunpack.c.l.b16 %v34
  %v109 = vunpack.c.l.b16 %v35
  %v110 = vunpack.c.l.b16 %v36
  %v111 = vunpack.c.l.b16 %v37
  %v112 = vunpack.c.l.b16 %v38
  %v113 = vunpack.c.l.b16 %v39
  %v114 = vunpack.c.l.b16 %v40
  %v115 = vunpack.c.l.b16 %v41
  %v116 = vunpack.c.l.b16 %v42
  %v117 = vunpack.c.l.b16 %v43
  %v118 = vunpack.c.l.b16 %v44
  %v119 = vunpack.c.l.b16 %v45
  %v120 = vunpack.c.l.b16 %v46
  %v121 = vpack.c.b16 %v90, %v89
  %v122 = vpack.c.b16 %v92, %v91
  %v123 = vpack.c.b16 %v94, %v93
  %v124 = vpack.c.b16 %v96, %v95
  %v125 = vpack.c.b16 %v98, %v97
  %v126 = vpack.c.b16 %v100, %v99
  %v127 = vpack.c.b16 %v102, %v101
  %v128 = vpack.c.b16 %v104, %v103
  %v129 = vpack.c.b16 %v106, %v105
  %v130 = vpack.c.b16 %v108, %v107
  %v131 = vpack.c.b16 %v110, %v109
  %v132 = vpack.c.b16 %v112, %v111
  %v133 = vpack.c.b16 %v114, %v113
  %v134 = vpack.c.b16 %v116, %v115
  %v135 = vpack.c.b16 %v118, %v117
  %v136 = vpack.c.b16 %v120, %v119
  %v143 = vunpack.c.l.b16 %v47
  %v144 = vunpack.c.l.b16 %v48
  %v145 = vunpack.c.l.b16 %v49
  %v146 = vunpack.c.l.b16 %v50
  %v147 = vunpack.c.l.b16 %v51
  %v148 = vunpack.c.l.b16 %v52
  %v149 = vpack.c.b16 %v144, %v143
  %v150 = vpack.c.b16 %v146, %v145
  %v151 = vpack.c.b16 %v148, %v147
  %vm155 = vcmask 392192
  %v157 = vsel %vm155, %v121, 0
  %v160 = vsel %vm155, %v122, 0
  %v163 = vsel %vm155, %v123, 0
  %v166 = vsel %vm155, %v124, 0
  %v169 = vsel %vm155, %v125, 0
  %v172 = vsel %vm155, %v126, 0
  %v175 = vsel %vm155, %v127, 0
  %v178 = vsel %vm155, %v128, 0
  %v181 = vsel %vm155, %v129, 0
  %v184 = vsel %vm155, %v130, 0
  %v187 = vsel %vm155, %v131, 0
  %v190 = vsel %vm155, %v132, 0
  %v193 = vsel %vm155, %v133, 0
  %v196 = vsel %vm155, %v134, 0
  %v199 = vsel %vm155, %v135, 0
  %v202 = vsel %vm155, %v136, 0
  %204 = vmatpush.bf16.msra.mxu0 0
  %205 = vmatpush.bf16.msra.mxu0 0
  %206 = vmatpush.bf16.msra.mxu0 0
  %207 = vmatpush.bf16.msra.mxu0 0
  %208 = vmatpush.bf16.msra.mxu0 0
  %209 = vmatpush.bf16.msra.mxu0 %v151
  %210 = vmatpush.bf16.msra.mxu0 %v150
  %211 = vmatpush.bf16.msra.mxu0 %v149
  %212 = vmatmul.bf16.gmra.mxu0 %v157
  %v213 = vpop.f32.mrf.mxu0
  %v214 = vadd.f32 %v55, %v213
  %v215 = vpop.f32.mrf.mxu0
  %v216 = vadd.f32 %v55, %v215
  %217 = vmatmul.bf16.gmra.mxu0 %v160
  %v218 = vpop.f32.mrf.mxu0
  %v219 = vadd.f32 %v55, %v218
  %v220 = vpop.f32.mrf.mxu0
  %v221 = vadd.f32 %v55, %v220
  %222 = vmatmul.bf16.gmra.mxu0 %v163
  %v223 = vpop.f32.mrf.mxu0
  %v224 = vadd.f32 %v55, %v223
  %v225 = vpop.f32.mrf.mxu0
  %v226 = vadd.f32 %v55, %v225
  %227 = vmatmul.bf16.gmra.mxu0 %v166
  %v228 = vpop.f32.mrf.mxu0
  %v229 = vadd.f32 %v55, %v228
  %v230 = vpop.f32.mrf.mxu0
  %v231 = vadd.f32 %v55, %v230
  %232 = vmatmul.bf16.gmra.mxu0 %v169
  %v233 = vpop.f32.mrf.mxu0
  %v234 = vadd.f32 %v55, %v233
  %v235 = vpop.f32.mrf.mxu0
  %v236 = vadd.f32 %v55, %v235
  %237 = vmatmul.bf16.gmra.mxu0 %v172
  %v238 = vpop.f32.mrf.mxu0
  %v239 = vadd.f32 %v55, %v238
  %v240 = vpop.f32.mrf.mxu0
  %v241 = vadd.f32 %v55, %v240
  %242 = vmatmul.bf16.gmra.mxu0 %v175
  %v243 = vpop.f32.mrf.mxu0
  %v244 = vadd.f32 %v55, %v243
  %v245 = vpop.f32.mrf.mxu0
  %v246 = vadd.f32 %v55, %v245
  %247 = vmatmul.bf16.gmra.mxu0 %v178
  %v248 = vpop.f32.mrf.mxu0
  %v249 = vadd.f32 %v55, %v248
  %v250 = vpop.f32.mrf.mxu0
  %v251 = vadd.f32 %v55, %v250
  %252 = vmatmul.bf16.gmra.mxu0 %v181
  %v253 = vpop.f32.mrf.mxu0
  %v254 = vadd.f32 %v55, %v253
  %v255 = vpop.f32.mrf.mxu0
  %v256 = vadd.f32 %v55, %v255
  %257 = vmatmul.bf16.gmra.mxu0 %v184
  %v258 = vpop.f32.mrf.mxu0
  %v259 = vadd.f32 %v55, %v258
  %v260 = vpop.f32.mrf.mxu0
  %v261 = vadd.f32 %v55, %v260
  %262 = vmatmul.bf16.gmra.mxu0 %v187
  %v263 = vpop.f32.mrf.mxu0
  %v264 = vadd.f32 %v55, %v263
  %v265 = vpop.f32.mrf.mxu0
  %v266 = vadd.f32 %v55, %v265
  %267 = vmatmul.bf16.gmra.mxu0 %v190
  %v268 = vpop.f32.mrf.mxu0
  %v269 = vadd.f32 %v55, %v268
  %v270 = vpop.f32.mrf.mxu0
  %v271 = vadd.f32 %v55, %v270
  %272 = vmatmul.bf16.gmra.mxu0 %v193
  %v273 = vpop.f32.mrf.mxu0
  %v274 = vadd.f32 %v55, %v273
  %v275 = vpop.f32.mrf.mxu0
  %v276 = vadd.f32 %v55, %v275
  %277 = vmatmul.bf16.gmra.mxu0 %v196
  %v278 = vpop.f32.mrf.mxu0
  %v279 = vadd.f32 %v55, %v278
  %v280 = vpop.f32.mrf.mxu0
  %v281 = vadd.f32 %v55, %v280
  %282 = vmatmul.bf16.gmra.mxu0 %v199
  %v283 = vpop.f32.mrf.mxu0
  %v284 = vadd.f32 %v55, %v283
  %v285 = vpop.f32.mrf.mxu0
  %v286 = vadd.f32 %v55, %v285
  %287 = vmatmul.bf16.gmra.mxu0 %v202
  %v288 = vpop.f32.mrf.mxu0
  %v289 = vadd.f32 %v55, %v288
  %v290 = vpop.f32.mrf.mxu0
  %v291 = vadd.f32 %v55, %v290
  %292 = vdwg.mxu0
  %v293 = vpack.c.bf16 %v214, %v214
  %v294 = vpack.c.bf16 %v216, %v216
  %v295 = vpack.c.bf16 %v219, %v219
  %v296 = vpack.c.bf16 %v221, %v221
  %v297 = vpack.c.bf16 %v224, %v224
  %v298 = vpack.c.bf16 %v226, %v226
  %v299 = vpack.c.bf16 %v229, %v229
  %v300 = vpack.c.bf16 %v231, %v231
  %v301 = vpack.c.bf16 %v234, %v234
  %v302 = vpack.c.bf16 %v236, %v236
  %v303 = vpack.c.bf16 %v239, %v239
  %v304 = vpack.c.bf16 %v241, %v241
  %v305 = vpack.c.bf16 %v244, %v244
  %v306 = vpack.c.bf16 %v246, %v246
  %v307 = vpack.c.bf16 %v249, %v249
  %v308 = vpack.c.bf16 %v251, %v251
  %v309 = vpack.c.bf16 %v254, %v254
  %v310 = vpack.c.bf16 %v256, %v256
  %v311 = vpack.c.bf16 %v259, %v259
  %v312 = vpack.c.bf16 %v261, %v261
  %v313 = vpack.c.bf16 %v264, %v264
  %v314 = vpack.c.bf16 %v266, %v266
  %v315 = vpack.c.bf16 %v269, %v269
  %v316 = vpack.c.bf16 %v271, %v271
  %v317 = vpack.c.bf16 %v274, %v274
  %v318 = vpack.c.bf16 %v276, %v276
  %v319 = vpack.c.bf16 %v279, %v279
  %v320 = vpack.c.bf16 %v281, %v281
  %v321 = vpack.c.bf16 %v284, %v284
  %v322 = vpack.c.bf16 %v286, %v286
  %v323 = vpack.c.bf16 %v289, %v289
  %v324 = vpack.c.bf16 %v291, %v291
  %vm325 = vcmask 519168
  %326 = vst.msk [vmem:[%s3] sm:$0xf] %vm325, %v293
  %327 = vst.msk [vmem:[%s3 + $0x4] sm:$0xf] %vm325, %v294
  %328 = vst.msk [vmem:[%s3 + $0x8] sm:$0xf] %vm325, %v295
  %329 = vst.msk [vmem:[%s3 + $0xc] sm:$0xf] %vm325, %v296
  %330 = vst.msk [vmem:[%s3 + $0x10] sm:$0xf] %vm325, %v297
  %331 = vst.msk [vmem:[%s3 + $0x14] sm:$0xf] %vm325, %v298
  %332 = vst.msk [vmem:[%s3 + $0x18] sm:$0xf] %vm325, %v299
  %333 = vst.msk [vmem:[%s3 + $0x1c] sm:$0xf] %vm325, %v300
  %334 = vst.msk [vmem:[%s3 + $0x20] sm:$0xf] %vm325, %v301
  %335 = vst.msk [vmem:[%s3 + $0x24] sm:$0xf] %vm325, %v302
  %336 = vst.msk [vmem:[%s3 + $0x28] sm:$0xf] %vm325, %v303
  %337 = vst.msk [vmem:[%s3 + $0x2c] sm:$0xf] %vm325, %v304
  %338 = vst.msk [vmem:[%s3 + $0x30] sm:$0xf] %vm325, %v305
  %339 = vst.msk [vmem:[%s3 + $0x34] sm:$0xf] %vm325, %v306
  %340 = vst.msk [vmem:[%s3 + $0x38] sm:$0xf] %vm325, %v307
  %341 = vst.msk [vmem:[%s3 + $0x3c] sm:$0xf] %vm325, %v308
  %342 = vst.msk [vmem:[%s3 + $0x40] sm:$0xf] %vm325, %v309
  %343 = vst.msk [vmem:[%s3 + $0x44] sm:$0xf] %vm325, %v310
  %344 = vst.msk [vmem:[%s3 + $0x48] sm:$0xf] %vm325, %v311
  %345 = vst.msk [vmem:[%s3 + $0x4c] sm:$0xf] %vm325, %v312
  %346 = vst.msk [vmem:[%s3 + $0x50] sm:$0xf] %vm325, %v313
  %347 = vst.msk [vmem:[%s3 + $0x54] sm:$0xf] %vm325, %v314
  %348 = vst.msk [vmem:[%s3 + $0x58] sm:$0xf] %vm325, %v315
  %349 = vst.msk [vmem:[%s3 + $0x5c] sm:$0xf] %vm325, %v316
  %350 = vst.msk [vmem:[%s3 + $0x60] sm:$0xf] %vm325, %v317
  %351 = vst.msk [vmem:[%s3 + $0x64] sm:$0xf] %vm325, %v318
  %352 = vst.msk [vmem:[%s3 + $0x68] sm:$0xf] %vm325, %v319
  %353 = vst.msk [vmem:[%s3 + $0x6c] sm:$0xf] %vm325, %v320
  %354 = vst.msk [vmem:[%s3 + $0x70] sm:$0xf] %vm325, %v321
  %355 = vst.msk [vmem:[%s3 + $0x74] sm:$0xf] %vm325, %v322
  %356 = vst.msk [vmem:[%s3 + $0x78] sm:$0xf] %vm325, %v323
  %357 = vst.msk [vmem:[%s3 + $0x7c] sm:$0xf] %vm325, %v324
  // Predicated region
  $region14: #{cross_frame_transformer_forward.9} parent=0 // pred_check
    _
  $region15: #{cross_frame_transformer_forward.9} parent=0 // pred_check_branch
    %359 = sbr.rel (0) target = $region17
  $region16: #{cross_frame_transformer_forward.9} parent=0 // pred_region
    _
  $region17: #{cross_frame_transformer_forward.9} parent=0 // pred_fallthru
    _
  // Predicated region
  $region18: #{cross_frame_transformer_forward.9} parent=0 // pred_check
    _
  $region19: #{cross_frame_transformer_forward.9} parent=0 // pred_check_branch
    %361 = sbr.rel (0) target = $region21
  $region20: #{cross_frame_transformer_forward.9} parent=0 // pred_region
    _
  $region21: #{cross_frame_transformer_forward.9} parent=0 // pred_fallthru
    _

// kernel: cross_frame_transformer_forward.10
$region0: #{cross_frame_transformer_forward.10}
  #allocation0 [shape = 'u32[]', space=smem, size = 0x4, offset = 0x4, fixed_abs, tag = 'smem constant byte address 0x4 - core index']
  #allocation1 [shape = 'u32[72,128]{1,0:T(1,128)}', space=vmem, size = 0x9000, scoped, tag = 'internal scratch']
  %s0 = inlined_call_operand.vmem [shape: bf16[288,64], index: 0, kind: input, shape index: {}]
  %s1 = inlined_call_operand.vmem [shape: f32[1,64], index: 1, kind: input, shape index: {}]
  %s2 = inlined_call_operand.vmem [shape: f32[1,64], index: 2, kind: input, shape index: {}]
  %s3 = inlined_call_operand.vmem [shape: bf16[288,64], index: 3, kind: output, shape index: {}]
  %s4 = sld [smem:[#allocation0]]
  $region22: #{cross_frame_transformer_forward.10} parent=0
    _
  %s6 = ssub.s32 1, %s4
  %s7 = scalar_select 0, %s6, %s4
  // Predicated region
  $region2: #{cross_frame_transformer_forward.10} parent=0 // pred_check
    _
  $region3: #{cross_frame_transformer_forward.10} parent=0 // pred_check_branch
    %9 = sbr.rel (0) target = $region5
  $region4: #{cross_frame_transformer_forward.10} parent=0 // pred_region
    _
  $region5: #{cross_frame_transformer_forward.10} parent=0 // pred_fallthru
    _
  // Predicated region
  $region6: #{cross_frame_transformer_forward.10} parent=0 // pred_check
    _
  $region7: #{cross_frame_transformer_forward.10} parent=0 // pred_check_branch
    %11 = sbr.rel (0) target = $region9
  $region8: #{cross_frame_transformer_forward.10} parent=0 // pred_region
    _
  $region9: #{cross_frame_transformer_forward.10} parent=0 // pred_fallthru
    _
  // Predicated region
  $region10: #{cross_frame_transformer_forward.10} parent=0 // pred_check
    _
  $region11: #{cross_frame_transformer_forward.10} parent=0 // pred_check_branch
    %13 = sbr.rel (0) target = $region13
  $region12: #{cross_frame_transformer_forward.10} parent=0 // pred_region
    _
  $region13: #{cross_frame_transformer_forward.10} parent=0 // pred_fallthru
    _
  %v14 = vld [vmem:[%s0] sm:$0xf]
  %v15 = vld [vmem:[%s0 + $0x4] sm:$0xf]
  %v16 = vld [vmem:[%s0 + $0x8] sm:$0xf]
  %v17 = vld [vmem:[%s0 + $0xc] sm:$0xf]
  %v18 = vld [vmem:[%s0 + $0x10] sm:$0xf]
  %v19 = vld [vmem:[%s0 + $0x14] sm:$0xf]
  %v20 = vld [vmem:[%s0 + $0x18] sm:$0xf]
  %v21 = vld [vmem:[%s0 + $0x1c] sm:$0xf]
  %v22 = vld [vmem:[%s0 + $0x20] sm:$0xf]
  %v23 = vld [vmem:[%s0 + $0x24] sm:$0xf]
  %v24 = vld [vmem:[%s0 + $0x28] sm:$0xf]
  %v25 = vld [vmem:[%s0 + $0x2c] sm:$0xf]
  %v26 = vld [vmem:[%s0 + $0x30] sm:$0xf]
  %v27 = vld [vmem:[%s0 + $0x34] sm:$0xf]
  %v28 = vld [vmem:[%s0 + $0x38] sm:$0xf]
  %v29 = vld [vmem:[%s0 + $0x3c] sm:$0xf]
  %v30 = vld [vmem:[%s0 + $0x40] sm:$0xf]
  %v31 = vld [vmem:[%s0 + $0x44] sm:$0xf]
  %v32 = vld [vmem:[%s0 + $0x48] sm:$0xf]
  %v33 = vld [vmem:[%s0 + $0x4c] sm:$0xf]
  %v34 = vld [vmem:[%s0 + $0x50] sm:$0xf]
  %v35 = vld [vmem:[%s0 + $0x54] sm:$0xf]
  %v36 = vld [vmem:[%s0 + $0x58] sm:$0xf]
  %v37 = vld [vmem:[%s0 + $0x5c] sm:$0xf]
  %v38 = vld [vmem:[%s0 + $0x60] sm:$0xf]
  %v39 = vld [vmem:[%s0 + $0x64] sm:$0xf]
  %v40 = vld [vmem:[%s0 + $0x68] sm:$0xf]
  %v41 = vld [vmem:[%s0 + $0x6c] sm:$0xf]
  %v42 = vld [vmem:[%s0 + $0x70] sm:$0xf]
  %v43 = vld [vmem:[%s0 + $0x74] sm:$0xf]
  %v44 = vld [vmem:[%s0 + $0x78] sm:$0xf]
  %v45 = vld [vmem:[%s0 + $0x7c] sm:$0xf]
  %v46 = vld [vmem:[%s0 + $0x80] sm:$0xf]
  %v47 = vld [vmem:[%s0 + $0x84] sm:$0xf]
  %v48 = vld [vmem:[%s0 + $0x88] sm:$0xf]
  %v49 = vld [vmem:[%s0 + $0x8c] sm:$0xf]
  %v50 = vunpack.c.l.bf16 %v14
  %v51 = vunpack.c.l.bf16 %v15
  %v52 = vunpack.c.l.bf16 %v16
  %v53 = vunpack.c.l.bf16 %v17
  %v54 = vunpack.c.l.bf16 %v18
  %v55 = vunpack.c.l.bf16 %v19
  %v56 = vunpack.c.l.bf16 %v20
  %v57 = vunpack.c.l.bf16 %v21
  %v58 = vunpack.c.l.bf16 %v22
  %v59 = vunpack.c.l.bf16 %v23
  %v60 = vunpack.c.l.bf16 %v24
  %v61 = vunpack.c.l.bf16 %v25
  %v62 = vunpack.c.l.bf16 %v26
  %v63 = vunpack.c.l.bf16 %v27
  %v64 = vunpack.c.l.bf16 %v28
  %v65 = vunpack.c.l.bf16 %v29
  %v66 = vunpack.c.l.bf16 %v30
  %v67 = vunpack.c.l.bf16 %v31
  %v68 = vunpack.c.l.bf16 %v32
  %v69 = vunpack.c.l.bf16 %v33
  %v70 = vunpack.c.l.bf16 %v34
  %v71 = vunpack.c.l.bf16 %v35
  %v72 = vunpack.c.l.bf16 %v36
  %v73 = vunpack.c.l.bf16 %v37
  %v74 = vunpack.c.l.bf16 %v38
  %v75 = vunpack.c.l.bf16 %v39
  %v76 = vunpack.c.l.bf16 %v40
  %v77 = vunpack.c.l.bf16 %v41
  %v78 = vunpack.c.l.bf16 %v42
  %v79 = vunpack.c.l.bf16 %v43
  %v80 = vunpack.c.l.bf16 %v44
  %v81 = vunpack.c.l.bf16 %v45
  %v82 = vunpack.c.l.bf16 %v46
  %v83 = vunpack.c.l.bf16 %v47
  %v84 = vunpack.c.l.bf16 %v48
  %v85 = vunpack.c.l.bf16 %v49
  %v86 = vld [vmem:[%s1] sm:$0x1]
  %v87 = vld [vmem:[%s2] sm:$0x1]
  %vm88 = vcmask 523264
  %v89 = vsel %vm88, %v50, 0.0
  %90 = vadd.xlane.f32.xlu0 %v89
  %v91 = vpop.xlane.xlu0 %90
  %v92 = vsel %vm88, %v51, 0.0
  %93 = vadd.xlane.f32.xlu0 %v92
  %v94 = vpop.xlane.xlu0 %93
  %v95 = vsel %vm88, %v52, 0.0
  %96 = vadd.xlane.f32.xlu0 %v95
  %v97 = vpop.xlane.xlu0 %96
  %v98 = vsel %vm88, %v53, 0.0
  %99 = vadd.xlane.f32.xlu0 %v98
  %v100 = vpop.xlane.xlu0 %99
  %v101 = vsel %vm88, %v54, 0.0
  %102 = vadd.xlane.f32.xlu0 %v101
  %v103 = vpop.xlane.xlu0 %102
  %v104 = vsel %vm88, %v55, 0.0
  %105 = vadd.xlane.f32.xlu0 %v104
  %v106 = vpop.xlane.xlu0 %105
  %v107 = vsel %vm88, %v56, 0.0
  %108 = vadd.xlane.f32.xlu0 %v107
  %v109 = vpop.xlane.xlu0 %108
  %v110 = vsel %vm88, %v57, 0.0
  %111 = vadd.xlane.f32.xlu0 %v110
  %v112 = vpop.xlane.xlu0 %111
  %v113 = vsel %vm88, %v58, 0.0
  %114 = vadd.xlane.f32.xlu0 %v113
  %v115 = vpop.xlane.xlu0 %114
  %v116 = vsel %vm88, %v59, 0.0
  %117 = vadd.xlane.f32.xlu0 %v116
  %v118 = vpop.xlane.xlu0 %117
  %v119 = vsel %vm88, %v60, 0.0
  %120 = vadd.xlane.f32.xlu0 %v119
  %v121 = vpop.xlane.xlu0 %120
  %v122 = vsel %vm88, %v61, 0.0
  %123 = vadd.xlane.f32.xlu0 %v122
  %v124 = vpop.xlane.xlu0 %123
  %v125 = vsel %vm88, %v62, 0.0
  %126 = vadd.xlane.f32.xlu0 %v125
  %v127 = vpop.xlane.xlu0 %126
  %v128 = vsel %vm88, %v63, 0.0
  %129 = vadd.xlane.f32.xlu0 %v128
  %v130 = vpop.xlane.xlu0 %129
  %v131 = vsel %vm88, %v64, 0.0
  %132 = vadd.xlane.f32.xlu0 %v131
  %v133 = vpop.xlane.xlu0 %132
  %v134 = vsel %vm88, %v65, 0.0
  %135 = vadd.xlane.f32.xlu0 %v134
  %v136 = vpop.xlane.xlu0 %135
  %v137 = vsel %vm88, %v66, 0.0
  %138 = vadd.xlane.f32.xlu0 %v137
  %v139 = vpop.xlane.xlu0 %138
  %v140 = vsel %vm88, %v67, 0.0
  %141 = vadd.xlane.f32.xlu0 %v140
  %v142 = vpop.xlane.xlu0 %141
  %v143 = vsel %vm88, %v68, 0.0
  %144 = vadd.xlane.f32.xlu0 %v143
  %v145 = vpop.xlane.xlu0 %144
  %v146 = vsel %vm88, %v69, 0.0
  %147 = vadd.xlane.f32.xlu0 %v146
  %v148 = vpop.xlane.xlu0 %147
  %v149 = vsel %vm88, %v70, 0.0
  %150 = vadd.xlane.f32.xlu0 %v149
  %v151 = vpop.xlane.xlu0 %150
  %v152 = vsel %vm88, %v71, 0.0
  %153 = vadd.xlane.f32.xlu0 %v152
  %v154 = vpop.xlane.xlu0 %153
  %v155 = vsel %vm88, %v72, 0.0
  %156 = vadd.xlane.f32.xlu0 %v155
  %v157 = vpop.xlane.xlu0 %156
  %v158 = vsel %vm88, %v73, 0.0
  %159 = vadd.xlane.f32.xlu0 %v158
  %v160 = vpop.xlane.xlu0 %159
  %v161 = vsel %vm88, %v74, 0.0
  %162 = vadd.xlane.f32.xlu0 %v161
  %v163 = vpop.xlane.xlu0 %162
  %v164 = vsel %vm88, %v75, 0.0
  %165 = vadd.xlane.f32.xlu0 %v164
  %v166 = vpop.xlane.xlu0 %165
  %v167 = vsel %vm88, %v76, 0.0
  %168 = vadd.xlane.f32.xlu0 %v167
  %v169 = vpop.xlane.xlu0 %168
  %v170 = vsel %vm88, %v77, 0.0
  %171 = vadd.xlane.f32.xlu0 %v170
  %v172 = vpop.xlane.xlu0 %171
  %v173 = vsel %vm88, %v78, 0.0
  %174 = vadd.xlane.f32.xlu0 %v173
  %v175 = vpop.xlane.xlu0 %174
  %v176 = vsel %vm88, %v79, 0.0
  %177 = vadd.xlane.f32.xlu0 %v176
  %v178 = vpop.xlane.xlu0 %177
  %v179 = vsel %vm88, %v80, 0.0
  %180 = vadd.xlane.f32.xlu0 %v179
  %v181 = vpop.xlane.xlu0 %180
  %v182 = vsel %vm88, %v81, 0.0
  %183 = vadd.xlane.f32.xlu0 %v182
  %v184 = vpop.xlane.xlu0 %183
  %v185 = vsel %vm88, %v82, 0.0
  %186 = vadd.xlane.f32.xlu0 %v185
  %v187 = vpop.xlane.xlu0 %186
  %v188 = vsel %vm88, %v83, 0.0
  %189 = vadd.xlane.f32.xlu0 %v188
  %v190 = vpop.xlane.xlu0 %189
  %v191 = vsel %vm88, %v84, 0.0
  %192 = vadd.xlane.f32.xlu0 %v191
  %v193 = vpop.xlane.xlu0 %192
  %v194 = vsel %vm88, %v85, 0.0
  %195 = vadd.xlane.f32.xlu0 %v194
  %v196 = vpop.xlane.xlu0 %195
  %v197 = vrcp.pop 64.0
  %v198 = vmul.f32 64.0, %v197
  %v199 = vsub.f32 1.0, %v198
  %v200 = vmul.f32 %v197, %v199
  %v201 = vadd.f32 %v197, %v200
  %vm202 = vweird.f32 %v197
  %v203 = vsel %vm202, %v197, %v201
  %v204 = vmul.f32 %v91, %v203
  %v205 = vmul.f32 %v94, %v203
  %v206 = vmul.f32 %v97, %v203
  %v207 = vmul.f32 %v100, %v203
  %v208 = vmul.f32 %v103, %v203
  %v209 = vmul.f32 %v106, %v203
  %v210 = vmul.f32 %v109, %v203
  %v211 = vmul.f32 %v112, %v203
  %v212 = vmul.f32 %v115, %v203
  %v213 = vmul.f32 %v118, %v203
  %v214 = vmul.f32 %v121, %v203
  %v215 = vmul.f32 %v124, %v203
  %v216 = vmul.f32 %v127, %v203
  %v217 = vmul.f32 %v130, %v203
  %v218 = vmul.f32 %v133, %v203
  %v219 = vmul.f32 %v136, %v203
  %v220 = vmul.f32 %v139, %v203
  %v221 = vmul.f32 %v142, %v203
  %v222 = vmul.f32 %v145, %v203
  %v223 = vmul.f32 %v148, %v203
  %v224 = vmul.f32 %v151, %v203
  %v225 = vmul.f32 %v154, %v203
  %v226 = vmul.f32 %v157, %v203
  %v227 = vmul.f32 %v160, %v203
  %v228 = vmul.f32 %v163, %v203
  %v229 = vmul.f32 %v166, %v203
  %v230 = vmul.f32 %v169, %v203
  %v231 = vmul.f32 %v172, %v203
  %v232 = vmul.f32 %v175, %v203
  %v233 = vmul.f32 %v178, %v203
  %v234 = vmul.f32 %v181, %v203
  %v235 = vmul.f32 %v184, %v203
  %v236 = vmul.f32 %v187, %v203
  %v237 = vmul.f32 %v190, %v203
  %v238 = vmul.f32 %v193, %v203
  %v239 = vmul.f32 %v196, %v203
  %v240 = vsub.f32 %v50, %v204
  %v241 = vsub.f32 %v51, %v205
  %v242 = vsub.f32 %v52, %v206
  %v243 = vsub.f32 %v53, %v207
  %v244 = vsub.f32 %v54, %v208
  %v245 = vsub.f32 %v55, %v209
  %v246 = vsub.f32 %v56, %v210
  %v247 = vsub.f32 %v57, %v211
  %v248 = vsub.f32 %v58, %v212
  %v249 = vsub.f32 %v59, %v213
  %v250 = vsub.f32 %v60, %v214
  %v251 = vsub.f32 %v61, %v215
  %v252 = vsub.f32 %v62, %v216
  %v253 = vsub.f32 %v63, %v217
  %v254 = vsub.f32 %v64, %v218
  %v255 = vsub.f32 %v65, %v219
  %v256 = vsub.f32 %v66, %v220
  %v257 = vsub.f32 %v67, %v221
  %v258 = vsub.f32 %v68, %v222
  %v259 = vsub.f32 %v69, %v223
  %v260 = vsub.f32 %v70, %v224
  %v261 = vsub.f32 %v71, %v225
  %v262 = vsub.f32 %v72, %v226
  %v263 = vsub.f32 %v73, %v227
  %v264 = vsub.f32 %v74, %v228
  %v265 = vsub.f32 %v75, %v229
  %v266 = vsub.f32 %v76, %v230
  %v267 = vsub.f32 %v77, %v231
  %v268 = vsub.f32 %v78, %v232
  %v269 = vsub.f32 %v79, %v233
  %v270 = vsub.f32 %v80, %v234
  %v271 = vsub.f32 %v81, %v235
  %v272 = vsub.f32 %v82, %v236
  %v273 = vsub.f32 %v83, %v237
  %v274 = vsub.f32 %v84, %v238
  %v275 = vsub.f32 %v85, %v239
  %v276 = vmul.f32 %v240, %v240
  %v277 = vmul.f32 %v241, %v241
  %v278 = vmul.f32 %v242, %v242
  %v279 = vmul.f32 %v243, %v243
  %v280 = vmul.f32 %v244, %v244
  %v281 = vmul.f32 %v245, %v245
  %v282 = vmul.f32 %v246, %v246
  %v283 = vmul.f32 %v247, %v247
  %v284 = vmul.f32 %v248, %v248
  %v285 = vmul.f32 %v249, %v249
  %v286 = vmul.f32 %v250, %v250
  %v287 = vmul.f32 %v251, %v251
  %v288 = vmul.f32 %v252, %v252
  %v289 = vmul.f32 %v253, %v253
  %v290 = vmul.f32 %v254, %v254
  %v291 = vmul.f32 %v255, %v255
  %v292 = vmul.f32 %v256, %v256
  %v293 = vmul.f32 %v257, %v257
  %v294 = vmul.f32 %v258, %v258
  %v295 = vmul.f32 %v259, %v259
  %v296 = vmul.f32 %v260, %v260
  %v297 = vmul.f32 %v261, %v261
  %v298 = vmul.f32 %v262, %v262
  %v299 = vmul.f32 %v263, %v263
  %v300 = vmul.f32 %v264, %v264
  %v301 = vmul.f32 %v265, %v265
  %v302 = vmul.f32 %v266, %v266
  %v303 = vmul.f32 %v267, %v267
  %v304 = vmul.f32 %v268, %v268
  %v305 = vmul.f32 %v269, %v269
  %v306 = vmul.f32 %v270, %v270
  %v307 = vmul.f32 %v271, %v271
  %v308 = vmul.f32 %v272, %v272
  %v309 = vmul.f32 %v273, %v273
  %v310 = vmul.f32 %v274, %v274
  %v311 = vmul.f32 %v275, %v275
  %v312 = vsel %vm88, %v276, 0.0
  %313 = vadd.xlane.f32.xlu0 %v312
  %v314 = vpop.xlane.xlu0 %313
  %v315 = vsel %vm88, %v277, 0.0
  %316 = vadd.xlane.f32.xlu0 %v315
  %v317 = vpop.xlane.xlu0 %316
  %v318 = vsel %vm88, %v278, 0.0
  %319 = vadd.xlane.f32.xlu0 %v318
  %v320 = vpop.xlane.xlu0 %319
  %v321 = vsel %vm88, %v279, 0.0
  %322 = vadd.xlane.f32.xlu0 %v321
  %v323 = vpop.xlane.xlu0 %322
  %v324 = vsel %vm88, %v280, 0.0
  %325 = vadd.xlane.f32.xlu0 %v324
  %v326 = vpop.xlane.xlu0 %325
  %v327 = vsel %vm88, %v281, 0.0
  %328 = vadd.xlane.f32.xlu0 %v327
  %v329 = vpop.xlane.xlu0 %328
  %v330 = vsel %vm88, %v282, 0.0
  %331 = vadd.xlane.f32.xlu0 %v330
  %v332 = vpop.xlane.xlu0 %331
  %v333 = vsel %vm88, %v283, 0.0
  %334 = vadd.xlane.f32.xlu0 %v333
  %v335 = vpop.xlane.xlu0 %334
  %v336 = vsel %vm88, %v284, 0.0
  %337 = vadd.xlane.f32.xlu0 %v336
  %v338 = vpop.xlane.xlu0 %337
  %v339 = vsel %vm88, %v285, 0.0
  %340 = vadd.xlane.f32.xlu0 %v339
  %v341 = vpop.xlane.xlu0 %340
  %v342 = vsel %vm88, %v286, 0.0
  %343 = vadd.xlane.f32.xlu0 %v342
  %v344 = vpop.xlane.xlu0 %343
  %v345 = vsel %vm88, %v287, 0.0
  %346 = vadd.xlane.f32.xlu0 %v345
  %v347 = vpop.xlane.xlu0 %346
  %v348 = vsel %vm88, %v288, 0.0
  %349 = vadd.xlane.f32.xlu0 %v348
  %v350 = vpop.xlane.xlu0 %349
  %v351 = vsel %vm88, %v289, 0.0
  %352 = vadd.xlane.f32.xlu0 %v351
  %v353 = vpop.xlane.xlu0 %352
  %v354 = vsel %vm88, %v290, 0.0
  %355 = vadd.xlane.f32.xlu0 %v354
  %v356 = vpop.xlane.xlu0 %355
  %v357 = vsel %vm88, %v291, 0.0
  %358 = vadd.xlane.f32.xlu0 %v357
  %v359 = vpop.xlane.xlu0 %358
  %v360 = vsel %vm88, %v292, 0.0
  %361 = vadd.xlane.f32.xlu0 %v360
  %v362 = vpop.xlane.xlu0 %361
  %v363 = vsel %vm88, %v293, 0.0
  %364 = vadd.xlane.f32.xlu0 %v363
  %v365 = vpop.xlane.xlu0 %364
  %v366 = vsel %vm88, %v294, 0.0
  %367 = vadd.xlane.f32.xlu0 %v366
  %v368 = vpop.xlane.xlu0 %367
  %v369 = vsel %vm88, %v295, 0.0
  %370 = vadd.xlane.f32.xlu0 %v369
  %v371 = vpop.xlane.xlu0 %370
  %v372 = vsel %vm88, %v296, 0.0
  %373 = vadd.xlane.f32.xlu0 %v372
  %v374 = vpop.xlane.xlu0 %373
  %v375 = vsel %vm88, %v297, 0.0
  %376 = vadd.xlane.f32.xlu0 %v375
  %v377 = vpop.xlane.xlu0 %376
  %v378 = vsel %vm88, %v298, 0.0
  %379 = vadd.xlane.f32.xlu0 %v378
  %v380 = vpop.xlane.xlu0 %379
  %v381 = vsel %vm88, %v299, 0.0
  %382 = vadd.xlane.f32.xlu0 %v381
  %v383 = vpop.xlane.xlu0 %382
  %v384 = vsel %vm88, %v300, 0.0
  %385 = vadd.xlane.f32.xlu0 %v384
  %v386 = vpop.xlane.xlu0 %385
  %v387 = vsel %vm88, %v301, 0.0
  %388 = vadd.xlane.f32.xlu0 %v387
  %v389 = vpop.xlane.xlu0 %388
  %v390 = vsel %vm88, %v302, 0.0
  %391 = vadd.xlane.f32.xlu0 %v390
  %v392 = vpop.xlane.xlu0 %391
  %v393 = vsel %vm88, %v303, 0.0
  %394 = vadd.xlane.f32.xlu0 %v393
  %v395 = vpop.xlane.xlu0 %394
  %v396 = vsel %vm88, %v304, 0.0
  %397 = vadd.xlane.f32.xlu0 %v396
  %v398 = vpop.xlane.xlu0 %397
  %v399 = vsel %vm88, %v305, 0.0
  %400 = vadd.xlane.f32.xlu0 %v399
  %v401 = vpop.xlane.xlu0 %400
  %v402 = vsel %vm88, %v306, 0.0
  %403 = vadd.xlane.f32.xlu0 %v402
  %v404 = vpop.xlane.xlu0 %403
  %v405 = vsel %vm88, %v307, 0.0
  %406 = vadd.xlane.f32.xlu0 %v405
  %v407 = vpop.xlane.xlu0 %406
  %v408 = vsel %vm88, %v308, 0.0
  %409 = vadd.xlane.f32.xlu0 %v408
  %v410 = vpop.xlane.xlu0 %409
  %v411 = vsel %vm88, %v309, 0.0
  %412 = vadd.xlane.f32.xlu0 %v411
  %v413 = vpop.xlane.xlu0 %412
  %v414 = vsel %vm88, %v310, 0.0
  %415 = vadd.xlane.f32.xlu0 %v414
  %v416 = vpop.xlane.xlu0 %415
  %v417 = vsel %vm88, %v311, 0.0
  %418 = vadd.xlane.f32.xlu0 %v417
  %v419 = vpop.xlane.xlu0 %418
  %v420 = vmul.f32 %v314, %v203
  %v421 = vmul.f32 %v317, %v203
  %v422 = vmul.f32 %v320, %v203
  %v423 = vmul.f32 %v323, %v203
  %v424 = vmul.f32 %v326, %v203
  %v425 = vmul.f32 %v329, %v203
  %v426 = vmul.f32 %v332, %v203
  %v427 = vmul.f32 %v335, %v203
  %v428 = vmul.f32 %v338, %v203
  %v429 = vmul.f32 %v341, %v203
  %v430 = vmul.f32 %v344, %v203
  %v431 = vmul.f32 %v347, %v203
  %v432 = vmul.f32 %v350, %v203
  %v433 = vmul.f32 %v353, %v203
  %v434 = vmul.f32 %v356, %v203
  %v435 = vmul.f32 %v359, %v203
  %v436 = vmul.f32 %v362, %v203
  %v437 = vmul.f32 %v365, %v203
  %v438 = vmul.f32 %v368, %v203
  %v439 = vmul.f32 %v371, %v203
  %v440 = vmul.f32 %v374, %v203
  %v441 = vmul.f32 %v377, %v203
  %v442 = vmul.f32 %v380, %v203
  %v443 = vmul.f32 %v383, %v203
  %v444 = vmul.f32 %v386, %v203
  %v445 = vmul.f32 %v389, %v203
  %v446 = vmul.f32 %v392, %v203
  %v447 = vmul.f32 %v395, %v203
  %v448 = vmul.f32 %v398, %v203
  %v449 = vmul.f32 %v401, %v203
  %v450 = vmul.f32 %v404, %v203
  %v451 = vmul.f32 %v407, %v203
  %v452 = vmul.f32 %v410, %v203
  %v453 = vmul.f32 %v413, %v203
  %v454 = vmul.f32 %v416, %v203
  %v455 = vmul.f32 %v419, %v203
  %v456 = vadd.f32 %v420, 1e-05
  %v457 = vadd.f32 %v421, 1e-05
  %v458 = vadd.f32 %v422, 1e-05
  %v459 = vadd.f32 %v423, 1e-05
  %v460 = vadd.f32 %v424, 1e-05
  %v461 = vadd.f32 %v425, 1e-05
  %v462 = vadd.f32 %v426, 1e-05
  %v463 = vadd.f32 %v427, 1e-05
  %v464 = vadd.f32 %v428, 1e-05
  %v465 = vadd.f32 %v429, 1e-05
  %v466 = vadd.f32 %v430, 1e-05
  %v467 = vadd.f32 %v431, 1e-05
  %v468 = vadd.f32 %v432, 1e-05
  %v469 = vadd.f32 %v433, 1e-05
  %v470 = vadd.f32 %v434, 1e-05
  %v471 = vadd.f32 %v435, 1e-05
  %v472 = vadd.f32 %v436, 1e-05
  %v473 = vadd.f32 %v437, 1e-05
  %v474 = vadd.f32 %v438, 1e-05
  %v475 = vadd.f32 %v439, 1e-05
  %v476 = vadd.f32 %v440, 1e-05
  %v477 = vadd.f32 %v441, 1e-05
  %v478 = vadd.f32 %v442, 1e-05
  %v479 = vadd.f32 %v443, 1e-05
  %v480 = vadd.f32 %v444, 1e-05
  %v481 = vadd.f32 %v445, 1e-05
  %v482 = vadd.f32 %v446, 1e-05
  %v483 = vadd.f32 %v447, 1e-05
  %v484 = vadd.f32 %v448, 1e-05
  %v485 = vadd.f32 %v449, 1e-05
  %v486 = vadd.f32 %v450, 1e-05
  %v487 = vadd.f32 %v451, 1e-05
  %v488 = vadd.f32 %v452, 1e-05
  %v489 = vadd.f32 %v453, 1e-05
  %v490 = vadd.f32 %v454, 1e-05
  %v491 = vadd.f32 %v455, 1e-05
  %v492 = vrsqrt.pop %v456
  %v493 = vmul.f32 %v492, %v456
  %v494 = vmul.f32 %v493, %v492
  %v495 = vmul.f32 0.5, %v494
  %v496 = vsub.f32 1.5, %v495
  %v497 = vmul.f32 %v492, %v496
  %vm498 = vweird.f32 %v456
  %vm499 = vweird.f32 %v492
  %vm500 = vmor %vm498, %vm499
  %v501 = vsel %vm500, %v492, %v497
  %v502 = vrsqrt.pop %v457
  %v503 = vmul.f32 %v502, %v457
  %v504 = vmul.f32 %v503, %v502
  %v505 = vmul.f32 0.5, %v504
  %v506 = vsub.f32 1.5, %v505
  %v507 = vmul.f32 %v502, %v506
  %vm508 = vweird.f32 %v457
  %vm509 = vweird.f32 %v502
  %vm510 = vmor %vm508, %vm509
  %v511 = vsel %vm510, %v502, %v507
  %v512 = vrsqrt.pop %v458
  %v513 = vmul.f32 %v512, %v458
  %v514 = vmul.f32 %v513, %v512
  %v515 = vmul.f32 0.5, %v514
  %v516 = vsub.f32 1.5, %v515
  %v517 = vmul.f32 %v512, %v516
  %vm518 = vweird.f32 %v458
  %vm519 = vweird.f32 %v512
  %vm520 = vmor %vm518, %vm519
  %v521 = vsel %vm520, %v512, %v517
  %v522 = vrsqrt.pop %v459
  %v523 = vmul.f32 %v522, %v459
  %v524 = vmul.f32 %v523, %v522
  %v525 = vmul.f32 0.5, %v524
  %v526 = vsub.f32 1.5, %v525
  %v527 = vmul.f32 %v522, %v526
  %vm528 = vweird.f32 %v459
  %vm529 = vweird.f32 %v522
  %vm530 = vmor %vm528, %vm529
  %v531 = vsel %vm530, %v522, %v527
  %v532 = vrsqrt.pop %v460
  %v533 = vmul.f32 %v532, %v460
  %v534 = vmul.f32 %v533, %v532
  %v535 = vmul.f32 0.5, %v534
  %v536 = vsub.f32 1.5, %v535
  %v537 = vmul.f32 %v532, %v536
  %vm538 = vweird.f32 %v460
  %vm539 = vweird.f32 %v532
  %vm540 = vmor %vm538, %vm539
  %v541 = vsel %vm540, %v532, %v537
  %v542 = vrsqrt.pop %v461
  %v543 = vmul.f32 %v542, %v461
  %v544 = vmul.f32 %v543, %v542
  %v545 = vmul.f32 0.5, %v544
  %v546 = vsub.f32 1.5, %v545
  %v547 = vmul.f32 %v542, %v546
  %vm548 = vweird.f32 %v461
  %vm549 = vweird.f32 %v542
  %vm550 = vmor %vm548, %vm549
  %v551 = vsel %vm550, %v542, %v547
  %v552 = vrsqrt.pop %v462
  %v553 = vmul.f32 %v552, %v462
  %v554 = vmul.f32 %v553, %v552
  %v555 = vmul.f32 0.5, %v554
  %v556 = vsub.f32 1.5, %v555
  %v557 = vmul.f32 %v552, %v556
  %vm558 = vweird.f32 %v462
  %vm559 = vweird.f32 %v552
  %vm560 = vmor %vm558, %vm559
  %v561 = vsel %vm560, %v552, %v557
  %v562 = vrsqrt.pop %v463
  %v563 = vmul.f32 %v562, %v463
  %v564 = vmul.f32 %v563, %v562
  %v565 = vmul.f32 0.5, %v564
  %v566 = vsub.f32 1.5, %v565
  %v567 = vmul.f32 %v562, %v566
  %vm568 = vweird.f32 %v463
  %vm569 = vweird.f32 %v562
  %vm570 = vmor %vm568, %vm569
  %v571 = vsel %vm570, %v562, %v567
  %v572 = vrsqrt.pop %v464
  %v573 = vmul.f32 %v572, %v464
  %v574 = vmul.f32 %v573, %v572
  %v575 = vmul.f32 0.5, %v574
  %v576 = vsub.f32 1.5, %v575
  %v577 = vmul.f32 %v572, %v576
  %vm578 = vweird.f32 %v464
  %vm579 = vweird.f32 %v572
  %vm580 = vmor %vm578, %vm579
  %v581 = vsel %vm580, %v572, %v577
  %v582 = vrsqrt.pop %v465
  %v583 = vmul.f32 %v582, %v465
  %v584 = vmul.f32 %v583, %v582
  %v585 = vmul.f32 0.5, %v584
  %v586 = vsub.f32 1.5, %v585
  %v587 = vmul.f32 %v582, %v586
  %vm588 = vweird.f32 %v465
  %vm589 = vweird.f32 %v582
  %vm590 = vmor %vm588, %vm589
  %v591 = vsel %vm590, %v582, %v587
  %v592 = vrsqrt.pop %v466
  %v593 = vmul.f32 %v592, %v466
  %v594 = vmul.f32 %v593, %v592
  %v595 = vmul.f32 0.5, %v594
  %v596 = vsub.f32 1.5, %v595
  %v597 = vmul.f32 %v592, %v596
  %vm598 = vweird.f32 %v466
  %vm599 = vweird.f32 %v592
  %vm600 = vmor %vm598, %vm599
  %v601 = vsel %vm600, %v592, %v597
  %v602 = vrsqrt.pop %v467
  %v603 = vmul.f32 %v602, %v467
  %v604 = vmul.f32 %v603, %v602
  %v605 = vmul.f32 0.5, %v604
  %v606 = vsub.f32 1.5, %v605
  %v607 = vmul.f32 %v602, %v606
  %vm608 = vweird.f32 %v467
  %vm609 = vweird.f32 %v602
  %vm610 = vmor %vm608, %vm609
  %v611 = vsel %vm610, %v602, %v607
  %v612 = vrsqrt.pop %v468
  %v613 = vmul.f32 %v612, %v468
  %v614 = vmul.f32 %v613, %v612
  %v615 = vmul.f32 0.5, %v614
  %v616 = vsub.f32 1.5, %v615
  %v617 = vmul.f32 %v612, %v616
  %vm618 = vweird.f32 %v468
  %vm619 = vweird.f32 %v612
  %vm620 = vmor %vm618, %vm619
  %v621 = vsel %vm620, %v612, %v617
  %v622 = vrsqrt.pop %v469
  %v623 = vmul.f32 %v622, %v469
  %v624 = vmul.f32 %v623, %v622
  %v625 = vmul.f32 0.5, %v624
  %v626 = vsub.f32 1.5, %v625
  %v627 = vmul.f32 %v622, %v626
  %vm628 = vweird.f32 %v469
  %vm629 = vweird.f32 %v622
  %vm630 = vmor %vm628, %vm629
  %v631 = vsel %vm630, %v622, %v627
  %v632 = vrsqrt.pop %v470
  %v633 = vmul.f32 %v632, %v470
  %v634 = vmul.f32 %v633, %v632
  %v635 = vmul.f32 0.5, %v634
  %v636 = vsub.f32 1.5, %v635
  %v637 = vmul.f32 %v632, %v636
  %vm638 = vweird.f32 %v470
  %vm639 = vweird.f32 %v632
  %vm640 = vmor %vm638, %vm639
  %v641 = vsel %vm640, %v632, %v637
  %v642 = vrsqrt.pop %v471
  %v643 = vmul.f32 %v642, %v471
  %v644 = vmul.f32 %v643, %v642
  %v645 = vmul.f32 0.5, %v644
  %v646 = vsub.f32 1.5, %v645
  %v647 = vmul.f32 %v642, %v646
  %vm648 = vweird.f32 %v471
  %vm649 = vweird.f32 %v642
  %vm650 = vmor %vm648, %vm649
  %v651 = vsel %vm650, %v642, %v647
  %v652 = vrsqrt.pop %v472
  %v653 = vmul.f32 %v652, %v472
  %v654 = vmul.f32 %v653, %v652
  %v655 = vmul.f32 0.5, %v654
  %v656 = vsub.f32 1.5, %v655
  %v657 = vmul.f32 %v652, %v656
  %vm658 = vweird.f32 %v472
  %vm659 = vweird.f32 %v652
  %vm660 = vmor %vm658, %vm659
  %v661 = vsel %vm660, %v652, %v657
  %v662 = vrsqrt.pop %v473
  %v663 = vmul.f32 %v662, %v473
  %v664 = vmul.f32 %v663, %v662
  %v665 = vmul.f32 0.5, %v664
  %v666 = vsub.f32 1.5, %v665
  %v667 = vmul.f32 %v662, %v666
  %vm668 = vweird.f32 %v473
  %vm669 = vweird.f32 %v662
  %vm670 = vmor %vm668, %vm669
  %v671 = vsel %vm670, %v662, %v667
  %v672 = vrsqrt.pop %v474
  %v673 = vmul.f32 %v672, %v474
  %v674 = vmul.f32 %v673, %v672
  %v675 = vmul.f32 0.5, %v674
  %v676 = vsub.f32 1.5, %v675
  %v677 = vmul.f32 %v672, %v676
  %vm678 = vweird.f32 %v474
  %vm679 = vweird.f32 %v672
  %vm680 = vmor %vm678, %vm679
  %v681 = vsel %vm680, %v672, %v677
  %v682 = vrsqrt.pop %v475
  %v683 = vmul.f32 %v682, %v475
  %v684 = vmul.f32 %v683, %v682
  %v685 = vmul.f32 0.5, %v684
  %v686 = vsub.f32 1.5, %v685
  %v687 = vmul.f32 %v682, %v686
  %vm688 = vweird.f32 %v475
  %vm689 = vweird.f32 %v682
  %vm690 = vmor %vm688, %vm689
  %v691 = vsel %vm690, %v682, %v687
  %v692 = vrsqrt.pop %v476
  %v693 = vmul.f32 %v692, %v476
  %v694 = vmul.f32 %v693, %v692
  %v695 = vmul.f32 0.5, %v694
  %v696 = vsub.f32 1.5, %v695
  %v697 = vmul.f32 %v692, %v696
  %vm698 = vweird.f32 %v476
  %vm699 = vweird.f32 %v692
  %vm700 = vmor %vm698, %vm699
  %v701 = vsel %vm700, %v692, %v697
  %v702 = vrsqrt.pop %v477
  %v703 = vmul.f32 %v702, %v477
  %v704 = vmul.f32 %v703, %v702
  %v705 = vmul.f32 0.5, %v704
  %v706 = vsub.f32 1.5, %v705
  %v707 = vmul.f32 %v702, %v706
  %vm708 = vweird.f32 %v477
  %vm709 = vweird.f32 %v702
  %vm710 = vmor %vm708, %vm709
  %v711 = vsel %vm710, %v702, %v707
  %v712 = vrsqrt.pop %v478
  %v713 = vmul.f32 %v712, %v478
  %v714 = vmul.f32 %v713, %v712
  %v715 = vmul.f32 0.5, %v714
  %v716 = vsub.f32 1.5, %v715
  %v717 = vmul.f32 %v712, %v716
  %vm718 = vweird.f32 %v478
  %vm719 = vweird.f32 %v712
  %vm720 = vmor %vm718, %vm719
  %v721 = vsel %vm720, %v712, %v717
  %v722 = vrsqrt.pop %v479
  %v723 = vmul.f32 %v722, %v479
  %v724 = vmul.f32 %v723, %v722
  %v725 = vmul.f32 0.5, %v724
  %v726 = vsub.f32 1.5, %v725
  %v727 = vmul.f32 %v722, %v726
  %vm728 = vweird.f32 %v479
  %vm729 = vweird.f32 %v722
  %vm730 = vmor %vm728, %vm729
  %v731 = vsel %vm730, %v722, %v727
  %v732 = vrsqrt.pop %v480
  %v733 = vmul.f32 %v732, %v480
  %v734 = vmul.f32 %v733, %v732
  %v735 = vmul.f32 0.5, %v734
  %v736 = vsub.f32 1.5, %v735
  %v737 = vmul.f32 %v732, %v736
  %vm738 = vweird.f32 %v480
  %vm739 = vweird.f32 %v732
  %vm740 = vmor %vm738, %vm739
  %v741 = vsel %vm740, %v732, %v737
  %v742 = vrsqrt.pop %v481
  %v743 = vmul.f32 %v742, %v481
  %v744 = vmul.f32 %v743, %v742
  %v745 = vmul.f32 0.5, %v744
  %v746 = vsub.f32 1.5, %v745
  %v747 = vmul.f32 %v742, %v746
  %vm748 = vweird.f32 %v481
  %vm749 = vweird.f32 %v742
  %vm750 = vmor %vm748, %vm749
  %v751 = vsel %vm750, %v742, %v747
  %v752 = vrsqrt.pop %v482
  %v753 = vmul.f32 %v752, %v482
  %v754 = vmul.f32 %v753, %v752
  %v755 = vmul.f32 0.5, %v754
  %v756 = vsub.f32 1.5, %v755
  %v757 = vmul.f32 %v752, %v756
  %vm758 = vweird.f32 %v482
  %vm759 = vweird.f32 %v752
  %vm760 = vmor %vm758, %vm759
  %v761 = vsel %vm760, %v752, %v757
  %v762 = vrsqrt.pop %v483
  %v763 = vmul.f32 %v762, %v483
  %v764 = vmul.f32 %v763, %v762
  %v765 = vmul.f32 0.5, %v764
  %v766 = vsub.f32 1.5, %v765
  %v767 = vmul.f32 %v762, %v766
  %vm768 = vweird.f32 %v483
  %vm769 = vweird.f32 %v762
  %vm770 = vmor %vm768, %vm769
  %v771 = vsel %vm770, %v762, %v767
  %v772 = vrsqrt.pop %v484
  %v773 = vmul.f32 %v772, %v484
  %v774 = vmul.f32 %v773, %v772
  %v775 = vmul.f32 0.5, %v774
  %v776 = vsub.f32 1.5, %v775
  %v777 = vmul.f32 %v772, %v776
  %vm778 = vweird.f32 %v484
  %vm779 = vweird.f32 %v772
  %vm780 = vmor %vm778, %vm779
  %v781 = vsel %vm780, %v772, %v777
  %v782 = vrsqrt.pop %v485
  %v783 = vmul.f32 %v782, %v485
  %v784 = vmul.f32 %v783, %v782
  %v785 = vmul.f32 0.5, %v784
  %v786 = vsub.f32 1.5, %v785
  %v787 = vmul.f32 %v782, %v786
  %vm788 = vweird.f32 %v485
  %vm789 = vweird.f32 %v782
  %vm790 = vmor %vm788, %vm789
  %v791 = vsel %vm790, %v782, %v787
  %v792 = vrsqrt.pop %v486
  %v793 = vmul.f32 %v792, %v486
  %v794 = vmul.f32 %v793, %v792
  %v795 = vmul.f32 0.5, %v794
  %v796 = vsub.f32 1.5, %v795
  %v797 = vmul.f32 %v792, %v796
  %vm798 = vweird.f32 %v486
  %vm799 = vweird.f32 %v792
  %vm800 = vmor %vm798, %vm799
  %v801 = vsel %vm800, %v792, %v797
  %v802 = vrsqrt.pop %v487
  %v803 = vmul.f32 %v802, %v487
  %v804 = vmul.f32 %v803, %v802
  %v805 = vmul.f32 0.5, %v804
  %v806 = vsub.f32 1.5, %v805
  %v807 = vmul.f32 %v802, %v806
  %vm808 = vweird.f32 %v487
  %vm809 = vweird.f32 %v802
  %vm810 = vmor %vm808, %vm809
  %v811 = vsel %vm810, %v802, %v807
  %v812 = vrsqrt.pop %v488
  %v813 = vmul.f32 %v812, %v488
  %v814 = vmul.f32 %v813, %v812
  %v815 = vmul.f32 0.5, %v814
  %v816 = vsub.f32 1.5, %v815
  %v817 = vmul.f32 %v812, %v816
  %vm818 = vweird.f32 %v488
  %vm819 = vweird.f32 %v812
  %vm820 = vmor %vm818, %vm819
  %v821 = vsel %vm820, %v812, %v817
  %v822 = vrsqrt.pop %v489
  %v823 = vmul.f32 %v822, %v489
  %v824 = vmul.f32 %v823, %v822
  %v825 = vmul.f32 0.5, %v824
  %v826 = vsub.f32 1.5, %v825
  %v827 = vmul.f32 %v822, %v826
  %vm828 = vweird.f32 %v489
  %vm829 = vweird.f32 %v822
  %vm830 = vmor %vm828, %vm829
  %v831 = vsel %vm830, %v822, %v827
  %v832 = vrsqrt.pop %v490
  %v833 = vmul.f32 %v832, %v490
  %v834 = vmul.f32 %v833, %v832
  %v835 = vmul.f32 0.5, %v834
  %v836 = vsub.f32 1.5, %v835
  %v837 = vmul.f32 %v832, %v836
  %vm838 = vweird.f32 %v490
  %vm839 = vweird.f32 %v832
  %vm840 = vmor %vm838, %vm839
  %v841 = vsel %vm840, %v832, %v837
  %v842 = vrsqrt.pop %v491
  %v843 = vmul.f32 %v842, %v491
  %v844 = vmul.f32 %v843, %v842
  %v845 = vmul.f32 0.5, %v844
  %v846 = vsub.f32 1.5, %v845
  %v847 = vmul.f32 %v842, %v846
  %vm848 = vweird.f32 %v491
  %vm849 = vweird.f32 %v842
  %vm850 = vmor %vm848, %vm849
  %v851 = vsel %vm850, %v842, %v847
  %v852 = vmul.f32 %v240, %v501
  %v853 = vmul.f32 %v241, %v511
  %v854 = vmul.f32 %v242, %v521
  %v855 = vmul.f32 %v243, %v531
  %v856 = vmul.f32 %v244, %v541
  %v857 = vmul.f32 %v245, %v551
  %v858 = vmul.f32 %v246, %v561
  %v859 = vmul.f32 %v247, %v571
  %v860 = vmul.f32 %v248, %v581
  %v861 = vmul.f32 %v249, %v591
  %v862 = vmul.f32 %v250, %v601
  %v863 = vmul.f32 %v251, %v611
  %v864 = vmul.f32 %v252, %v621
  %v865 = vmul.f32 %v253, %v631
  %v866 = vmul.f32 %v254, %v641
  %v867 = vmul.f32 %v255, %v651
  %v868 = vmul.f32 %v256, %v661
  %v869 = vmul.f32 %v257, %v671
  %v870 = vmul.f32 %v258, %v681
  %v871 = vmul.f32 %v259, %v691
  %v872 = vmul.f32 %v260, %v701
  %v873 = vmul.f32 %v261, %v711
  %v874 = vmul.f32 %v262, %v721
  %v875 = vmul.f32 %v263, %v731
  %v876 = vmul.f32 %v264, %v741
  %v877 = vmul.f32 %v265, %v751
  %v878 = vmul.f32 %v266, %v761
  %v879 = vmul.f32 %v267, %v771
  %v880 = vmul.f32 %v268, %v781
  %v881 = vmul.f32 %v269, %v791
  %v882 = vmul.f32 %v270, %v801
  %v883 = vmul.f32 %v271, %v811
  %v884 = vmul.f32 %v272, %v821
  %v885 = vmul.f32 %v273, %v831
  %v886 = vmul.f32 %v274, %v841
  %v887 = vmul.f32 %v275, %v851
  %v889 = vperm.slane %v86, 0
  %v891 = vmul.f32 %v852, %v889
  %v892 = vmul.f32 %v853, %v889
  %v893 = vmul.f32 %v854, %v889
  %v894 = vmul.f32 %v855, %v889
  %v895 = vmul.f32 %v856, %v889
  %v896 = vmul.f32 %v857, %v889
  %v897 = vmul.f32 %v858, %v889
  %v898 = vmul.f32 %v859, %v889
  %v899 = vmul.f32 %v860, %v889
  %v900 = vmul.f32 %v861, %v889
  %v901 = vmul.f32 %v862, %v889
  %v902 = vmul.f32 %v863, %v889
  %v903 = vmul.f32 %v864, %v889
  %v904 = vmul.f32 %v865, %v889
  %v905 = vmul.f32 %v866, %v889
  %v906 = vmul.f32 %v867, %v889
  %v907 = vmul.f32 %v868, %v889
  %v908 = vmul.f32 %v869, %v889
  %v909 = vmul.f32 %v870, %v889
  %v910 = vmul.f32 %v871, %v889
  %v911 = vmul.f32 %v872, %v889
  %v912 = vmul.f32 %v873, %v889
  %v913 = vmul.f32 %v874, %v889
  %v914 = vmul.f32 %v875, %v889
  %v915 = vmul.f32 %v876, %v889
  %v916 = vmul.f32 %v877, %v889
  %v917 = vmul.f32 %v878, %v889
  %v918 = vmul.f32 %v879, %v889
  %v919 = vmul.f32 %v880, %v889
  %v920 = vmul.f32 %v881, %v889
  %v921 = vmul.f32 %v882, %v889
  %v922 = vmul.f32 %v883, %v889
  %v923 = vmul.f32 %v884, %v889
  %v924 = vmul.f32 %v885, %v889
  %v925 = vmul.f32 %v886, %v889
  %v926 = vmul.f32 %v887, %v889
  %v928 = vperm.slane %v87, 0
  %v930 = vadd.f32 %v891, %v928
  %v931 = vadd.f32 %v892, %v928
  %v932 = vadd.f32 %v893, %v928
  %v933 = vadd.f32 %v894, %v928
  %v934 = vadd.f32 %v895, %v928
  %v935 = vadd.f32 %v896, %v928
  %v936 = vadd.f32 %v897, %v928
  %v937 = vadd.f32 %v898, %v928
  %v938 = vadd.f32 %v899, %v928
  %v939 = vadd.f32 %v900, %v928
  %v940 = vadd.f32 %v901, %v928
  %v941 = vadd.f32 %v902, %v928
  %v942 = vadd.f32 %v903, %v928
  %v943 = vadd.f32 %v904, %v928
  %v944 = vadd.f32 %v905, %v928
  %v945 = vadd.f32 %v906, %v928
  %v946 = vadd.f32 %v907, %v928
  %v947 = vadd.f32 %v908, %v928
  %v948 = vadd.f32 %v909, %v928
  %v949 = vadd.f32 %v910, %v928
  %v950 = vadd.f32 %v911, %v928
  %v951 = vadd.f32 %v912, %v928
  %v952 = vadd.f32 %v913, %v928
  %v953 = vadd.f32 %v914, %v928
  %v954 = vadd.f32 %v915, %v928
  %v955 = vadd.f32 %v916, %v928
  %v956 = vadd.f32 %v917, %v928
  %v957 = vadd.f32 %v918, %v928
  %v958 = vadd.f32 %v919, %v928
  %v959 = vadd.f32 %v920, %v928
  %v960 = vadd.f32 %v921, %v928
  %v961 = vadd.f32 %v922, %v928
  %v962 = vadd.f32 %v923, %v928
  %v963 = vadd.f32 %v924, %v928
  %v964 = vadd.f32 %v925, %v928
  %v965 = vadd.f32 %v926, %v928
  %v966 = vpack.c.bf16 %v930, %v930
  %v967 = vpack.c.bf16 %v931, %v931
  %v968 = vpack.c.bf16 %v932, %v932
  %v969 = vpack.c.bf16 %v933, %v933
  %v970 = vpack.c.bf16 %v934, %v934
  %v971 = vpack.c.bf16 %v935, %v935
  %v972 = vpack.c.bf16 %v936, %v936
  %v973 = vpack.c.bf16 %v937, %v937
  %v974 = vpack.c.bf16 %v938, %v938
  %v975 = vpack.c.bf16 %v939, %v939
  %v976 = vpack.c.bf16 %v940, %v940
  %v977 = vpack.c.bf16 %v941, %v941
  %v978 = vpack.c.bf16 %v942, %v942
  %v979 = vpack.c.bf16 %v943, %v943
  %v980 = vpack.c.bf16 %v944, %v944
  %v981 = vpack.c.bf16 %v945, %v945
  %v982 = vpack.c.bf16 %v946, %v946
  %v983 = vpack.c.bf16 %v947, %v947
  %v984 = vpack.c.bf16 %v948, %v948
  %v985 = vpack.c.bf16 %v949, %v949
  %v986 = vpack.c.bf16 %v950, %v950
  %v987 = vpack.c.bf16 %v951, %v951
  %v988 = vpack.c.bf16 %v952, %v952
  %v989 = vpack.c.bf16 %v953, %v953
  %v990 = vpack.c.bf16 %v954, %v954
  %v991 = vpack.c.bf16 %v955, %v955
  %v992 = vpack.c.bf16 %v956, %v956
  %v993 = vpack.c.bf16 %v957, %v957
  %v994 = vpack.c.bf16 %v958, %v958
  %v995 = vpack.c.bf16 %v959, %v959
  %v996 = vpack.c.bf16 %v960, %v960
  %v997 = vpack.c.bf16 %v961, %v961
  %v998 = vpack.c.bf16 %v962, %v962
  %v999 = vpack.c.bf16 %v963, %v963
  %v1000 = vpack.c.bf16 %v964, %v964
  %v1001 = vpack.c.bf16 %v965, %v965
  %vm1002 = vcmask 519168
  %1003 = vst.msk [vmem:[%s3] sm:$0xf] %vm1002, %v966
  %1004 = vst.msk [vmem:[%s3 + $0x4] sm:$0xf] %vm1002, %v967
  %1005 = vst.msk [vmem:[%s3 + $0x8] sm:$0xf] %vm1002, %v968
  %1006 = vst.msk [vmem:[%s3 + $0xc] sm:$0xf] %vm1002, %v969
  %1007 = vst.msk [vmem:[%s3 + $0x10] sm:$0xf] %vm1002, %v970
  %1008 = vst.msk [vmem:[%s3 + $0x14] sm:$0xf] %vm1002, %v971
  %1009 = vst.msk [vmem:[%s3 + $0x18] sm:$0xf] %vm1002, %v972
  %1010 = vst.msk [vmem:[%s3 + $0x1c] sm:$0xf] %vm1002, %v973
  %1011 = vst.msk [vmem:[%s3 + $0x20] sm:$0xf] %vm1002, %v974
  %1012 = vst.msk [vmem:[%s3 + $0x24] sm:$0xf] %vm1002, %v975
  %1013 = vst.msk [vmem:[%s3 + $0x28] sm:$0xf] %vm1002, %v976
  %1014 = vst.msk [vmem:[%s3 + $0x2c] sm:$0xf] %vm1002, %v977
  %1015 = vst.msk [vmem:[%s3 + $0x30] sm:$0xf] %vm1002, %v978
  %1016 = vst.msk [vmem:[%s3 + $0x34] sm:$0xf] %vm1002, %v979
  %1017 = vst.msk [vmem:[%s3 + $0x38] sm:$0xf] %vm1002, %v980
  %1018 = vst.msk [vmem:[%s3 + $0x3c] sm:$0xf] %vm1002, %v981
  %1019 = vst.msk [vmem:[%s3 + $0x40] sm:$0xf] %vm1002, %v982
  %1020 = vst.msk [vmem:[%s3 + $0x44] sm:$0xf] %vm1002, %v983
  %1021 = vst.msk [vmem:[%s3 + $0x48] sm:$0xf] %vm1002, %v984
  %1022 = vst.msk [vmem:[%s3 + $0x4c] sm:$0xf] %vm1002, %v985
  %1023 = vst.msk [vmem:[%s3 + $0x50] sm:$0xf] %vm1002, %v986
  %1024 = vst.msk [vmem:[%s3 + $0x54] sm:$0xf] %vm1002, %v987
  %1025 = vst.msk [vmem:[%s3 + $0x58] sm:$0xf] %vm1002, %v988
  %1026 = vst.msk [vmem:[%s3 + $0x5c] sm:$0xf] %vm1002, %v989
  %1027 = vst.msk [vmem:[%s3 + $0x60] sm:$0xf] %vm1002, %v990
  %1028 = vst.msk [vmem:[%s3 + $0x64] sm:$0xf] %vm1002, %v991
  %1029 = vst.msk [vmem:[%s3 + $0x68] sm:$0xf] %vm1002, %v992
  %1030 = vst.msk [vmem:[%s3 + $0x6c] sm:$0xf] %vm1002, %v993
  %1031 = vst.msk [vmem:[%s3 + $0x70] sm:$0xf] %vm1002, %v994
  %1032 = vst.msk [vmem:[%s3 + $0x74] sm:$0xf] %vm1002, %v995
  %1033 = vst.msk [vmem:[%s3 + $0x78] sm:$0xf] %vm1002, %v996
  %1034 = vst.msk [vmem:[%s3 + $0x7c] sm:$0xf] %vm1002, %v997
  %1035 = vst.msk [vmem:[%s3 + $0x80] sm:$0xf] %vm1002, %v998
  %1036 = vst.msk [vmem:[%s3 + $0x84] sm:$0xf] %vm1002, %v999
  %1037 = vst.msk [vmem:[%s3 + $0x88] sm:$0xf] %vm1002, %v1000
  %1038 = vst.msk [vmem:[%s3 + $0x8c] sm:$0xf] %vm1002, %v1001
  // Predicated region
  $region14: #{cross_frame_transformer_forward.10} parent=0 // pred_check
    _
  $region15: #{cross_frame_transformer_forward.10} parent=0 // pred_check_branch
    %1040 = sbr.rel (0) target = $region17
  $region16: #{cross_frame_transformer_forward.10} parent=0 // pred_region
    _
  $region17: #{cross_frame_transformer_forward.10} parent=0 // pred_fallthru
    _
  // Predicated region
  $region18: #{cross_frame_transformer_forward.10} parent=0 // pred_check
    _
  $region19: #{cross_frame_transformer_forward.10} parent=0 // pred_check_branch
    %1042 = sbr.rel (0) target = $region21
  $region20: #{cross_frame_transformer_forward.10} parent=0 // pred_region
    _
  $region21: #{cross_frame_transformer_forward.10} parent=0 // pred_fallthru
    _

// kernel: cross_frame_transformer_forward.11
$region0: #{cross_frame_transformer_forward.11}
  #allocation0 [shape = 'u32[]', space=smem, size = 0x4, offset = 0x4, fixed_abs, tag = 'smem constant byte address 0x4 - core index']
  #allocation1 [shape = 'u32[72,128]{1,0:T(1,128)}', space=vmem, size = 0x9000, scoped, tag = 'internal scratch']
  %s0 = inlined_call_operand.vmem [shape: bf16[2,2,64], index: 0, kind: input, shape index: {}]
  %s1 = inlined_call_operand.vmem [shape: bf16[64,64], index: 1, kind: input, shape index: {}]
  %s2 = inlined_call_operand.vmem [shape: f32[1,64], index: 2, kind: input, shape index: {}]
  %s3 = inlined_call_operand.vmem [shape: f32[1,64], index: 3, kind: input, shape index: {}]
  %s4 = inlined_call_operand.vmem [shape: f32[1,64], index: 4, kind: input, shape index: {}]
  %s5 = inlined_call_operand.vmem [shape: bf16[64,192], index: 5, kind: input, shape index: {}]
  %s6 = inlined_call_operand.vmem [shape: f32[1,192], index: 6, kind: input, shape index: {}]
  %s7 = inlined_call_operand.vmem [shape: bf16[64,64], index: 7, kind: input, shape index: {}]
  %s8 = inlined_call_operand.vmem [shape: f32[1,64], index: 8, kind: input, shape index: {}]
  %s9 = inlined_call_operand.vmem [shape: bf16[2,2,64], index: 9, kind: output, shape index: {}]
  %s10 = sld [smem:[#allocation0]]
  $region69: #{cross_frame_transformer_forward.11} parent=0
    _
  %s12 = ssub.s32 1, %s10
  %s13 = scalar_select 0, %s12, %s10
  loop: start=0, step=1, limit=4
  $region2: #{cross_frame_transformer_forward.11} parent=0 // loop_pre_header
    _
  $region3: #{cross_frame_transformer_forward.11} parent=0 // loop_header
    %s15 = sphi 0, %s19
    %p16 = scmp.ge.s32.totalorder %s15, 4
    %s25 = sphi 0, %s27
    %s28 = sphi 0, %s25
    %s29 = sphi 0, %s28
    %s45 = sphi 0, %s29
    %s49 = sphi 0, %s49
    %s51 = sphi 0, %s49
    %s52 = sphi 0, %s51
    %s66 = sphi 0, %s52
    %s70 = sphi 0, %s70
    %s72 = sphi 0, %s70
    %s73 = sphi 0, %s72
    %s87 = sphi 0, %s73
    %s91 = sphi 0, %s91
    %s93 = sphi 0, %s91
    %s94 = sphi 0, %s93
    %s108 = sphi 0, %s94
    %s112 = sphi 0, %s112
    %s114 = sphi 0, %s112
    %s115 = sphi 0, %s114
    %s129 = sphi 0, %s115
    %s133 = sphi 0, %s133
    %s135 = sphi 0, %s133
    %s136 = sphi 0, %s135
    %s150 = sphi 0, %s136
    %s154 = sphi 0, %s154
    %s156 = sphi 0, %s154
    %s157 = sphi 0, %s156
    %s171 = sphi 0, %s157
    %s175 = sphi 0, %s175
    %s177 = sphi 0, %s175
    %s178 = sphi 0, %s177
    %s192 = sphi 0, %s178
    %s196 = sphi 0, %s196
    %s198 = sphi 0, %s196
    %s199 = sphi 0, %s198
    %s213 = sphi 0, %s199
    %s219 = sphi 0, %s221
    %s222 = sphi 0, %s219
    %s223 = sphi 0, %s222
    %s239 = sphi 0, %s223
  $region4: #{cross_frame_transformer_forward.11} parent=0 // loop_header_branch
    %18 = sbr.rel (%p16) target = $region8
  $region5: #{cross_frame_transformer_forward.11} parent=0 // loop_body
    %s20 = ssub.s32 %s15, 1
    %s21 = ssub.s32 %s15, 2
    %s22 = sadd.s32 %s15, 1
    %s23 = ssub.s32 %s15, %s22
    %p24 = scmp.eq.s32.totalorder %s23, 0
    %s26 = sadd.s32 %s25, 1
    %s27 = scalar_select %p24, %s25, %s26
    %p30 = pneg %p24
    %p31 = scmp.eq.s32.totalorder %s15, 1
    %p32 = por %p30, %p31
    %p33 = scmp.ne.s32.totalorder %s25, %s28
    %p34 = scmp.eq.s32.totalorder %s15, 0
    %p35 = por %p33, %p34
    %p36 = scmp.ne.s32.totalorder %s25, %s28
    %p37 = scmp.eq.s32.totalorder %s20, 1
    %p38 = por %p36, %p37
    %p39 = scmp.ne.s32.totalorder %s28, %s29
    %p40 = scmp.eq.s32.totalorder %s20, 0
    %p41 = por %p39, %p40
    %p42 = scmp.ne.s32.totalorder %s28, %s29
    %p43 = scmp.eq.s32.totalorder %s21, 1
    %p44 = por %p42, %p43
    %p46 = scmp.ne.s32.totalorder %s29, %s45
    %p47 = scmp.eq.s32.totalorder %s21, 0
    %p48 = por %p46, %p47
    %s50 = sadd.s32 %s49, 1
    %p53 = scmp.eq.s32.totalorder %s15, 1
    %p54 = scmp.ne.s32.totalorder %s49, %s51
    %p55 = scmp.eq.s32.totalorder %s15, 0
    %p56 = por %p54, %p55
    %p57 = scmp.ne.s32.totalorder %s49, %s51
    %p58 = scmp.eq.s32.totalorder %s20, 1
    %p59 = por %p57, %p58
    %p60 = scmp.ne.s32.totalorder %s51, %s52
    %p61 = scmp.eq.s32.totalorder %s20, 0
    %p62 = por %p60, %p61
    %p63 = scmp.ne.s32.totalorder %s51, %s52
    %p64 = scmp.eq.s32.totalorder %s21, 1
    %p65 = por %p63, %p64
    %p67 = scmp.ne.s32.totalorder %s52, %s66
    %p68 = scmp.eq.s32.totalorder %s21, 0
    %p69 = por %p67, %p68
    %s71 = sadd.s32 %s70, 1
    %p74 = scmp.eq.s32.totalorder %s15, 1
    %p75 = scmp.ne.s32.totalorder %s70, %s72
    %p76 = scmp.eq.s32.totalorder %s15, 0
    %p77 = por %p75, %p76
    %p78 = scmp.ne.s32.totalorder %s70, %s72
    %p79 = scmp.eq.s32.totalorder %s20, 1
    %p80 = por %p78, %p79
    %p81 = scmp.ne.s32.totalorder %s72, %s73
    %p82 = scmp.eq.s32.totalorder %s20, 0
    %p83 = por %p81, %p82
    %p84 = scmp.ne.s32.totalorder %s72, %s73
    %p85 = scmp.eq.s32.totalorder %s21, 1
    %p86 = por %p84, %p85
    %p88 = scmp.ne.s32.totalorder %s73, %s87
    %p89 = scmp.eq.s32.totalorder %s21, 0
    %p90 = por %p88, %p89
    %s92 = sadd.s32 %s91, 1
    %p95 = scmp.eq.s32.totalorder %s15, 1
    %p96 = scmp.ne.s32.totalorder %s91, %s93
    %p97 = scmp.eq.s32.totalorder %s15, 0
    %p98 = por %p96, %p97
    %p99 = scmp.ne.s32.totalorder %s91, %s93
    %p100 = scmp.eq.s32.totalorder %s20, 1
    %p101 = por %p99, %p100
    %p102 = scmp.ne.s32.totalorder %s93, %s94
    %p103 = scmp.eq.s32.totalorder %s20, 0
    %p104 = por %p102, %p103
    %p105 = scmp.ne.s32.totalorder %s93, %s94
    %p106 = scmp.eq.s32.totalorder %s21, 1
    %p107 = por %p105, %p106
    %p109 = scmp.ne.s32.totalorder %s94, %s108
    %p110 = scmp.eq.s32.totalorder %s21, 0
    %p111 = por %p109, %p110
    %s113 = sadd.s32 %s112, 1
    %p116 = scmp.eq.s32.totalorder %s15, 1
    %p117 = scmp.ne.s32.totalorder %s112, %s114
    %p118 = scmp.eq.s32.totalorder %s15, 0
    %p119 = por %p117, %p118
    %p120 = scmp.ne.s32.totalorder %s112, %s114
    %p121 = scmp.eq.s32.totalorder %s20, 1
    %p122 = por %p120, %p121
    %p123 = scmp.ne.s32.totalorder %s114, %s115
    %p124 = scmp.eq.s32.totalorder %s20, 0
    %p125 = por %p123, %p124
    %p126 = scmp.ne.s32.totalorder %s114, %s115
    %p127 = scmp.eq.s32.totalorder %s21, 1
    %p128 = por %p126, %p127
    %p130 = scmp.ne.s32.totalorder %s115, %s129
    %p131 = scmp.eq.s32.totalorder %s21, 0
    %p132 = por %p130, %p131
    %s134 = sadd.s32 %s133, 1
    %p137 = scmp.eq.s32.totalorder %s15, 1
    %p138 = scmp.ne.s32.totalorder %s133, %s135
    %p139 = scmp.eq.s32.totalorder %s15, 0
    %p140 = por %p138, %p139
    %p141 = scmp.ne.s32.totalorder %s133, %s135
    %p142 = scmp.eq.s32.totalorder %s20, 1
    %p143 = por %p141, %p142
    %p144 = scmp.ne.s32.totalorder %s135, %s136
    %p145 = scmp.eq.s32.totalorder %s20, 0
    %p146 = por %p144, %p145
    %p147 = scmp.ne.s32.totalorder %s135, %s136
    %p148 = scmp.eq.s32.totalorder %s21, 1
    %p149 = por %p147, %p148
    %p151 = scmp.ne.s32.totalorder %s136, %s150
    %p152 = scmp.eq.s32.totalorder %s21, 0
    %p153 = por %p151, %p152
    %s155 = sadd.s32 %s154, 1
    %p158 = scmp.eq.s32.totalorder %s15, 1
    %p159 = scmp.ne.s32.totalorder %s154, %s156
    %p160 = scmp.eq.s32.totalorder %s15, 0
    %p161 = por %p159, %p160
    %p162 = scmp.ne.s32.totalorder %s154, %s156
    %p163 = scmp.eq.s32.totalorder %s20, 1
    %p164 = por %p162, %p163
    %p165 = scmp.ne.s32.totalorder %s156, %s157
    %p166 = scmp.eq.s32.totalorder %s20, 0
    %p167 = por %p165, %p166
    %p168 = scmp.ne.s32.totalorder %s156, %s157
    %p169 = scmp.eq.s32.totalorder %s21, 1
    %p170 = por %p168, %p169
    %p172 = scmp.ne.s32.totalorder %s157, %s171
    %p173 = scmp.eq.s32.totalorder %s21, 0
    %p174 = por %p172, %p173
    %s176 = sadd.s32 %s175, 1
    %p179 = scmp.eq.s32.totalorder %s15, 1
    %p180 = scmp.ne.s32.totalorder %s175, %s177
    %p181 = scmp.eq.s32.totalorder %s15, 0
    %p182 = por %p180, %p181
    %p183 = scmp.ne.s32.totalorder %s175, %s177
    %p184 = scmp.eq.s32.totalorder %s20, 1
    %p185 = por %p183, %p184
    %p186 = scmp.ne.s32.totalorder %s177, %s178
    %p187 = scmp.eq.s32.totalorder %s20, 0
    %p188 = por %p186, %p187
    %p189 = scmp.ne.s32.totalorder %s177, %s178
    %p190 = scmp.eq.s32.totalorder %s21, 1
    %p191 = por %p189, %p190
    %p193 = scmp.ne.s32.totalorder %s178, %s192
    %p194 = scmp.eq.s32.totalorder %s21, 0
    %p195 = por %p193, %p194
    %s197 = sadd.s32 %s196, 1
    %p200 = scmp.eq.s32.totalorder %s15, 1
    %p201 = scmp.ne.s32.totalorder %s196, %s198
    %p202 = scmp.eq.s32.totalorder %s15, 0
    %p203 = por %p201, %p202
    %p204 = scmp.ne.s32.totalorder %s196, %s198
    %p205 = scmp.eq.s32.totalorder %s20, 1
    %p206 = por %p204, %p205
    %p207 = scmp.ne.s32.totalorder %s198, %s199
    %p208 = scmp.eq.s32.totalorder %s20, 0
    %p209 = por %p207, %p208
    %p210 = scmp.ne.s32.totalorder %s198, %s199
    %p211 = scmp.eq.s32.totalorder %s21, 1
    %p212 = por %p210, %p211
    %p214 = scmp.ne.s32.totalorder %s199, %s213
    %p215 = scmp.eq.s32.totalorder %s21, 0
    %p216 = por %p214, %p215
    %s217 = ssub.s32 %s15, %s22
    %p218 = scmp.eq.s32.totalorder %s217, 0
    %s220 = sadd.s32 %s219, 1
    %s221 = scalar_select %p218, %s219, %s220
    %p224 = pneg %p218
    %p225 = scmp.eq.s32.totalorder %s15, 1
    %p226 = por %p224, %p225
    %p227 = scmp.ne.s32.totalorder %s219, %s222
    %p228 = scmp.eq.s32.totalorder %s15, 0
    %p229 = por %p227, %p228
    %p230 = scmp.ne.s32.totalorder %s219, %s222
    %p231 = scmp.eq.s32.totalorder %s20, 1
    %p232 = por %p230, %p231
    %p233 = scmp.ne.s32.totalorder %s222, %s223
    %p234 = scmp.eq.s32.totalorder %s20, 0
    %p235 = por %p233, %p234
    %p236 = scmp.ne.s32.totalorder %s222, %s223
    %p237 = scmp.eq.s32.totalorder %s21, 1
    %p238 = por %p236, %p237
    %p240 = scmp.ne.s32.totalorder %s223, %s239
    %p241 = scmp.eq.s32.totalorder %s21, 0
    %p242 = por %p240, %p241
    %p243 = scmp.le.s32.totalorder 1, %s15
    %p244 = scmp.lt.s32.totalorder %s15, 3
    %p245 = pnand %p243, %p244
    %p246 = pneg %p245
    // Predicated region
    $region9: #{cross_frame_transformer_forward.11} parent=5 // pred_check
      _
    $region10: #{cross_frame_transformer_forward.11} parent=5 // pred_check_branch
      %248 = sbr.rel (%p245) target = $region12
    $region11: #{cross_frame_transformer_forward.11} parent=5 // pred_region
      %s249 = ssub.s32 %s15, 1
      // Predicated region
      $region13: #{cross_frame_transformer_forward.11} parent=11 // pred_check
        %p250 = pneg %p62
      $region14: #{cross_frame_transformer_forward.11} parent=11 // pred_check_branch
        %252 = sbr.rel (%p250) target = $region16
      $region15: #{cross_frame_transformer_forward.11} parent=11 // pred_region
        _
      $region16: #{cross_frame_transformer_forward.11} parent=11 // pred_fallthru
        _
      // Predicated region
      $region17: #{cross_frame_transformer_forward.11} parent=11 // pred_check
        %p253 = pneg %p83
      $region18: #{cross_frame_transformer_forward.11} parent=11 // pred_check_branch
        %255 = sbr.rel (%p253) target = $region20
      $region19: #{cross_frame_transformer_forward.11} parent=11 // pred_region
        _
      $region20: #{cross_frame_transformer_forward.11} parent=11 // pred_fallthru
        _
      // Predicated region
      $region21: #{cross_frame_transformer_forward.11} parent=11 // pred_check
        %p256 = pneg %p104
      $region22: #{cross_frame_transformer_forward.11} parent=11 // pred_check_branch
        %258 = sbr.rel (%p256) target = $region24
      $region23: #{cross_frame_transformer_forward.11} parent=11 // pred_region
        _
      $region24: #{cross_frame_transformer_forward.11} parent=11 // pred_fallthru
        _
      // Predicated region
      $region25: #{cross_frame_transformer_forward.11} parent=11 // pred_check
        %p259 = pneg %p125
      $region26: #{cross_frame_transformer_forward.11} parent=11 // pred_check_branch
        %261 = sbr.rel (%p259) target = $region28
      $region27: #{cross_frame_transformer_forward.11} parent=11 // pred_region
        _
      $region28: #{cross_frame_transformer_forward.11} parent=11 // pred_fallthru
        _
      // Predicated region
      $region29: #{cross_frame_transformer_forward.11} parent=11 // pred_check
        %p262 = pneg %p146
      $region30: #{cross_frame_transformer_forward.11} parent=11 // pred_check_branch
        %264 = sbr.rel (%p262) target = $region32
      $region31: #{cross_frame_transformer_forward.11} parent=11 // pred_region
        _
      $region32: #{cross_frame_transformer_forward.11} parent=11 // pred_fallthru
        _
      // Predicated region
      $region33: #{cross_frame_transformer_forward.11} parent=11 // pred_check
        %p265 = pneg %p167
      $region34: #{cross_frame_transformer_forward.11} parent=11 // pred_check_branch
        %267 = sbr.rel (%p265) target = $region36
      $region35: #{cross_frame_transformer_forward.11} parent=11 // pred_region
        _
      $region36: #{cross_frame_transformer_forward.11} parent=11 // pred_fallthru
        _
      // Predicated region
      $region37: #{cross_frame_transformer_forward.11} parent=11 // pred_check
        %p268 = pneg %p188
      $region38: #{cross_frame_transformer_forward.11} parent=11 // pred_check_branch
        %270 = sbr.rel (%p268) target = $region40
      $region39: #{cross_frame_transformer_forward.11} parent=11 // pred_region
        _
      $region40: #{cross_frame_transformer_forward.11} parent=11 // pred_fallthru
        _
      // Predicated region
      $region41: #{cross_frame_transformer_forward.11} parent=11 // pred_check
        %p271 = pneg %p209
      $region42: #{cross_frame_transformer_forward.11} parent=11 // pred_check_branch
        %273 = sbr.rel (%p271) target = $region44
      $region43: #{cross_frame_transformer_forward.11} parent=11 // pred_region
        _
      $region44: #{cross_frame_transformer_forward.11} parent=11 // pred_fallthru
        _
    $region12: #{cross_frame_transformer_forward.11} parent=5 // pred_fallthru
      _
    %p274 = scmp.lt.s32.totalorder %s15, 2
    // Predicated region
    $region45: #{cross_frame_transformer_forward.11} parent=5 // pred_check
      %p275 = pneg %p274
    $region46: #{cross_frame_transformer_forward.11} parent=5 // pred_check_branch
      %277 = sbr.rel (%p275) target = $region48
    $region47: #{cross_frame_transformer_forward.11} parent=5 // pred_region
      // Predicated region
      $region49: #{cross_frame_transformer_forward.11} parent=47 // pred_check
        %p278 = pneg %p35
      $region50: #{cross_frame_transformer_forward.11} parent=47 // pred_check_branch
        %280 = sbr.rel (%p278) target = $region52
      $region51: #{cross_frame_transformer_forward.11} parent=47 // pred_region
        %p281 = scmp.lt.s32.totalorder %s15, 1
        %s282 = scalar_select %p281, %s15, 1
        %s283 = scalar_lea.vmem %s0, %s282
      $region52: #{cross_frame_transformer_forward.11} parent=47 // pred_fallthru
        _
    $region48: #{cross_frame_transformer_forward.11} parent=5 // pred_fallthru
      _
    %p284 = scmp.le.s32.totalorder 1, %s15
    %p285 = scmp.lt.s32.totalorder %s15, 3
    %p286 = pnand %p284, %p285
    %p287 = pneg %p286
    // Predicated region
    $region53: #{cross_frame_transformer_forward.11} parent=5 // pred_check
      _
    $region54: #{cross_frame_transformer_forward.11} parent=5 // pred_check_branch
      %289 = sbr.rel (%p286) target = $region56
    $region55: #{cross_frame_transformer_forward.11} parent=5 // pred_region
      %s290 = ssub.s32 %s15, 1
      %p291 = scmp.lt.s32.totalorder %s20, 1
      %s292 = scalar_select %p291, %s20, 1
      %s293 = scalar_lea.vmem %s0, %s292
      %p294 = pneg %p41
      %p295 = pneg %p38
      %p296 = pneg %p62
      %p297 = pneg %p59
      %p298 = pneg %p83
      %p299 = pneg %p80
      %p300 = pneg %p104
      %p301 = pneg %p101
      %p302 = pneg %p125
      %p303 = pneg %p122
      %p304 = pneg %p146
      %p305 = pneg %p143
      %p306 = pneg %p167
      %p307 = pneg %p164
      %p308 = pneg %p188
      %p309 = pneg %p185
      %p310 = pneg %p209
      %p311 = pneg %p206
      %p312 = pneg %p235
      %p313 = pneg %p232
      %p314 = scmp.lt.s32.totalorder %s20, 1
      %s315 = scalar_select %p314, %s20, 1
      %s316 = scalar_lea.vmem %s9, %s315
      %p317 = scmp.lt.s32.totalorder %s20, 1
      %s318 = scalar_select %p317, %s20, 1
      %s319 = scalar_lea.vmem %s0, %s318
      %p320 = scmp.lt.s32.totalorder %s20, 1
      %s321 = scalar_select %p320, %s20, 1
      %s322 = scalar_lea.vmem %s9, %s321
      %v324 = vld [vmem:[%s319] sm:$0x1]
      %v325 = vld [vmem:[%s1] sm:$0xf]
      %v326 = vld [vmem:[%s1 + $0x4] sm:$0xf]
      %v327 = vld [vmem:[%s1 + $0x8] sm:$0xf]
      %v328 = vld [vmem:[%s1 + $0xc] sm:$0xf]
      %v329 = vld [vmem:[%s1 + $0x10] sm:$0xf]
      %v330 = vld [vmem:[%s1 + $0x14] sm:$0xf]
      %v331 = vld [vmem:[%s1 + $0x18] sm:$0xf]
      %v332 = vld [vmem:[%s1 + $0x1c] sm:$0xf]
      %v333 = vld [vmem:[%s2] sm:$0x1]
      %v335 = vperm.slane %v333, 0
      %v345 = vunpack.c.l.b16 %v325
      %v346 = vunpack.c.l.b16 %v326
      %v347 = vunpack.c.l.b16 %v327
      %v348 = vunpack.c.l.b16 %v328
      %v349 = vunpack.c.l.b16 %v329
      %v350 = vunpack.c.l.b16 %v330
      %v351 = vunpack.c.l.b16 %v331
      %v352 = vunpack.c.l.b16 %v332
      %v353 = vpack.c.b16 %v346, %v345
      %v354 = vpack.c.b16 %v348, %v347
      %v355 = vpack.c.b16 %v350, %v349
      %v356 = vpack.c.b16 %v352, %v351
      %vm361 = vcmask 523264
      %v363 = vsel %vm361, %v324, 0
      %365 = vmatpush.bf16.msra.mxu0 0
      %366 = vmatpush.bf16.msra.mxu0 0
      %367 = vmatpush.bf16.msra.mxu0 0
      %368 = vmatpush.bf16.msra.mxu0 0
      %369 = vmatpush.bf16.msra.mxu0 %v356
      %370 = vmatpush.bf16.msra.mxu0 %v355
      %371 = vmatpush.bf16.msra.mxu0 %v354
      %372 = vmatpush.bf16.msra.mxu0 %v353
      %373 = vmatmul.bf16.gmra.mxu0 %v363
      %v374 = vpop.f32.mrf.mxu0
      %v375 = vadd.f32 %v335, %v374
      %v376 = vpop.f32.mrf.mxu0
      %377 = vdwg.mxu0
      %v378 = vld [vmem:[%s3] sm:$0x1]
      %v379 = vld [vmem:[%s4] sm:$0x1]
      %vm380 = vcmask 517120
      %v381 = vsel %vm380, %v375, 0.0
      %382 = vadd.xlane.f32.xlu0 %v381
      %v383 = vpop.xlane.xlu0 %382
      %v384 = vrcp.pop 64.0
      %v385 = vmul.f32 64.0, %v384
      %v386 = vsub.f32 1.0, %v385
      %v387 = vmul.f32 %v384, %v386
      %v388 = vadd.f32 %v384, %v387
      %vm389 = vweird.f32 %v384
      %v390 = vsel %vm389, %v384, %v388
      %v391 = vmul.f32 %v383, %v390
      %v392 = vsub.f32 %v375, %v391
      %v393 = vmul.f32 %v392, %v392
      %v394 = vsel %vm380, %v393, 0.0
      %395 = vadd.xlane.f32.xlu0 %v394
      %v396 = vpop.xlane.xlu0 %395
      %v397 = vmul.f32 %v396, %v390
      %v398 = vadd.f32 %v397, 1e-05
      %v399 = vrsqrt.pop %v398
      %v400 = vmul.f32 %v399, %v398
      %v401 = vmul.f32 %v400, %v399
      %v402 = vmul.f32 0.5, %v401
      %v403 = vsub.f32 1.5, %v402
      %v404 = vmul.f32 %v399, %v403
      %vm405 = vweird.f32 %v398
      %vm406 = vweird.f32 %v399
      %vm407 = vmor %vm405, %vm406
      %v408 = vsel %vm407, %v399, %v404
      %v409 = vmul.f32 %v392, %v408
      %v411 = vperm.slane %v378, 0
      %v413 = vmul.f32 %v409, %v411
      %v415 = vperm.slane %v379, 0
      %v417 = vadd.f32 %v413, %v415
      %v418 = vpack.c.bf16 %v417, %v417
      %v419 = vld [vmem:[%s5] sm:$0xff]
      %v420 = vld [vmem:[%s5 + $0x8] sm:$0xff]
      %v421 = vld [vmem:[%s5 + $0x10] sm:$0xff]
      %v422 = vld [vmem:[%s5 + $0x18] sm:$0xff]
      %v423 = vld [vmem:[%s5 + $0x20] sm:$0xff]
      %v424 = vld [vmem:[%s5 + $0x28] sm:$0xff]
      %v425 = vld [vmem:[%s5 + $0x30] sm:$0xff]
      %v426 = vld [vmem:[%s5 + $0x38] sm:$0xff]
      %v427 = vld [vmem:[%s6] sm:$0x3]
      %v429 = vperm.slane %v427, 0
      %v430 = vperm.slane %v427, 1
      %v441 = vunpack.c.l.b16 %v419
      %v442 = vunpack.c.h.b16 %v419
      %v443 = vunpack.c.l.b16 %v420
      %v444 = vunpack.c.h.b16 %v420
      %v445 = vunpack.c.l.b16 %v421
      %v446 = vunpack.c.h.b16 %v421
      %v447 = vunpack.c.l.b16 %v422
      %v448 = vunpack.c.h.b16 %v422
      %v449 = vunpack.c.l.b16 %v423
      %v450 = vunpack.c.h.b16 %v423
      %v451 = vunpack.c.l.b16 %v424
      %v452 = vunpack.c.h.b16 %v424
      %v453 = vunpack.c.l.b16 %v425
      %v454 = vunpack.c.h.b16 %v425
      %v455 = vunpack.c.l.b16 %v426
      %v456 = vunpack.c.h.b16 %v426
      %v457 = vpack.c.b16 %v443, %v441
      %v458 = vpack.c.b16 %v444, %v442
      %v459 = vpack.c.b16 %v447, %v445
      %v460 = vpack.c.b16 %v448, %v446
      %v461 = vpack.c.b16 %v451, %v449
      %v462 = vpack.c.b16 %v452, %v450
      %v463 = vpack.c.b16 %v455, %v453
      %v464 = vpack.c.b16 %v456, %v454
      %v474 = vsel %vm361, %v418, 0
      %476 = vmatpush.bf16.msra.mxu0 0
      %477 = vmatpush.bf16.msra.mxu0 0
      %478 = vmatpush.bf16.msra.mxu0 0
      %479 = vmatpush.bf16.msra.mxu0 0
      %480 = vmatpush.bf16.msra.mxu0 %v463
      %481 = vmatpush.bf16.msra.mxu0 %v461
      %482 = vmatpush.bf16.msra.mxu0 %v459
      %483 = vmatpush.bf16.msra.mxu0 %v457
      %484 = vmatmul.bf16.gmra.mxu0 %v474
      %v485 = vpop.f32.mrf.mxu0
      %v486 = vadd.f32 %v429, %v485
      %v487 = vpop.f32.mrf.mxu0
      %488 = vdwg.mxu0
      %489 = vmatpush.bf16.msra.mxu0 0
      %490 = vmatpush.bf16.msra.mxu0 0
      %491 = vmatpush.bf16.msra.mxu0 0
      %492 = vmatpush.bf16.msra.mxu0 0
      %493 = vmatpush.bf16.msra.mxu0 %v464
      %494 = vmatpush.bf16.msra.mxu0 %v462
      %495 = vmatpush.bf16.msra.mxu0 %v460
      %496 = vmatpush.bf16.msra.mxu0 %v458
      %497 = vmatmul.bf16.gmra.mxu0 %v474
      %v498 = vpop.f32.mrf.mxu0
      %v499 = vadd.f32 %v430, %v498
      %v500 = vpop.f32.mrf.mxu0
      %501 = vdwg.mxu0
      %v502 = vpack.c.bf16 %v499, %v486
      %v503 = vld [vmem:[%s7] sm:$0xf]
      %v504 = vld [vmem:[%s7 + $0x4] sm:$0xf]
      %v505 = vld [vmem:[%s7 + $0x8] sm:$0xf]
      %v506 = vld [vmem:[%s7 + $0xc] sm:$0xf]
      %v507 = vld [vmem:[%s7 + $0x10] sm:$0xf]
      %v508 = vld [vmem:[%s7 + $0x14] sm:$0xf]
      %v509 = vld [vmem:[%s7 + $0x18] sm:$0xf]
      %v510 = vld [vmem:[%s7 + $0x1c] sm:$0xf]
      %v512 = vunpack.c.l.b16 %v502
      %v513 = vpack.c.b16 %v512, %v512
      %514 = vrot.lane.b32.xlu0 %v513, 64
      %v515 = vpop.permute.xlu0 %514
      %vm516 = vcmask 130048
      %v518 = vsel %vm516, %v502, 0
      %v521 = vsel %vm516, %v515, 0
      %523 = vmatpush.bf16.xpose.msra.mxu0 0
      %524 = vmatpush.bf16.xpose.msra.mxu0 0
      %525 = vmatpush.bf16.xpose.msra.mxu0 0
      %526 = vmatpush.bf16.xpose.msra.mxu0 0
      %527 = vmatpush.bf16.xpose.msra.mxu0 0
      %528 = vmatpush.bf16.xpose.msra.mxu0 0
      %529 = vmatpush.bf16.xpose.msra.mxu0 0
      %530 = vmatpush.bf16.xpose.msra.mxu0 %v521
      %531 = vmatmul.bf16.gmra.mxu0 %v518
      %v532 = vpop.f32.mrf.mxu0
      %v533 = vadd.f32 0.0, %v532
      %v534 = vpop.f32.mrf.mxu0
      %535 = vdwg.mxu0
      %v536 = vmul.f32 %v533, 0.25
      %vm537 = vcmask 9216
      %v538 = vsel %vm537, %v536, -inf
      %539 = vmax.xlane.f32.xlu0 %v538
      %v540 = vpop.xlane.xlu0 %539
      %v541 = vsub.f32 %v536, %v540
      %v542 = vmul.f32 %v541, 1.442695
      %v543 = vpow.pop %v542
      %v544 = vsel %vm537, %v543, 0.0
      %545 = vadd.xlane.f32.xlu0 %v544
      %v546 = vpop.xlane.xlu0 %545
      %v547 = vrcp.pop %v546
      %v548 = vmul.f32 %v543, %v547
      %v549 = vpack.c.bf16 %v548, %v548
      %v550 = vunpack.c.h.b16 %v502
      %v551 = vpack.c.b16 %v550, %v550
      %vm552 = vcmask 15360
      %v554 = vsel %vm552, %v549, 0
      %vm556 = vcmask 1040384
      %v558 = vsel %vm556, %v551, 0
      %560 = vmatpush.bf16.msra.mxu0 0
      %561 = vmatpush.bf16.msra.mxu0 0
      %562 = vmatpush.bf16.msra.mxu0 0
      %563 = vmatpush.bf16.msra.mxu0 0
      %564 = vmatpush.bf16.msra.mxu0 0
      %565 = vmatpush.bf16.msra.mxu0 0
      %566 = vmatpush.bf16.msra.mxu0 0
      %567 = vmatpush.bf16.msra.mxu0 %v558
      %568 = vmatmul.bf16.gmra.mxu0 %v554
      %v569 = vpop.f32.mrf.mxu0
      %v570 = vadd.f32 0.0, %v569
      %v571 = vpop.f32.mrf.mxu0
      %572 = vdwg.mxu0
      %v573 = vpack.c.bf16 %v570, %v570
      %574 = vrot.lane.b32.xlu0 %v513, 112
      %v575 = vpop.permute.xlu0 %574
      %576 = vrot.lane.b32.xlu0 %v513, 48
      %v577 = vpop.permute.xlu0 %576
      %v579 = vsel %vm516, %v575, 0
      %v582 = vsel %vm516, %v577, 0
      %584 = vmatpush.bf16.xpose.msra.mxu0 0
      %585 = vmatpush.bf16.xpose.msra.mxu0 0
      %586 = vmatpush.bf16.xpose.msra.mxu0 0
      %587 = vmatpush.bf16.xpose.msra.mxu0 0
      %588 = vmatpush.bf16.xpose.msra.mxu0 0
      %589 = vmatpush.bf16.xpose.msra.mxu0 0
      %590 = vmatpush.bf16.xpose.msra.mxu0 0
      %591 = vmatpush.bf16.xpose.msra.mxu0 %v582
      %592 = vmatmul.bf16.gmra.mxu0 %v579
      %v593 = vpop.f32.mrf.mxu0
      %v594 = vadd.f32 0.0, %v593
      %v595 = vpop.f32.mrf.mxu0
      %596 = vdwg.mxu0
      %v597 = vmul.f32 %v594, 0.25
      %v598 = vsel %vm537, %v597, -inf
      %599 = vmax.xlane.f32.xlu0 %v598
      %v600 = vpop.xlane.xlu0 %599
      %v601 = vsub.f32 %v597, %v600
      %v602 = vmul.f32 %v601, 1.442695
      %v603 = vpow.pop %v602
      %v604 = vsel %vm537, %v603, 0.0
      %605 = vadd.xlane.f32.xlu0 %v604
      %v606 = vpop.xlane.xlu0 %605
      %v607 = vrcp.pop %v606
      %v608 = vmul.f32 %v603, %v607
      %v609 = vpack.c.bf16 %v608, %v608
      %610 = vrot.lane.b32.xlu0 %v551, 112
      %v611 = vpop.permute.xlu0 %610
      %v613 = vsel %vm552, %v609, 0
      %v616 = vsel %vm556, %v611, 0
      %618 = vmatpush.bf16.msra.mxu0 0
      %619 = vmatpush.bf16.msra.mxu0 0
      %620 = vmatpush.bf16.msra.mxu0 0
      %621 = vmatpush.bf16.msra.mxu0 0
      %622 = vmatpush.bf16.msra.mxu0 0
      %623 = vmatpush.bf16.msra.mxu0 0
      %624 = vmatpush.bf16.msra.mxu0 0
      %625 = vmatpush.bf16.msra.mxu0 %v616
      %626 = vmatmul.bf16.gmra.mxu0 %v613
      %v627 = vpop.f32.mrf.mxu0
      %v628 = vadd.f32 0.0, %v627
      %v629 = vpop.f32.mrf.mxu0
      %630 = vdwg.mxu0
      %v631 = vpack.c.bf16 %v628, %v628
      %v634 = vunpack.c.l.b16 %v505
      %v635 = vunpack.c.l.b16 %v506
      %v636 = vpack.c.b16 %v635, %v634
      %v639 = vsel %vm516, %v631, 0
      %641 = vmatpush.bf16.msra.mxu0 0
      %642 = vmatpush.bf16.msra.mxu0 0
      %643 = vmatpush.bf16.msra.mxu0 0
      %644 = vmatpush.bf16.msra.mxu0 0
      %645 = vmatpush.bf16.msra.mxu0 0
      %646 = vmatpush.bf16.msra.mxu0 0
      %647 = vmatpush.bf16.msra.mxu0 0
      %648 = vmatpush.bf16.msra.mxu0 %v636
      %649 = vmatmul.bf16.gmra.mxu0 %v639
      %v650 = vpop.f32.mrf.mxu0
      %v651 = vadd.f32 0.0, %v650
      %v652 = vpop.f32.mrf.mxu0
      %653 = vdwg.mxu0
      %v656 = vunpack.c.l.b16 %v503
      %v657 = vunpack.c.l.b16 %v504
      %v658 = vpack.c.b16 %v657, %v656
      %v661 = vsel %vm516, %v573, 0
      %663 = vmatpush.bf16.msra.mxu0 0
      %664 = vmatpush.bf16.msra.mxu0 0
      %665 = vmatpush.bf16.msra.mxu0 0
      %666 = vmatpush.bf16.msra.mxu0 0
      %667 = vmatpush.bf16.msra.mxu0 0
      %668 = vmatpush.bf16.msra.mxu0 0
      %669 = vmatpush.bf16.msra.mxu0 0
      %670 = vmatpush.bf16.msra.mxu0 %v658
      %671 = vmatmul.bf16.gmra.mxu0 %v661
      %v672 = vpop.f32.mrf.mxu0
      %v673 = vadd.f32 %v651, %v672
      %v674 = vpop.f32.mrf.mxu0
      %675 = vdwg.mxu0
      %676 = vrot.lane.b32.xlu0 %v513, 96
      %v677 = vpop.permute.xlu0 %676
      %678 = vrot.lane.b32.xlu0 %v513, 32
      %v679 = vpop.permute.xlu0 %678
      %v681 = vsel %vm516, %v677, 0
      %v684 = vsel %vm516, %v679, 0
      %686 = vmatpush.bf16.xpose.msra.mxu0 0
      %687 = vmatpush.bf16.xpose.msra.mxu0 0
      %688 = vmatpush.bf16.xpose.msra.mxu0 0
      %689 = vmatpush.bf16.xpose.msra.mxu0 0
      %690 = vmatpush.bf16.xpose.msra.mxu0 0
      %691 = vmatpush.bf16.xpose.msra.mxu0 0
      %692 = vmatpush.bf16.xpose.msra.mxu0 0
      %693 = vmatpush.bf16.xpose.msra.mxu0 %v684
      %694 = vmatmul.bf16.gmra.mxu0 %v681
      %v695 = vpop.f32.mrf.mxu0
      %v696 = vadd.f32 0.0, %v695
      %v697 = vpop.f32.mrf.mxu0
      %698 = vdwg.mxu0
      %v699 = vmul.f32 %v696, 0.25
      %v700 = vsel %vm537, %v699, -inf
      %701 = vmax.xlane.f32.xlu0 %v700
      %v702 = vpop.xlane.xlu0 %701
      %v703 = vsub.f32 %v699, %v702
      %v704 = vmul.f32 %v703, 1.442695
      %v705 = vpow.pop %v704
      %v706 = vsel %vm537, %v705, 0.0
      %707 = vadd.xlane.f32.xlu0 %v706
      %v708 = vpop.xlane.xlu0 %707
      %v709 = vrcp.pop %v708
      %v710 = vmul.f32 %v705, %v709
      %v711 = vpack.c.bf16 %v710, %v710
      %712 = vrot.lane.b32.xlu0 %v551, 96
      %v713 = vpop.permute.xlu0 %712
      %v715 = vsel %vm552, %v711, 0
      %v718 = vsel %vm556, %v713, 0
      %720 = vmatpush.bf16.msra.mxu0 0
      %721 = vmatpush.bf16.msra.mxu0 0
      %722 = vmatpush.bf16.msra.mxu0 0
      %723 = vmatpush.bf16.msra.mxu0 0
      %724 = vmatpush.bf16.msra.mxu0 0
      %725 = vmatpush.bf16.msra.mxu0 0
      %726 = vmatpush.bf16.msra.mxu0 0
      %727 = vmatpush.bf16.msra.mxu0 %v718
      %728 = vmatmul.bf16.gmra.mxu0 %v715
      %v729 = vpop.f32.mrf.mxu0
      %v730 = vadd.f32 0.0, %v729
      %v731 = vpop.f32.mrf.mxu0
      %732 = vdwg.mxu0
      %v733 = vpack.c.bf16 %v730, %v730
      %v736 = vunpack.c.l.b16 %v507
      %v737 = vunpack.c.l.b16 %v508
      %v738 = vpack.c.b16 %v737, %v736
      %v741 = vsel %vm516, %v733, 0
      %743 = vmatpush.bf16.msra.mxu0 0
      %744 = vmatpush.bf16.msra.mxu0 0
      %745 = vmatpush.bf16.msra.mxu0 0
      %746 = vmatpush.bf16.msra.mxu0 0
      %747 = vmatpush.bf16.msra.mxu0 0
      %748 = vmatpush.bf16.msra.mxu0 0
      %749 = vmatpush.bf16.msra.mxu0 0
      %750 = vmatpush.bf16.msra.mxu0 %v738
      %751 = vmatmul.bf16.gmra.mxu0 %v741
      %v752 = vpop.f32.mrf.mxu0
      %v753 = vadd.f32 0.0, %v752
      %v754 = vpop.f32.mrf.mxu0
      %755 = vdwg.mxu0
      %v756 = vadd.f32 %v673, %v753
      %757 = vrot.lane.b32.xlu0 %v513, 80
      %v758 = vpop.permute.xlu0 %757
      %759 = vrot.lane.b32.xlu0 %v513, 16
      %v760 = vpop.permute.xlu0 %759
      %v762 = vsel %vm516, %v758, 0
      %v765 = vsel %vm516, %v760, 0
      %767 = vmatpush.bf16.xpose.msra.mxu0 0
      %768 = vmatpush.bf16.xpose.msra.mxu0 0
      %769 = vmatpush.bf16.xpose.msra.mxu0 0
      %770 = vmatpush.bf16.xpose.msra.mxu0 0
      %771 = vmatpush.bf16.xpose.msra.mxu0 0
      %772 = vmatpush.bf16.xpose.msra.mxu0 0
      %773 = vmatpush.bf16.xpose.msra.mxu0 0
      %774 = vmatpush.bf16.xpose.msra.mxu0 %v765
      %775 = vmatmul.bf16.gmra.mxu0 %v762
      %v776 = vpop.f32.mrf.mxu0
      %v777 = vadd.f32 0.0, %v776
      %v778 = vpop.f32.mrf.mxu0
      %779 = vdwg.mxu0
      %v780 = vmul.f32 %v777, 0.25
      %v781 = vsel %vm537, %v780, -inf
      %782 = vmax.xlane.f32.xlu0 %v781
      %v783 = vpop.xlane.xlu0 %782
      %v784 = vsub.f32 %v780, %v783
      %v785 = vmul.f32 %v784, 1.442695
      %v786 = vpow.pop %v785
      %v787 = vsel %vm537, %v786, 0.0
      %788 = vadd.xlane.f32.xlu0 %v787
      %v789 = vpop.xlane.xlu0 %788
      %v790 = vrcp.pop %v789
      %v791 = vmul.f32 %v786, %v790
      %v792 = vpack.c.bf16 %v791, %v791
      %793 = vrot.lane.b32.xlu0 %v551, 80
      %v794 = vpop.permute.xlu0 %793
      %v796 = vsel %vm552, %v792, 0
      %v799 = vsel %vm556, %v794, 0
      %801 = vmatpush.bf16.msra.mxu0 0
      %802 = vmatpush.bf16.msra.mxu0 0
      %803 = vmatpush.bf16.msra.mxu0 0
      %804 = vmatpush.bf16.msra.mxu0 0
      %805 = vmatpush.bf16.msra.mxu0 0
      %806 = vmatpush.bf16.msra.mxu0 0
      %807 = vmatpush.bf16.msra.mxu0 0
      %808 = vmatpush.bf16.msra.mxu0 %v799
      %809 = vmatmul.bf16.gmra.mxu0 %v796
      %v810 = vpop.f32.mrf.mxu0
      %v811 = vadd.f32 0.0, %v810
      %v812 = vpop.f32.mrf.mxu0
      %813 = vdwg.mxu0
      %v814 = vpack.c.bf16 %v811, %v811
      %v817 = vunpack.c.l.b16 %v509
      %v818 = vunpack.c.l.b16 %v510
      %v819 = vpack.c.b16 %v818, %v817
      %v822 = vsel %vm516, %v814, 0
      %824 = vmatpush.bf16.msra.mxu0 0
      %825 = vmatpush.bf16.msra.mxu0 0
      %826 = vmatpush.bf16.msra.mxu0 0
      %827 = vmatpush.bf16.msra.mxu0 0
      %828 = vmatpush.bf16.msra.mxu0 0
      %829 = vmatpush.bf16.msra.mxu0 0
      %830 = vmatpush.bf16.msra.mxu0 0
      %831 = vmatpush.bf16.msra.mxu0 %v819
      %832 = vmatmul.bf16.gmra.mxu0 %v822
      %v833 = vpop.f32.mrf.mxu0
      %v834 = vadd.f32 0.0, %v833
      %v835 = vpop.f32.mrf.mxu0
      %836 = vdwg.mxu0
      %v837 = vadd.f32 %v756, %v834
      %v838 = vld [vmem:[%s8] sm:$0x1]
      %v840 = vperm.slane %v838, 0
      %v842 = vadd.f32 %v837, %v840
      %v843 = vadd.f32 %v375, %v842
      %v844 = vpack.c.bf16 %v843, %v843
      %vm845 = vcmask 516096
      %846 = vst.msk [vmem:[%s322] sm:$0x1] %vm845, %v844
      %p847 = scmp.lt.s32.totalorder %s20, 1
      %s848 = scalar_select %p847, %s20, 1
      %s849 = scalar_lea.vmem %s9, %s848
      // Predicated region
      $region57: #{cross_frame_transformer_forward.11} parent=55 // pred_check
        %p850 = pneg %p232
      $region58: #{cross_frame_transformer_forward.11} parent=55 // pred_check_branch
        %852 = sbr.rel (%p850) target = $region60
      $region59: #{cross_frame_transformer_forward.11} parent=55 // pred_region
        _
      $region60: #{cross_frame_transformer_forward.11} parent=55 // pred_fallthru
        _
    $region56: #{cross_frame_transformer_forward.11} parent=5 // pred_fallthru
      _
    %p853 = scmp.le.s32.totalorder 2, %s15
    // Predicated region
    $region61: #{cross_frame_transformer_forward.11} parent=5 // pred_check
      %p854 = pneg %p853
    $region62: #{cross_frame_transformer_forward.11} parent=5 // pred_check_branch
      %856 = sbr.rel (%p854) target = $region64
    $region63: #{cross_frame_transformer_forward.11} parent=5 // pred_region
      %s857 = ssub.s32 %s15, 2
      // Predicated region
      $region65: #{cross_frame_transformer_forward.11} parent=63 // pred_check
        %p858 = pneg %p238
      $region66: #{cross_frame_transformer_forward.11} parent=63 // pred_check_branch
        %860 = sbr.rel (%p858) target = $region68
      $region67: #{cross_frame_transformer_forward.11} parent=63 // pred_region
        %p861 = scmp.lt.s32.totalorder %s21, 1
        %s862 = scalar_select %p861, %s21, 1
        %s863 = scalar_lea.vmem %s9, %s862
      $region68: #{cross_frame_transformer_forward.11} parent=63 // pred_fallthru
        _
    $region64: #{cross_frame_transformer_forward.11} parent=5 // pred_fallthru
      _
  $region6: #{cross_frame_transformer_forward.11} parent=0 // loop_footer
    %s19 = sadd.s32 1, %s15
  $region7: #{cross_frame_transformer_forward.11} parent=0 // loop_footer_branch
    %14 = sbr.rel target = $region3
  $region8: #{cross_frame_transformer_forward.11} parent=0 // loop_exit
    _

// kernel: cross_frame_transformer_forward.12
$region0: #{cross_frame_transformer_forward.12}
  #allocation0 [shape = 'u32[]', space=smem, size = 0x4, offset = 0x4, fixed_abs, tag = 'smem constant byte address 0x4 - core index']
  #allocation1 [shape = 'u32[72,128]{1,0:T(1,128)}', space=vmem, size = 0x9000, scoped, tag = 'internal scratch']
  %s0 = inlined_call_operand.vmem [shape: bf16[4,72,64], index: 0, kind: input, shape index: {}]
  %s1 = inlined_call_operand.vmem [shape: f32[1,64], index: 1, kind: input, shape index: {}]
  %s2 = inlined_call_operand.vmem [shape: f32[1,64], index: 2, kind: input, shape index: {}]
  %s3 = inlined_call_operand.vmem [shape: bf16[64,192], index: 3, kind: input, shape index: {}]
  %s4 = inlined_call_operand.vmem [shape: f32[1,192], index: 4, kind: input, shape index: {}]
  %s5 = inlined_call_operand.vmem [shape: bf16[64,64], index: 5, kind: input, shape index: {}]
  %s6 = inlined_call_operand.vmem [shape: f32[1,64], index: 6, kind: input, shape index: {}]
  %s7 = inlined_call_operand.vmem [shape: bf16[4,72,64], index: 7, kind: output, shape index: {}]
  %s8 = sld [smem:[#allocation0]]
  $region61: #{cross_frame_transformer_forward.12} parent=0
    _
  %s10 = ssub.s32 1, %s8
  %s11 = scalar_select 0, %s10, %s8
  loop: start=0, step=1, limit=6
  $region2: #{cross_frame_transformer_forward.12} parent=0 // loop_pre_header
    _
  $region3: #{cross_frame_transformer_forward.12} parent=0 // loop_header
    %s13 = sphi 0, %s17
    %p14 = scmp.ge.s32.totalorder %s13, 6
    %s23 = sphi 0, %s25
    %s26 = sphi 0, %s23
    %s27 = sphi 0, %s26
    %s43 = sphi 0, %s27
    %s47 = sphi 0, %s47
    %s49 = sphi 0, %s47
    %s50 = sphi 0, %s49
    %s64 = sphi 0, %s50
    %s68 = sphi 0, %s68
    %s70 = sphi 0, %s68
    %s71 = sphi 0, %s70
    %s85 = sphi 0, %s71
    %s89 = sphi 0, %s89
    %s91 = sphi 0, %s89
    %s92 = sphi 0, %s91
    %s106 = sphi 0, %s92
    %s110 = sphi 0, %s110
    %s112 = sphi 0, %s110
    %s113 = sphi 0, %s112
    %s127 = sphi 0, %s113
    %s131 = sphi 0, %s131
    %s133 = sphi 0, %s131
    %s134 = sphi 0, %s133
    %s148 = sphi 0, %s134
    %s152 = sphi 0, %s152
    %s154 = sphi 0, %s152
    %s155 = sphi 0, %s154
    %s169 = sphi 0, %s155
    %s175 = sphi 0, %s177
    %s178 = sphi 0, %s175
    %s179 = sphi 0, %s178
    %s195 = sphi 0, %s179
  $region4: #{cross_frame_transformer_forward.12} parent=0 // loop_header_branch
    %16 = sbr.rel (%p14) target = $region8
  $region5: #{cross_frame_transformer_forward.12} parent=0 // loop_body
    %s18 = ssub.s32 %s13, 1
    %s19 = ssub.s32 %s13, 2
    %s20 = sadd.s32 %s13, 1
    %s21 = ssub.s32 %s13, %s20
    %p22 = scmp.eq.s32.totalorder %s21, 0
    %s24 = sadd.s32 %s23, 1
    %s25 = scalar_select %p22, %s23, %s24
    %p28 = pneg %p22
    %p29 = scmp.eq.s32.totalorder %s13, 3
    %p30 = por %p28, %p29
    %p31 = scmp.ne.s32.totalorder %s23, %s26
    %p32 = scmp.eq.s32.totalorder %s13, 0
    %p33 = por %p31, %p32
    %p34 = scmp.ne.s32.totalorder %s23, %s26
    %p35 = scmp.eq.s32.totalorder %s18, 3
    %p36 = por %p34, %p35
    %p37 = scmp.ne.s32.totalorder %s26, %s27
    %p38 = scmp.eq.s32.totalorder %s18, 0
    %p39 = por %p37, %p38
    %p40 = scmp.ne.s32.totalorder %s26, %s27
    %p41 = scmp.eq.s32.totalorder %s19, 3
    %p42 = por %p40, %p41
    %p44 = scmp.ne.s32.totalorder %s27, %s43
    %p45 = scmp.eq.s32.totalorder %s19, 0
    %p46 = por %p44, %p45
    %s48 = sadd.s32 %s47, 1
    %p51 = scmp.eq.s32.totalorder %s13, 3
    %p52 = scmp.ne.s32.totalorder %s47, %s49
    %p53 = scmp.eq.s32.totalorder %s13, 0
    %p54 = por %p52, %p53
    %p55 = scmp.ne.s32.totalorder %s47, %s49
    %p56 = scmp.eq.s32.totalorder %s18, 3
    %p57 = por %p55, %p56
    %p58 = scmp.ne.s32.totalorder %s49, %s50
    %p59 = scmp.eq.s32.totalorder %s18, 0
    %p60 = por %p58, %p59
    %p61 = scmp.ne.s32.totalorder %s49, %s50
    %p62 = scmp.eq.s32.totalorder %s19, 3
    %p63 = por %p61, %p62
    %p65 = scmp.ne.s32.totalorder %s50, %s64
    %p66 = scmp.eq.s32.totalorder %s19, 0
    %p67 = por %p65, %p66
    %s69 = sadd.s32 %s68, 1
    %p72 = scmp.eq.s32.totalorder %s13, 3
    %p73 = scmp.ne.s32.totalorder %s68, %s70
    %p74 = scmp.eq.s32.totalorder %s13, 0
    %p75 = por %p73, %p74
    %p76 = scmp.ne.s32.totalorder %s68, %s70
    %p77 = scmp.eq.s32.totalorder %s18, 3
    %p78 = por %p76, %p77
    %p79 = scmp.ne.s32.totalorder %s70, %s71
    %p80 = scmp.eq.s32.totalorder %s18, 0
    %p81 = por %p79, %p80
    %p82 = scmp.ne.s32.totalorder %s70, %s71
    %p83 = scmp.eq.s32.totalorder %s19, 3
    %p84 = por %p82, %p83
    %p86 = scmp.ne.s32.totalorder %s71, %s85
    %p87 = scmp.eq.s32.totalorder %s19, 0
    %p88 = por %p86, %p87
    %s90 = sadd.s32 %s89, 1
    %p93 = scmp.eq.s32.totalorder %s13, 3
    %p94 = scmp.ne.s32.totalorder %s89, %s91
    %p95 = scmp.eq.s32.totalorder %s13, 0
    %p96 = por %p94, %p95
    %p97 = scmp.ne.s32.totalorder %s89, %s91
    %p98 = scmp.eq.s32.totalorder %s18, 3
    %p99 = por %p97, %p98
    %p100 = scmp.ne.s32.totalorder %s91, %s92
    %p101 = scmp.eq.s32.totalorder %s18, 0
    %p102 = por %p100, %p101
    %p103 = scmp.ne.s32.totalorder %s91, %s92
    %p104 = scmp.eq.s32.totalorder %s19, 3
    %p105 = por %p103, %p104
    %p107 = scmp.ne.s32.totalorder %s92, %s106
    %p108 = scmp.eq.s32.totalorder %s19, 0
    %p109 = por %p107, %p108
    %s111 = sadd.s32 %s110, 1
    %p114 = scmp.eq.s32.totalorder %s13, 3
    %p115 = scmp.ne.s32.totalorder %s110, %s112
    %p116 = scmp.eq.s32.totalorder %s13, 0
    %p117 = por %p115, %p116
    %p118 = scmp.ne.s32.totalorder %s110, %s112
    %p119 = scmp.eq.s32.totalorder %s18, 3
    %p120 = por %p118, %p119
    %p121 = scmp.ne.s32.totalorder %s112, %s113
    %p122 = scmp.eq.s32.totalorder %s18, 0
    %p123 = por %p121, %p122
    %p124 = scmp.ne.s32.totalorder %s112, %s113
    %p125 = scmp.eq.s32.totalorder %s19, 3
    %p126 = por %p124, %p125
    %p128 = scmp.ne.s32.totalorder %s113, %s127
    %p129 = scmp.eq.s32.totalorder %s19, 0
    %p130 = por %p128, %p129
    %s132 = sadd.s32 %s131, 1
    %p135 = scmp.eq.s32.totalorder %s13, 3
    %p136 = scmp.ne.s32.totalorder %s131, %s133
    %p137 = scmp.eq.s32.totalorder %s13, 0
    %p138 = por %p136, %p137
    %p139 = scmp.ne.s32.totalorder %s131, %s133
    %p140 = scmp.eq.s32.totalorder %s18, 3
    %p141 = por %p139, %p140
    %p142 = scmp.ne.s32.totalorder %s133, %s134
    %p143 = scmp.eq.s32.totalorder %s18, 0
    %p144 = por %p142, %p143
    %p145 = scmp.ne.s32.totalorder %s133, %s134
    %p146 = scmp.eq.s32.totalorder %s19, 3
    %p147 = por %p145, %p146
    %p149 = scmp.ne.s32.totalorder %s134, %s148
    %p150 = scmp.eq.s32.totalorder %s19, 0
    %p151 = por %p149, %p150
    %s153 = sadd.s32 %s152, 1
    %p156 = scmp.eq.s32.totalorder %s13, 3
    %p157 = scmp.ne.s32.totalorder %s152, %s154
    %p158 = scmp.eq.s32.totalorder %s13, 0
    %p159 = por %p157, %p158
    %p160 = scmp.ne.s32.totalorder %s152, %s154
    %p161 = scmp.eq.s32.totalorder %s18, 3
    %p162 = por %p160, %p161
    %p163 = scmp.ne.s32.totalorder %s154, %s155
    %p164 = scmp.eq.s32.totalorder %s18, 0
    %p165 = por %p163, %p164
    %p166 = scmp.ne.s32.totalorder %s154, %s155
    %p167 = scmp.eq.s32.totalorder %s19, 3
    %p168 = por %p166, %p167
    %p170 = scmp.ne.s32.totalorder %s155, %s169
    %p171 = scmp.eq.s32.totalorder %s19, 0
    %p172 = por %p170, %p171
    %s173 = ssub.s32 %s13, %s20
    %p174 = scmp.eq.s32.totalorder %s173, 0
    %s176 = sadd.s32 %s175, 1
    %s177 = scalar_select %p174, %s175, %s176
    %p180 = pneg %p174
    %p181 = scmp.eq.s32.totalorder %s13, 3
    %p182 = por %p180, %p181
    %p183 = scmp.ne.s32.totalorder %s175, %s178
    %p184 = scmp.eq.s32.totalorder %s13, 0
    %p185 = por %p183, %p184
    %p186 = scmp.ne.s32.totalorder %s175, %s178
    %p187 = scmp.eq.s32.totalorder %s18, 3
    %p188 = por %p186, %p187
    %p189 = scmp.ne.s32.totalorder %s178, %s179
    %p190 = scmp.eq.s32.totalorder %s18, 0
    %p191 = por %p189, %p190
    %p192 = scmp.ne.s32.totalorder %s178, %s179
    %p193 = scmp.eq.s32.totalorder %s19, 3
    %p194 = por %p192, %p193
    %p196 = scmp.ne.s32.totalorder %s179, %s195
    %p197 = scmp.eq.s32.totalorder %s19, 0
    %p198 = por %p196, %p197
    %p199 = scmp.le.s32.totalorder 1, %s13
    %p200 = scmp.lt.s32.totalorder %s13, 5
    %p201 = pnand %p199, %p200
    %p202 = pneg %p201
    // Predicated region
    $region9: #{cross_frame_transformer_forward.12} parent=5 // pred_check
      _
    $region10: #{cross_frame_transformer_forward.12} parent=5 // pred_check_branch
      %204 = sbr.rel (%p201) target = $region12
    $region11: #{cross_frame_transformer_forward.12} parent=5 // pred_region
      %s205 = ssub.s32 %s13, 1
      // Predicated region
      $region13: #{cross_frame_transformer_forward.12} parent=11 // pred_check
        %p206 = pneg %p60
      $region14: #{cross_frame_transformer_forward.12} parent=11 // pred_check_branch
        %208 = sbr.rel (%p206) target = $region16
      $region15: #{cross_frame_transformer_forward.12} parent=11 // pred_region
        _
      $region16: #{cross_frame_transformer_forward.12} parent=11 // pred_fallthru
        _
      // Predicated region
      $region17: #{cross_frame_transformer_forward.12} parent=11 // pred_check
        %p209 = pneg %p81
      $region18: #{cross_frame_transformer_forward.12} parent=11 // pred_check_branch
        %211 = sbr.rel (%p209) target = $region20
      $region19: #{cross_frame_transformer_forward.12} parent=11 // pred_region
        _
      $region20: #{cross_frame_transformer_forward.12} parent=11 // pred_fallthru
        _
      // Predicated region
      $region21: #{cross_frame_transformer_forward.12} parent=11 // pred_check
        %p212 = pneg %p102
      $region22: #{cross_frame_transformer_forward.12} parent=11 // pred_check_branch
        %214 = sbr.rel (%p212) target = $region24
      $region23: #{cross_frame_transformer_forward.12} parent=11 // pred_region
        _
      $region24: #{cross_frame_transformer_forward.12} parent=11 // pred_fallthru
        _
      // Predicated region
      $region25: #{cross_frame_transformer_forward.12} parent=11 // pred_check
        %p215 = pneg %p123
      $region26: #{cross_frame_transformer_forward.12} parent=11 // pred_check_branch
        %217 = sbr.rel (%p215) target = $region28
      $region27: #{cross_frame_transformer_forward.12} parent=11 // pred_region
        _
      $region28: #{cross_frame_transformer_forward.12} parent=11 // pred_fallthru
        _
      // Predicated region
      $region29: #{cross_frame_transformer_forward.12} parent=11 // pred_check
        %p218 = pneg %p144
      $region30: #{cross_frame_transformer_forward.12} parent=11 // pred_check_branch
        %220 = sbr.rel (%p218) target = $region32
      $region31: #{cross_frame_transformer_forward.12} parent=11 // pred_region
        _
      $region32: #{cross_frame_transformer_forward.12} parent=11 // pred_fallthru
        _
      // Predicated region
      $region33: #{cross_frame_transformer_forward.12} parent=11 // pred_check
        %p221 = pneg %p165
      $region34: #{cross_frame_transformer_forward.12} parent=11 // pred_check_branch
        %223 = sbr.rel (%p221) target = $region36
      $region35: #{cross_frame_transformer_forward.12} parent=11 // pred_region
        _
      $region36: #{cross_frame_transformer_forward.12} parent=11 // pred_fallthru
        _
    $region12: #{cross_frame_transformer_forward.12} parent=5 // pred_fallthru
      _
    %p224 = scmp.lt.s32.totalorder %s13, 4
    // Predicated region
    $region37: #{cross_frame_transformer_forward.12} parent=5 // pred_check
      %p225 = pneg %p224
    $region38: #{cross_frame_transformer_forward.12} parent=5 // pred_check_branch
      %227 = sbr.rel (%p225) target = $region40
    $region39: #{cross_frame_transformer_forward.12} parent=5 // pred_region
      // Predicated region
      $region41: #{cross_frame_transformer_forward.12} parent=39 // pred_check
        %p228 = pneg %p33
      $region42: #{cross_frame_transformer_forward.12} parent=39 // pred_check_branch
        %230 = sbr.rel (%p228) target = $region44
      $region43: #{cross_frame_transformer_forward.12} parent=39 // pred_region
        %p231 = scmp.lt.s32.totalorder %s13, 3
        %s232 = scalar_select %p231, %s13, 3
        %s233 = smul.addr %s232, 9
        %s234 = smul.addr %s233, 4
        %s235 = scalar_lea.vmem %s0, %s234
      $region44: #{cross_frame_transformer_forward.12} parent=39 // pred_fallthru
        _
    $region40: #{cross_frame_transformer_forward.12} parent=5 // pred_fallthru
      _
    %p236 = scmp.le.s32.totalorder 1, %s13
    %p237 = scmp.lt.s32.totalorder %s13, 5
    %p238 = pnand %p236, %p237
    %p239 = pneg %p238
    // Predicated region
    $region45: #{cross_frame_transformer_forward.12} parent=5 // pred_check
      _
    $region46: #{cross_frame_transformer_forward.12} parent=5 // pred_check_branch
      %241 = sbr.rel (%p238) target = $region48
    $region47: #{cross_frame_transformer_forward.12} parent=5 // pred_region
      %s242 = ssub.s32 %s13, 1
      %p243 = scmp.lt.s32.totalorder %s18, 3
      %s244 = scalar_select %p243, %s18, 3
      %s245 = smul.addr %s244, 9
      %s246 = smul.addr %s245, 4
      %s247 = scalar_lea.vmem %s0, %s246
      %p248 = pneg %p39
      %p249 = pneg %p36
      %p250 = pneg %p60
      %p251 = pneg %p57
      %p252 = pneg %p81
      %p253 = pneg %p78
      %p254 = pneg %p102
      %p255 = pneg %p99
      %p256 = pneg %p123
      %p257 = pneg %p120
      %p258 = pneg %p144
      %p259 = pneg %p141
      %p260 = pneg %p165
      %p261 = pneg %p162
      %p262 = pneg %p191
      %p263 = pneg %p188
      %p264 = scmp.lt.s32.totalorder %s18, 3
      %s265 = scalar_select %p264, %s18, 3
      %s266 = smul.addr %s265, 9
      %s267 = smul.addr %s266, 4
      %s268 = scalar_lea.vmem %s7, %s267
      %p269 = scmp.lt.s32.totalorder %s18, 3
      %s270 = scalar_select %p269, %s18, 3
      %s271 = smul.addr %s270, 9
      %s272 = smul.addr %s271, 4
      %s273 = scalar_lea.vmem %s0, %s272
      %p274 = scmp.lt.s32.totalorder %s18, 3
      %s275 = scalar_select %p274, %s18, 3
      %s276 = smul.addr %s275, 9
      %s277 = smul.addr %s276, 4
      %s278 = scalar_lea.vmem %s7, %s277
      %v280 = vld [vmem:[%s273] sm:$0xf]
      %v281 = vld [vmem:[%s273 + $0x4] sm:$0xf]
      %v282 = vld [vmem:[%s273 + $0x8] sm:$0xf]
      %v283 = vld [vmem:[%s273 + $0xc] sm:$0xf]
      %v284 = vld [vmem:[%s273 + $0x10] sm:$0xf]
      %v285 = vld [vmem:[%s273 + $0x14] sm:$0xf]
      %v286 = vld [vmem:[%s273 + $0x18] sm:$0xf]
      %v287 = vld [vmem:[%s273 + $0x1c] sm:$0xf]
      %v288 = vld [vmem:[%s273 + $0x20] sm:$0xf]
      %v289 = vunpack.c.l.bf16 %v280
      %v290 = vunpack.c.l.bf16 %v281
      %v291 = vunpack.c.l.bf16 %v282
      %v292 = vunpack.c.l.bf16 %v283
      %v293 = vunpack.c.l.bf16 %v284
      %v294 = vunpack.c.l.bf16 %v285
      %v295 = vunpack.c.l.bf16 %v286
      %v296 = vunpack.c.l.bf16 %v287
      %v297 = vunpack.c.l.bf16 %v288
      %v298 = vld [vmem:[%s1] sm:$0x1]
      %v299 = vld [vmem:[%s2] sm:$0x1]
      %vm300 = vcmask 523264
      %v301 = vsel %vm300, %v289, 0.0
      %302 = vadd.xlane.f32.xlu0 %v301
      %v303 = vpop.xlane.xlu0 %302
      %v304 = vsel %vm300, %v290, 0.0
      %305 = vadd.xlane.f32.xlu0 %v304
      %v306 = vpop.xlane.xlu0 %305
      %v307 = vsel %vm300, %v291, 0.0
      %308 = vadd.xlane.f32.xlu0 %v307
      %v309 = vpop.xlane.xlu0 %308
      %v310 = vsel %vm300, %v292, 0.0
      %311 = vadd.xlane.f32.xlu0 %v310
      %v312 = vpop.xlane.xlu0 %311
      %v313 = vsel %vm300, %v293, 0.0
      %314 = vadd.xlane.f32.xlu0 %v313
      %v315 = vpop.xlane.xlu0 %314
      %v316 = vsel %vm300, %v294, 0.0
      %317 = vadd.xlane.f32.xlu0 %v316
      %v318 = vpop.xlane.xlu0 %317
      %v319 = vsel %vm300, %v295, 0.0
      %320 = vadd.xlane.f32.xlu0 %v319
      %v321 = vpop.xlane.xlu0 %320
      %v322 = vsel %vm300, %v296, 0.0
      %323 = vadd.xlane.f32.xlu0 %v322
      %v324 = vpop.xlane.xlu0 %323
      %v325 = vsel %vm300, %v297, 0.0
      %326 = vadd.xlane.f32.xlu0 %v325
      %v327 = vpop.xlane.xlu0 %326
      %v328 = vrcp.pop 64.0
      %v329 = vmul.f32 64.0, %v328
      %v330 = vsub.f32 1.0, %v329
      %v331 = vmul.f32 %v328, %v330
      %v332 = vadd.f32 %v328, %v331
      %vm333 = vweird.f32 %v328
      %v334 = vsel %vm333, %v328, %v332
      %v335 = vmul.f32 %v303, %v334
      %v336 = vmul.f32 %v306, %v334
      %v337 = vmul.f32 %v309, %v334
      %v338 = vmul.f32 %v312, %v334
      %v339 = vmul.f32 %v315, %v334
      %v340 = vmul.f32 %v318, %v334
      %v341 = vmul.f32 %v321, %v334
      %v342 = vmul.f32 %v324, %v334
      %v343 = vmul.f32 %v327, %v334
      %v344 = vsub.f32 %v289, %v335
      %v345 = vsub.f32 %v290, %v336
      %v346 = vsub.f32 %v291, %v337
      %v347 = vsub.f32 %v292, %v338
      %v348 = vsub.f32 %v293, %v339
      %v349 = vsub.f32 %v294, %v340
      %v350 = vsub.f32 %v295, %v341
      %v351 = vsub.f32 %v296, %v342
      %v352 = vsub.f32 %v297, %v343
      %v353 = vmul.f32 %v344, %v344
      %v354 = vmul.f32 %v345, %v345
      %v355 = vmul.f32 %v346, %v346
      %v356 = vmul.f32 %v347, %v347
      %v357 = vmul.f32 %v348, %v348
      %v358 = vmul.f32 %v349, %v349
      %v359 = vmul.f32 %v350, %v350
      %v360 = vmul.f32 %v351, %v351
      %v361 = vmul.f32 %v352, %v352
      %v362 = vsel %vm300, %v353, 0.0
      %363 = vadd.xlane.f32.xlu0 %v362
      %v364 = vpop.xlane.xlu0 %363
      %v365 = vsel %vm300, %v354, 0.0
      %366 = vadd.xlane.f32.xlu0 %v365
      %v367 = vpop.xlane.xlu0 %366
      %v368 = vsel %vm300, %v355, 0.0
      %369 = vadd.xlane.f32.xlu0 %v368
      %v370 = vpop.xlane.xlu0 %369
      %v371 = vsel %vm300, %v356, 0.0
      %372 = vadd.xlane.f32.xlu0 %v371
      %v373 = vpop.xlane.xlu0 %372
      %v374 = vsel %vm300, %v357, 0.0
      %375 = vadd.xlane.f32.xlu0 %v374
      %v376 = vpop.xlane.xlu0 %375
      %v377 = vsel %vm300, %v358, 0.0
      %378 = vadd.xlane.f32.xlu0 %v377
      %v379 = vpop.xlane.xlu0 %378
      %v380 = vsel %vm300, %v359, 0.0
      %381 = vadd.xlane.f32.xlu0 %v380
      %v382 = vpop.xlane.xlu0 %381
      %v383 = vsel %vm300, %v360, 0.0
      %384 = vadd.xlane.f32.xlu0 %v383
      %v385 = vpop.xlane.xlu0 %384
      %v386 = vsel %vm300, %v361, 0.0
      %387 = vadd.xlane.f32.xlu0 %v386
      %v388 = vpop.xlane.xlu0 %387
      %v389 = vmul.f32 %v364, %v334
      %v390 = vmul.f32 %v367, %v334
      %v391 = vmul.f32 %v370, %v334
      %v392 = vmul.f32 %v373, %v334
      %v393 = vmul.f32 %v376, %v334
      %v394 = vmul.f32 %v379, %v334
      %v395 = vmul.f32 %v382, %v334
      %v396 = vmul.f32 %v385, %v334
      %v397 = vmul.f32 %v388, %v334
      %v398 = vadd.f32 %v389, 1e-05
      %v399 = vadd.f32 %v390, 1e-05
      %v400 = vadd.f32 %v391, 1e-05
      %v401 = vadd.f32 %v392, 1e-05
      %v402 = vadd.f32 %v393, 1e-05
      %v403 = vadd.f32 %v394, 1e-05
      %v404 = vadd.f32 %v395, 1e-05
      %v405 = vadd.f32 %v396, 1e-05
      %v406 = vadd.f32 %v397, 1e-05
      %v407 = vrsqrt.pop %v398
      %v408 = vmul.f32 %v407, %v398
      %v409 = vmul.f32 %v408, %v407
      %v410 = vmul.f32 0.5, %v409
      %v411 = vsub.f32 1.5, %v410
      %v412 = vmul.f32 %v407, %v411
      %vm413 = vweird.f32 %v398
      %vm414 = vweird.f32 %v407
      %vm415 = vmor %vm413, %vm414
      %v416 = vsel %vm415, %v407, %v412
      %v417 = vrsqrt.pop %v399
      %v418 = vmul.f32 %v417, %v399
      %v419 = vmul.f32 %v418, %v417
      %v420 = vmul.f32 0.5, %v419
      %v421 = vsub.f32 1.5, %v420
      %v422 = vmul.f32 %v417, %v421
      %vm423 = vweird.f32 %v399
      %vm424 = vweird.f32 %v417
      %vm425 = vmor %vm423, %vm424
      %v426 = vsel %vm425, %v417, %v422
      %v427 = vrsqrt.pop %v400
      %v428 = vmul.f32 %v427, %v400
      %v429 = vmul.f32 %v428, %v427
      %v430 = vmul.f32 0.5, %v429
      %v431 = vsub.f32 1.5, %v430
      %v432 = vmul.f32 %v427, %v431
      %vm433 = vweird.f32 %v400
      %vm434 = vweird.f32 %v427
      %vm435 = vmor %vm433, %vm434
      %v436 = vsel %vm435, %v427, %v432
      %v437 = vrsqrt.pop %v401
      %v438 = vmul.f32 %v437, %v401
      %v439 = vmul.f32 %v438, %v437
      %v440 = vmul.f32 0.5, %v439
      %v441 = vsub.f32 1.5, %v440
      %v442 = vmul.f32 %v437, %v441
      %vm443 = vweird.f32 %v401
      %vm444 = vweird.f32 %v437
      %vm445 = vmor %vm443, %vm444
      %v446 = vsel %vm445, %v437, %v442
      %v447 = vrsqrt.pop %v402
      %v448 = vmul.f32 %v447, %v402
      %v449 = vmul.f32 %v448, %v447
      %v450 = vmul.f32 0.5, %v449
      %v451 = vsub.f32 1.5, %v450
      %v452 = vmul.f32 %v447, %v451
      %vm453 = vweird.f32 %v402
      %vm454 = vweird.f32 %v447
      %vm455 = vmor %vm453, %vm454
      %v456 = vsel %vm455, %v447, %v452
      %v457 = vrsqrt.pop %v403
      %v458 = vmul.f32 %v457, %v403
      %v459 = vmul.f32 %v458, %v457
      %v460 = vmul.f32 0.5, %v459
      %v461 = vsub.f32 1.5, %v460
      %v462 = vmul.f32 %v457, %v461
      %vm463 = vweird.f32 %v403
      %vm464 = vweird.f32 %v457
      %vm465 = vmor %vm463, %vm464
      %v466 = vsel %vm465, %v457, %v462
      %v467 = vrsqrt.pop %v404
      %v468 = vmul.f32 %v467, %v404
      %v469 = vmul.f32 %v468, %v467
      %v470 = vmul.f32 0.5, %v469
      %v471 = vsub.f32 1.5, %v470
      %v472 = vmul.f32 %v467, %v471
      %vm473 = vweird.f32 %v404
      %vm474 = vweird.f32 %v467
      %vm475 = vmor %vm473, %vm474
      %v476 = vsel %vm475, %v467, %v472
      %v477 = vrsqrt.pop %v405
      %v478 = vmul.f32 %v477, %v405
      %v479 = vmul.f32 %v478, %v477
      %v480 = vmul.f32 0.5, %v479
      %v481 = vsub.f32 1.5, %v480
      %v482 = vmul.f32 %v477, %v481
      %vm483 = vweird.f32 %v405
      %vm484 = vweird.f32 %v477
      %vm485 = vmor %vm483, %vm484
      %v486 = vsel %vm485, %v477, %v482
      %v487 = vrsqrt.pop %v406
      %v488 = vmul.f32 %v487, %v406
      %v489 = vmul.f32 %v488, %v487
      %v490 = vmul.f32 0.5, %v489
      %v491 = vsub.f32 1.5, %v490
      %v492 = vmul.f32 %v487, %v491
      %vm493 = vweird.f32 %v406
      %vm494 = vweird.f32 %v487
      %vm495 = vmor %vm493, %vm494
      %v496 = vsel %vm495, %v487, %v492
      %v497 = vmul.f32 %v344, %v416
      %v498 = vmul.f32 %v345, %v426
      %v499 = vmul.f32 %v346, %v436
      %v500 = vmul.f32 %v347, %v446
      %v501 = vmul.f32 %v348, %v456
      %v502 = vmul.f32 %v349, %v466
      %v503 = vmul.f32 %v350, %v476
      %v504 = vmul.f32 %v351, %v486
      %v505 = vmul.f32 %v352, %v496
      %v507 = vperm.slane %v298, 0
      %v509 = vmul.f32 %v497, %v507
      %v510 = vmul.f32 %v498, %v507
      %v511 = vmul.f32 %v499, %v507
      %v512 = vmul.f32 %v500, %v507
      %v513 = vmul.f32 %v501, %v507
      %v514 = vmul.f32 %v502, %v507
      %v515 = vmul.f32 %v503, %v507
      %v516 = vmul.f32 %v504, %v507
      %v517 = vmul.f32 %v505, %v507
      %v519 = vperm.slane %v299, 0
      %v521 = vadd.f32 %v509, %v519
      %v522 = vadd.f32 %v510, %v519
      %v523 = vadd.f32 %v511, %v519
      %v524 = vadd.f32 %v512, %v519
      %v525 = vadd.f32 %v513, %v519
      %v526 = vadd.f32 %v514, %v519
      %v527 = vadd.f32 %v515, %v519
      %v528 = vadd.f32 %v516, %v519
      %v529 = vadd.f32 %v517, %v519
      %v530 = vpack.c.bf16 %v522, %v521
      %v531 = vpack.c.bf16 %v524, %v523
      %v532 = vpack.c.bf16 %v526, %v525
      %v533 = vpack.c.bf16 %v528, %v527
      %v534 = vpack.c.bf16 %v529, %v529
      %v535 = vld [vmem:[%s3] sm:$0xff]
      %v536 = vld [vmem:[%s3 + $0x8] sm:$0xff]
      %v537 = vld [vmem:[%s3 + $0x10] sm:$0xff]
      %v538 = vld [vmem:[%s3 + $0x18] sm:$0xff]
      %v539 = vld [vmem:[%s3 + $0x20] sm:$0xff]
      %v540 = vld [vmem:[%s3 + $0x28] sm:$0xff]
      %v541 = vld [vmem:[%s3 + $0x30] sm:$0xff]
      %v542 = vld [vmem:[%s3 + $0x38] sm:$0xff]
      %v543 = vld [vmem:[%s4] sm:$0x3]
      %v545 = vperm.slane %v543, 0
      %v546 = vperm.slane %v543, 1
      %v557 = vunpack.c.l.b16 %v535
      %v558 = vunpack.c.h.b16 %v535
      %v559 = vunpack.c.l.b16 %v536
      %v560 = vunpack.c.h.b16 %v536
      %v561 = vunpack.c.l.b16 %v537
      %v562 = vunpack.c.h.b16 %v537
      %v563 = vunpack.c.l.b16 %v538
      %v564 = vunpack.c.h.b16 %v538
      %v565 = vunpack.c.l.b16 %v539
      %v566 = vunpack.c.h.b16 %v539
      %v567 = vunpack.c.l.b16 %v540
      %v568 = vunpack.c.h.b16 %v540
      %v569 = vunpack.c.l.b16 %v541
      %v570 = vunpack.c.h.b16 %v541
      %v571 = vunpack.c.l.b16 %v542
      %v572 = vunpack.c.h.b16 %v542
      %v573 = vpack.c.b16 %v559, %v557
      %v574 = vpack.c.b16 %v560, %v558
      %v575 = vpack.c.b16 %v563, %v561
      %v576 = vpack.c.b16 %v564, %v562
      %v577 = vpack.c.b16 %v567, %v565
      %v578 = vpack.c.b16 %v568, %v566
      %v579 = vpack.c.b16 %v571, %v569
      %v580 = vpack.c.b16 %v572, %v570
      %v590 = vsel %vm300, %v530, 0
      %v593 = vsel %vm300, %v531, 0
      %v596 = vsel %vm300, %v532, 0
      %v599 = vsel %vm300, %v533, 0
      %v602 = vsel %vm300, %v534, 0
      %604 = vmatpush.bf16.msra.mxu0 0
      %605 = vmatpush.bf16.msra.mxu0 0
      %606 = vmatpush.bf16.msra.mxu0 0
      %607 = vmatpush.bf16.msra.mxu0 0
      %608 = vmatpush.bf16.msra.mxu0 %v579
      %609 = vmatpush.bf16.msra.mxu0 %v577
      %610 = vmatpush.bf16.msra.mxu0 %v575
      %611 = vmatpush.bf16.msra.mxu0 %v573
      %612 = vmatmul.bf16.gmra.mxu0 %v590
      %v613 = vpop.f32.mrf.mxu0
      %v614 = vadd.f32 %v545, %v613
      %v615 = vpop.f32.mrf.mxu0
      %v616 = vadd.f32 %v545, %v615
      %617 = vmatmul.bf16.gmra.mxu0 %v593
      %v618 = vpop.f32.mrf.mxu0
      %v619 = vadd.f32 %v545, %v618
      %v620 = vpop.f32.mrf.mxu0
      %v621 = vadd.f32 %v545, %v620
      %622 = vmatmul.bf16.gmra.mxu0 %v596
      %v623 = vpop.f32.mrf.mxu0
      %v624 = vadd.f32 %v545, %v623
      %v625 = vpop.f32.mrf.mxu0
      %v626 = vadd.f32 %v545, %v625
      %627 = vmatmul.bf16.gmra.mxu0 %v599
      %v628 = vpop.f32.mrf.mxu0
      %v629 = vadd.f32 %v545, %v628
      %v630 = vpop.f32.mrf.mxu0
      %v631 = vadd.f32 %v545, %v630
      %632 = vmatmul.bf16.gmra.mxu0 %v602
      %v633 = vpop.f32.mrf.mxu0
      %v634 = vadd.f32 %v545, %v633
      %v635 = vpop.f32.mrf.mxu0
      %636 = vdwg.mxu0
      %637 = vmatpush.bf16.msra.mxu0 0
      %638 = vmatpush.bf16.msra.mxu0 0
      %639 = vmatpush.bf16.msra.mxu0 0
      %640 = vmatpush.bf16.msra.mxu0 0
      %641 = vmatpush.bf16.msra.mxu0 %v580
      %642 = vmatpush.bf16.msra.mxu0 %v578
      %643 = vmatpush.bf16.msra.mxu0 %v576
      %644 = vmatpush.bf16.msra.mxu0 %v574
      %645 = vmatmul.bf16.gmra.mxu0 %v590
      %v646 = vpop.f32.mrf.mxu0
      %v647 = vadd.f32 %v546, %v646
      %v648 = vpop.f32.mrf.mxu0
      %v649 = vadd.f32 %v546, %v648
      %650 = vmatmul.bf16.gmra.mxu0 %v593
      %v651 = vpop.f32.mrf.mxu0
      %v652 = vadd.f32 %v546, %v651
      %v653 = vpop.f32.mrf.mxu0
      %v654 = vadd.f32 %v546, %v653
      %655 = vmatmul.bf16.gmra.mxu0 %v596
      %v656 = vpop.f32.mrf.mxu0
      %v657 = vadd.f32 %v546, %v656
      %v658 = vpop.f32.mrf.mxu0
      %v659 = vadd.f32 %v546, %v658
      %660 = vmatmul.bf16.gmra.mxu0 %v599
      %v661 = vpop.f32.mrf.mxu0
      %v662 = vadd.f32 %v546, %v661
      %v663 = vpop.f32.mrf.mxu0
      %v664 = vadd.f32 %v546, %v663
      %665 = vmatmul.bf16.gmra.mxu0 %v602
      %v666 = vpop.f32.mrf.mxu0
      %v667 = vadd.f32 %v546, %v666
      %v668 = vpop.f32.mrf.mxu0
      %669 = vdwg.mxu0
      %v670 = vpack.c.bf16 %v647, %v614
      %v671 = vpack.c.bf16 %v649, %v616
      %v672 = vpack.c.bf16 %v652, %v619
      %v673 = vpack.c.bf16 %v654, %v621
      %v674 = vpack.c.bf16 %v657, %v624
      %v675 = vpack.c.bf16 %v659, %v626
      %v676 = vpack.c.bf16 %v662, %v629
      %v677 = vpack.c.bf16 %v664, %v631
      %v678 = vpack.c.bf16 %v667, %v634
      %v679 = vld [vmem:[%s5] sm:$0xf]
      %v680 = vld [vmem:[%s5 + $0x4] sm:$0xf]
      %v681 = vld [vmem:[%s5 + $0x8] sm:$0xf]
      %v682 = vld [vmem:[%s5 + $0xc] sm:$0xf]
      %v683 = vld [vmem:[%s5 + $0x10] sm:$0xf]
      %v684 = vld [vmem:[%s5 + $0x14] sm:$0xf]
      %v685 = vld [vmem:[%s5 + $0x18] sm:$0xf]
      %v686 = vld [vmem:[%s5 + $0x1c] sm:$0xf]
      %v687 = vlaneseq
      %v688 = vand.u32 %v687, 127
      %vm689 = vcmp.lt.s32.totalorder %v688, 66
      %v690 = vsel %vm689, 0.0, -1e+30
      %v700 = vunpack.c.l.b16 %v670
      %v701 = vunpack.c.l.b16 %v671
      %v702 = vunpack.c.l.b16 %v672
      %v703 = vunpack.c.l.b16 %v673
      %v704 = vunpack.c.l.b16 %v674
      %v705 = vunpack.c.l.b16 %v675
      %v706 = vunpack.c.l.b16 %v676
      %v707 = vunpack.c.l.b16 %v677
      %v708 = vunpack.c.l.b16 %v678
      %v709 = vpack.c.b16 %v701, %v700
      %v710 = vpack.c.b16 %v703, %v702
      %v711 = vpack.c.b16 %v705, %v704
      %v712 = vpack.c.b16 %v707, %v706
      %v713 = vpack.c.b16 %v708, %v708
      %714 = vrot.lane.b32.xlu0 %v709, 64
      %v715 = vpop.permute.xlu0 %714
      %716 = vrot.lane.b32.xlu0 %v710, 64
      %v717 = vpop.permute.xlu0 %716
      %718 = vrot.lane.b32.xlu0 %v711, 64
      %v719 = vpop.permute.xlu0 %718
      %720 = vrot.lane.b32.xlu0 %v712, 64
      %v721 = vpop.permute.xlu0 %720
      %722 = vrot.lane.b32.xlu0 %v713, 64
      %v723 = vpop.permute.xlu0 %722
      %vm724 = vcmask 130048
      %v726 = vsel %vm724, %v709, 0
      %v729 = vsel %vm724, %v710, 0
      %v732 = vsel %vm724, %v711, 0
      %v735 = vsel %vm724, %v712, 0
      %v738 = vsel %vm724, %v713, 0
      %v741 = vsel %vm724, %v715, 0
      %v744 = vsel %vm724, %v717, 0
      %v747 = vsel %vm724, %v719, 0
      %v750 = vsel %vm724, %v721, 0
      %v753 = vsel %vm724, %v723, 0
      %755 = vmatpush.bf16.xpose.msra.mxu0 0
      %756 = vmatpush.bf16.xpose.msra.mxu0 0
      %757 = vmatpush.bf16.xpose.msra.mxu0 0
      %758 = vmatpush.bf16.xpose.msra.mxu0 %v753
      %759 = vmatpush.bf16.xpose.msra.mxu0 %v750
      %760 = vmatpush.bf16.xpose.msra.mxu0 %v747
      %761 = vmatpush.bf16.xpose.msra.mxu0 %v744
      %762 = vmatpush.bf16.xpose.msra.mxu0 %v741
      %763 = vmatmul.bf16.gmra.mxu0 %v726
      %v764 = vpop.f32.mrf.mxu0
      %v765 = vadd.f32 0.0, %v764
      %v766 = vpop.f32.mrf.mxu0
      %v767 = vadd.f32 0.0, %v766
      %768 = vmatmul.bf16.gmra.mxu0 %v729
      %v769 = vpop.f32.mrf.mxu0
      %v770 = vadd.f32 0.0, %v769
      %v771 = vpop.f32.mrf.mxu0
      %v772 = vadd.f32 0.0, %v771
      %773 = vmatmul.bf16.gmra.mxu0 %v732
      %v774 = vpop.f32.mrf.mxu0
      %v775 = vadd.f32 0.0, %v774
      %v776 = vpop.f32.mrf.mxu0
      %v777 = vadd.f32 0.0, %v776
      %778 = vmatmul.bf16.gmra.mxu0 %v735
      %v779 = vpop.f32.mrf.mxu0
      %v780 = vadd.f32 0.0, %v779
      %v781 = vpop.f32.mrf.mxu0
      %v782 = vadd.f32 0.0, %v781
      %783 = vmatmul.bf16.gmra.mxu0 %v738
      %v784 = vpop.f32.mrf.mxu0
      %v785 = vadd.f32 0.0, %v784
      %v786 = vpop.f32.mrf.mxu0
      %787 = vdwg.mxu0
      %v788 = vmul.f32 %v765, 0.25
      %v789 = vmul.f32 %v767, 0.25
      %v790 = vmul.f32 %v770, 0.25
      %v791 = vmul.f32 %v772, 0.25
      %v792 = vmul.f32 %v775, 0.25
      %v793 = vmul.f32 %v777, 0.25
      %v794 = vmul.f32 %v780, 0.25
      %v795 = vmul.f32 %v782, 0.25
      %v796 = vmul.f32 %v785, 0.25
      %v797 = vadd.f32 %v788, %v690
      %v798 = vadd.f32 %v789, %v690
      %v799 = vadd.f32 %v790, %v690
      %v800 = vadd.f32 %v791, %v690
      %v801 = vadd.f32 %v792, %v690
      %v802 = vadd.f32 %v793, %v690
      %v803 = vadd.f32 %v794, %v690
      %v804 = vadd.f32 %v795, %v690
      %v805 = vadd.f32 %v796, %v690
      %vm806 = vcmask 588800
      %v807 = vsel %vm806, %v797, -inf
      %808 = vmax.xlane.f32.xlu0 %v807
      %v809 = vpop.xlane.xlu0 %808
      %v810 = vsel %vm806, %v798, -inf
      %811 = vmax.xlane.f32.xlu0 %v810
      %v812 = vpop.xlane.xlu0 %811
      %v813 = vsel %vm806, %v799, -inf
      %814 = vmax.xlane.f32.xlu0 %v813
      %v815 = vpop.xlane.xlu0 %814
      %v816 = vsel %vm806, %v800, -inf
      %817 = vmax.xlane.f32.xlu0 %v816
      %v818 = vpop.xlane.xlu0 %817
      %v819 = vsel %vm806, %v801, -inf
      %820 = vmax.xlane.f32.xlu0 %v819
      %v821 = vpop.xlane.xlu0 %820
      %v822 = vsel %vm806, %v802, -inf
      %823 = vmax.xlane.f32.xlu0 %v822
      %v824 = vpop.xlane.xlu0 %823
      %v825 = vsel %vm806, %v803, -inf
      %826 = vmax.xlane.f32.xlu0 %v825
      %v827 = vpop.xlane.xlu0 %826
      %v828 = vsel %vm806, %v804, -inf
      %829 = vmax.xlane.f32.xlu0 %v828
      %v830 = vpop.xlane.xlu0 %829
      %v831 = vsel %vm806, %v805, -inf
      %832 = vmax.xlane.f32.xlu0 %v831
      %v833 = vpop.xlane.xlu0 %832
      %v834 = vsub.f32 %v797, %v809
      %v835 = vsub.f32 %v798, %v812
      %v836 = vsub.f32 %v799, %v815
      %v837 = vsub.f32 %v800, %v818
      %v838 = vsub.f32 %v801, %v821
      %v839 = vsub.f32 %v802, %v824
      %v840 = vsub.f32 %v803, %v827
      %v841 = vsub.f32 %v804, %v830
      %v842 = vsub.f32 %v805, %v833
      %v843 = vmul.f32 %v834, 1.442695
      %v844 = vpow.pop %v843
      %v845 = vmul.f32 %v835, 1.442695
      %v846 = vpow.pop %v845
      %v847 = vmul.f32 %v836, 1.442695
      %v848 = vpow.pop %v847
      %v849 = vmul.f32 %v837, 1.442695
      %v850 = vpow.pop %v849
      %v851 = vmul.f32 %v838, 1.442695
      %v852 = vpow.pop %v851
      %v853 = vmul.f32 %v839, 1.442695
      %v854 = vpow.pop %v853
      %v855 = vmul.f32 %v840, 1.442695
      %v856 = vpow.pop %v855
      %v857 = vmul.f32 %v841, 1.442695
      %v858 = vpow.pop %v857
      %v859 = vmul.f32 %v842, 1.442695
      %v860 = vpow.pop %v859
      %v861 = vsel %vm806, %v844, 0.0
      %862 = vadd.xlane.f32.xlu0 %v861
      %v863 = vpop.xlane.xlu0 %862
      %v864 = vsel %vm806, %v846, 0.0
      %865 = vadd.xlane.f32.xlu0 %v864
      %v866 = vpop.xlane.xlu0 %865
      %v867 = vsel %vm806, %v848, 0.0
      %868 = vadd.xlane.f32.xlu0 %v867
      %v869 = vpop.xlane.xlu0 %868
      %v870 = vsel %vm806, %v850, 0.0
      %871 = vadd.xlane.f32.xlu0 %v870
      %v872 = vpop.xlane.xlu0 %871
      %v873 = vsel %vm806, %v852, 0.0
      %874 = vadd.xlane.f32.xlu0 %v873
      %v875 = vpop.xlane.xlu0 %874
      %v876 = vsel %vm806, %v854, 0.0
      %877 = vadd.xlane.f32.xlu0 %v876
      %v878 = vpop.xlane.xlu0 %877
      %v879 = vsel %vm806, %v856, 0.0
      %880 = vadd.xlane.f32.xlu0 %v879
      %v881 = vpop.xlane.xlu0 %880
      %v882 = vsel %vm806, %v858, 0.0
      %883 = vadd.xlane.f32.xlu0 %v882
      %v884 = vpop.xlane.xlu0 %883
      %v885 = vsel %vm806, %v860, 0.0
      %886 = vadd.xlane.f32.xlu0 %v885
      %v887 = vpop.xlane.xlu0 %886
      %v888 = vrcp.pop %v863
      %v889 = vrcp.pop %v866
      %v890 = vrcp.pop %v869
      %v891 = vrcp.pop %v872
      %v892 = vrcp.pop %v875
      %v893 = vrcp.pop %v878
      %v894 = vrcp.pop %v881
      %v895 = vrcp.pop %v884
      %v896 = vrcp.pop %v887
      %v897 = vmul.f32 %v844, %v888
      %v898 = vmul.f32 %v846, %v889
      %v899 = vmul.f32 %v848, %v890
      %v900 = vmul.f32 %v850, %v891
      %v901 = vmul.f32 %v852, %v892
      %v902 = vmul.f32 %v854, %v893
      %v903 = vmul.f32 %v856, %v894
      %v904 = vmul.f32 %v858, %v895
      %v905 = vmul.f32 %v860, %v896
      %v906 = vpack.c.bf16 %v898, %v897
      %v907 = vpack.c.bf16 %v900, %v899
      %v908 = vpack.c.bf16 %v902, %v901
      %v909 = vpack.c.bf16 %v904, %v903
      %v910 = vpack.c.bf16 %v905, %v905
      %v911 = vunpack.c.h.b16 %v670
      %v912 = vunpack.c.h.b16 %v671
      %v913 = vunpack.c.h.b16 %v672
      %v914 = vunpack.c.h.b16 %v673
      %v915 = vunpack.c.h.b16 %v674
      %v916 = vunpack.c.h.b16 %v675
      %v917 = vunpack.c.h.b16 %v676
      %v918 = vunpack.c.h.b16 %v677
      %v919 = vunpack.c.h.b16 %v678
      %v920 = vpack.c.b16 %v912, %v911
      %v921 = vpack.c.b16 %v914, %v913
      %v922 = vpack.c.b16 %v916, %v915
      %v923 = vpack.c.b16 %v918, %v917
      %v924 = vpack.c.b16 %v919, %v919
      %v930 = vsel %vm806, %v906, 0
      %v933 = vsel %vm806, %v907, 0
      %v936 = vsel %vm806, %v908, 0
      %v939 = vsel %vm806, %v909, 0
      %v942 = vsel %vm806, %v910, 0
      %vm944 = vcmask 1043456
      %v946 = vsel %vm944, %v924, 0
      %948 = vmatpush.bf16.msra.mxu0 0
      %949 = vmatpush.bf16.msra.mxu0 0
      %950 = vmatpush.bf16.msra.mxu0 0
      %951 = vmatpush.bf16.msra.mxu0 %v946
      %952 = vmatpush.bf16.msra.mxu0 %v923
      %953 = vmatpush.bf16.msra.mxu0 %v922
      %954 = vmatpush.bf16.msra.mxu0 %v921
      %955 = vmatpush.bf16.msra.mxu0 %v920
      %956 = vmatmul.bf16.gmra.mxu0 %v930
      %v957 = vpop.f32.mrf.mxu0
      %v958 = vadd.f32 0.0, %v957
      %v959 = vpop.f32.mrf.mxu0
      %v960 = vadd.f32 0.0, %v959
      %961 = vmatmul.bf16.gmra.mxu0 %v933
      %v962 = vpop.f32.mrf.mxu0
      %v963 = vadd.f32 0.0, %v962
      %v964 = vpop.f32.mrf.mxu0
      %v965 = vadd.f32 0.0, %v964
      %966 = vmatmul.bf16.gmra.mxu0 %v936
      %v967 = vpop.f32.mrf.mxu0
      %v968 = vadd.f32 0.0, %v967
      %v969 = vpop.f32.mrf.mxu0
      %v970 = vadd.f32 0.0, %v969
      %971 = vmatmul.bf16.gmra.mxu0 %v939
      %v972 = vpop.f32.mrf.mxu0
      %v973 = vadd.f32 0.0, %v972
      %v974 = vpop.f32.mrf.mxu0
      %v975 = vadd.f32 0.0, %v974
      %976 = vmatmul.bf16.gmra.mxu0 %v942
      %v977 = vpop.f32.mrf.mxu0
      %v978 = vadd.f32 0.0, %v977
      %v979 = vpop.f32.mrf.mxu0
      %980 = vdwg.mxu0
      %v981 = vpack.c.bf16 %v960, %v958
      %v982 = vpack.c.bf16 %v965, %v963
      %v983 = vpack.c.bf16 %v970, %v968
      %v984 = vpack.c.bf16 %v975, %v973
      %v985 = vpack.c.bf16 %v978, %v978
      %986 = vrot.lane.b32.xlu0 %v709, 112
      %v987 = vpop.permute.xlu0 %986
      %988 = vrot.lane.b32.xlu0 %v710, 112
      %v989 = vpop.permute.xlu0 %988
      %990 = vrot.lane.b32.xlu0 %v711, 112
      %v991 = vpop.permute.xlu0 %990
      %992 = vrot.lane.b32.xlu0 %v712, 112
      %v993 = vpop.permute.xlu0 %992
      %994 = vrot.lane.b32.xlu0 %v713, 112
      %v995 = vpop.permute.xlu0 %994
      %996 = vrot.lane.b32.xlu0 %v709, 48
      %v997 = vpop.permute.xlu0 %996
      %998 = vrot.lane.b32.xlu0 %v710, 48
      %v999 = vpop.permute.xlu0 %998
      %1000 = vrot.lane.b32.xlu0 %v711, 48
      %v1001 = vpop.permute.xlu0 %1000
      %1002 = vrot.lane.b32.xlu0 %v712, 48
      %v1003 = vpop.permute.xlu0 %1002
      %1004 = vrot.lane.b32.xlu0 %v713, 48
      %v1005 = vpop.permute.xlu0 %1004
      %v1007 = vsel %vm724, %v987, 0
      %v1010 = vsel %vm724, %v989, 0
      %v1013 = vsel %vm724, %v991, 0
      %v1016 = vsel %vm724, %v993, 0
      %v1019 = vsel %vm724, %v995, 0
      %v1022 = vsel %vm724, %v997, 0
      %v1025 = vsel %vm724, %v999, 0
      %v1028 = vsel %vm724, %v1001, 0
      %v1031 = vsel %vm724, %v1003, 0
      %v1034 = vsel %vm724, %v1005, 0
      %1036 = vmatpush.bf16.xpose.msra.mxu0 0
      %1037 = vmatpush.bf16.xpose.msra.mxu0 0
      %1038 = vmatpush.bf16.xpose.msra.mxu0 0
      %1039 = vmatpush.bf16.xpose.msra.mxu0 %v1034
      %1040 = vmatpush.bf16.xpose.msra.mxu0 %v1031
      %1041 = vmatpush.bf16.xpose.msra.mxu0 %v1028
      %1042 = vmatpush.bf16.xpose.msra.mxu0 %v1025
      %1043 = vmatpush.bf16.xpose.msra.mxu0 %v1022
      %1044 = vmatmul.bf16.gmra.mxu0 %v1007
      %v1045 = vpop.f32.mrf.mxu0
      %v1046 = vadd.f32 0.0, %v1045
      %v1047 = vpop.f32.mrf.mxu0
      %v1048 = vadd.f32 0.0, %v1047
      %1049 = vmatmul.bf16.gmra.mxu0 %v1010
      %v1050 = vpop.f32.mrf.mxu0
      %v1051 = vadd.f32 0.0, %v1050
      %v1052 = vpop.f32.mrf.mxu0
      %v1053 = vadd.f32 0.0, %v1052
      %1054 = vmatmul.bf16.gmra.mxu0 %v1013
      %v1055 = vpop.f32.mrf.mxu0
      %v1056 = vadd.f32 0.0, %v1055
      %v1057 = vpop.f32.mrf.mxu0
      %v1058 = vadd.f32 0.0, %v1057
      %1059 = vmatmul.bf16.gmra.mxu0 %v1016
      %v1060 = vpop.f32.mrf.mxu0
      %v1061 = vadd.f32 0.0, %v1060
      %v1062 = vpop.f32.mrf.mxu0
      %v1063 = vadd.f32 0.0, %v1062
      %1064 = vmatmul.bf16.gmra.mxu0 %v1019
      %v1065 = vpop.f32.mrf.mxu0
      %v1066 = vadd.f32 0.0, %v1065
      %v1067 = vpop.f32.mrf.mxu0
      %1068 = vdwg.mxu0
      %v1069 = vmul.f32 %v1046, 0.25
      %v1070 = vmul.f32 %v1048, 0.25
      %v1071 = vmul.f32 %v1051, 0.25
      %v1072 = vmul.f32 %v1053, 0.25
      %v1073 = vmul.f32 %v1056, 0.25
      %v1074 = vmul.f32 %v1058, 0.25
      %v1075 = vmul.f32 %v1061, 0.25
      %v1076 = vmul.f32 %v1063, 0.25
      %v1077 = vmul.f32 %v1066, 0.25
      %v1078 = vadd.f32 %v1069, %v690
      %v1079 = vadd.f32 %v1070, %v690
      %v1080 = vadd.f32 %v1071, %v690
      %v1081 = vadd.f32 %v1072, %v690
      %v1082 = vadd.f32 %v1073, %v690
      %v1083 = vadd.f32 %v1074, %v690
      %v1084 = vadd.f32 %v1075, %v690
      %v1085 = vadd.f32 %v1076, %v690
      %v1086 = vadd.f32 %v1077, %v690
      %v1087 = vsel %vm806, %v1078, -inf
      %1088 = vmax.xlane.f32.xlu0 %v1087
      %v1089 = vpop.xlane.xlu0 %1088
      %v1090 = vsel %vm806, %v1079, -inf
      %1091 = vmax.xlane.f32.xlu0 %v1090
      %v1092 = vpop.xlane.xlu0 %1091
      %v1093 = vsel %vm806, %v1080, -inf
      %1094 = vmax.xlane.f32.xlu0 %v1093
      %v1095 = vpop.xlane.xlu0 %1094
      %v1096 = vsel %vm806, %v1081, -inf
      %1097 = vmax.xlane.f32.xlu0 %v1096
      %v1098 = vpop.xlane.xlu0 %1097
      %v1099 = vsel %vm806, %v1082, -inf
      %1100 = vmax.xlane.f32.xlu0 %v1099
      %v1101 = vpop.xlane.xlu0 %1100
      %v1102 = vsel %vm806, %v1083, -inf
      %1103 = vmax.xlane.f32.xlu0 %v1102
      %v1104 = vpop.xlane.xlu0 %1103
      %v1105 = vsel %vm806, %v1084, -inf
      %1106 = vmax.xlane.f32.xlu0 %v1105
      %v1107 = vpop.xlane.xlu0 %1106
      %v1108 = vsel %vm806, %v1085, -inf
      %1109 = vmax.xlane.f32.xlu0 %v1108
      %v1110 = vpop.xlane.xlu0 %1109
      %v1111 = vsel %vm806, %v1086, -inf
      %1112 = vmax.xlane.f32.xlu0 %v1111
      %v1113 = vpop.xlane.xlu0 %1112
      %v1114 = vsub.f32 %v1078, %v1089
      %v1115 = vsub.f32 %v1079, %v1092
      %v1116 = vsub.f32 %v1080, %v1095
      %v1117 = vsub.f32 %v1081, %v1098
      %v1118 = vsub.f32 %v1082, %v1101
      %v1119 = vsub.f32 %v1083, %v1104
      %v1120 = vsub.f32 %v1084, %v1107
      %v1121 = vsub.f32 %v1085, %v1110
      %v1122 = vsub.f32 %v1086, %v1113
      %v1123 = vmul.f32 %v1114, 1.442695
      %v1124 = vpow.pop %v1123
      %v1125 = vmul.f32 %v1115, 1.442695
      %v1126 = vpow.pop %v1125
      %v1127 = vmul.f32 %v1116, 1.442695
      %v1128 = vpow.pop %v1127
      %v1129 = vmul.f32 %v1117, 1.442695
      %v1130 = vpow.pop %v1129
      %v1131 = vmul.f32 %v1118, 1.442695
      %v1132 = vpow.pop %v1131
      %v1133 = vmul.f32 %v1119, 1.442695
      %v1134 = vpow.pop %v1133
      %v1135 = vmul.f32 %v1120, 1.442695
      %v1136 = vpow.pop %v1135
      %v1137 = vmul.f32 %v1121, 1.442695
      %v1138 = vpow.pop %v1137
      %v1139 = vmul.f32 %v1122, 1.442695
      %v1140 = vpow.pop %v1139
      %v1141 = vsel %vm806, %v1124, 0.0
      %1142 = vadd.xlane.f32.xlu0 %v1141
      %v1143 = vpop.xlane.xlu0 %1142
      %v1144 = vsel %vm806, %v1126, 0.0
      %1145 = vadd.xlane.f32.xlu0 %v1144
      %v1146 = vpop.xlane.xlu0 %1145
      %v1147 = vsel %vm806, %v1128, 0.0
      %1148 = vadd.xlane.f32.xlu0 %v1147
      %v1149 = vpop.xlane.xlu0 %1148
      %v1150 = vsel %vm806, %v1130, 0.0
      %1151 = vadd.xlane.f32.xlu0 %v1150
      %v1152 = vpop.xlane.xlu0 %1151
      %v1153 = vsel %vm806, %v1132, 0.0
      %1154 = vadd.xlane.f32.xlu0 %v1153
      %v1155 = vpop.xlane.xlu0 %1154
      %v1156 = vsel %vm806, %v1134, 0.0
      %1157 = vadd.xlane.f32.xlu0 %v1156
      %v1158 = vpop.xlane.xlu0 %1157
      %v1159 = vsel %vm806, %v1136, 0.0
      %1160 = vadd.xlane.f32.xlu0 %v1159
      %v1161 = vpop.xlane.xlu0 %1160
      %v1162 = vsel %vm806, %v1138, 0.0
      %1163 = vadd.xlane.f32.xlu0 %v1162
      %v1164 = vpop.xlane.xlu0 %1163
      %v1165 = vsel %vm806, %v1140, 0.0
      %1166 = vadd.xlane.f32.xlu0 %v1165
      %v1167 = vpop.xlane.xlu0 %1166
      %v1168 = vrcp.pop %v1143
      %v1169 = vrcp.pop %v1146
      %v1170 = vrcp.pop %v1149
      %v1171 = vrcp.pop %v1152
      %v1172 = vrcp.pop %v1155
      %v1173 = vrcp.pop %v1158
      %v1174 = vrcp.pop %v1161
      %v1175 = vrcp.pop %v1164
      %v1176 = vrcp.pop %v1167
      %v1177 = vmul.f32 %v1124, %v1168
      %v1178 = vmul.f32 %v1126, %v1169
      %v1179 = vmul.f32 %v1128, %v1170
      %v1180 = vmul.f32 %v1130, %v1171
      %v1181 = vmul.f32 %v1132, %v1172
      %v1182 = vmul.f32 %v1134, %v1173
      %v1183 = vmul.f32 %v1136, %v1174
      %v1184 = vmul.f32 %v1138, %v1175
      %v1185 = vmul.f32 %v1140, %v1176
      %v1186 = vpack.c.bf16 %v1178, %v1177
      %v1187 = vpack.c.bf16 %v1180, %v1179
      %v1188 = vpack.c.bf16 %v1182, %v1181
      %v1189 = vpack.c.bf16 %v1184, %v1183
      %v1190 = vpack.c.bf16 %v1185, %v1185
      %1191 = vrot.lane.b32.xlu0 %v920, 112
      %v1192 = vpop.permute.xlu0 %1191
      %1193 = vrot.lane.b32.xlu0 %v921, 112
      %v1194 = vpop.permute.xlu0 %1193
      %1195 = vrot.lane.b32.xlu0 %v922, 112
      %v1196 = vpop.permute.xlu0 %1195
      %1197 = vrot.lane.b32.xlu0 %v923, 112
      %v1198 = vpop.permute.xlu0 %1197
      %1199 = vrot.lane.b32.xlu0 %v924, 112
      %v1200 = vpop.permute.xlu0 %1199
      %v1206 = vsel %vm806, %v1186, 0
      %v1209 = vsel %vm806, %v1187, 0
      %v1212 = vsel %vm806, %v1188, 0
      %v1215 = vsel %vm806, %v1189, 0
      %v1218 = vsel %vm806, %v1190, 0
      %v1221 = vsel %vm944, %v1200, 0
      %1223 = vmatpush.bf16.msra.mxu0 0
      %1224 = vmatpush.bf16.msra.mxu0 0
      %1225 = vmatpush.bf16.msra.mxu0 0
      %1226 = vmatpush.bf16.msra.mxu0 %v1221
      %1227 = vmatpush.bf16.msra.mxu0 %v1198
      %1228 = vmatpush.bf16.msra.mxu0 %v1196
      %1229 = vmatpush.bf16.msra.mxu0 %v1194
      %1230 = vmatpush.bf16.msra.mxu0 %v1192
      %1231 = vmatmul.bf16.gmra.mxu0 %v1206
      %v1232 = vpop.f32.mrf.mxu0
      %v1233 = vadd.f32 0.0, %v1232
      %v1234 = vpop.f32.mrf.mxu0
      %v1235 = vadd.f32 0.0, %v1234
      %1236 = vmatmul.bf16.gmra.mxu0 %v1209
      %v1237 = vpop.f32.mrf.mxu0
      %v1238 = vadd.f32 0.0, %v1237
      %v1239 = vpop.f32.mrf.mxu0
      %v1240 = vadd.f32 0.0, %v1239
      %1241 = vmatmul.bf16.gmra.mxu0 %v1212
      %v1242 = vpop.f32.mrf.mxu0
      %v1243 = vadd.f32 0.0, %v1242
      %v1244 = vpop.f32.mrf.mxu0
      %v1245 = vadd.f32 0.0, %v1244
      %1246 = vmatmul.bf16.gmra.mxu0 %v1215
      %v1247 = vpop.f32.mrf.mxu0
      %v1248 = vadd.f32 0.0, %v1247
      %v1249 = vpop.f32.mrf.mxu0
      %v1250 = vadd.f32 0.0, %v1249
      %1251 = vmatmul.bf16.gmra.mxu0 %v1218
      %v1252 = vpop.f32.mrf.mxu0
      %v1253 = vadd.f32 0.0, %v1252
      %v1254 = vpop.f32.mrf.mxu0
      %1255 = vdwg.mxu0
      %v1256 = vpack.c.bf16 %v1235, %v1233
      %v1257 = vpack.c.bf16 %v1240, %v1238
      %v1258 = vpack.c.bf16 %v1245, %v1243
      %v1259 = vpack.c.bf16 %v1250, %v1248
      %v1260 = vpack.c.bf16 %v1253, %v1253
      %v1263 = vunpack.c.l.b16 %v681
      %v1264 = vunpack.c.l.b16 %v682
      %v1265 = vpack.c.b16 %v1264, %v1263
      %v1268 = vsel %vm724, %v1256, 0
      %v1271 = vsel %vm724, %v1257, 0
      %v1274 = vsel %vm724, %v1258, 0
      %v1277 = vsel %vm724, %v1259, 0
      %v1280 = vsel %vm724, %v1260, 0
      %1282 = vmatpush.bf16.msra.mxu0 0
      %1283 = vmatpush.bf16.msra.mxu0 0
      %1284 = vmatpush.bf16.msra.mxu0 0
      %1285 = vmatpush.bf16.msra.mxu0 0
      %1286 = vmatpush.bf16.msra.mxu0 0
      %1287 = vmatpush.bf16.msra.mxu0 0
      %1288 = vmatpush.bf16.msra.mxu0 0
      %1289 = vmatpush.bf16.msra.mxu0 %v1265
      %1290 = vmatmul.bf16.gmra.mxu0 %v1268
      %v1291 = vpop.f32.mrf.mxu0
      %v1292 = vadd.f32 0.0, %v1291
      %v1293 = vpop.f32.mrf.mxu0
      %v1294 = vadd.f32 0.0, %v1293
      %1295 = vmatmul.bf16.gmra.mxu0 %v1271
      %v1296 = vpop.f32.mrf.mxu0
      %v1297 = vadd.f32 0.0, %v1296
      %v1298 = vpop.f32.mrf.mxu0
      %v1299 = vadd.f32 0.0, %v1298
      %1300 = vmatmul.bf16.gmra.mxu0 %v1274
      %v1301 = vpop.f32.mrf.mxu0
      %v1302 = vadd.f32 0.0, %v1301
      %v1303 = vpop.f32.mrf.mxu0
      %v1304 = vadd.f32 0.0, %v1303
      %1305 = vmatmul.bf16.gmra.mxu0 %v1277
      %v1306 = vpop.f32.mrf.mxu0
      %v1307 = vadd.f32 0.0, %v1306
      %v1308 = vpop.f32.mrf.mxu0
      %v1309 = vadd.f32 0.0, %v1308
      %1310 = vmatmul.bf16.gmra.mxu0 %v1280
      %v1311 = vpop.f32.mrf.mxu0
      %v1312 = vadd.f32 0.0, %v1311
      %v1313 = vpop.f32.mrf.mxu0
      %1314 = vdwg.mxu0
      %v1317 = vunpack.c.l.b16 %v679
      %v1318 = vunpack.c.l.b16 %v680
      %v1319 = vpack.c.b16 %v1318, %v1317
      %v1322 = vsel %vm724, %v981, 0
      %v1325 = vsel %vm724, %v982, 0
      %v1328 = vsel %vm724, %v983, 0
      %v1331 = vsel %vm724, %v984, 0
      %v1334 = vsel %vm724, %v985, 0
      %1336 = vmatpush.bf16.msra.mxu0 0
      %1337 = vmatpush.bf16.msra.mxu0 0
      %1338 = vmatpush.bf16.msra.mxu0 0
      %1339 = vmatpush.bf16.msra.mxu0 0
      %1340 = vmatpush.bf16.msra.mxu0 0
      %1341 = vmatpush.bf16.msra.mxu0 0
      %1342 = vmatpush.bf16.msra.mxu0 0
      %1343 = vmatpush.bf16.msra.mxu0 %v1319
      %1344 = vmatmul.bf16.gmra.mxu0 %v1322
      %v1345 = vpop.f32.mrf.mxu0
      %v1346 = vadd.f32 %v1292, %v1345
      %v1347 = vpop.f32.mrf.mxu0
      %v1348 = vadd.f32 %v1294, %v1347
      %1349 = vmatmul.bf16.gmra.mxu0 %v1325
      %v1350 = vpop.f32.mrf.mxu0
      %v1351 = vadd.f32 %v1297, %v1350
      %v1352 = vpop.f32.mrf.mxu0
      %v1353 = vadd.f32 %v1299, %v1352
      %1354 = vmatmul.bf16.gmra.mxu0 %v1328
      %v1355 = vpop.f32.mrf.mxu0
      %v1356 = vadd.f32 %v1302, %v1355
      %v1357 = vpop.f32.mrf.mxu0
      %v1358 = vadd.f32 %v1304, %v1357
      %1359 = vmatmul.bf16.gmra.mxu0 %v1331
      %v1360 = vpop.f32.mrf.mxu0
      %v1361 = vadd.f32 %v1307, %v1360
      %v1362 = vpop.f32.mrf.mxu0
      %v1363 = vadd.f32 %v1309, %v1362
      %1364 = vmatmul.bf16.gmra.mxu0 %v1334
      %v1365 = vpop.f32.mrf.mxu0
      %v1366 = vadd.f32 %v1312, %v1365
      %v1367 = vpop.f32.mrf.mxu0
      %1368 = vdwg.mxu0
      %1369 = vrot.lane.b32.xlu0 %v709, 96
      %v1370 = vpop.permute.xlu0 %1369
      %1371 = vrot.lane.b32.xlu0 %v710, 96
      %v1372 = vpop.permute.xlu0 %1371
      %1373 = vrot.lane.b32.xlu0 %v711, 96
      %v1374 = vpop.permute.xlu0 %1373
      %1375 = vrot.lane.b32.xlu0 %v712, 96
      %v1376 = vpop.permute.xlu0 %1375
      %1377 = vrot.lane.b32.xlu0 %v713, 96
      %v1378 = vpop.permute.xlu0 %1377
      %1379 = vrot.lane.b32.xlu0 %v709, 32
      %v1380 = vpop.permute.xlu0 %1379
      %1381 = vrot.lane.b32.xlu0 %v710, 32
      %v1382 = vpop.permute.xlu0 %1381
      %1383 = vrot.lane.b32.xlu0 %v711, 32
      %v1384 = vpop.permute.xlu0 %1383
      %1385 = vrot.lane.b32.xlu0 %v712, 32
      %v1386 = vpop.permute.xlu0 %1385
      %1387 = vrot.lane.b32.xlu0 %v713, 32
      %v1388 = vpop.permute.xlu0 %1387
      %v1390 = vsel %vm724, %v1370, 0
      %v1393 = vsel %vm724, %v1372, 0
      %v1396 = vsel %vm724, %v1374, 0
      %v1399 = vsel %vm724, %v1376, 0
      %v1402 = vsel %vm724, %v1378, 0
      %v1405 = vsel %vm724, %v1380, 0
      %v1408 = vsel %vm724, %v1382, 0
      %v1411 = vsel %vm724, %v1384, 0
      %v1414 = vsel %vm724, %v1386, 0
      %v1417 = vsel %vm724, %v1388, 0
      %1419 = vmatpush.bf16.xpose.msra.mxu0 0
      %1420 = vmatpush.bf16.xpose.msra.mxu0 0
      %1421 = vmatpush.bf16.xpose.msra.mxu0 0
      %1422 = vmatpush.bf16.xpose.msra.mxu0 %v1417
      %1423 = vmatpush.bf16.xpose.msra.mxu0 %v1414
      %1424 = vmatpush.bf16.xpose.msra.mxu0 %v1411
      %1425 = vmatpush.bf16.xpose.msra.mxu0 %v1408
      %1426 = vmatpush.bf16.xpose.msra.mxu0 %v1405
      %1427 = vmatmul.bf16.gmra.mxu0 %v1390
      %v1428 = vpop.f32.mrf.mxu0
      %v1429 = vadd.f32 0.0, %v1428
      %v1430 = vpop.f32.mrf.mxu0
      %v1431 = vadd.f32 0.0, %v1430
      %1432 = vmatmul.bf16.gmra.mxu0 %v1393
      %v1433 = vpop.f32.mrf.mxu0
      %v1434 = vadd.f32 0.0, %v1433
      %v1435 = vpop.f32.mrf.mxu0
      %v1436 = vadd.f32 0.0, %v1435
      %1437 = vmatmul.bf16.gmra.mxu0 %v1396
      %v1438 = vpop.f32.mrf.mxu0
      %v1439 = vadd.f32 0.0, %v1438
      %v1440 = vpop.f32.mrf.mxu0
      %v1441 = vadd.f32 0.0, %v1440
      %1442 = vmatmul.bf16.gmra.mxu0 %v1399
      %v1443 = vpop.f32.mrf.mxu0
      %v1444 = vadd.f32 0.0, %v1443
      %v1445 = vpop.f32.mrf.mxu0
      %v1446 = vadd.f32 0.0, %v1445
      %1447 = vmatmul.bf16.gmra.mxu0 %v1402
      %v1448 = vpop.f32.mrf.mxu0
      %v1449 = vadd.f32 0.0, %v1448
      %v1450 = vpop.f32.mrf.mxu0
      %1451 = vdwg.mxu0
      %v1452 = vmul.f32 %v1429, 0.25
      %v1453 = vmul.f32 %v1431, 0.25
      %v1454 = vmul.f32 %v1434, 0.25
      %v1455 = vmul.f32 %v1436, 0.25
      %v1456 = vmul.f32 %v1439, 0.25
      %v1457 = vmul.f32 %v1441, 0.25
      %v1458 = vmul.f32 %v1444, 0.25
      %v1459 = vmul.f32 %v1446, 0.25
      %v1460 = vmul.f32 %v1449, 0.25
      %v1461 = vadd.f32 %v1452, %v690
      %v1462 = vadd.f32 %v1453, %v690
      %v1463 = vadd.f32 %v1454, %v690
      %v1464 = vadd.f32 %v1455, %v690
      %v1465 = vadd.f32 %v1456, %v690
      %v1466 = vadd.f32 %v1457, %v690
      %v1467 = vadd.f32 %v1458, %v690
      %v1468 = vadd.f32 %v1459, %v690
      %v1469 = vadd.f32 %v1460, %v690
      %v1470 = vsel %vm806, %v1461, -inf
      %1471 = vmax.xlane.f32.xlu0 %v1470
      %v1472 = vpop.xlane.xlu0 %1471
      %v1473 = vsel %vm806, %v1462, -inf
      %1474 = vmax.xlane.f32.xlu0 %v1473
      %v1475 = vpop.xlane.xlu0 %1474
      %v1476 = vsel %vm806, %v1463, -inf
      %1477 = vmax.xlane.f32.xlu0 %v1476
      %v1478 = vpop.xlane.xlu0 %1477
      %v1479 = vsel %vm806, %v1464, -inf
      %1480 = vmax.xlane.f32.xlu0 %v1479
      %v1481 = vpop.xlane.xlu0 %1480
      %v1482 = vsel %vm806, %v1465, -inf
      %1483 = vmax.xlane.f32.xlu0 %v1482
      %v1484 = vpop.xlane.xlu0 %1483
      %v1485 = vsel %vm806, %v1466, -inf
      %1486 = vmax.xlane.f32.xlu0 %v1485
      %v1487 = vpop.xlane.xlu0 %1486
      %v1488 = vsel %vm806, %v1467, -inf
      %1489 = vmax.xlane.f32.xlu0 %v1488
      %v1490 = vpop.xlane.xlu0 %1489
      %v1491 = vsel %vm806, %v1468, -inf
      %1492 = vmax.xlane.f32.xlu0 %v1491
      %v1493 = vpop.xlane.xlu0 %1492
      %v1494 = vsel %vm806, %v1469, -inf
      %1495 = vmax.xlane.f32.xlu0 %v1494
      %v1496 = vpop.xlane.xlu0 %1495
      %v1497 = vsub.f32 %v1461, %v1472
      %v1498 = vsub.f32 %v1462, %v1475
      %v1499 = vsub.f32 %v1463, %v1478
      %v1500 = vsub.f32 %v1464, %v1481
      %v1501 = vsub.f32 %v1465, %v1484
      %v1502 = vsub.f32 %v1466, %v1487
      %v1503 = vsub.f32 %v1467, %v1490
      %v1504 = vsub.f32 %v1468, %v1493
      %v1505 = vsub.f32 %v1469, %v1496
      %v1506 = vmul.f32 %v1497, 1.442695
      %v1507 = vpow.pop %v1506
      %v1508 = vmul.f32 %v1498, 1.442695
      %v1509 = vpow.pop %v1508
      %v1510 = vmul.f32 %v1499, 1.442695
      %v1511 = vpow.pop %v1510
      %v1512 = vmul.f32 %v1500, 1.442695
      %v1513 = vpow.pop %v1512
      %v1514 = vmul.f32 %v1501, 1.442695
      %v1515 = vpow.pop %v1514
      %v1516 = vmul.f32 %v1502, 1.442695
      %v1517 = vpow.pop %v1516
      %v1518 = vmul.f32 %v1503, 1.442695
      %v1519 = vpow.pop %v1518
      %v1520 = vmul.f32 %v1504, 1.442695
      %v1521 = vpow.pop %v1520
      %v1522 = vmul.f32 %v1505, 1.442695
      %v1523 = vpow.pop %v1522
      %v1524 = vsel %vm806, %v1507, 0.0
      %1525 = vadd.xlane.f32.xlu0 %v1524
      %v1526 = vpop.xlane.xlu0 %1525
      %v1527 = vsel %vm806, %v1509, 0.0
      %1528 = vadd.xlane.f32.xlu0 %v1527
      %v1529 = vpop.xlane.xlu0 %1528
      %v1530 = vsel %vm806, %v1511, 0.0
      %1531 = vadd.xlane.f32.xlu0 %v1530
      %v1532 = vpop.xlane.xlu0 %1531
      %v1533 = vsel %vm806, %v1513, 0.0
      %1534 = vadd.xlane.f32.xlu0 %v1533
      %v1535 = vpop.xlane.xlu0 %1534
      %v1536 = vsel %vm806, %v1515, 0.0
      %1537 = vadd.xlane.f32.xlu0 %v1536
      %v1538 = vpop.xlane.xlu0 %1537
      %v1539 = vsel %vm806, %v1517, 0.0
      %1540 = vadd.xlane.f32.xlu0 %v1539
      %v1541 = vpop.xlane.xlu0 %1540
      %v1542 = vsel %vm806, %v1519, 0.0
      %1543 = vadd.xlane.f32.xlu0 %v1542
      %v1544 = vpop.xlane.xlu0 %1543
      %v1545 = vsel %vm806, %v1521, 0.0
      %1546 = vadd.xlane.f32.xlu0 %v1545
      %v1547 = vpop.xlane.xlu0 %1546
      %v1548 = vsel %vm806, %v1523, 0.0
      %1549 = vadd.xlane.f32.xlu0 %v1548
      %v1550 = vpop.xlane.xlu0 %1549
      %v1551 = vrcp.pop %v1526
      %v1552 = vrcp.pop %v1529
      %v1553 = vrcp.pop %v1532
      %v1554 = vrcp.pop %v1535
      %v1555 = vrcp.pop %v1538
      %v1556 = vrcp.pop %v1541
      %v1557 = vrcp.pop %v1544
      %v1558 = vrcp.pop %v1547
      %v1559 = vrcp.pop %v1550
      %v1560 = vmul.f32 %v1507, %v1551
      %v1561 = vmul.f32 %v1509, %v1552
      %v1562 = vmul.f32 %v1511, %v1553
      %v1563 = vmul.f32 %v1513, %v1554
      %v1564 = vmul.f32 %v1515, %v1555
      %v1565 = vmul.f32 %v1517, %v1556
      %v1566 = vmul.f32 %v1519, %v1557
      %v1567 = vmul.f32 %v1521, %v1558
      %v1568 = vmul.f32 %v1523, %v1559
      %v1569 = vpack.c.bf16 %v1561, %v1560
      %v1570 = vpack.c.bf16 %v1563, %v1562
      %v1571 = vpack.c.bf16 %v1565, %v1564
      %v1572 = vpack.c.bf16 %v1567, %v1566
      %v1573 = vpack.c.bf16 %v1568, %v1568
      %1574 = vrot.lane.b32.xlu0 %v920, 96
      %v1575 = vpop.permute.xlu0 %1574
      %1576 = vrot.lane.b32.xlu0 %v921, 96
      %v1577 = vpop.permute.xlu0 %1576
      %1578 = vrot.lane.b32.xlu0 %v922, 96
      %v1579 = vpop.permute.xlu0 %1578
      %1580 = vrot.lane.b32.xlu0 %v923, 96
      %v1581 = vpop.permute.xlu0 %1580
      %1582 = vrot.lane.b32.xlu0 %v924, 96
      %v1583 = vpop.permute.xlu0 %1582
      %v1589 = vsel %vm806, %v1569, 0
      %v1592 = vsel %vm806, %v1570, 0
      %v1595 = vsel %vm806, %v1571, 0
      %v1598 = vsel %vm806, %v1572, 0
      %v1601 = vsel %vm806, %v1573, 0
      %v1604 = vsel %vm944, %v1583, 0
      %1606 = vmatpush.bf16.msra.mxu0 0
      %1607 = vmatpush.bf16.msra.mxu0 0
      %1608 = vmatpush.bf16.msra.mxu0 0
      %1609 = vmatpush.bf16.msra.mxu0 %v1604
      %1610 = vmatpush.bf16.msra.mxu0 %v1581
      %1611 = vmatpush.bf16.msra.mxu0 %v1579
      %1612 = vmatpush.bf16.msra.mxu0 %v1577
      %1613 = vmatpush.bf16.msra.mxu0 %v1575
      %1614 = vmatmul.bf16.gmra.mxu0 %v1589
      %v1615 = vpop.f32.mrf.mxu0
      %v1616 = vadd.f32 0.0, %v1615
      %v1617 = vpop.f32.mrf.mxu0
      %v1618 = vadd.f32 0.0, %v1617
      %1619 = vmatmul.bf16.gmra.mxu0 %v1592
      %v1620 = vpop.f32.mrf.mxu0
      %v1621 = vadd.f32 0.0, %v1620
      %v1622 = vpop.f32.mrf.mxu0
      %v1623 = vadd.f32 0.0, %v1622
      %1624 = vmatmul.bf16.gmra.mxu0 %v1595
      %v1625 = vpop.f32.mrf.mxu0
      %v1626 = vadd.f32 0.0, %v1625
      %v1627 = vpop.f32.mrf.mxu0
      %v1628 = vadd.f32 0.0, %v1627
      %1629 = vmatmul.bf16.gmra.mxu0 %v1598
      %v1630 = vpop.f32.mrf.mxu0
      %v1631 = vadd.f32 0.0, %v1630
      %v1632 = vpop.f32.mrf.mxu0
      %v1633 = vadd.f32 0.0, %v1632
      %1634 = vmatmul.bf16.gmra.mxu0 %v1601
      %v1635 = vpop.f32.mrf.mxu0
      %v1636 = vadd.f32 0.0, %v1635
      %v1637 = vpop.f32.mrf.mxu0
      %1638 = vdwg.mxu0
      %v1639 = vpack.c.bf16 %v1618, %v1616
      %v1640 = vpack.c.bf16 %v1623, %v1621
      %v1641 = vpack.c.bf16 %v1628, %v1626
      %v1642 = vpack.c.bf16 %v1633, %v1631
      %v1643 = vpack.c.bf16 %v1636, %v1636
      %v1646 = vunpack.c.l.b16 %v683
      %v1647 = vunpack.c.l.b16 %v684
      %v1648 = vpack.c.b16 %v1647, %v1646
      %v1651 = vsel %vm724, %v1639, 0
      %v1654 = vsel %vm724, %v1640, 0
      %v1657 = vsel %vm724, %v1641, 0
      %v1660 = vsel %vm724, %v1642, 0
      %v1663 = vsel %vm724, %v1643, 0
      %1665 = vmatpush.bf16.msra.mxu0 0
      %1666 = vmatpush.bf16.msra.mxu0 0
      %1667 = vmatpush.bf16.msra.mxu0 0
      %1668 = vmatpush.bf16.msra.mxu0 0
      %1669 = vmatpush.bf16.msra.mxu0 0
      %1670 = vmatpush.bf16.msra.mxu0 0
      %1671 = vmatpush.bf16.msra.mxu0 0
      %1672 = vmatpush.bf16.msra.mxu0 %v1648
      %1673 = vmatmul.bf16.gmra.mxu0 %v1651
      %v1674 = vpop.f32.mrf.mxu0
      %v1675 = vadd.f32 0.0, %v1674
      %v1676 = vpop.f32.mrf.mxu0
      %v1677 = vadd.f32 0.0, %v1676
      %1678 = vmatmul.bf16.gmra.mxu0 %v1654
      %v1679 = vpop.f32.mrf.mxu0
      %v1680 = vadd.f32 0.0, %v1679
      %v1681 = vpop.f32.mrf.mxu0
      %v1682 = vadd.f32 0.0, %v1681
      %1683 = vmatmul.bf16.gmra.mxu0 %v1657
      %v1684 = vpop.f32.mrf.mxu0
      %v1685 = vadd.f32 0.0, %v1684
      %v1686 = vpop.f32.mrf.mxu0
      %v1687 = vadd.f32 0.0, %v1686
      %1688 = vmatmul.bf16.gmra.mxu0 %v1660
      %v1689 = vpop.f32.mrf.mxu0
      %v1690 = vadd.f32 0.0, %v1689
      %v1691 = vpop.f32.mrf.mxu0
      %v1692 = vadd.f32 0.0, %v1691
      %1693 = vmatmul.bf16.gmra.mxu0 %v1663
      %v1694 = vpop.f32.mrf.mxu0
      %v1695 = vadd.f32 0.0, %v1694
      %v1696 = vpop.f32.mrf.mxu0
      %1697 = vdwg.mxu0
      %v1698 = vadd.f32 %v1346, %v1675
      %v1699 = vadd.f32 %v1348, %v1677
      %v1700 = vadd.f32 %v1351, %v1680
      %v1701 = vadd.f32 %v1353, %v1682
      %v1702 = vadd.f32 %v1356, %v1685
      %v1703 = vadd.f32 %v1358, %v1687
      %v1704 = vadd.f32 %v1361, %v1690
      %v1705 = vadd.f32 %v1363, %v1692
      %v1706 = vadd.f32 %v1366, %v1695
      %1707 = vrot.lane.b32.xlu0 %v709, 80
      %v1708 = vpop.permute.xlu0 %1707
      %1709 = vrot.lane.b32.xlu0 %v710, 80
      %v1710 = vpop.permute.xlu0 %1709
      %1711 = vrot.lane.b32.xlu0 %v711, 80
      %v1712 = vpop.permute.xlu0 %1711
      %1713 = vrot.lane.b32.xlu0 %v712, 80
      %v1714 = vpop.permute.xlu0 %1713
      %1715 = vrot.lane.b32.xlu0 %v713, 80
      %v1716 = vpop.permute.xlu0 %1715
      %1717 = vrot.lane.b32.xlu0 %v709, 16
      %v1718 = vpop.permute.xlu0 %1717
      %1719 = vrot.lane.b32.xlu0 %v710, 16
      %v1720 = vpop.permute.xlu0 %1719
      %1721 = vrot.lane.b32.xlu0 %v711, 16
      %v1722 = vpop.permute.xlu0 %1721
      %1723 = vrot.lane.b32.xlu0 %v712, 16
      %v1724 = vpop.permute.xlu0 %1723
      %1725 = vrot.lane.b32.xlu0 %v713, 16
      %v1726 = vpop.permute.xlu0 %1725
      %v1728 = vsel %vm724, %v1708, 0
      %v1731 = vsel %vm724, %v1710, 0
      %v1734 = vsel %vm724, %v1712, 0
      %v1737 = vsel %vm724, %v1714, 0
      %v1740 = vsel %vm724, %v1716, 0
      %v1743 = vsel %vm724, %v1718, 0
      %v1746 = vsel %vm724, %v1720, 0
      %v1749 = vsel %vm724, %v1722, 0
      %v1752 = vsel %vm724, %v1724, 0
      %v1755 = vsel %vm724, %v1726, 0
      %1757 = vmatpush.bf16.xpose.msra.mxu0 0
      %1758 = vmatpush.bf16.xpose.msra.mxu0 0
      %1759 = vmatpush.bf16.xpose.msra.mxu0 0
      %1760 = vmatpush.bf16.xpose.msra.mxu0 %v1755
      %1761 = vmatpush.bf16.xpose.msra.mxu0 %v1752
      %1762 = vmatpush.bf16.xpose.msra.mxu0 %v1749
      %1763 = vmatpush.bf16.xpose.msra.mxu0 %v1746
      %1764 = vmatpush.bf16.xpose.msra.mxu0 %v1743
      %1765 = vmatmul.bf16.gmra.mxu0 %v1728
      %v1766 = vpop.f32.mrf.mxu0
      %v1767 = vadd.f32 0.0, %v1766
      %v1768 = vpop.f32.mrf.mxu0
      %v1769 = vadd.f32 0.0, %v1768
      %1770 = vmatmul.bf16.gmra.mxu0 %v1731
      %v1771 = vpop.f32.mrf.mxu0
      %v1772 = vadd.f32 0.0, %v1771
      %v1773 = vpop.f32.mrf.mxu0
      %v1774 = vadd.f32 0.0, %v1773
      %1775 = vmatmul.bf16.gmra.mxu0 %v1734
      %v1776 = vpop.f32.mrf.mxu0
      %v1777 = vadd.f32 0.0, %v1776
      %v1778 = vpop.f32.mrf.mxu0
      %v1779 = vadd.f32 0.0, %v1778
      %1780 = vmatmul.bf16.gmra.mxu0 %v1737
      %v1781 = vpop.f32.mrf.mxu0
      %v1782 = vadd.f32 0.0, %v1781
      %v1783 = vpop.f32.mrf.mxu0
      %v1784 = vadd.f32 0.0, %v1783
      %1785 = vmatmul.bf16.gmra.mxu0 %v1740
      %v1786 = vpop.f32.mrf.mxu0
      %v1787 = vadd.f32 0.0, %v1786
      %v1788 = vpop.f32.mrf.mxu0
      %1789 = vdwg.mxu0
      %v1790 = vmul.f32 %v1767, 0.25
      %v1791 = vmul.f32 %v1769, 0.25
      %v1792 = vmul.f32 %v1772, 0.25
      %v1793 = vmul.f32 %v1774, 0.25
      %v1794 = vmul.f32 %v1777, 0.25
      %v1795 = vmul.f32 %v1779, 0.25
      %v1796 = vmul.f32 %v1782, 0.25
      %v1797 = vmul.f32 %v1784, 0.25
      %v1798 = vmul.f32 %v1787, 0.25
      %v1799 = vadd.f32 %v1790, %v690
      %v1800 = vadd.f32 %v1791, %v690
      %v1801 = vadd.f32 %v1792, %v690
      %v1802 = vadd.f32 %v1793, %v690
      %v1803 = vadd.f32 %v1794, %v690
      %v1804 = vadd.f32 %v1795, %v690
      %v1805 = vadd.f32 %v1796, %v690
      %v1806 = vadd.f32 %v1797, %v690
      %v1807 = vadd.f32 %v1798, %v690
      %v1808 = vsel %vm806, %v1799, -inf
      %1809 = vmax.xlane.f32.xlu0 %v1808
      %v1810 = vpop.xlane.xlu0 %1809
      %v1811 = vsel %vm806, %v1800, -inf
      %1812 = vmax.xlane.f32.xlu0 %v1811
      %v1813 = vpop.xlane.xlu0 %1812
      %v1814 = vsel %vm806, %v1801, -inf
      %1815 = vmax.xlane.f32.xlu0 %v1814
      %v1816 = vpop.xlane.xlu0 %1815
      %v1817 = vsel %vm806, %v1802, -inf
      %1818 = vmax.xlane.f32.xlu0 %v1817
      %v1819 = vpop.xlane.xlu0 %1818
      %v1820 = vsel %vm806, %v1803, -inf
      %1821 = vmax.xlane.f32.xlu0 %v1820
      %v1822 = vpop.xlane.xlu0 %1821
      %v1823 = vsel %vm806, %v1804, -inf
      %1824 = vmax.xlane.f32.xlu0 %v1823
      %v1825 = vpop.xlane.xlu0 %1824
      %v1826 = vsel %vm806, %v1805, -inf
      %1827 = vmax.xlane.f32.xlu0 %v1826
      %v1828 = vpop.xlane.xlu0 %1827
      %v1829 = vsel %vm806, %v1806, -inf
      %1830 = vmax.xlane.f32.xlu0 %v1829
      %v1831 = vpop.xlane.xlu0 %1830
      %v1832 = vsel %vm806, %v1807, -inf
      %1833 = vmax.xlane.f32.xlu0 %v1832
      %v1834 = vpop.xlane.xlu0 %1833
      %v1835 = vsub.f32 %v1799, %v1810
      %v1836 = vsub.f32 %v1800, %v1813
      %v1837 = vsub.f32 %v1801, %v1816
      %v1838 = vsub.f32 %v1802, %v1819
      %v1839 = vsub.f32 %v1803, %v1822
      %v1840 = vsub.f32 %v1804, %v1825
      %v1841 = vsub.f32 %v1805, %v1828
      %v1842 = vsub.f32 %v1806, %v1831
      %v1843 = vsub.f32 %v1807, %v1834
      %v1844 = vmul.f32 %v1835, 1.442695
      %v1845 = vpow.pop %v1844
      %v1846 = vmul.f32 %v1836, 1.442695
      %v1847 = vpow.pop %v1846
      %v1848 = vmul.f32 %v1837, 1.442695
      %v1849 = vpow.pop %v1848
      %v1850 = vmul.f32 %v1838, 1.442695
      %v1851 = vpow.pop %v1850
      %v1852 = vmul.f32 %v1839, 1.442695
      %v1853 = vpow.pop %v1852
      %v1854 = vmul.f32 %v1840, 1.442695
      %v1855 = vpow.pop %v1854
      %v1856 = vmul.f32 %v1841, 1.442695
      %v1857 = vpow.pop %v1856
      %v1858 = vmul.f32 %v1842, 1.442695
      %v1859 = vpow.pop %v1858
      %v1860 = vmul.f32 %v1843, 1.442695
      %v1861 = vpow.pop %v1860
      %v1862 = vsel %vm806, %v1845, 0.0
      %1863 = vadd.xlane.f32.xlu0 %v1862
      %v1864 = vpop.xlane.xlu0 %1863
      %v1865 = vsel %vm806, %v1847, 0.0
      %1866 = vadd.xlane.f32.xlu0 %v1865
      %v1867 = vpop.xlane.xlu0 %1866
      %v1868 = vsel %vm806, %v1849, 0.0
      %1869 = vadd.xlane.f32.xlu0 %v1868
      %v1870 = vpop.xlane.xlu0 %1869
      %v1871 = vsel %vm806, %v1851, 0.0
      %1872 = vadd.xlane.f32.xlu0 %v1871
      %v1873 = vpop.xlane.xlu0 %1872
      %v1874 = vsel %vm806, %v1853, 0.0
      %1875 = vadd.xlane.f32.xlu0 %v1874
      %v1876 = vpop.xlane.xlu0 %1875
      %v1877 = vsel %vm806, %v1855, 0.0
      %1878 = vadd.xlane.f32.xlu0 %v1877
      %v1879 = vpop.xlane.xlu0 %1878
      %v1880 = vsel %vm806, %v1857, 0.0
      %1881 = vadd.xlane.f32.xlu0 %v1880
      %v1882 = vpop.xlane.xlu0 %1881
      %v1883 = vsel %vm806, %v1859, 0.0
      %1884 = vadd.xlane.f32.xlu0 %v1883
      %v1885 = vpop.xlane.xlu0 %1884
      %v1886 = vsel %vm806, %v1861, 0.0
      %1887 = vadd.xlane.f32.xlu0 %v1886
      %v1888 = vpop.xlane.xlu0 %1887
      %v1889 = vrcp.pop %v1864
      %v1890 = vrcp.pop %v1867
      %v1891 = vrcp.pop %v1870
      %v1892 = vrcp.pop %v1873
      %v1893 = vrcp.pop %v1876
      %v1894 = vrcp.pop %v1879
      %v1895 = vrcp.pop %v1882
      %v1896 = vrcp.pop %v1885
      %v1897 = vrcp.pop %v1888
      %v1898 = vmul.f32 %v1845, %v1889
      %v1899 = vmul.f32 %v1847, %v1890
      %v1900 = vmul.f32 %v1849, %v1891
      %v1901 = vmul.f32 %v1851, %v1892
      %v1902 = vmul.f32 %v1853, %v1893
      %v1903 = vmul.f32 %v1855, %v1894
      %v1904 = vmul.f32 %v1857, %v1895
      %v1905 = vmul.f32 %v1859, %v1896
      %v1906 = vmul.f32 %v1861, %v1897
      %v1907 = vpack.c.bf16 %v1899, %v1898
      %v1908 = vpack.c.bf16 %v1901, %v1900
      %v1909 = vpack.c.bf16 %v1903, %v1902
      %v1910 = vpack.c.bf16 %v1905, %v1904
      %v1911 = vpack.c.bf16 %v1906, %v1906
      %1912 = vrot.lane.b32.xlu0 %v920, 80
      %v1913 = vpop.permute.xlu0 %1912
      %1914 = vrot.lane.b32.xlu0 %v921, 80
      %v1915 = vpop.permute.xlu0 %1914
      %1916 = vrot.lane.b32.xlu0 %v922, 80
      %v1917 = vpop.permute.xlu0 %1916
      %1918 = vrot.lane.b32.xlu0 %v923, 80
      %v1919 = vpop.permute.xlu0 %1918
      %1920 = vrot.lane.b32.xlu0 %v924, 80
      %v1921 = vpop.permute.xlu0 %1920
      %v1927 = vsel %vm806, %v1907, 0
      %v1930 = vsel %vm806, %v1908, 0
      %v1933 = vsel %vm806, %v1909, 0
      %v1936 = vsel %vm806, %v1910, 0
      %v1939 = vsel %vm806, %v1911, 0
      %v1942 = vsel %vm944, %v1921, 0
      %1944 = vmatpush.bf16.msra.mxu0 0
      %1945 = vmatpush.bf16.msra.mxu0 0
      %1946 = vmatpush.bf16.msra.mxu0 0
      %1947 = vmatpush.bf16.msra.mxu0 %v1942
      %1948 = vmatpush.bf16.msra.mxu0 %v1919
      %1949 = vmatpush.bf16.msra.mxu0 %v1917
      %1950 = vmatpush.bf16.msra.mxu0 %v1915
      %1951 = vmatpush.bf16.msra.mxu0 %v1913
      %1952 = vmatmul.bf16.gmra.mxu0 %v1927
      %v1953 = vpop.f32.mrf.mxu0
      %v1954 = vadd.f32 0.0, %v1953
      %v1955 = vpop.f32.mrf.mxu0
      %v1956 = vadd.f32 0.0, %v1955
      %1957 = vmatmul.bf16.gmra.mxu0 %v1930
      %v1958 = vpop.f32.mrf.mxu0
      %v1959 = vadd.f32 0.0, %v1958
      %v1960 = vpop.f32.mrf.mxu0
      %v1961 = vadd.f32 0.0, %v1960
      %1962 = vmatmul.bf16.gmra.mxu0 %v1933
      %v1963 = vpop.f32.mrf.mxu0
      %v1964 = vadd.f32 0.0, %v1963
      %v1965 = vpop.f32.mrf.mxu0
      %v1966 = vadd.f32 0.0, %v1965
      %1967 = vmatmul.bf16.gmra.mxu0 %v1936
      %v1968 = vpop.f32.mrf.mxu0
      %v1969 = vadd.f32 0.0, %v1968
      %v1970 = vpop.f32.mrf.mxu0
      %v1971 = vadd.f32 0.0, %v1970
      %1972 = vmatmul.bf16.gmra.mxu0 %v1939
      %v1973 = vpop.f32.mrf.mxu0
      %v1974 = vadd.f32 0.0, %v1973
      %v1975 = vpop.f32.mrf.mxu0
      %1976 = vdwg.mxu0
      %v1977 = vpack.c.bf16 %v1956, %v1954
      %v1978 = vpack.c.bf16 %v1961, %v1959
      %v1979 = vpack.c.bf16 %v1966, %v1964
      %v1980 = vpack.c.bf16 %v1971, %v1969
      %v1981 = vpack.c.bf16 %v1974, %v1974
      %v1984 = vunpack.c.l.b16 %v685
      %v1985 = vunpack.c.l.b16 %v686
      %v1986 = vpack.c.b16 %v1985, %v1984
      %v1989 = vsel %vm724, %v1977, 0
      %v1992 = vsel %vm724, %v1978, 0
      %v1995 = vsel %vm724, %v1979, 0
      %v1998 = vsel %vm724, %v1980, 0
      %v2001 = vsel %vm724, %v1981, 0
      %2003 = vmatpush.bf16.msra.mxu0 0
      %2004 = vmatpush.bf16.msra.mxu0 0
      %2005 = vmatpush.bf16.msra.mxu0 0
      %2006 = vmatpush.bf16.msra.mxu0 0
      %2007 = vmatpush.bf16.msra.mxu0 0
      %2008 = vmatpush.bf16.msra.mxu0 0
      %2009 = vmatpush.bf16.msra.mxu0 0
      %2010 = vmatpush.bf16.msra.mxu0 %v1986
      %2011 = vmatmul.bf16.gmra.mxu0 %v1989
      %v2012 = vpop.f32.mrf.mxu0
      %v2013 = vadd.f32 0.0, %v2012
      %v2014 = vpop.f32.mrf.mxu0
      %v2015 = vadd.f32 0.0, %v2014
      %2016 = vmatmul.bf16.gmra.mxu0 %v1992
      %v2017 = vpop.f32.mrf.mxu0
      %v2018 = vadd.f32 0.0, %v2017
      %v2019 = vpop.f32.mrf.mxu0
      %v2020 = vadd.f32 0.0, %v2019
      %2021 = vmatmul.bf16.gmra.mxu0 %v1995
      %v2022 = vpop.f32.mrf.mxu0
      %v2023 = vadd.f32 0.0, %v2022
      %v2024 = vpop.f32.mrf.mxu0
      %v2025 = vadd.f32 0.0, %v2024
      %2026 = vmatmul.bf16.gmra.mxu0 %v1998
      %v2027 = vpop.f32.mrf.mxu0
      %v2028 = vadd.f32 0.0, %v2027
      %v2029 = vpop.f32.mrf.mxu0
      %v2030 = vadd.f32 0.0, %v2029
      %2031 = vmatmul.bf16.gmra.mxu0 %v2001
      %v2032 = vpop.f32.mrf.mxu0
      %v2033 = vadd.f32 0.0, %v2032
      %v2034 = vpop.f32.mrf.mxu0
      %2035 = vdwg.mxu0
      %v2036 = vadd.f32 %v1698, %v2013
      %v2037 = vadd.f32 %v1699, %v2015
      %v2038 = vadd.f32 %v1700, %v2018
      %v2039 = vadd.f32 %v1701, %v2020
      %v2040 = vadd.f32 %v1702, %v2023
      %v2041 = vadd.f32 %v1703, %v2025
      %v2042 = vadd.f32 %v1704, %v2028
      %v2043 = vadd.f32 %v1705, %v2030
      %v2044 = vadd.f32 %v1706, %v2033
      %v2045 = vld [vmem:[%s6] sm:$0x1]
      %v2047 = vperm.slane %v2045, 0
      %v2049 = vadd.f32 %v2036, %v2047
      %v2050 = vadd.f32 %v2037, %v2047
      %v2051 = vadd.f32 %v2038, %v2047
      %v2052 = vadd.f32 %v2039, %v2047
      %v2053 = vadd.f32 %v2040, %v2047
      %v2054 = vadd.f32 %v2041, %v2047
      %v2055 = vadd.f32 %v2042, %v2047
      %v2056 = vadd.f32 %v2043, %v2047
      %v2057 = vadd.f32 %v2044, %v2047
      %v2058 = vadd.f32 %v289, %v2049
      %v2059 = vadd.f32 %v290, %v2050
      %v2060 = vadd.f32 %v291, %v2051
      %v2061 = vadd.f32 %v292, %v2052
      %v2062 = vadd.f32 %v293, %v2053
      %v2063 = vadd.f32 %v294, %v2054
      %v2064 = vadd.f32 %v295, %v2055
      %v2065 = vadd.f32 %v296, %v2056
      %v2066 = vadd.f32 %v297, %v2057
      %v2067 = vpack.c.bf16 %v2058, %v2058
      %v2068 = vpack.c.bf16 %v2059, %v2059
      %v2069 = vpack.c.bf16 %v2060, %v2060
      %v2070 = vpack.c.bf16 %v2061, %v2061
      %v2071 = vpack.c.bf16 %v2062, %v2062
      %v2072 = vpack.c.bf16 %v2063, %v2063
      %v2073 = vpack.c.bf16 %v2064, %v2064
      %v2074 = vpack.c.bf16 %v2065, %v2065
      %v2075 = vpack.c.bf16 %v2066, %v2066
      %vm2076 = vcmask 519168
      %2077 = vst.msk [vmem:[%s278] sm:$0xf] %vm2076, %v2067
      %2078 = vst.msk [vmem:[%s278 + $0x4] sm:$0xf] %vm2076, %v2068
      %2079 = vst.msk [vmem:[%s278 + $0x8] sm:$0xf] %vm2076, %v2069
      %2080 = vst.msk [vmem:[%s278 + $0xc] sm:$0xf] %vm2076, %v2070
      %2081 = vst.msk [vmem:[%s278 + $0x10] sm:$0xf] %vm2076, %v2071
      %2082 = vst.msk [vmem:[%s278 + $0x14] sm:$0xf] %vm2076, %v2072
      %2083 = vst.msk [vmem:[%s278 + $0x18] sm:$0xf] %vm2076, %v2073
      %2084 = vst.msk [vmem:[%s278 + $0x1c] sm:$0xf] %vm2076, %v2074
      %2085 = vst.msk [vmem:[%s278 + $0x20] sm:$0xf] %vm2076, %v2075
      %p2086 = scmp.lt.s32.totalorder %s18, 3
      %s2087 = scalar_select %p2086, %s18, 3
      %s2088 = smul.addr %s2087, 9
      %s2089 = smul.addr %s2088, 4
      %s2090 = scalar_lea.vmem %s7, %s2089
      // Predicated region
      $region49: #{cross_frame_transformer_forward.12} parent=47 // pred_check
        %p2091 = pneg %p188
      $region50: #{cross_frame_transformer_forward.12} parent=47 // pred_check_branch
        %2093 = sbr.rel (%p2091) target = $region52
      $region51: #{cross_frame_transformer_forward.12} parent=47 // pred_region
        _
      $region52: #{cross_frame_transformer_forward.12} parent=47 // pred_fallthru
        _
    $region48: #{cross_frame_transformer_forward.12} parent=5 // pred_fallthru
      _
    %p2094 = scmp.le.s32.totalorder 2, %s13
    // Predicated region
    $region53: #{cross_frame_transformer_forward.12} parent=5 // pred_check
      %p2095 = pneg %p2094
    $region54: #{cross_frame_transformer_forward.12} parent=5 // pred_check_branch
      %2097 = sbr.rel (%p2095) target = $region56
    $region55: #{cross_frame_transformer_forward.12} parent=5 // pred_region
      %s2098 = ssub.s32 %s13, 2
      // Predicated region
      $region57: #{cross_frame_transformer_forward.12} parent=55 // pred_check
        %p2099 = pneg %p194
      $region58: #{cross_frame_transformer_forward.12} parent=55 // pred_check_branch
        %2101 = sbr.rel (%p2099) target = $region60
      $region59: #{cross_frame_transformer_forward.12} parent=55 // pred_region
        %p2102 = scmp.lt.s32.totalorder %s19, 3
        %s2103 = scalar_select %p2102, %s19, 3
        %s2104 = smul.addr %s2103, 9
        %s2105 = smul.addr %s2104, 4
        %s2106 = scalar_lea.vmem %s7, %s2105
      $region60: #{cross_frame_transformer_forward.12} parent=55 // pred_fallthru
        _
    $region56: #{cross_frame_transformer_forward.12} parent=5 // pred_fallthru
      _
  $region6: #{cross_frame_transformer_forward.12} parent=0 // loop_footer
    %s17 = sadd.s32 1, %s13
  $region7: #{cross_frame_transformer_forward.12} parent=0 // loop_footer_branch
    %12 = sbr.rel target = $region3
  $region8: #{cross_frame_transformer_forward.12} parent=0 // loop_exit
    _

// kernel: cross_frame_transformer_forward.17
$region0: #{cross_frame_transformer_forward.17}
  #allocation0 [shape = 'u32[]', space=smem, size = 0x4, offset = 0x4, fixed_abs, tag = 'smem constant byte address 0x4 - core index']
  #allocation1 [shape = 'u32[72,128]{1,0:T(1,128)}', space=vmem, size = 0x9000, scoped, tag = 'internal scratch']
  %s0 = inlined_call_operand.vmem [shape: bf16[4,64], index: 0, kind: input, shape index: {}]
  %s1 = inlined_call_operand.vmem [shape: f32[1,64], index: 1, kind: input, shape index: {}]
  %s2 = inlined_call_operand.vmem [shape: f32[1,64], index: 2, kind: input, shape index: {}]
  %s3 = inlined_call_operand.vmem [shape: bf16[64,32], index: 3, kind: input, shape index: {}]
  %s4 = inlined_call_operand.vmem [shape: f32[1,32], index: 4, kind: input, shape index: {}]
  %s5 = inlined_call_operand.hbm [shape: f32[4,32], index: 5, kind: output, shape index: {}]
  %s6 = sld [smem:[#allocation0]]
  $region30: #{cross_frame_transformer_forward.17} parent=0
    _
  %s8 = ssub.s32 1, %s6
  %s9 = scalar_select 0, %s8, %s6
  $region1: #{cross_frame_transformer_forward.17} parent=0
    #allocation2 [shape = 'u8[2048]{0}', space=vmem, size = 0x800, scoped, tag = 'output window, operand 0, single buffered']
    #allocation3 [shape = 's32[1]{0}', space=sflag, size = 0x4, scoped, tag = 'scoped memory for cross_frame_transformer_forward.17']
    %10 = vsyncpa [#allocation3], 0
    // Predicated region
    $region2: #{cross_frame_transformer_forward.17} parent=1 // pred_check
      _
    $region3: #{cross_frame_transformer_forward.17} parent=1 // pred_check_branch
      %12 = sbr.rel (0) target = $region5
    $region4: #{cross_frame_transformer_forward.17} parent=1 // pred_region
      _
    $region5: #{cross_frame_transformer_forward.17} parent=1 // pred_fallthru
      _
    // Predicated region
    $region6: #{cross_frame_transformer_forward.17} parent=1 // pred_check
      _
    $region7: #{cross_frame_transformer_forward.17} parent=1 // pred_check_branch
      %14 = sbr.rel (0) target = $region9
    $region8: #{cross_frame_transformer_forward.17} parent=1 // pred_region
      _
    $region9: #{cross_frame_transformer_forward.17} parent=1 // pred_fallthru
      _
    // Predicated region
    $region10: #{cross_frame_transformer_forward.17} parent=1 // pred_check
      _
    $region11: #{cross_frame_transformer_forward.17} parent=1 // pred_check_branch
      %16 = sbr.rel (0) target = $region13
    $region12: #{cross_frame_transformer_forward.17} parent=1 // pred_region
      _
    $region13: #{cross_frame_transformer_forward.17} parent=1 // pred_fallthru
      _
    // Predicated region
    $region14: #{cross_frame_transformer_forward.17} parent=1 // pred_check
      _
    $region15: #{cross_frame_transformer_forward.17} parent=1 // pred_check_branch
      %18 = sbr.rel (0) target = $region17
    $region16: #{cross_frame_transformer_forward.17} parent=1 // pred_region
      _
    $region17: #{cross_frame_transformer_forward.17} parent=1 // pred_fallthru
      _
    // Predicated region
    $region18: #{cross_frame_transformer_forward.17} parent=1 // pred_check
      _
    $region19: #{cross_frame_transformer_forward.17} parent=1 // pred_check_branch
      %20 = sbr.rel (0) target = $region21
    $region20: #{cross_frame_transformer_forward.17} parent=1 // pred_region
      _
    $region21: #{cross_frame_transformer_forward.17} parent=1 // pred_fallthru
      _
    %v22 = vld [vmem:[%s0] sm:$0x3]
    %v23 = vunpack.c.l.bf16 %v22
    %v24 = vld [vmem:[%s1] sm:$0x1]
    %v25 = vld [vmem:[%s2] sm:$0x1]
    %vm26 = vcmask 519168
    %v27 = vsel %vm26, %v23, 0.0
    %28 = vadd.xlane.f32.xlu0 %v27
    %v29 = vpop.xlane.xlu0 %28
    %v30 = vrcp.pop 64.0
    %v31 = vmul.f32 64.0, %v30
    %v32 = vsub.f32 1.0, %v31
    %v33 = vmul.f32 %v30, %v32
    %v34 = vadd.f32 %v30, %v33
    %vm35 = vweird.f32 %v30
    %v36 = vsel %vm35, %v30, %v34
    %v37 = vmul.f32 %v29, %v36
    %v38 = vsub.f32 %v23, %v37
    %v39 = vmul.f32 %v38, %v38
    %v40 = vsel %vm26, %v39, 0.0
    %41 = vadd.xlane.f32.xlu0 %v40
    %v42 = vpop.xlane.xlu0 %41
    %v43 = vmul.f32 %v42, %v36
    %v44 = vadd.f32 %v43, 1e-05
    %v45 = vrsqrt.pop %v44
    %v46 = vmul.f32 %v45, %v44
    %v47 = vmul.f32 %v46, %v45
    %v48 = vmul.f32 0.5, %v47
    %v49 = vsub.f32 1.5, %v48
    %v50 = vmul.f32 %v45, %v49
    %vm51 = vweird.f32 %v44
    %vm52 = vweird.f32 %v45
    %vm53 = vmor %vm51, %vm52
    %v54 = vsel %vm53, %v45, %v50
    %v55 = vmul.f32 %v38, %v54
    %v57 = vperm.slane %v24, 0
    %v59 = vmul.f32 %v55, %v57
    %v61 = vperm.slane %v25, 0
    %v63 = vadd.f32 %v59, %v61
    %v64 = vpack.c.bf16 %v63, %v63
    %v65 = vld [vmem:[%s3] sm:$0xf]
    %v66 = vld [vmem:[%s3 + $0x4] sm:$0xf]
    %v67 = vld [vmem:[%s3 + $0x8] sm:$0xf]
    %v68 = vld [vmem:[%s3 + $0xc] sm:$0xf]
    %v69 = vld [vmem:[%s3 + $0x10] sm:$0xf]
    %v70 = vld [vmem:[%s3 + $0x14] sm:$0xf]
    %v71 = vld [vmem:[%s3 + $0x18] sm:$0xf]
    %v72 = vld [vmem:[%s3 + $0x1c] sm:$0xf]
    %v73 = vld [vmem:[%s4] sm:$0x1]
    %v75 = vperm.slane %v73, 0
    %v85 = vunpack.c.l.b16 %v65
    %v86 = vunpack.c.l.b16 %v66
    %v87 = vunpack.c.l.b16 %v67
    %v88 = vunpack.c.l.b16 %v68
    %v89 = vunpack.c.l.b16 %v69
    %v90 = vunpack.c.l.b16 %v70
    %v91 = vunpack.c.l.b16 %v71
    %v92 = vunpack.c.l.b16 %v72
    %v93 = vpack.c.b16 %v86, %v85
    %v94 = vpack.c.b16 %v88, %v87
    %v95 = vpack.c.b16 %v90, %v89
    %v96 = vpack.c.b16 %v92, %v91
    %vm101 = vcmask 523264
    %v103 = vsel %vm101, %v64, 0
    %105 = vmatpush.bf16.msra.mxu0 0
    %106 = vmatpush.bf16.msra.mxu0 0
    %107 = vmatpush.bf16.msra.mxu0 0
    %108 = vmatpush.bf16.msra.mxu0 0
    %109 = vmatpush.bf16.msra.mxu0 %v96
    %110 = vmatpush.bf16.msra.mxu0 %v95
    %111 = vmatpush.bf16.msra.mxu0 %v94
    %112 = vmatpush.bf16.msra.mxu0 %v93
    %113 = vmatmul.bf16.gmra.mxu0 %v103
    %v114 = vpop.f32.mrf.mxu0
    %v115 = vadd.f32 %v75, %v114
    %v116 = vpop.f32.mrf.mxu0
    %117 = vdwg.mxu0
    %vm118 = vcmask 257024
    %119 = vst.msk [vmem:[#allocation2] sm:$0xf] %vm118, %v115
    // Predicated region
    $region22: #{cross_frame_transformer_forward.17} parent=1 // pred_check
      _
    $region23: #{cross_frame_transformer_forward.17} parent=1 // pred_check_branch
      %121 = sbr.rel (0) target = $region25
    $region24: #{cross_frame_transformer_forward.17} parent=1 // pred_region
      %123 = vsyncadd [#allocation3], 0
      %s125 = sshll.u32 [#allocation2], 4
      %s126 = int_to_ptr.vmem [resolvable:$true] %s125
      %s127 = sshll.u32 %s5, 4
      %s128 = int_to_ptr.hbm [resolvable:$true] %s127
      %130 = dma.vmem_to_hbm [thread:$0]  %s126, 64, %s128, [#allocation3]
    $region25: #{cross_frame_transformer_forward.17} parent=1 // pred_fallthru
      _
    // Predicated region
    $region26: #{cross_frame_transformer_forward.17} parent=1 // pred_check
      _
    $region27: #{cross_frame_transformer_forward.17} parent=1 // pred_check_branch
      %132 = sbr.rel (0) target = $region29
    $region28: #{cross_frame_transformer_forward.17} parent=1 // pred_region
      %134 = dma.done [#allocation3], 64
    $region29: #{cross_frame_transformer_forward.17} parent=1 // pred_fallthru
      _
    %135 = vsyncpa [#allocation3], 1

// kernel: cross_frame_transformer_forward.13
$region0: #{cross_frame_transformer_forward.13}
  #allocation0 [shape = 'u32[]', space=smem, size = 0x4, offset = 0x4, fixed_abs, tag = 'smem constant byte address 0x4 - core index']
  #allocation1 [shape = 'u32[72,128]{1,0:T(1,128)}', space=vmem, size = 0x9000, scoped, tag = 'internal scratch']
  %s0 = inlined_call_operand.vmem [shape: bf16[288,64], index: 0, kind: input, shape index: {}]
  %s1 = inlined_call_operand.vmem [shape: f32[1,64], index: 1, kind: input, shape index: {}]
  %s2 = inlined_call_operand.vmem [shape: f32[1,64], index: 2, kind: input, shape index: {}]
  %s3 = inlined_call_operand.vmem [shape: bf16[64,256], index: 3, kind: input, shape index: {}]
  %s4 = inlined_call_operand.vmem [shape: f32[1,256], index: 4, kind: input, shape index: {}]
  %s5 = inlined_call_operand.vmem [shape: bf16[256,64], index: 5, kind: input, shape index: {}]
  %s6 = inlined_call_operand.vmem [shape: f32[1,64], index: 6, kind: input, shape index: {}]
  %s7 = inlined_call_operand.vmem [shape: bf16[288,64], index: 7, kind: output, shape index: {}]
  %s8 = sld [smem:[#allocation0]]
  $region38: #{cross_frame_transformer_forward.13} parent=0
    _
  %s10 = ssub.s32 1, %s8
  %s11 = scalar_select 0, %s10, %s8
  // Predicated region
  $region2: #{cross_frame_transformer_forward.13} parent=0 // pred_check
    _
  $region3: #{cross_frame_transformer_forward.13} parent=0 // pred_check_branch
    %13 = sbr.rel (0) target = $region5
  $region4: #{cross_frame_transformer_forward.13} parent=0 // pred_region
    _
  $region5: #{cross_frame_transformer_forward.13} parent=0 // pred_fallthru
    _
  // Predicated region
  $region6: #{cross_frame_transformer_forward.13} parent=0 // pred_check
    _
  $region7: #{cross_frame_transformer_forward.13} parent=0 // pred_check_branch
    %15 = sbr.rel (0) target = $region9
  $region8: #{cross_frame_transformer_forward.13} parent=0 // pred_region
    _
  $region9: #{cross_frame_transformer_forward.13} parent=0 // pred_fallthru
    _
  // Predicated region
  $region10: #{cross_frame_transformer_forward.13} parent=0 // pred_check
    _
  $region11: #{cross_frame_transformer_forward.13} parent=0 // pred_check_branch
    %17 = sbr.rel (0) target = $region13
  $region12: #{cross_frame_transformer_forward.13} parent=0 // pred_region
    _
  $region13: #{cross_frame_transformer_forward.13} parent=0 // pred_fallthru
    _
  // Predicated region
  $region14: #{cross_frame_transformer_forward.13} parent=0 // pred_check
    _
  $region15: #{cross_frame_transformer_forward.13} parent=0 // pred_check_branch
    %19 = sbr.rel (0) target = $region17
  $region16: #{cross_frame_transformer_forward.13} parent=0 // pred_region
    _
  $region17: #{cross_frame_transformer_forward.13} parent=0 // pred_fallthru
    _
  // Predicated region
  $region18: #{cross_frame_transformer_forward.13} parent=0 // pred_check
    _
  $region19: #{cross_frame_transformer_forward.13} parent=0 // pred_check_branch
    %21 = sbr.rel (0) target = $region21
  $region20: #{cross_frame_transformer_forward.13} parent=0 // pred_region
    _
  $region21: #{cross_frame_transformer_forward.13} parent=0 // pred_fallthru
    _
  // Predicated region
  $region22: #{cross_frame_transformer_forward.13} parent=0 // pred_check
    _
  $region23: #{cross_frame_transformer_forward.13} parent=0 // pred_check_branch
    %23 = sbr.rel (0) target = $region25
  $region24: #{cross_frame_transformer_forward.13} parent=0 // pred_region
    _
  $region25: #{cross_frame_transformer_forward.13} parent=0 // pred_fallthru
    _
  // Predicated region
  $region26: #{cross_frame_transformer_forward.13} parent=0 // pred_check
    _
  $region27: #{cross_frame_transformer_forward.13} parent=0 // pred_check_branch
    %25 = sbr.rel (0) target = $region29
  $region28: #{cross_frame_transformer_forward.13} parent=0 // pred_region
    _
  $region29: #{cross_frame_transformer_forward.13} parent=0 // pred_fallthru
    _
  %v27 = vld [vmem:[%s0] sm:$0xf]
  %v28 = vld [vmem:[%s0 + $0x4] sm:$0xf]
  %v29 = vld [vmem:[%s0 + $0x8] sm:$0xf]
  %v30 = vld [vmem:[%s0 + $0xc] sm:$0xf]
  %v31 = vld [vmem:[%s0 + $0x10] sm:$0xf]
  %v32 = vld [vmem:[%s0 + $0x14] sm:$0xf]
  %v33 = vld [vmem:[%s0 + $0x18] sm:$0xf]
  %v34 = vld [vmem:[%s0 + $0x1c] sm:$0xf]
  %v35 = vld [vmem:[%s0 + $0x20] sm:$0xf]
  %v36 = vld [vmem:[%s0 + $0x24] sm:$0xf]
  %v37 = vld [vmem:[%s0 + $0x28] sm:$0xf]
  %v38 = vld [vmem:[%s0 + $0x2c] sm:$0xf]
  %v39 = vld [vmem:[%s0 + $0x30] sm:$0xf]
  %v40 = vld [vmem:[%s0 + $0x34] sm:$0xf]
  %v41 = vld [vmem:[%s0 + $0x38] sm:$0xf]
  %v42 = vld [vmem:[%s0 + $0x3c] sm:$0xf]
  %v43 = vld [vmem:[%s0 + $0x40] sm:$0xf]
  %v44 = vld [vmem:[%s0 + $0x44] sm:$0xf]
  %v45 = vld [vmem:[%s0 + $0x48] sm:$0xf]
  %v46 = vld [vmem:[%s0 + $0x4c] sm:$0xf]
  %v47 = vld [vmem:[%s0 + $0x50] sm:$0xf]
  %v48 = vld [vmem:[%s0 + $0x54] sm:$0xf]
  %v49 = vld [vmem:[%s0 + $0x58] sm:$0xf]
  %v50 = vld [vmem:[%s0 + $0x5c] sm:$0xf]
  %v51 = vld [vmem:[%s0 + $0x60] sm:$0xf]
  %v52 = vld [vmem:[%s0 + $0x64] sm:$0xf]
  %v53 = vld [vmem:[%s0 + $0x68] sm:$0xf]
  %v54 = vld [vmem:[%s0 + $0x6c] sm:$0xf]
  %v55 = vld [vmem:[%s0 + $0x70] sm:$0xf]
  %v56 = vld [vmem:[%s0 + $0x74] sm:$0xf]
  %v57 = vld [vmem:[%s0 + $0x78] sm:$0xf]
  %v58 = vld [vmem:[%s0 + $0x7c] sm:$0xf]
  %v59 = vld [vmem:[%s0 + $0x80] sm:$0xf]
  %v60 = vld [vmem:[%s0 + $0x84] sm:$0xf]
  %v61 = vld [vmem:[%s0 + $0x88] sm:$0xf]
  %v62 = vld [vmem:[%s0 + $0x8c] sm:$0xf]
  %v63 = vunpack.c.l.bf16 %v27
  %v64 = vunpack.c.l.bf16 %v28
  %v65 = vunpack.c.l.bf16 %v29
  %v66 = vunpack.c.l.bf16 %v30
  %v67 = vunpack.c.l.bf16 %v31
  %v68 = vunpack.c.l.bf16 %v32
  %v69 = vunpack.c.l.bf16 %v33
  %v70 = vunpack.c.l.bf16 %v34
  %v71 = vunpack.c.l.bf16 %v35
  %v72 = vunpack.c.l.bf16 %v36
  %v73 = vunpack.c.l.bf16 %v37
  %v74 = vunpack.c.l.bf16 %v38
  %v75 = vunpack.c.l.bf16 %v39
  %v76 = vunpack.c.l.bf16 %v40
  %v77 = vunpack.c.l.bf16 %v41
  %v78 = vunpack.c.l.bf16 %v42
  %v79 = vunpack.c.l.bf16 %v43
  %v80 = vunpack.c.l.bf16 %v44
  %v81 = vunpack.c.l.bf16 %v45
  %v82 = vunpack.c.l.bf16 %v46
  %v83 = vunpack.c.l.bf16 %v47
  %v84 = vunpack.c.l.bf16 %v48
  %v85 = vunpack.c.l.bf16 %v49
  %v86 = vunpack.c.l.bf16 %v50
  %v87 = vunpack.c.l.bf16 %v51
  %v88 = vunpack.c.l.bf16 %v52
  %v89 = vunpack.c.l.bf16 %v53
  %v90 = vunpack.c.l.bf16 %v54
  %v91 = vunpack.c.l.bf16 %v55
  %v92 = vunpack.c.l.bf16 %v56
  %v93 = vunpack.c.l.bf16 %v57
  %v94 = vunpack.c.l.bf16 %v58
  %v95 = vunpack.c.l.bf16 %v59
  %v96 = vunpack.c.l.bf16 %v60
  %v97 = vunpack.c.l.bf16 %v61
  %v98 = vunpack.c.l.bf16 %v62
  %v99 = vld [vmem:[%s1] sm:$0x1]
  %v100 = vld [vmem:[%s2] sm:$0x1]
  %vm101 = vcmask 523264
  %v102 = vsel %vm101, %v63, 0.0
  %103 = vadd.xlane.f32.xlu0 %v102
  %v104 = vpop.xlane.xlu0 %103
  %v105 = vsel %vm101, %v64, 0.0
  %106 = vadd.xlane.f32.xlu0 %v105
  %v107 = vpop.xlane.xlu0 %106
  %v108 = vsel %vm101, %v65, 0.0
  %109 = vadd.xlane.f32.xlu0 %v108
  %v110 = vpop.xlane.xlu0 %109
  %v111 = vsel %vm101, %v66, 0.0
  %112 = vadd.xlane.f32.xlu0 %v111
  %v113 = vpop.xlane.xlu0 %112
  %v114 = vsel %vm101, %v67, 0.0
  %115 = vadd.xlane.f32.xlu0 %v114
  %v116 = vpop.xlane.xlu0 %115
  %v117 = vsel %vm101, %v68, 0.0
  %118 = vadd.xlane.f32.xlu0 %v117
  %v119 = vpop.xlane.xlu0 %118
  %v120 = vsel %vm101, %v69, 0.0
  %121 = vadd.xlane.f32.xlu0 %v120
  %v122 = vpop.xlane.xlu0 %121
  %v123 = vsel %vm101, %v70, 0.0
  %124 = vadd.xlane.f32.xlu0 %v123
  %v125 = vpop.xlane.xlu0 %124
  %v126 = vsel %vm101, %v71, 0.0
  %127 = vadd.xlane.f32.xlu0 %v126
  %v128 = vpop.xlane.xlu0 %127
  %v129 = vsel %vm101, %v72, 0.0
  %130 = vadd.xlane.f32.xlu0 %v129
  %v131 = vpop.xlane.xlu0 %130
  %v132 = vsel %vm101, %v73, 0.0
  %133 = vadd.xlane.f32.xlu0 %v132
  %v134 = vpop.xlane.xlu0 %133
  %v135 = vsel %vm101, %v74, 0.0
  %136 = vadd.xlane.f32.xlu0 %v135
  %v137 = vpop.xlane.xlu0 %136
  %v138 = vsel %vm101, %v75, 0.0
  %139 = vadd.xlane.f32.xlu0 %v138
  %v140 = vpop.xlane.xlu0 %139
  %v141 = vsel %vm101, %v76, 0.0
  %142 = vadd.xlane.f32.xlu0 %v141
  %v143 = vpop.xlane.xlu0 %142
  %v144 = vsel %vm101, %v77, 0.0
  %145 = vadd.xlane.f32.xlu0 %v144
  %v146 = vpop.xlane.xlu0 %145
  %v147 = vsel %vm101, %v78, 0.0
  %148 = vadd.xlane.f32.xlu0 %v147
  %v149 = vpop.xlane.xlu0 %148
  %v150 = vsel %vm101, %v79, 0.0
  %151 = vadd.xlane.f32.xlu0 %v150
  %v152 = vpop.xlane.xlu0 %151
  %v153 = vsel %vm101, %v80, 0.0
  %154 = vadd.xlane.f32.xlu0 %v153
  %v155 = vpop.xlane.xlu0 %154
  %v156 = vsel %vm101, %v81, 0.0
  %157 = vadd.xlane.f32.xlu0 %v156
  %v158 = vpop.xlane.xlu0 %157
  %v159 = vsel %vm101, %v82, 0.0
  %160 = vadd.xlane.f32.xlu0 %v159
  %v161 = vpop.xlane.xlu0 %160
  %v162 = vsel %vm101, %v83, 0.0
  %163 = vadd.xlane.f32.xlu0 %v162
  %v164 = vpop.xlane.xlu0 %163
  %v165 = vsel %vm101, %v84, 0.0
  %166 = vadd.xlane.f32.xlu0 %v165
  %v167 = vpop.xlane.xlu0 %166
  %v168 = vsel %vm101, %v85, 0.0
  %169 = vadd.xlane.f32.xlu0 %v168
  %v170 = vpop.xlane.xlu0 %169
  %v171 = vsel %vm101, %v86, 0.0
  %172 = vadd.xlane.f32.xlu0 %v171
  %v173 = vpop.xlane.xlu0 %172
  %v174 = vsel %vm101, %v87, 0.0
  %175 = vadd.xlane.f32.xlu0 %v174
  %v176 = vpop.xlane.xlu0 %175
  %v177 = vsel %vm101, %v88, 0.0
  %178 = vadd.xlane.f32.xlu0 %v177
  %v179 = vpop.xlane.xlu0 %178
  %v180 = vsel %vm101, %v89, 0.0
  %181 = vadd.xlane.f32.xlu0 %v180
  %v182 = vpop.xlane.xlu0 %181
  %v183 = vsel %vm101, %v90, 0.0
  %184 = vadd.xlane.f32.xlu0 %v183
  %v185 = vpop.xlane.xlu0 %184
  %v186 = vsel %vm101, %v91, 0.0
  %187 = vadd.xlane.f32.xlu0 %v186
  %v188 = vpop.xlane.xlu0 %187
  %v189 = vsel %vm101, %v92, 0.0
  %190 = vadd.xlane.f32.xlu0 %v189
  %v191 = vpop.xlane.xlu0 %190
  %v192 = vsel %vm101, %v93, 0.0
  %193 = vadd.xlane.f32.xlu0 %v192
  %v194 = vpop.xlane.xlu0 %193
  %v195 = vsel %vm101, %v94, 0.0
  %196 = vadd.xlane.f32.xlu0 %v195
  %v197 = vpop.xlane.xlu0 %196
  %v198 = vsel %vm101, %v95, 0.0
  %199 = vadd.xlane.f32.xlu0 %v198
  %v200 = vpop.xlane.xlu0 %199
  %v201 = vsel %vm101, %v96, 0.0
  %202 = vadd.xlane.f32.xlu0 %v201
  %v203 = vpop.xlane.xlu0 %202
  %v204 = vsel %vm101, %v97, 0.0
  %205 = vadd.xlane.f32.xlu0 %v204
  %v206 = vpop.xlane.xlu0 %205
  %v207 = vsel %vm101, %v98, 0.0
  %208 = vadd.xlane.f32.xlu0 %v207
  %v209 = vpop.xlane.xlu0 %208
  %v210 = vrcp.pop 64.0
  %v211 = vmul.f32 64.0, %v210
  %v212 = vsub.f32 1.0, %v211
  %v213 = vmul.f32 %v210, %v212
  %v214 = vadd.f32 %v210, %v213
  %vm215 = vweird.f32 %v210
  %v216 = vsel %vm215, %v210, %v214
  %v217 = vmul.f32 %v104, %v216
  %v218 = vmul.f32 %v107, %v216
  %v219 = vmul.f32 %v110, %v216
  %v220 = vmul.f32 %v113, %v216
  %v221 = vmul.f32 %v116, %v216
  %v222 = vmul.f32 %v119, %v216
  %v223 = vmul.f32 %v122, %v216
  %v224 = vmul.f32 %v125, %v216
  %v225 = vmul.f32 %v128, %v216
  %v226 = vmul.f32 %v131, %v216
  %v227 = vmul.f32 %v134, %v216
  %v228 = vmul.f32 %v137, %v216
  %v229 = vmul.f32 %v140, %v216
  %v230 = vmul.f32 %v143, %v216
  %v231 = vmul.f32 %v146, %v216
  %v232 = vmul.f32 %v149, %v216
  %v233 = vmul.f32 %v152, %v216
  %v234 = vmul.f32 %v155, %v216
  %v235 = vmul.f32 %v158, %v216
  %v236 = vmul.f32 %v161, %v216
  %v237 = vmul.f32 %v164, %v216
  %v238 = vmul.f32 %v167, %v216
  %v239 = vmul.f32 %v170, %v216
  %v240 = vmul.f32 %v173, %v216
  %v241 = vmul.f32 %v176, %v216
  %v242 = vmul.f32 %v179, %v216
  %v243 = vmul.f32 %v182, %v216
  %v244 = vmul.f32 %v185, %v216
  %v245 = vmul.f32 %v188, %v216
  %v246 = vmul.f32 %v191, %v216
  %v247 = vmul.f32 %v194, %v216
  %v248 = vmul.f32 %v197, %v216
  %v249 = vmul.f32 %v200, %v216
  %v250 = vmul.f32 %v203, %v216
  %v251 = vmul.f32 %v206, %v216
  %v252 = vmul.f32 %v209, %v216
  %v253 = vsub.f32 %v63, %v217
  %v254 = vsub.f32 %v64, %v218
  %v255 = vsub.f32 %v65, %v219
  %v256 = vsub.f32 %v66, %v220
  %v257 = vsub.f32 %v67, %v221
  %v258 = vsub.f32 %v68, %v222
  %v259 = vsub.f32 %v69, %v223
  %v260 = vsub.f32 %v70, %v224
  %v261 = vsub.f32 %v71, %v225
  %v262 = vsub.f32 %v72, %v226
  %v263 = vsub.f32 %v73, %v227
  %v264 = vsub.f32 %v74, %v228
  %v265 = vsub.f32 %v75, %v229
  %v266 = vsub.f32 %v76, %v230
  %v267 = vsub.f32 %v77, %v231
  %v268 = vsub.f32 %v78, %v232
  %v269 = vsub.f32 %v79, %v233
  %v270 = vsub.f32 %v80, %v234
  %v271 = vsub.f32 %v81, %v235
  %v272 = vsub.f32 %v82, %v236
  %v273 = vsub.f32 %v83, %v237
  %v274 = vsub.f32 %v84, %v238
  %v275 = vsub.f32 %v85, %v239
  %v276 = vsub.f32 %v86, %v240
  %v277 = vsub.f32 %v87, %v241
  %v278 = vsub.f32 %v88, %v242
  %v279 = vsub.f32 %v89, %v243
  %v280 = vsub.f32 %v90, %v244
  %v281 = vsub.f32 %v91, %v245
  %v282 = vsub.f32 %v92, %v246
  %v283 = vsub.f32 %v93, %v247
  %v284 = vsub.f32 %v94, %v248
  %v285 = vsub.f32 %v95, %v249
  %v286 = vsub.f32 %v96, %v250
  %v287 = vsub.f32 %v97, %v251
  %v288 = vsub.f32 %v98, %v252
  %v289 = vmul.f32 %v253, %v253
  %v290 = vmul.f32 %v254, %v254
  %v291 = vmul.f32 %v255, %v255
  %v292 = vmul.f32 %v256, %v256
  %v293 = vmul.f32 %v257, %v257
  %v294 = vmul.f32 %v258, %v258
  %v295 = vmul.f32 %v259, %v259
  %v296 = vmul.f32 %v260, %v260
  %v297 = vmul.f32 %v261, %v261
  %v298 = vmul.f32 %v262, %v262
  %v299 = vmul.f32 %v263, %v263
  %v300 = vmul.f32 %v264, %v264
  %v301 = vmul.f32 %v265, %v265
  %v302 = vmul.f32 %v266, %v266
  %v303 = vmul.f32 %v267, %v267
  %v304 = vmul.f32 %v268, %v268
  %v305 = vmul.f32 %v269, %v269
  %v306 = vmul.f32 %v270, %v270
  %v307 = vmul.f32 %v271, %v271
  %v308 = vmul.f32 %v272, %v272
  %v309 = vmul.f32 %v273, %v273
  %v310 = vmul.f32 %v274, %v274
  %v311 = vmul.f32 %v275, %v275
  %v312 = vmul.f32 %v276, %v276
  %v313 = vmul.f32 %v277, %v277
  %v314 = vmul.f32 %v278, %v278
  %v315 = vmul.f32 %v279, %v279
  %v316 = vmul.f32 %v280, %v280
  %v317 = vmul.f32 %v281, %v281
  %v318 = vmul.f32 %v282, %v282
  %v319 = vmul.f32 %v283, %v283
  %v320 = vmul.f32 %v284, %v284
  %v321 = vmul.f32 %v285, %v285
  %v322 = vmul.f32 %v286, %v286
  %v323 = vmul.f32 %v287, %v287
  %v324 = vmul.f32 %v288, %v288
  %v325 = vsel %vm101, %v289, 0.0
  %326 = vadd.xlane.f32.xlu0 %v325
  %v327 = vpop.xlane.xlu0 %326
  %v328 = vsel %vm101, %v290, 0.0
  %329 = vadd.xlane.f32.xlu0 %v328
  %v330 = vpop.xlane.xlu0 %329
  %v331 = vsel %vm101, %v291, 0.0
  %332 = vadd.xlane.f32.xlu0 %v331
  %v333 = vpop.xlane.xlu0 %332
  %v334 = vsel %vm101, %v292, 0.0
  %335 = vadd.xlane.f32.xlu0 %v334
  %v336 = vpop.xlane.xlu0 %335
  %v337 = vsel %vm101, %v293, 0.0
  %338 = vadd.xlane.f32.xlu0 %v337
  %v339 = vpop.xlane.xlu0 %338
  %v340 = vsel %vm101, %v294, 0.0
  %341 = vadd.xlane.f32.xlu0 %v340
  %v342 = vpop.xlane.xlu0 %341
  %v343 = vsel %vm101, %v295, 0.0
  %344 = vadd.xlane.f32.xlu0 %v343
  %v345 = vpop.xlane.xlu0 %344
  %v346 = vsel %vm101, %v296, 0.0
  %347 = vadd.xlane.f32.xlu0 %v346
  %v348 = vpop.xlane.xlu0 %347
  %v349 = vsel %vm101, %v297, 0.0
  %350 = vadd.xlane.f32.xlu0 %v349
  %v351 = vpop.xlane.xlu0 %350
  %v352 = vsel %vm101, %v298, 0.0
  %353 = vadd.xlane.f32.xlu0 %v352
  %v354 = vpop.xlane.xlu0 %353
  %v355 = vsel %vm101, %v299, 0.0
  %356 = vadd.xlane.f32.xlu0 %v355
  %v357 = vpop.xlane.xlu0 %356
  %v358 = vsel %vm101, %v300, 0.0
  %359 = vadd.xlane.f32.xlu0 %v358
  %v360 = vpop.xlane.xlu0 %359
  %v361 = vsel %vm101, %v301, 0.0
  %362 = vadd.xlane.f32.xlu0 %v361
  %v363 = vpop.xlane.xlu0 %362
  %v364 = vsel %vm101, %v302, 0.0
  %365 = vadd.xlane.f32.xlu0 %v364
  %v366 = vpop.xlane.xlu0 %365
  %v367 = vsel %vm101, %v303, 0.0
  %368 = vadd.xlane.f32.xlu0 %v367
  %v369 = vpop.xlane.xlu0 %368
  %v370 = vsel %vm101, %v304, 0.0
  %371 = vadd.xlane.f32.xlu0 %v370
  %v372 = vpop.xlane.xlu0 %371
  %v373 = vsel %vm101, %v305, 0.0
  %374 = vadd.xlane.f32.xlu0 %v373
  %v375 = vpop.xlane.xlu0 %374
  %v376 = vsel %vm101, %v306, 0.0
  %377 = vadd.xlane.f32.xlu0 %v376
  %v378 = vpop.xlane.xlu0 %377
  %v379 = vsel %vm101, %v307, 0.0
  %380 = vadd.xlane.f32.xlu0 %v379
  %v381 = vpop.xlane.xlu0 %380
  %v382 = vsel %vm101, %v308, 0.0
  %383 = vadd.xlane.f32.xlu0 %v382
  %v384 = vpop.xlane.xlu0 %383
  %v385 = vsel %vm101, %v309, 0.0
  %386 = vadd.xlane.f32.xlu0 %v385
  %v387 = vpop.xlane.xlu0 %386
  %v388 = vsel %vm101, %v310, 0.0
  %389 = vadd.xlane.f32.xlu0 %v388
  %v390 = vpop.xlane.xlu0 %389
  %v391 = vsel %vm101, %v311, 0.0
  %392 = vadd.xlane.f32.xlu0 %v391
  %v393 = vpop.xlane.xlu0 %392
  %v394 = vsel %vm101, %v312, 0.0
  %395 = vadd.xlane.f32.xlu0 %v394
  %v396 = vpop.xlane.xlu0 %395
  %v397 = vsel %vm101, %v313, 0.0
  %398 = vadd.xlane.f32.xlu0 %v397
  %v399 = vpop.xlane.xlu0 %398
  %v400 = vsel %vm101, %v314, 0.0
  %401 = vadd.xlane.f32.xlu0 %v400
  %v402 = vpop.xlane.xlu0 %401
  %v403 = vsel %vm101, %v315, 0.0
  %404 = vadd.xlane.f32.xlu0 %v403
  %v405 = vpop.xlane.xlu0 %404
  %v406 = vsel %vm101, %v316, 0.0
  %407 = vadd.xlane.f32.xlu0 %v406
  %v408 = vpop.xlane.xlu0 %407
  %v409 = vsel %vm101, %v317, 0.0
  %410 = vadd.xlane.f32.xlu0 %v409
  %v411 = vpop.xlane.xlu0 %410
  %v412 = vsel %vm101, %v318, 0.0
  %413 = vadd.xlane.f32.xlu0 %v412
  %v414 = vpop.xlane.xlu0 %413
  %v415 = vsel %vm101, %v319, 0.0
  %416 = vadd.xlane.f32.xlu0 %v415
  %v417 = vpop.xlane.xlu0 %416
  %v418 = vsel %vm101, %v320, 0.0
  %419 = vadd.xlane.f32.xlu0 %v418
  %v420 = vpop.xlane.xlu0 %419
  %v421 = vsel %vm101, %v321, 0.0
  %422 = vadd.xlane.f32.xlu0 %v421
  %v423 = vpop.xlane.xlu0 %422
  %v424 = vsel %vm101, %v322, 0.0
  %425 = vadd.xlane.f32.xlu0 %v424
  %v426 = vpop.xlane.xlu0 %425
  %v427 = vsel %vm101, %v323, 0.0
  %428 = vadd.xlane.f32.xlu0 %v427
  %v429 = vpop.xlane.xlu0 %428
  %v430 = vsel %vm101, %v324, 0.0
  %431 = vadd.xlane.f32.xlu0 %v430
  %v432 = vpop.xlane.xlu0 %431
  %v433 = vmul.f32 %v327, %v216
  %v434 = vmul.f32 %v330, %v216
  %v435 = vmul.f32 %v333, %v216
  %v436 = vmul.f32 %v336, %v216
  %v437 = vmul.f32 %v339, %v216
  %v438 = vmul.f32 %v342, %v216
  %v439 = vmul.f32 %v345, %v216
  %v440 = vmul.f32 %v348, %v216
  %v441 = vmul.f32 %v351, %v216
  %v442 = vmul.f32 %v354, %v216
  %v443 = vmul.f32 %v357, %v216
  %v444 = vmul.f32 %v360, %v216
  %v445 = vmul.f32 %v363, %v216
  %v446 = vmul.f32 %v366, %v216
  %v447 = vmul.f32 %v369, %v216
  %v448 = vmul.f32 %v372, %v216
  %v449 = vmul.f32 %v375, %v216
  %v450 = vmul.f32 %v378, %v216
  %v451 = vmul.f32 %v381, %v216
  %v452 = vmul.f32 %v384, %v216
  %v453 = vmul.f32 %v387, %v216
  %v454 = vmul.f32 %v390, %v216
  %v455 = vmul.f32 %v393, %v216
  %v456 = vmul.f32 %v396, %v216
  %v457 = vmul.f32 %v399, %v216
  %v458 = vmul.f32 %v402, %v216
  %v459 = vmul.f32 %v405, %v216
  %v460 = vmul.f32 %v408, %v216
  %v461 = vmul.f32 %v411, %v216
  %v462 = vmul.f32 %v414, %v216
  %v463 = vmul.f32 %v417, %v216
  %v464 = vmul.f32 %v420, %v216
  %v465 = vmul.f32 %v423, %v216
  %v466 = vmul.f32 %v426, %v216
  %v467 = vmul.f32 %v429, %v216
  %v468 = vmul.f32 %v432, %v216
  %v469 = vadd.f32 %v433, 1e-05
  %v470 = vadd.f32 %v434, 1e-05
  %v471 = vadd.f32 %v435, 1e-05
  %v472 = vadd.f32 %v436, 1e-05
  %v473 = vadd.f32 %v437, 1e-05
  %v474 = vadd.f32 %v438, 1e-05
  %v475 = vadd.f32 %v439, 1e-05
  %v476 = vadd.f32 %v440, 1e-05
  %v477 = vadd.f32 %v441, 1e-05
  %v478 = vadd.f32 %v442, 1e-05
  %v479 = vadd.f32 %v443, 1e-05
  %v480 = vadd.f32 %v444, 1e-05
  %v481 = vadd.f32 %v445, 1e-05
  %v482 = vadd.f32 %v446, 1e-05
  %v483 = vadd.f32 %v447, 1e-05
  %v484 = vadd.f32 %v448, 1e-05
  %v485 = vadd.f32 %v449, 1e-05
  %v486 = vadd.f32 %v450, 1e-05
  %v487 = vadd.f32 %v451, 1e-05
  %v488 = vadd.f32 %v452, 1e-05
  %v489 = vadd.f32 %v453, 1e-05
  %v490 = vadd.f32 %v454, 1e-05
  %v491 = vadd.f32 %v455, 1e-05
  %v492 = vadd.f32 %v456, 1e-05
  %v493 = vadd.f32 %v457, 1e-05
  %v494 = vadd.f32 %v458, 1e-05
  %v495 = vadd.f32 %v459, 1e-05
  %v496 = vadd.f32 %v460, 1e-05
  %v497 = vadd.f32 %v461, 1e-05
  %v498 = vadd.f32 %v462, 1e-05
  %v499 = vadd.f32 %v463, 1e-05
  %v500 = vadd.f32 %v464, 1e-05
  %v501 = vadd.f32 %v465, 1e-05
  %v502 = vadd.f32 %v466, 1e-05
  %v503 = vadd.f32 %v467, 1e-05
  %v504 = vadd.f32 %v468, 1e-05
  %v505 = vrsqrt.pop %v469
  %v506 = vmul.f32 %v505, %v469
  %v507 = vmul.f32 %v506, %v505
  %v508 = vmul.f32 0.5, %v507
  %v509 = vsub.f32 1.5, %v508
  %v510 = vmul.f32 %v505, %v509
  %vm511 = vweird.f32 %v469
  %vm512 = vweird.f32 %v505
  %vm513 = vmor %vm511, %vm512
  %v514 = vsel %vm513, %v505, %v510
  %v515 = vrsqrt.pop %v470
  %v516 = vmul.f32 %v515, %v470
  %v517 = vmul.f32 %v516, %v515
  %v518 = vmul.f32 0.5, %v517
  %v519 = vsub.f32 1.5, %v518
  %v520 = vmul.f32 %v515, %v519
  %vm521 = vweird.f32 %v470
  %vm522 = vweird.f32 %v515
  %vm523 = vmor %vm521, %vm522
  %v524 = vsel %vm523, %v515, %v520
  %v525 = vrsqrt.pop %v471
  %v526 = vmul.f32 %v525, %v471
  %v527 = vmul.f32 %v526, %v525
  %v528 = vmul.f32 0.5, %v527
  %v529 = vsub.f32 1.5, %v528
  %v530 = vmul.f32 %v525, %v529
  %vm531 = vweird.f32 %v471
  %vm532 = vweird.f32 %v525
  %vm533 = vmor %vm531, %vm532
  %v534 = vsel %vm533, %v525, %v530
  %v535 = vrsqrt.pop %v472
  %v536 = vmul.f32 %v535, %v472
  %v537 = vmul.f32 %v536, %v535
  %v538 = vmul.f32 0.5, %v537
  %v539 = vsub.f32 1.5, %v538
  %v540 = vmul.f32 %v535, %v539
  %vm541 = vweird.f32 %v472
  %vm542 = vweird.f32 %v535
  %vm543 = vmor %vm541, %vm542
  %v544 = vsel %vm543, %v535, %v540
  %v545 = vrsqrt.pop %v473
  %v546 = vmul.f32 %v545, %v473
  %v547 = vmul.f32 %v546, %v545
  %v548 = vmul.f32 0.5, %v547
  %v549 = vsub.f32 1.5, %v548
  %v550 = vmul.f32 %v545, %v549
  %vm551 = vweird.f32 %v473
  %vm552 = vweird.f32 %v545
  %vm553 = vmor %vm551, %vm552
  %v554 = vsel %vm553, %v545, %v550
  %v555 = vrsqrt.pop %v474
  %v556 = vmul.f32 %v555, %v474
  %v557 = vmul.f32 %v556, %v555
  %v558 = vmul.f32 0.5, %v557
  %v559 = vsub.f32 1.5, %v558
  %v560 = vmul.f32 %v555, %v559
  %vm561 = vweird.f32 %v474
  %vm562 = vweird.f32 %v555
  %vm563 = vmor %vm561, %vm562
  %v564 = vsel %vm563, %v555, %v560
  %v565 = vrsqrt.pop %v475
  %v566 = vmul.f32 %v565, %v475
  %v567 = vmul.f32 %v566, %v565
  %v568 = vmul.f32 0.5, %v567
  %v569 = vsub.f32 1.5, %v568
  %v570 = vmul.f32 %v565, %v569
  %vm571 = vweird.f32 %v475
  %vm572 = vweird.f32 %v565
  %vm573 = vmor %vm571, %vm572
  %v574 = vsel %vm573, %v565, %v570
  %v575 = vrsqrt.pop %v476
  %v576 = vmul.f32 %v575, %v476
  %v577 = vmul.f32 %v576, %v575
  %v578 = vmul.f32 0.5, %v577
  %v579 = vsub.f32 1.5, %v578
  %v580 = vmul.f32 %v575, %v579
  %vm581 = vweird.f32 %v476
  %vm582 = vweird.f32 %v575
  %vm583 = vmor %vm581, %vm582
  %v584 = vsel %vm583, %v575, %v580
  %v585 = vrsqrt.pop %v477
  %v586 = vmul.f32 %v585, %v477
  %v587 = vmul.f32 %v586, %v585
  %v588 = vmul.f32 0.5, %v587
  %v589 = vsub.f32 1.5, %v588
  %v590 = vmul.f32 %v585, %v589
  %vm591 = vweird.f32 %v477
  %vm592 = vweird.f32 %v585
  %vm593 = vmor %vm591, %vm592
  %v594 = vsel %vm593, %v585, %v590
  %v595 = vrsqrt.pop %v478
  %v596 = vmul.f32 %v595, %v478
  %v597 = vmul.f32 %v596, %v595
  %v598 = vmul.f32 0.5, %v597
  %v599 = vsub.f32 1.5, %v598
  %v600 = vmul.f32 %v595, %v599
  %vm601 = vweird.f32 %v478
  %vm602 = vweird.f32 %v595
  %vm603 = vmor %vm601, %vm602
  %v604 = vsel %vm603, %v595, %v600
  %v605 = vrsqrt.pop %v479
  %v606 = vmul.f32 %v605, %v479
  %v607 = vmul.f32 %v606, %v605
  %v608 = vmul.f32 0.5, %v607
  %v609 = vsub.f32 1.5, %v608
  %v610 = vmul.f32 %v605, %v609
  %vm611 = vweird.f32 %v479
  %vm612 = vweird.f32 %v605
  %vm613 = vmor %vm611, %vm612
  %v614 = vsel %vm613, %v605, %v610
  %v615 = vrsqrt.pop %v480
  %v616 = vmul.f32 %v615, %v480
  %v617 = vmul.f32 %v616, %v615
  %v618 = vmul.f32 0.5, %v617
  %v619 = vsub.f32 1.5, %v618
  %v620 = vmul.f32 %v615, %v619
  %vm621 = vweird.f32 %v480
  %vm622 = vweird.f32 %v615
  %vm623 = vmor %vm621, %vm622
  %v624 = vsel %vm623, %v615, %v620
  %v625 = vrsqrt.pop %v481
  %v626 = vmul.f32 %v625, %v481
  %v627 = vmul.f32 %v626, %v625
  %v628 = vmul.f32 0.5, %v627
  %v629 = vsub.f32 1.5, %v628
  %v630 = vmul.f32 %v625, %v629
  %vm631 = vweird.f32 %v481
  %vm632 = vweird.f32 %v625
  %vm633 = vmor %vm631, %vm632
  %v634 = vsel %vm633, %v625, %v630
  %v635 = vrsqrt.pop %v482
  %v636 = vmul.f32 %v635, %v482
  %v637 = vmul.f32 %v636, %v635
  %v638 = vmul.f32 0.5, %v637
  %v639 = vsub.f32 1.5, %v638
  %v640 = vmul.f32 %v635, %v639
  %vm641 = vweird.f32 %v482
  %vm642 = vweird.f32 %v635
  %vm643 = vmor %vm641, %vm642
  %v644 = vsel %vm643, %v635, %v640
  %v645 = vrsqrt.pop %v483
  %v646 = vmul.f32 %v645, %v483
  %v647 = vmul.f32 %v646, %v645
  %v648 = vmul.f32 0.5, %v647
  %v649 = vsub.f32 1.5, %v648
  %v650 = vmul.f32 %v645, %v649
  %vm651 = vweird.f32 %v483
  %vm652 = vweird.f32 %v645
  %vm653 = vmor %vm651, %vm652
  %v654 = vsel %vm653, %v645, %v650
  %v655 = vrsqrt.pop %v484
  %v656 = vmul.f32 %v655, %v484
  %v657 = vmul.f32 %v656, %v655
  %v658 = vmul.f32 0.5, %v657
  %v659 = vsub.f32 1.5, %v658
  %v660 = vmul.f32 %v655, %v659
  %vm661 = vweird.f32 %v484
  %vm662 = vweird.f32 %v655
  %vm663 = vmor %vm661, %vm662
  %v664 = vsel %vm663, %v655, %v660
  %v665 = vrsqrt.pop %v485
  %v666 = vmul.f32 %v665, %v485
  %v667 = vmul.f32 %v666, %v665
  %v668 = vmul.f32 0.5, %v667
  %v669 = vsub.f32 1.5, %v668
  %v670 = vmul.f32 %v665, %v669
  %vm671 = vweird.f32 %v485
  %vm672 = vweird.f32 %v665
  %vm673 = vmor %vm671, %vm672
  %v674 = vsel %vm673, %v665, %v670
  %v675 = vrsqrt.pop %v486
  %v676 = vmul.f32 %v675, %v486
  %v677 = vmul.f32 %v676, %v675
  %v678 = vmul.f32 0.5, %v677
  %v679 = vsub.f32 1.5, %v678
  %v680 = vmul.f32 %v675, %v679
  %vm681 = vweird.f32 %v486
  %vm682 = vweird.f32 %v675
  %vm683 = vmor %vm681, %vm682
  %v684 = vsel %vm683, %v675, %v680
  %v685 = vrsqrt.pop %v487
  %v686 = vmul.f32 %v685, %v487
  %v687 = vmul.f32 %v686, %v685
  %v688 = vmul.f32 0.5, %v687
  %v689 = vsub.f32 1.5, %v688
  %v690 = vmul.f32 %v685, %v689
  %vm691 = vweird.f32 %v487
  %vm692 = vweird.f32 %v685
  %vm693 = vmor %vm691, %vm692
  %v694 = vsel %vm693, %v685, %v690
  %v695 = vrsqrt.pop %v488
  %v696 = vmul.f32 %v695, %v488
  %v697 = vmul.f32 %v696, %v695
  %v698 = vmul.f32 0.5, %v697
  %v699 = vsub.f32 1.5, %v698
  %v700 = vmul.f32 %v695, %v699
  %vm701 = vweird.f32 %v488
  %vm702 = vweird.f32 %v695
  %vm703 = vmor %vm701, %vm702
  %v704 = vsel %vm703, %v695, %v700
  %v705 = vrsqrt.pop %v489
  %v706 = vmul.f32 %v705, %v489
  %v707 = vmul.f32 %v706, %v705
  %v708 = vmul.f32 0.5, %v707
  %v709 = vsub.f32 1.5, %v708
  %v710 = vmul.f32 %v705, %v709
  %vm711 = vweird.f32 %v489
  %vm712 = vweird.f32 %v705
  %vm713 = vmor %vm711, %vm712
  %v714 = vsel %vm713, %v705, %v710
  %v715 = vrsqrt.pop %v490
  %v716 = vmul.f32 %v715, %v490
  %v717 = vmul.f32 %v716, %v715
  %v718 = vmul.f32 0.5, %v717
  %v719 = vsub.f32 1.5, %v718
  %v720 = vmul.f32 %v715, %v719
  %vm721 = vweird.f32 %v490
  %vm722 = vweird.f32 %v715
  %vm723 = vmor %vm721, %vm722
  %v724 = vsel %vm723, %v715, %v720
  %v725 = vrsqrt.pop %v491
  %v726 = vmul.f32 %v725, %v491
  %v727 = vmul.f32 %v726, %v725
  %v728 = vmul.f32 0.5, %v727
  %v729 = vsub.f32 1.5, %v728
  %v730 = vmul.f32 %v725, %v729
  %vm731 = vweird.f32 %v491
  %vm732 = vweird.f32 %v725
  %vm733 = vmor %vm731, %vm732
  %v734 = vsel %vm733, %v725, %v730
  %v735 = vrsqrt.pop %v492
  %v736 = vmul.f32 %v735, %v492
  %v737 = vmul.f32 %v736, %v735
  %v738 = vmul.f32 0.5, %v737
  %v739 = vsub.f32 1.5, %v738
  %v740 = vmul.f32 %v735, %v739
  %vm741 = vweird.f32 %v492
  %vm742 = vweird.f32 %v735
  %vm743 = vmor %vm741, %vm742
  %v744 = vsel %vm743, %v735, %v740
  %v745 = vrsqrt.pop %v493
  %v746 = vmul.f32 %v745, %v493
  %v747 = vmul.f32 %v746, %v745
  %v748 = vmul.f32 0.5, %v747
  %v749 = vsub.f32 1.5, %v748
  %v750 = vmul.f32 %v745, %v749
  %vm751 = vweird.f32 %v493
  %vm752 = vweird.f32 %v745
  %vm753 = vmor %vm751, %vm752
  %v754 = vsel %vm753, %v745, %v750
  %v755 = vrsqrt.pop %v494
  %v756 = vmul.f32 %v755, %v494
  %v757 = vmul.f32 %v756, %v755
  %v758 = vmul.f32 0.5, %v757
  %v759 = vsub.f32 1.5, %v758
  %v760 = vmul.f32 %v755, %v759
  %vm761 = vweird.f32 %v494
  %vm762 = vweird.f32 %v755
  %vm763 = vmor %vm761, %vm762
  %v764 = vsel %vm763, %v755, %v760
  %v765 = vrsqrt.pop %v495
  %v766 = vmul.f32 %v765, %v495
  %v767 = vmul.f32 %v766, %v765
  %v768 = vmul.f32 0.5, %v767
  %v769 = vsub.f32 1.5, %v768
  %v770 = vmul.f32 %v765, %v769
  %vm771 = vweird.f32 %v495
  %vm772 = vweird.f32 %v765
  %vm773 = vmor %vm771, %vm772
  %v774 = vsel %vm773, %v765, %v770
  %v775 = vrsqrt.pop %v496
  %v776 = vmul.f32 %v775, %v496
  %v777 = vmul.f32 %v776, %v775
  %v778 = vmul.f32 0.5, %v777
  %v779 = vsub.f32 1.5, %v778
  %v780 = vmul.f32 %v775, %v779
  %vm781 = vweird.f32 %v496
  %vm782 = vweird.f32 %v775
  %vm783 = vmor %vm781, %vm782
  %v784 = vsel %vm783, %v775, %v780
  %v785 = vrsqrt.pop %v497
  %v786 = vmul.f32 %v785, %v497
  %v787 = vmul.f32 %v786, %v785
  %v788 = vmul.f32 0.5, %v787
  %v789 = vsub.f32 1.5, %v788
  %v790 = vmul.f32 %v785, %v789
  %vm791 = vweird.f32 %v497
  %vm792 = vweird.f32 %v785
  %vm793 = vmor %vm791, %vm792
  %v794 = vsel %vm793, %v785, %v790
  %v795 = vrsqrt.pop %v498
  %v796 = vmul.f32 %v795, %v498
  %v797 = vmul.f32 %v796, %v795
  %v798 = vmul.f32 0.5, %v797
  %v799 = vsub.f32 1.5, %v798
  %v800 = vmul.f32 %v795, %v799
  %vm801 = vweird.f32 %v498
  %vm802 = vweird.f32 %v795
  %vm803 = vmor %vm801, %vm802
  %v804 = vsel %vm803, %v795, %v800
  %v805 = vrsqrt.pop %v499
  %v806 = vmul.f32 %v805, %v499
  %v807 = vmul.f32 %v806, %v805
  %v808 = vmul.f32 0.5, %v807
  %v809 = vsub.f32 1.5, %v808
  %v810 = vmul.f32 %v805, %v809
  %vm811 = vweird.f32 %v499
  %vm812 = vweird.f32 %v805
  %vm813 = vmor %vm811, %vm812
  %v814 = vsel %vm813, %v805, %v810
  %v815 = vrsqrt.pop %v500
  %v816 = vmul.f32 %v815, %v500
  %v817 = vmul.f32 %v816, %v815
  %v818 = vmul.f32 0.5, %v817
  %v819 = vsub.f32 1.5, %v818
  %v820 = vmul.f32 %v815, %v819
  %vm821 = vweird.f32 %v500
  %vm822 = vweird.f32 %v815
  %vm823 = vmor %vm821, %vm822
  %v824 = vsel %vm823, %v815, %v820
  %v825 = vrsqrt.pop %v501
  %v826 = vmul.f32 %v825, %v501
  %v827 = vmul.f32 %v826, %v825
  %v828 = vmul.f32 0.5, %v827
  %v829 = vsub.f32 1.5, %v828
  %v830 = vmul.f32 %v825, %v829
  %vm831 = vweird.f32 %v501
  %vm832 = vweird.f32 %v825
  %vm833 = vmor %vm831, %vm832
  %v834 = vsel %vm833, %v825, %v830
  %v835 = vrsqrt.pop %v502
  %v836 = vmul.f32 %v835, %v502
  %v837 = vmul.f32 %v836, %v835
  %v838 = vmul.f32 0.5, %v837
  %v839 = vsub.f32 1.5, %v838
  %v840 = vmul.f32 %v835, %v839
  %vm841 = vweird.f32 %v502
  %vm842 = vweird.f32 %v835
  %vm843 = vmor %vm841, %vm842
  %v844 = vsel %vm843, %v835, %v840
  %v845 = vrsqrt.pop %v503
  %v846 = vmul.f32 %v845, %v503
  %v847 = vmul.f32 %v846, %v845
  %v848 = vmul.f32 0.5, %v847
  %v849 = vsub.f32 1.5, %v848
  %v850 = vmul.f32 %v845, %v849
  %vm851 = vweird.f32 %v503
  %vm852 = vweird.f32 %v845
  %vm853 = vmor %vm851, %vm852
  %v854 = vsel %vm853, %v845, %v850
  %v855 = vrsqrt.pop %v504
  %v856 = vmul.f32 %v855, %v504
  %v857 = vmul.f32 %v856, %v855
  %v858 = vmul.f32 0.5, %v857
  %v859 = vsub.f32 1.5, %v858
  %v860 = vmul.f32 %v855, %v859
  %vm861 = vweird.f32 %v504
  %vm862 = vweird.f32 %v855
  %vm863 = vmor %vm861, %vm862
  %v864 = vsel %vm863, %v855, %v860
  %v865 = vmul.f32 %v253, %v514
  %v866 = vmul.f32 %v254, %v524
  %v867 = vmul.f32 %v255, %v534
  %v868 = vmul.f32 %v256, %v544
  %v869 = vmul.f32 %v257, %v554
  %v870 = vmul.f32 %v258, %v564
  %v871 = vmul.f32 %v259, %v574
  %v872 = vmul.f32 %v260, %v584
  %v873 = vmul.f32 %v261, %v594
  %v874 = vmul.f32 %v262, %v604
  %v875 = vmul.f32 %v263, %v614
  %v876 = vmul.f32 %v264, %v624
  %v877 = vmul.f32 %v265, %v634
  %v878 = vmul.f32 %v266, %v644
  %v879 = vmul.f32 %v267, %v654
  %v880 = vmul.f32 %v268, %v664
  %v881 = vmul.f32 %v269, %v674
  %v882 = vmul.f32 %v270, %v684
  %v883 = vmul.f32 %v271, %v694
  %v884 = vmul.f32 %v272, %v704
  %v885 = vmul.f32 %v273, %v714
  %v886 = vmul.f32 %v274, %v724
  %v887 = vmul.f32 %v275, %v734
  %v888 = vmul.f32 %v276, %v744
  %v889 = vmul.f32 %v277, %v754
  %v890 = vmul.f32 %v278, %v764
  %v891 = vmul.f32 %v279, %v774
  %v892 = vmul.f32 %v280, %v784
  %v893 = vmul.f32 %v281, %v794
  %v894 = vmul.f32 %v282, %v804
  %v895 = vmul.f32 %v283, %v814
  %v896 = vmul.f32 %v284, %v824
  %v897 = vmul.f32 %v285, %v834
  %v898 = vmul.f32 %v286, %v844
  %v899 = vmul.f32 %v287, %v854
  %v900 = vmul.f32 %v288, %v864
  %v902 = vperm.slane %v99, 0
  %v904 = vmul.f32 %v865, %v902
  %v905 = vmul.f32 %v866, %v902
  %v906 = vmul.f32 %v867, %v902
  %v907 = vmul.f32 %v868, %v902
  %v908 = vmul.f32 %v869, %v902
  %v909 = vmul.f32 %v870, %v902
  %v910 = vmul.f32 %v871, %v902
  %v911 = vmul.f32 %v872, %v902
  %v912 = vmul.f32 %v873, %v902
  %v913 = vmul.f32 %v874, %v902
  %v914 = vmul.f32 %v875, %v902
  %v915 = vmul.f32 %v876, %v902
  %v916 = vmul.f32 %v877, %v902
  %v917 = vmul.f32 %v878, %v902
  %v918 = vmul.f32 %v879, %v902
  %v919 = vmul.f32 %v880, %v902
  %v920 = vmul.f32 %v881, %v902
  %v921 = vmul.f32 %v882, %v902
  %v922 = vmul.f32 %v883, %v902
  %v923 = vmul.f32 %v884, %v902
  %v924 = vmul.f32 %v885, %v902
  %v925 = vmul.f32 %v886, %v902
  %v926 = vmul.f32 %v887, %v902
  %v927 = vmul.f32 %v888, %v902
  %v928 = vmul.f32 %v889, %v902
  %v929 = vmul.f32 %v890, %v902
  %v930 = vmul.f32 %v891, %v902
  %v931 = vmul.f32 %v892, %v902
  %v932 = vmul.f32 %v893, %v902
  %v933 = vmul.f32 %v894, %v902
  %v934 = vmul.f32 %v895, %v902
  %v935 = vmul.f32 %v896, %v902
  %v936 = vmul.f32 %v897, %v902
  %v937 = vmul.f32 %v898, %v902
  %v938 = vmul.f32 %v899, %v902
  %v939 = vmul.f32 %v900, %v902
  %v941 = vperm.slane %v100, 0
  %v943 = vadd.f32 %v904, %v941
  %v944 = vadd.f32 %v905, %v941
  %v945 = vadd.f32 %v906, %v941
  %v946 = vadd.f32 %v907, %v941
  %v947 = vadd.f32 %v908, %v941
  %v948 = vadd.f32 %v909, %v941
  %v949 = vadd.f32 %v910, %v941
  %v950 = vadd.f32 %v911, %v941
  %v951 = vadd.f32 %v912, %v941
  %v952 = vadd.f32 %v913, %v941
  %v953 = vadd.f32 %v914, %v941
  %v954 = vadd.f32 %v915, %v941
  %v955 = vadd.f32 %v916, %v941
  %v956 = vadd.f32 %v917, %v941
  %v957 = vadd.f32 %v918, %v941
  %v958 = vadd.f32 %v919, %v941
  %v959 = vadd.f32 %v920, %v941
  %v960 = vadd.f32 %v921, %v941
  %v961 = vadd.f32 %v922, %v941
  %v962 = vadd.f32 %v923, %v941
  %v963 = vadd.f32 %v924, %v941
  %v964 = vadd.f32 %v925, %v941
  %v965 = vadd.f32 %v926, %v941
  %v966 = vadd.f32 %v927, %v941
  %v967 = vadd.f32 %v928, %v941
  %v968 = vadd.f32 %v929, %v941
  %v969 = vadd.f32 %v930, %v941
  %v970 = vadd.f32 %v931, %v941
  %v971 = vadd.f32 %v932, %v941
  %v972 = vadd.f32 %v933, %v941
  %v973 = vadd.f32 %v934, %v941
  %v974 = vadd.f32 %v935, %v941
  %v975 = vadd.f32 %v936, %v941
  %v976 = vadd.f32 %v937, %v941
  %v977 = vadd.f32 %v938, %v941
  %v978 = vadd.f32 %v939, %v941
  %v979 = vpack.c.bf16 %v944, %v943
  %v980 = vpack.c.bf16 %v946, %v945
  %v981 = vpack.c.bf16 %v948, %v947
  %v982 = vpack.c.bf16 %v950, %v949
  %v983 = vpack.c.bf16 %v952, %v951
  %v984 = vpack.c.bf16 %v954, %v953
  %v985 = vpack.c.bf16 %v956, %v955
  %v986 = vpack.c.bf16 %v958, %v957
  %v987 = vpack.c.bf16 %v960, %v959
  %v988 = vpack.c.bf16 %v962, %v961
  %v989 = vpack.c.bf16 %v964, %v963
  %v990 = vpack.c.bf16 %v966, %v965
  %v991 = vpack.c.bf16 %v968, %v967
  %v992 = vpack.c.bf16 %v970, %v969
  %v993 = vpack.c.bf16 %v972, %v971
  %v994 = vpack.c.bf16 %v974, %v973
  %v995 = vpack.c.bf16 %v976, %v975
  %v996 = vpack.c.bf16 %v978, %v977
  %v997 = vld [vmem:[%s3] sm:$0xff]
  %v998 = vld [vmem:[%s3 + $0x8] sm:$0xff]
  %v999 = vld [vmem:[%s3 + $0x10] sm:$0xff]
  %v1000 = vld [vmem:[%s3 + $0x18] sm:$0xff]
  %v1001 = vld [vmem:[%s3 + $0x20] sm:$0xff]
  %v1002 = vld [vmem:[%s3 + $0x28] sm:$0xff]
  %v1003 = vld [vmem:[%s3 + $0x30] sm:$0xff]
  %v1004 = vld [vmem:[%s3 + $0x38] sm:$0xff]
  %v1005 = vld [vmem:[%s4] sm:$0x3]
  %v1007 = vperm.slane %v1005, 0
  %v1008 = vperm.slane %v1005, 1
  %v1019 = vunpack.c.l.b16 %v997
  %v1020 = vunpack.c.h.b16 %v997
  %v1021 = vunpack.c.l.b16 %v998
  %v1022 = vunpack.c.h.b16 %v998
  %v1023 = vunpack.c.l.b16 %v999
  %v1024 = vunpack.c.h.b16 %v999
  %v1025 = vunpack.c.l.b16 %v1000
  %v1026 = vunpack.c.h.b16 %v1000
  %v1027 = vunpack.c.l.b16 %v1001
  %v1028 = vunpack.c.h.b16 %v1001
  %v1029 = vunpack.c.l.b16 %v1002
  %v1030 = vunpack.c.h.b16 %v1002
  %v1031 = vunpack.c.l.b16 %v1003
  %v1032 = vunpack.c.h.b16 %v1003
  %v1033 = vunpack.c.l.b16 %v1004
  %v1034 = vunpack.c.h.b16 %v1004
  %v1035 = vpack.c.b16 %v1021, %v1019
  %v1036 = vpack.c.b16 %v1022, %v1020
  %v1037 = vpack.c.b16 %v1025, %v1023
  %v1038 = vpack.c.b16 %v1026, %v1024
  %v1039 = vpack.c.b16 %v1029, %v1027
  %v1040 = vpack.c.b16 %v1030, %v1028
  %v1041 = vpack.c.b16 %v1033, %v1031
  %v1042 = vpack.c.b16 %v1034, %v1032
  %v1052 = vsel %vm101, %v979, 0
  %v1055 = vsel %vm101, %v980, 0
  %v1058 = vsel %vm101, %v981, 0
  %v1061 = vsel %vm101, %v982, 0
  %v1064 = vsel %vm101, %v983, 0
  %v1067 = vsel %vm101, %v984, 0
  %v1070 = vsel %vm101, %v985, 0
  %v1073 = vsel %vm101, %v986, 0
  %v1076 = vsel %vm101, %v987, 0
  %v1079 = vsel %vm101, %v988, 0
  %v1082 = vsel %vm101, %v989, 0
  %v1085 = vsel %vm101, %v990, 0
  %v1088 = vsel %vm101, %v991, 0
  %v1091 = vsel %vm101, %v992, 0
  %v1094 = vsel %vm101, %v993, 0
  %v1097 = vsel %vm101, %v994, 0
  %v1100 = vsel %vm101, %v995, 0
  %v1103 = vsel %vm101, %v996, 0
  %1105 = vmatpush.bf16.msra.mxu0 0
  %1106 = vmatpush.bf16.msra.mxu0 0
  %1107 = vmatpush.bf16.msra.mxu0 0
  %1108 = vmatpush.bf16.msra.mxu0 0
  %1109 = vmatpush.bf16.msra.mxu0 %v1041
  %1110 = vmatpush.bf16.msra.mxu0 %v1039
  %1111 = vmatpush.bf16.msra.mxu0 %v1037
  %1112 = vmatpush.bf16.msra.mxu0 %v1035
  %1113 = vmatmul.bf16.gmra.mxu0 %v1052
  %v1114 = vpop.f32.mrf.mxu0
  %v1115 = vadd.f32 %v1007, %v1114
  %v1116 = vpop.f32.mrf.mxu0
  %v1117 = vadd.f32 %v1007, %v1116
  %1118 = vmatmul.bf16.gmra.mxu0 %v1055
  %v1119 = vpop.f32.mrf.mxu0
  %v1120 = vadd.f32 %v1007, %v1119
  %v1121 = vpop.f32.mrf.mxu0
  %v1122 = vadd.f32 %v1007, %v1121
  %1123 = vmatmul.bf16.gmra.mxu0 %v1058
  %v1124 = vpop.f32.mrf.mxu0
  %v1125 = vadd.f32 %v1007, %v1124
  %v1126 = vpop.f32.mrf.mxu0
  %v1127 = vadd.f32 %v1007, %v1126
  %1128 = vmatmul.bf16.gmra.mxu0 %v1061
  %v1129 = vpop.f32.mrf.mxu0
  %v1130 = vadd.f32 %v1007, %v1129
  %v1131 = vpop.f32.mrf.mxu0
  %v1132 = vadd.f32 %v1007, %v1131
  %1133 = vmatmul.bf16.gmra.mxu0 %v1064
  %v1134 = vpop.f32.mrf.mxu0
  %v1135 = vadd.f32 %v1007, %v1134
  %v1136 = vpop.f32.mrf.mxu0
  %v1137 = vadd.f32 %v1007, %v1136
  %1138 = vmatmul.bf16.gmra.mxu0 %v1067
  %v1139 = vpop.f32.mrf.mxu0
  %v1140 = vadd.f32 %v1007, %v1139
  %v1141 = vpop.f32.mrf.mxu0
  %v1142 = vadd.f32 %v1007, %v1141
  %1143 = vmatmul.bf16.gmra.mxu0 %v1070
  %v1144 = vpop.f32.mrf.mxu0
  %v1145 = vadd.f32 %v1007, %v1144
  %v1146 = vpop.f32.mrf.mxu0
  %v1147 = vadd.f32 %v1007, %v1146
  %1148 = vmatmul.bf16.gmra.mxu0 %v1073
  %v1149 = vpop.f32.mrf.mxu0
  %v1150 = vadd.f32 %v1007, %v1149
  %v1151 = vpop.f32.mrf.mxu0
  %v1152 = vadd.f32 %v1007, %v1151
  %1153 = vmatmul.bf16.gmra.mxu0 %v1076
  %v1154 = vpop.f32.mrf.mxu0
  %v1155 = vadd.f32 %v1007, %v1154
  %v1156 = vpop.f32.mrf.mxu0
  %v1157 = vadd.f32 %v1007, %v1156
  %1158 = vmatmul.bf16.gmra.mxu0 %v1079
  %v1159 = vpop.f32.mrf.mxu0
  %v1160 = vadd.f32 %v1007, %v1159
  %v1161 = vpop.f32.mrf.mxu0
  %v1162 = vadd.f32 %v1007, %v1161
  %1163 = vmatmul.bf16.gmra.mxu0 %v1082
  %v1164 = vpop.f32.mrf.mxu0
  %v1165 = vadd.f32 %v1007, %v1164
  %v1166 = vpop.f32.mrf.mxu0
  %v1167 = vadd.f32 %v1007, %v1166
  %1168 = vmatmul.bf16.gmra.mxu0 %v1085
  %v1169 = vpop.f32.mrf.mxu0
  %v1170 = vadd.f32 %v1007, %v1169
  %v1171 = vpop.f32.mrf.mxu0
  %v1172 = vadd.f32 %v1007, %v1171
  %1173 = vmatmul.bf16.gmra.mxu0 %v1088
  %v1174 = vpop.f32.mrf.mxu0
  %v1175 = vadd.f32 %v1007, %v1174
  %v1176 = vpop.f32.mrf.mxu0
  %v1177 = vadd.f32 %v1007, %v1176
  %1178 = vmatmul.bf16.gmra.mxu0 %v1091
  %v1179 = vpop.f32.mrf.mxu0
  %v1180 = vadd.f32 %v1007, %v1179
  %v1181 = vpop.f32.mrf.mxu0
  %v1182 = vadd.f32 %v1007, %v1181
  %1183 = vmatmul.bf16.gmra.mxu0 %v1094
  %v1184 = vpop.f32.mrf.mxu0
  %v1185 = vadd.f32 %v1007, %v1184
  %v1186 = vpop.f32.mrf.mxu0
  %v1187 = vadd.f32 %v1007, %v1186
  %1188 = vmatmul.bf16.gmra.mxu0 %v1097
  %v1189 = vpop.f32.mrf.mxu0
  %v1190 = vadd.f32 %v1007, %v1189
  %v1191 = vpop.f32.mrf.mxu0
  %v1192 = vadd.f32 %v1007, %v1191
  %1193 = vmatmul.bf16.gmra.mxu0 %v1100
  %v1194 = vpop.f32.mrf.mxu0
  %v1195 = vadd.f32 %v1007, %v1194
  %v1196 = vpop.f32.mrf.mxu0
  %v1197 = vadd.f32 %v1007, %v1196
  %1198 = vmatmul.bf16.gmra.mxu0 %v1103
  %v1199 = vpop.f32.mrf.mxu0
  %v1200 = vadd.f32 %v1007, %v1199
  %v1201 = vpop.f32.mrf.mxu0
  %v1202 = vadd.f32 %v1007, %v1201
  %1203 = vdwg.mxu0
  %1204 = vmatpush.bf16.msra.mxu0 0
  %1205 = vmatpush.bf16.msra.mxu0 0
  %1206 = vmatpush.bf16.msra.mxu0 0
  %1207 = vmatpush.bf16.msra.mxu0 0
  %1208 = vmatpush.bf16.msra.mxu0 %v1042
  %1209 = vmatpush.bf16.msra.mxu0 %v1040
  %1210 = vmatpush.bf16.msra.mxu0 %v1038
  %1211 = vmatpush.bf16.msra.mxu0 %v1036
  %1212 = vmatmul.bf16.gmra.mxu0 %v1052
  %v1213 = vpop.f32.mrf.mxu0
  %v1214 = vadd.f32 %v1008, %v1213
  %v1215 = vpop.f32.mrf.mxu0
  %v1216 = vadd.f32 %v1008, %v1215
  %1217 = vmatmul.bf16.gmra.mxu0 %v1055
  %v1218 = vpop.f32.mrf.mxu0
  %v1219 = vadd.f32 %v1008, %v1218
  %v1220 = vpop.f32.mrf.mxu0
  %v1221 = vadd.f32 %v1008, %v1220
  %1222 = vmatmul.bf16.gmra.mxu0 %v1058
  %v1223 = vpop.f32.mrf.mxu0
  %v1224 = vadd.f32 %v1008, %v1223
  %v1225 = vpop.f32.mrf.mxu0
  %v1226 = vadd.f32 %v1008, %v1225
  %1227 = vmatmul.bf16.gmra.mxu0 %v1061
  %v1228 = vpop.f32.mrf.mxu0
  %v1229 = vadd.f32 %v1008, %v1228
  %v1230 = vpop.f32.mrf.mxu0
  %v1231 = vadd.f32 %v1008, %v1230
  %1232 = vmatmul.bf16.gmra.mxu0 %v1064
  %v1233 = vpop.f32.mrf.mxu0
  %v1234 = vadd.f32 %v1008, %v1233
  %v1235 = vpop.f32.mrf.mxu0
  %v1236 = vadd.f32 %v1008, %v1235
  %1237 = vmatmul.bf16.gmra.mxu0 %v1067
  %v1238 = vpop.f32.mrf.mxu0
  %v1239 = vadd.f32 %v1008, %v1238
  %v1240 = vpop.f32.mrf.mxu0
  %v1241 = vadd.f32 %v1008, %v1240
  %1242 = vmatmul.bf16.gmra.mxu0 %v1070
  %v1243 = vpop.f32.mrf.mxu0
  %v1244 = vadd.f32 %v1008, %v1243
  %v1245 = vpop.f32.mrf.mxu0
  %v1246 = vadd.f32 %v1008, %v1245
  %1247 = vmatmul.bf16.gmra.mxu0 %v1073
  %v1248 = vpop.f32.mrf.mxu0
  %v1249 = vadd.f32 %v1008, %v1248
  %v1250 = vpop.f32.mrf.mxu0
  %v1251 = vadd.f32 %v1008, %v1250
  %1252 = vmatmul.bf16.gmra.mxu0 %v1076
  %v1253 = vpop.f32.mrf.mxu0
  %v1254 = vadd.f32 %v1008, %v1253
  %v1255 = vpop.f32.mrf.mxu0
  %v1256 = vadd.f32 %v1008, %v1255
  %1257 = vmatmul.bf16.gmra.mxu0 %v1079
  %v1258 = vpop.f32.mrf.mxu0
  %v1259 = vadd.f32 %v1008, %v1258
  %v1260 = vpop.f32.mrf.mxu0
  %v1261 = vadd.f32 %v1008, %v1260
  %1262 = vmatmul.bf16.gmra.mxu0 %v1082
  %v1263 = vpop.f32.mrf.mxu0
  %v1264 = vadd.f32 %v1008, %v1263
  %v1265 = vpop.f32.mrf.mxu0
  %v1266 = vadd.f32 %v1008, %v1265
  %1267 = vmatmul.bf16.gmra.mxu0 %v1085
  %v1268 = vpop.f32.mrf.mxu0
  %v1269 = vadd.f32 %v1008, %v1268
  %v1270 = vpop.f32.mrf.mxu0
  %v1271 = vadd.f32 %v1008, %v1270
  %1272 = vmatmul.bf16.gmra.mxu0 %v1088
  %v1273 = vpop.f32.mrf.mxu0
  %v1274 = vadd.f32 %v1008, %v1273
  %v1275 = vpop.f32.mrf.mxu0
  %v1276 = vadd.f32 %v1008, %v1275
  %1277 = vmatmul.bf16.gmra.mxu0 %v1091
  %v1278 = vpop.f32.mrf.mxu0
  %v1279 = vadd.f32 %v1008, %v1278
  %v1280 = vpop.f32.mrf.mxu0
  %v1281 = vadd.f32 %v1008, %v1280
  %1282 = vmatmul.bf16.gmra.mxu0 %v1094
  %v1283 = vpop.f32.mrf.mxu0
  %v1284 = vadd.f32 %v1008, %v1283
  %v1285 = vpop.f32.mrf.mxu0
  %v1286 = vadd.f32 %v1008, %v1285
  %1287 = vmatmul.bf16.gmra.mxu0 %v1097
  %v1288 = vpop.f32.mrf.mxu0
  %v1289 = vadd.f32 %v1008, %v1288
  %v1290 = vpop.f32.mrf.mxu0
  %v1291 = vadd.f32 %v1008, %v1290
  %1292 = vmatmul.bf16.gmra.mxu0 %v1100
  %v1293 = vpop.f32.mrf.mxu0
  %v1294 = vadd.f32 %v1008, %v1293
  %v1295 = vpop.f32.mrf.mxu0
  %v1296 = vadd.f32 %v1008, %v1295
  %1297 = vmatmul.bf16.gmra.mxu0 %v1103
  %v1298 = vpop.f32.mrf.mxu0
  %v1299 = vadd.f32 %v1008, %v1298
  %v1300 = vpop.f32.mrf.mxu0
  %v1301 = vadd.f32 %v1008, %v1300
  %1302 = vdwg.mxu0
  %v1303 = vmul.f32 %v1115, 1.702
  %v1304 = vmul.f32 %v1214, 1.702
  %v1305 = vmul.f32 %v1117, 1.702
  %v1306 = vmul.f32 %v1216, 1.702
  %v1307 = vmul.f32 %v1120, 1.702
  %v1308 = vmul.f32 %v1219, 1.702
  %v1309 = vmul.f32 %v1122, 1.702
  %v1310 = vmul.f32 %v1221, 1.702
  %v1311 = vmul.f32 %v1125, 1.702
  %v1312 = vmul.f32 %v1224, 1.702
  %v1313 = vmul.f32 %v1127, 1.702
  %v1314 = vmul.f32 %v1226, 1.702
  %v1315 = vmul.f32 %v1130, 1.702
  %v1316 = vmul.f32 %v1229, 1.702
  %v1317 = vmul.f32 %v1132, 1.702
  %v1318 = vmul.f32 %v1231, 1.702
  %v1319 = vmul.f32 %v1135, 1.702
  %v1320 = vmul.f32 %v1234, 1.702
  %v1321 = vmul.f32 %v1137, 1.702
  %v1322 = vmul.f32 %v1236, 1.702
  %v1323 = vmul.f32 %v1140, 1.702
  %v1324 = vmul.f32 %v1239, 1.702
  %v1325 = vmul.f32 %v1142, 1.702
  %v1326 = vmul.f32 %v1241, 1.702
  %v1327 = vmul.f32 %v1145, 1.702
  %v1328 = vmul.f32 %v1244, 1.702
  %v1329 = vmul.f32 %v1147, 1.702
  %v1330 = vmul.f32 %v1246, 1.702
  %v1331 = vmul.f32 %v1150, 1.702
  %v1332 = vmul.f32 %v1249, 1.702
  %v1333 = vmul.f32 %v1152, 1.702
  %v1334 = vmul.f32 %v1251, 1.702
  %v1335 = vmul.f32 %v1155, 1.702
  %v1336 = vmul.f32 %v1254, 1.702
  %v1337 = vmul.f32 %v1157, 1.702
  %v1338 = vmul.f32 %v1256, 1.702
  %v1339 = vmul.f32 %v1160, 1.702
  %v1340 = vmul.f32 %v1259, 1.702
  %v1341 = vmul.f32 %v1162, 1.702
  %v1342 = vmul.f32 %v1261, 1.702
  %v1343 = vmul.f32 %v1165, 1.702
  %v1344 = vmul.f32 %v1264, 1.702
  %v1345 = vmul.f32 %v1167, 1.702
  %v1346 = vmul.f32 %v1266, 1.702
  %v1347 = vmul.f32 %v1170, 1.702
  %v1348 = vmul.f32 %v1269, 1.702
  %v1349 = vmul.f32 %v1172, 1.702
  %v1350 = vmul.f32 %v1271, 1.702
  %v1351 = vmul.f32 %v1175, 1.702
  %v1352 = vmul.f32 %v1274, 1.702
  %v1353 = vmul.f32 %v1177, 1.702
  %v1354 = vmul.f32 %v1276, 1.702
  %v1355 = vmul.f32 %v1180, 1.702
  %v1356 = vmul.f32 %v1279, 1.702
  %v1357 = vmul.f32 %v1182, 1.702
  %v1358 = vmul.f32 %v1281, 1.702
  %v1359 = vmul.f32 %v1185, 1.702
  %v1360 = vmul.f32 %v1284, 1.702
  %v1361 = vmul.f32 %v1187, 1.702
  %v1362 = vmul.f32 %v1286, 1.702
  %v1363 = vmul.f32 %v1190, 1.702
  %v1364 = vmul.f32 %v1289, 1.702
  %v1365 = vmul.f32 %v1192, 1.702
  %v1366 = vmul.f32 %v1291, 1.702
  %v1367 = vmul.f32 %v1195, 1.702
  %v1368 = vmul.f32 %v1294, 1.702
  %v1369 = vmul.f32 %v1197, 1.702
  %v1370 = vmul.f32 %v1296, 1.702
  %v1371 = vmul.f32 %v1200, 1.702
  %v1372 = vmul.f32 %v1299, 1.702
  %v1373 = vmul.f32 %v1202, 1.702
  %v1374 = vmul.f32 %v1301, 1.702
  %v1375 = vxor.u32 %v1303, 2147483648
  %v1376 = vxor.u32 %v1304, 2147483648
  %v1377 = vxor.u32 %v1305, 2147483648
  %v1378 = vxor.u32 %v1306, 2147483648
  %v1379 = vxor.u32 %v1307, 2147483648
  %v1380 = vxor.u32 %v1308, 2147483648
  %v1381 = vxor.u32 %v1309, 2147483648
  %v1382 = vxor.u32 %v1310, 2147483648
  %v1383 = vxor.u32 %v1311, 2147483648
  %v1384 = vxor.u32 %v1312, 2147483648
  %v1385 = vxor.u32 %v1313, 2147483648
  %v1386 = vxor.u32 %v1314, 2147483648
  %v1387 = vxor.u32 %v1315, 2147483648
  %v1388 = vxor.u32 %v1316, 2147483648
  %v1389 = vxor.u32 %v1317, 2147483648
  %v1390 = vxor.u32 %v1318, 2147483648
  %v1391 = vxor.u32 %v1319, 2147483648
  %v1392 = vxor.u32 %v1320, 2147483648
  %v1393 = vxor.u32 %v1321, 2147483648
  %v1394 = vxor.u32 %v1322, 2147483648
  %v1395 = vxor.u32 %v1323, 2147483648
  %v1396 = vxor.u32 %v1324, 2147483648
  %v1397 = vxor.u32 %v1325, 2147483648
  %v1398 = vxor.u32 %v1326, 2147483648
  %v1399 = vxor.u32 %v1327, 2147483648
  %v1400 = vxor.u32 %v1328, 2147483648
  %v1401 = vxor.u32 %v1329, 2147483648
  %v1402 = vxor.u32 %v1330, 2147483648
  %v1403 = vxor.u32 %v1331, 2147483648
  %v1404 = vxor.u32 %v1332, 2147483648
  %v1405 = vxor.u32 %v1333, 2147483648
  %v1406 = vxor.u32 %v1334, 2147483648
  %v1407 = vxor.u32 %v1335, 2147483648
  %v1408 = vxor.u32 %v1336, 2147483648
  %v1409 = vxor.u32 %v1337, 2147483648
  %v1410 = vxor.u32 %v1338, 2147483648
  %v1411 = vxor.u32 %v1339, 2147483648
  %v1412 = vxor.u32 %v1340, 2147483648
  %v1413 = vxor.u32 %v1341, 2147483648
  %v1414 = vxor.u32 %v1342, 2147483648
  %v1415 = vxor.u32 %v1343, 2147483648
  %v1416 = vxor.u32 %v1344, 2147483648
  %v1417 = vxor.u32 %v1345, 2147483648
  %v1418 = vxor.u32 %v1346, 2147483648
  %v1419 = vxor.u32 %v1347, 2147483648
  %v1420 = vxor.u32 %v1348, 2147483648
  %v1421 = vxor.u32 %v1349, 2147483648
  %v1422 = vxor.u32 %v1350, 2147483648
  %v1423 = vxor.u32 %v1351, 2147483648
  %v1424 = vxor.u32 %v1352, 2147483648
  %v1425 = vxor.u32 %v1353, 2147483648
  %v1426 = vxor.u32 %v1354, 2147483648
  %v1427 = vxor.u32 %v1355, 2147483648
  %v1428 = vxor.u32 %v1356, 2147483648
  %v1429 = vxor.u32 %v1357, 2147483648
  %v1430 = vxor.u32 %v1358, 2147483648
  %v1431 = vxor.u32 %v1359, 2147483648
  %v1432 = vxor.u32 %v1360, 2147483648
  %v1433 = vxor.u32 %v1361, 2147483648
  %v1434 = vxor.u32 %v1362, 2147483648
  %v1435 = vxor.u32 %v1363, 2147483648
  %v1436 = vxor.u32 %v1364, 2147483648
  %v1437 = vxor.u32 %v1365, 2147483648
  %v1438 = vxor.u32 %v1366, 2147483648
  %v1439 = vxor.u32 %v1367, 2147483648
  %v1440 = vxor.u32 %v1368, 2147483648
  %v1441 = vxor.u32 %v1369, 2147483648
  %v1442 = vxor.u32 %v1370, 2147483648
  %v1443 = vxor.u32 %v1371, 2147483648
  %v1444 = vxor.u32 %v1372, 2147483648
  %v1445 = vxor.u32 %v1373, 2147483648
  %v1446 = vxor.u32 %v1374, 2147483648
  %v1447 = vmul.f32 %v1375, 1.442695
  %v1448 = vpow.pop %v1447
  %v1449 = vmul.f32 %v1376, 1.442695
  %v1450 = vpow.pop %v1449
  %v1451 = vmul.f32 %v1377, 1.442695
  %v1452 = vpow.pop %v1451
  %v1453 = vmul.f32 %v1378, 1.442695
  %v1454 = vpow.pop %v1453
  %v1455 = vmul.f32 %v1379, 1.442695
  %v1456 = vpow.pop %v1455
  %v1457 = vmul.f32 %v1380, 1.442695
  %v1458 = vpow.pop %v1457
  %v1459 = vmul.f32 %v1381, 1.442695
  %v1460 = vpow.pop %v1459
  %v1461 = vmul.f32 %v1382, 1.442695
  %v1462 = vpow.pop %v1461
  %v1463 = vmul.f32 %v1383, 1.442695
  %v1464 = vpow.pop %v1463
  %v1465 = vmul.f32 %v1384, 1.442695
  %v1466 = vpow.pop %v1465
  %v1467 = vmul.f32 %v1385, 1.442695
  %v1468 = vpow.pop %v1467
  %v1469 = vmul.f32 %v1386, 1.442695
  %v1470 = vpow.pop %v1469
  %v1471 = vmul.f32 %v1387, 1.442695
  %v1472 = vpow.pop %v1471
  %v1473 = vmul.f32 %v1388, 1.442695
  %v1474 = vpow.pop %v1473
  %v1475 = vmul.f32 %v1389, 1.442695
  %v1476 = vpow.pop %v1475
  %v1477 = vmul.f32 %v1390, 1.442695
  %v1478 = vpow.pop %v1477
  %v1479 = vmul.f32 %v1391, 1.442695
  %v1480 = vpow.pop %v1479
  %v1481 = vmul.f32 %v1392, 1.442695
  %v1482 = vpow.pop %v1481
  %v1483 = vmul.f32 %v1393, 1.442695
  %v1484 = vpow.pop %v1483
  %v1485 = vmul.f32 %v1394, 1.442695
  %v1486 = vpow.pop %v1485
  %v1487 = vmul.f32 %v1395, 1.442695
  %v1488 = vpow.pop %v1487
  %v1489 = vmul.f32 %v1396, 1.442695
  %v1490 = vpow.pop %v1489
  %v1491 = vmul.f32 %v1397, 1.442695
  %v1492 = vpow.pop %v1491
  %v1493 = vmul.f32 %v1398, 1.442695
  %v1494 = vpow.pop %v1493
  %v1495 = vmul.f32 %v1399, 1.442695
  %v1496 = vpow.pop %v1495
  %v1497 = vmul.f32 %v1400, 1.442695
  %v1498 = vpow.pop %v1497
  %v1499 = vmul.f32 %v1401, 1.442695
  %v1500 = vpow.pop %v1499
  %v1501 = vmul.f32 %v1402, 1.442695
  %v1502 = vpow.pop %v1501
  %v1503 = vmul.f32 %v1403, 1.442695
  %v1504 = vpow.pop %v1503
  %v1505 = vmul.f32 %v1404, 1.442695
  %v1506 = vpow.pop %v1505
  %v1507 = vmul.f32 %v1405, 1.442695
  %v1508 = vpow.pop %v1507
  %v1509 = vmul.f32 %v1406, 1.442695
  %v1510 = vpow.pop %v1509
  %v1511 = vmul.f32 %v1407, 1.442695
  %v1512 = vpow.pop %v1511
  %v1513 = vmul.f32 %v1408, 1.442695
  %v1514 = vpow.pop %v1513
  %v1515 = vmul.f32 %v1409, 1.442695
  %v1516 = vpow.pop %v1515
  %v1517 = vmul.f32 %v1410, 1.442695
  %v1518 = vpow.pop %v1517
  %v1519 = vmul.f32 %v1411, 1.442695
  %v1520 = vpow.pop %v1519
  %v1521 = vmul.f32 %v1412, 1.442695
  %v1522 = vpow.pop %v1521
  %v1523 = vmul.f32 %v1413, 1.442695
  %v1524 = vpow.pop %v1523
  %v1525 = vmul.f32 %v1414, 1.442695
  %v1526 = vpow.pop %v1525
  %v1527 = vmul.f32 %v1415, 1.442695
  %v1528 = vpow.pop %v1527
  %v1529 = vmul.f32 %v1416, 1.442695
  %v1530 = vpow.pop %v1529
  %v1531 = vmul.f32 %v1417, 1.442695
  %v1532 = vpow.pop %v1531
  %v1533 = vmul.f32 %v1418, 1.442695
  %v1534 = vpow.pop %v1533
  %v1535 = vmul.f32 %v1419, 1.442695
  %v1536 = vpow.pop %v1535
  %v1537 = vmul.f32 %v1420, 1.442695
  %v1538 = vpow.pop %v1537
  %v1539 = vmul.f32 %v1421, 1.442695
  %v1540 = vpow.pop %v1539
  %v1541 = vmul.f32 %v1422, 1.442695
  %v1542 = vpow.pop %v1541
  %v1543 = vmul.f32 %v1423, 1.442695
  %v1544 = vpow.pop %v1543
  %v1545 = vmul.f32 %v1424, 1.442695
  %v1546 = vpow.pop %v1545
  %v1547 = vmul.f32 %v1425, 1.442695
  %v1548 = vpow.pop %v1547
  %v1549 = vmul.f32 %v1426, 1.442695
  %v1550 = vpow.pop %v1549
  %v1551 = vmul.f32 %v1427, 1.442695
  %v1552 = vpow.pop %v1551
  %v1553 = vmul.f32 %v1428, 1.442695
  %v1554 = vpow.pop %v1553
  %v1555 = vmul.f32 %v1429, 1.442695
  %v1556 = vpow.pop %v1555
  %v1557 = vmul.f32 %v1430, 1.442695
  %v1558 = vpow.pop %v1557
  %v1559 = vmul.f32 %v1431, 1.442695
  %v1560 = vpow.pop %v1559
  %v1561 = vmul.f32 %v1432, 1.442695
  %v1562 = vpow.pop %v1561
  %v1563 = vmul.f32 %v1433, 1.442695
  %v1564 = vpow.pop %v1563
  %v1565 = vmul.f32 %v1434, 1.442695
  %v1566 = vpow.pop %v1565
  %v1567 = vmul.f32 %v1435, 1.442695
  %v1568 = vpow.pop %v1567
  %v1569 = vmul.f32 %v1436, 1.442695
  %v1570 = vpow.pop %v1569
  %v1571 = vmul.f32 %v1437, 1.442695
  %v1572 = vpow.pop %v1571
  %v1573 = vmul.f32 %v1438, 1.442695
  %v1574 = vpow.pop %v1573
  %v1575 = vmul.f32 %v1439, 1.442695
  %v1576 = vpow.pop %v1575
  %v1577 = vmul.f32 %v1440, 1.442695
  %v1578 = vpow.pop %v1577
  %v1579 = vmul.f32 %v1441, 1.442695
  %v1580 = vpow.pop %v1579
  %v1581 = vmul.f32 %v1442, 1.442695
  %v1582 = vpow.pop %v1581
  %v1583 = vmul.f32 %v1443, 1.442695
  %v1584 = vpow.pop %v1583
  %v1585 = vmul.f32 %v1444, 1.442695
  %v1586 = vpow.pop %v1585
  %v1587 = vmul.f32 %v1445, 1.442695
  %v1588 = vpow.pop %v1587
  %v1589 = vmul.f32 %v1446, 1.442695
  %v1590 = vpow.pop %v1589
  %v1591 = vadd.f32 %v1448, 1.0
  %v1592 = vadd.f32 %v1450, 1.0
  %v1593 = vadd.f32 %v1452, 1.0
  %v1594 = vadd.f32 %v1454, 1.0
  %v1595 = vadd.f32 %v1456, 1.0
  %v1596 = vadd.f32 %v1458, 1.0
  %v1597 = vadd.f32 %v1460, 1.0
  %v1598 = vadd.f32 %v1462, 1.0
  %v1599 = vadd.f32 %v1464, 1.0
  %v1600 = vadd.f32 %v1466, 1.0
  %v1601 = vadd.f32 %v1468, 1.0
  %v1602 = vadd.f32 %v1470, 1.0
  %v1603 = vadd.f32 %v1472, 1.0
  %v1604 = vadd.f32 %v1474, 1.0
  %v1605 = vadd.f32 %v1476, 1.0
  %v1606 = vadd.f32 %v1478, 1.0
  %v1607 = vadd.f32 %v1480, 1.0
  %v1608 = vadd.f32 %v1482, 1.0
  %v1609 = vadd.f32 %v1484, 1.0
  %v1610 = vadd.f32 %v1486, 1.0
  %v1611 = vadd.f32 %v1488, 1.0
  %v1612 = vadd.f32 %v1490, 1.0
  %v1613 = vadd.f32 %v1492, 1.0
  %v1614 = vadd.f32 %v1494, 1.0
  %v1615 = vadd.f32 %v1496, 1.0
  %v1616 = vadd.f32 %v1498, 1.0
  %v1617 = vadd.f32 %v1500, 1.0
  %v1618 = vadd.f32 %v1502, 1.0
  %v1619 = vadd.f32 %v1504, 1.0
  %v1620 = vadd.f32 %v1506, 1.0
  %v1621 = vadd.f32 %v1508, 1.0
  %v1622 = vadd.f32 %v1510, 1.0
  %v1623 = vadd.f32 %v1512, 1.0
  %v1624 = vadd.f32 %v1514, 1.0
  %v1625 = vadd.f32 %v1516, 1.0
  %v1626 = vadd.f32 %v1518, 1.0
  %v1627 = vadd.f32 %v1520, 1.0
  %v1628 = vadd.f32 %v1522, 1.0
  %v1629 = vadd.f32 %v1524, 1.0
  %v1630 = vadd.f32 %v1526, 1.0
  %v1631 = vadd.f32 %v1528, 1.0
  %v1632 = vadd.f32 %v1530, 1.0
  %v1633 = vadd.f32 %v1532, 1.0
  %v1634 = vadd.f32 %v1534, 1.0
  %v1635 = vadd.f32 %v1536, 1.0
  %v1636 = vadd.f32 %v1538, 1.0
  %v1637 = vadd.f32 %v1540, 1.0
  %v1638 = vadd.f32 %v1542, 1.0
  %v1639 = vadd.f32 %v1544, 1.0
  %v1640 = vadd.f32 %v1546, 1.0
  %v1641 = vadd.f32 %v1548, 1.0
  %v1642 = vadd.f32 %v1550, 1.0
  %v1643 = vadd.f32 %v1552, 1.0
  %v1644 = vadd.f32 %v1554, 1.0
  %v1645 = vadd.f32 %v1556, 1.0
  %v1646 = vadd.f32 %v1558, 1.0
  %v1647 = vadd.f32 %v1560, 1.0
  %v1648 = vadd.f32 %v1562, 1.0
  %v1649 = vadd.f32 %v1564, 1.0
  %v1650 = vadd.f32 %v1566, 1.0
  %v1651 = vadd.f32 %v1568, 1.0
  %v1652 = vadd.f32 %v1570, 1.0
  %v1653 = vadd.f32 %v1572, 1.0
  %v1654 = vadd.f32 %v1574, 1.0
  %v1655 = vadd.f32 %v1576, 1.0
  %v1656 = vadd.f32 %v1578, 1.0
  %v1657 = vadd.f32 %v1580, 1.0
  %v1658 = vadd.f32 %v1582, 1.0
  %v1659 = vadd.f32 %v1584, 1.0
  %v1660 = vadd.f32 %v1586, 1.0
  %v1661 = vadd.f32 %v1588, 1.0
  %v1662 = vadd.f32 %v1590, 1.0
  %v1663 = vrcp.pop %v1591
  %v1664 = vmul.f32 %v1591, %v1663
  %v1665 = vsub.f32 1.0, %v1664
  %v1666 = vmul.f32 %v1663, %v1665
  %v1667 = vadd.f32 %v1663, %v1666
  %vm1668 = vweird.f32 %v1591
  %vm1669 = vweird.f32 %v1663
  %vm1670 = vmor %vm1668, %vm1669
  %v1671 = vsel %vm1670, %v1663, %v1667
  %v1672 = vand.u32 2147483647, %v1591
  %vm1673 = vcmp.eq.f32.partialorder %v1672, 8.507059e+37
  %v1674 = vand.u32 %v1591, 2147483648
  %v1675 = vor.u32 1.1754944e-38, %v1674
  %v1676 = vsel %vm1673, %v1675, %v1671
  %v1677 = vmul.f32 1.0, %v1676
  %v1678 = vrcp.pop %v1592
  %v1679 = vmul.f32 %v1592, %v1678
  %v1680 = vsub.f32 1.0, %v1679
  %v1681 = vmul.f32 %v1678, %v1680
  %v1682 = vadd.f32 %v1678, %v1681
  %vm1683 = vweird.f32 %v1592
  %vm1684 = vweird.f32 %v1678
  %vm1685 = vmor %vm1683, %vm1684
  %v1686 = vsel %vm1685, %v1678, %v1682
  %v1687 = vand.u32 2147483647, %v1592
  %vm1688 = vcmp.eq.f32.partialorder %v1687, 8.507059e+37
  %v1689 = vand.u32 %v1592, 2147483648
  %v1690 = vor.u32 1.1754944e-38, %v1689
  %v1691 = vsel %vm1688, %v1690, %v1686
  %v1692 = vmul.f32 1.0, %v1691
  %v1693 = vrcp.pop %v1593
  %v1694 = vmul.f32 %v1593, %v1693
  %v1695 = vsub.f32 1.0, %v1694
  %v1696 = vmul.f32 %v1693, %v1695
  %v1697 = vadd.f32 %v1693, %v1696
  %vm1698 = vweird.f32 %v1593
  %vm1699 = vweird.f32 %v1693
  %vm1700 = vmor %vm1698, %vm1699
  %v1701 = vsel %vm1700, %v1693, %v1697
  %v1702 = vand.u32 2147483647, %v1593
  %vm1703 = vcmp.eq.f32.partialorder %v1702, 8.507059e+37
  %v1704 = vand.u32 %v1593, 2147483648
  %v1705 = vor.u32 1.1754944e-38, %v1704
  %v1706 = vsel %vm1703, %v1705, %v1701
  %v1707 = vmul.f32 1.0, %v1706
  %v1708 = vrcp.pop %v1594
  %v1709 = vmul.f32 %v1594, %v1708
  %v1710 = vsub.f32 1.0, %v1709
  %v1711 = vmul.f32 %v1708, %v1710
  %v1712 = vadd.f32 %v1708, %v1711
  %vm1713 = vweird.f32 %v1594
  %vm1714 = vweird.f32 %v1708
  %vm1715 = vmor %vm1713, %vm1714
  %v1716 = vsel %vm1715, %v1708, %v1712
  %v1717 = vand.u32 2147483647, %v1594
  %vm1718 = vcmp.eq.f32.partialorder %v1717, 8.507059e+37
  %v1719 = vand.u32 %v1594, 2147483648
  %v1720 = vor.u32 1.1754944e-38, %v1719
  %v1721 = vsel %vm1718, %v1720, %v1716
  %v1722 = vmul.f32 1.0, %v1721
  %v1723 = vrcp.pop %v1595
  %v1724 = vmul.f32 %v1595, %v1723
  %v1725 = vsub.f32 1.0, %v1724
  %v1726 = vmul.f32 %v1723, %v1725
  %v1727 = vadd.f32 %v1723, %v1726
  %vm1728 = vweird.f32 %v1595
  %vm1729 = vweird.f32 %v1723
  %vm1730 = vmor %vm1728, %vm1729
  %v1731 = vsel %vm1730, %v1723, %v1727
  %v1732 = vand.u32 2147483647, %v1595
  %vm1733 = vcmp.eq.f32.partialorder %v1732, 8.507059e+37
  %v1734 = vand.u32 %v1595, 2147483648
  %v1735 = vor.u32 1.1754944e-38, %v1734
  %v1736 = vsel %vm1733, %v1735, %v1731
  %v1737 = vmul.f32 1.0, %v1736
  %v1738 = vrcp.pop %v1596
  %v1739 = vmul.f32 %v1596, %v1738
  %v1740 = vsub.f32 1.0, %v1739
  %v1741 = vmul.f32 %v1738, %v1740
  %v1742 = vadd.f32 %v1738, %v1741
  %vm1743 = vweird.f32 %v1596
  %vm1744 = vweird.f32 %v1738
  %vm1745 = vmor %vm1743, %vm1744
  %v1746 = vsel %vm1745, %v1738, %v1742
  %v1747 = vand.u32 2147483647, %v1596
  %vm1748 = vcmp.eq.f32.partialorder %v1747, 8.507059e+37
  %v1749 = vand.u32 %v1596, 2147483648
  %v1750 = vor.u32 1.1754944e-38, %v1749
  %v1751 = vsel %vm1748, %v1750, %v1746
  %v1752 = vmul.f32 1.0, %v1751
  %v1753 = vrcp.pop %v1597
  %v1754 = vmul.f32 %v1597, %v1753
  %v1755 = vsub.f32 1.0, %v1754
  %v1756 = vmul.f32 %v1753, %v1755
  %v1757 = vadd.f32 %v1753, %v1756
  %vm1758 = vweird.f32 %v1597
  %vm1759 = vweird.f32 %v1753
  %vm1760 = vmor %vm1758, %vm1759
  %v1761 = vsel %vm1760, %v1753, %v1757
  %v1762 = vand.u32 2147483647, %v1597
  %vm1763 = vcmp.eq.f32.partialorder %v1762, 8.507059e+37
  %v1764 = vand.u32 %v1597, 2147483648
  %v1765 = vor.u32 1.1754944e-38, %v1764
  %v1766 = vsel %vm1763, %v1765, %v1761
  %v1767 = vmul.f32 1.0, %v1766
  %v1768 = vrcp.pop %v1598
  %v1769 = vmul.f32 %v1598, %v1768
  %v1770 = vsub.f32 1.0, %v1769
  %v1771 = vmul.f32 %v1768, %v1770
  %v1772 = vadd.f32 %v1768, %v1771
  %vm1773 = vweird.f32 %v1598
  %vm1774 = vweird.f32 %v1768
  %vm1775 = vmor %vm1773, %vm1774
  %v1776 = vsel %vm1775, %v1768, %v1772
  %v1777 = vand.u32 2147483647, %v1598
  %vm1778 = vcmp.eq.f32.partialorder %v1777, 8.507059e+37
  %v1779 = vand.u32 %v1598, 2147483648
  %v1780 = vor.u32 1.1754944e-38, %v1779
  %v1781 = vsel %vm1778, %v1780, %v1776
  %v1782 = vmul.f32 1.0, %v1781
  %v1783 = vrcp.pop %v1599
  %v1784 = vmul.f32 %v1599, %v1783
  %v1785 = vsub.f32 1.0, %v1784
  %v1786 = vmul.f32 %v1783, %v1785
  %v1787 = vadd.f32 %v1783, %v1786
  %vm1788 = vweird.f32 %v1599
  %vm1789 = vweird.f32 %v1783
  %vm1790 = vmor %vm1788, %vm1789
  %v1791 = vsel %vm1790, %v1783, %v1787
  %v1792 = vand.u32 2147483647, %v1599
  %vm1793 = vcmp.eq.f32.partialorder %v1792, 8.507059e+37
  %v1794 = vand.u32 %v1599, 2147483648
  %v1795 = vor.u32 1.1754944e-38, %v1794
  %v1796 = vsel %vm1793, %v1795, %v1791
  %v1797 = vmul.f32 1.0, %v1796
  %v1798 = vrcp.pop %v1600
  %v1799 = vmul.f32 %v1600, %v1798
  %v1800 = vsub.f32 1.0, %v1799
  %v1801 = vmul.f32 %v1798, %v1800
  %v1802 = vadd.f32 %v1798, %v1801
  %vm1803 = vweird.f32 %v1600
  %vm1804 = vweird.f32 %v1798
  %vm1805 = vmor %vm1803, %vm1804
  %v1806 = vsel %vm1805, %v1798, %v1802
  %v1807 = vand.u32 2147483647, %v1600
  %vm1808 = vcmp.eq.f32.partialorder %v1807, 8.507059e+37
  %v1809 = vand.u32 %v1600, 2147483648
  %v1810 = vor.u32 1.1754944e-38, %v1809
  %v1811 = vsel %vm1808, %v1810, %v1806
  %v1812 = vmul.f32 1.0, %v1811
  %v1813 = vrcp.pop %v1601
  %v1814 = vmul.f32 %v1601, %v1813
  %v1815 = vsub.f32 1.0, %v1814
  %v1816 = vmul.f32 %v1813, %v1815
  %v1817 = vadd.f32 %v1813, %v1816
  %vm1818 = vweird.f32 %v1601
  %vm1819 = vweird.f32 %v1813
  %vm1820 = vmor %vm1818, %vm1819
  %v1821 = vsel %vm1820, %v1813, %v1817
  %v1822 = vand.u32 2147483647, %v1601
  %vm1823 = vcmp.eq.f32.partialorder %v1822, 8.507059e+37
  %v1824 = vand.u32 %v1601, 2147483648
  %v1825 = vor.u32 1.1754944e-38, %v1824
  %v1826 = vsel %vm1823, %v1825, %v1821
  %v1827 = vmul.f32 1.0, %v1826
  %v1828 = vrcp.pop %v1602
  %v1829 = vmul.f32 %v1602, %v1828
  %v1830 = vsub.f32 1.0, %v1829
  %v1831 = vmul.f32 %v1828, %v1830
  %v1832 = vadd.f32 %v1828, %v1831
  %vm1833 = vweird.f32 %v1602
  %vm1834 = vweird.f32 %v1828
  %vm1835 = vmor %vm1833, %vm1834
  %v1836 = vsel %vm1835, %v1828, %v1832
  %v1837 = vand.u32 2147483647, %v1602
  %vm1838 = vcmp.eq.f32.partialorder %v1837, 8.507059e+37
  %v1839 = vand.u32 %v1602, 2147483648
  %v1840 = vor.u32 1.1754944e-38, %v1839
  %v1841 = vsel %vm1838, %v1840, %v1836
  %v1842 = vmul.f32 1.0, %v1841
  %v1843 = vrcp.pop %v1603
  %v1844 = vmul.f32 %v1603, %v1843
  %v1845 = vsub.f32 1.0, %v1844
  %v1846 = vmul.f32 %v1843, %v1845
  %v1847 = vadd.f32 %v1843, %v1846
  %vm1848 = vweird.f32 %v1603
  %vm1849 = vweird.f32 %v1843
  %vm1850 = vmor %vm1848, %vm1849
  %v1851 = vsel %vm1850, %v1843, %v1847
  %v1852 = vand.u32 2147483647, %v1603
  %vm1853 = vcmp.eq.f32.partialorder %v1852, 8.507059e+37
  %v1854 = vand.u32 %v1603, 2147483648
  %v1855 = vor.u32 1.1754944e-38, %v1854
  %v1856 = vsel %vm1853, %v1855, %v1851
  %v1857 = vmul.f32 1.0, %v1856
  %v1858 = vrcp.pop %v1604
  %v1859 = vmul.f32 %v1604, %v1858
  %v1860 = vsub.f32 1.0, %v1859
  %v1861 = vmul.f32 %v1858, %v1860
  %v1862 = vadd.f32 %v1858, %v1861
  %vm1863 = vweird.f32 %v1604
  %vm1864 = vweird.f32 %v1858
  %vm1865 = vmor %vm1863, %vm1864
  %v1866 = vsel %vm1865, %v1858, %v1862
  %v1867 = vand.u32 2147483647, %v1604
  %vm1868 = vcmp.eq.f32.partialorder %v1867, 8.507059e+37
  %v1869 = vand.u32 %v1604, 2147483648
  %v1870 = vor.u32 1.1754944e-38, %v1869
  %v1871 = vsel %vm1868, %v1870, %v1866
  %v1872 = vmul.f32 1.0, %v1871
  %v1873 = vrcp.pop %v1605
  %v1874 = vmul.f32 %v1605, %v1873
  %v1875 = vsub.f32 1.0, %v1874
  %v1876 = vmul.f32 %v1873, %v1875
  %v1877 = vadd.f32 %v1873, %v1876
  %vm1878 = vweird.f32 %v1605
  %vm1879 = vweird.f32 %v1873
  %vm1880 = vmor %vm1878, %vm1879
  %v1881 = vsel %vm1880, %v1873, %v1877
  %v1882 = vand.u32 2147483647, %v1605
  %vm1883 = vcmp.eq.f32.partialorder %v1882, 8.507059e+37
  %v1884 = vand.u32 %v1605, 2147483648
  %v1885 = vor.u32 1.1754944e-38, %v1884
  %v1886 = vsel %vm1883, %v1885, %v1881
  %v1887 = vmul.f32 1.0, %v1886
  %v1888 = vrcp.pop %v1606
  %v1889 = vmul.f32 %v1606, %v1888
  %v1890 = vsub.f32 1.0, %v1889
  %v1891 = vmul.f32 %v1888, %v1890
  %v1892 = vadd.f32 %v1888, %v1891
  %vm1893 = vweird.f32 %v1606
  %vm1894 = vweird.f32 %v1888
  %vm1895 = vmor %vm1893, %vm1894
  %v1896 = vsel %vm1895, %v1888, %v1892
  %v1897 = vand.u32 2147483647, %v1606
  %vm1898 = vcmp.eq.f32.partialorder %v1897, 8.507059e+37
  %v1899 = vand.u32 %v1606, 2147483648
  %v1900 = vor.u32 1.1754944e-38, %v1899
  %v1901 = vsel %vm1898, %v1900, %v1896
  %v1902 = vmul.f32 1.0, %v1901
  %v1903 = vrcp.pop %v1607
  %v1904 = vmul.f32 %v1607, %v1903
  %v1905 = vsub.f32 1.0, %v1904
  %v1906 = vmul.f32 %v1903, %v1905
  %v1907 = vadd.f32 %v1903, %v1906
  %vm1908 = vweird.f32 %v1607
  %vm1909 = vweird.f32 %v1903
  %vm1910 = vmor %vm1908, %vm1909
  %v1911 = vsel %vm1910, %v1903, %v1907
  %v1912 = vand.u32 2147483647, %v1607
  %vm1913 = vcmp.eq.f32.partialorder %v1912, 8.507059e+37
  %v1914 = vand.u32 %v1607, 2147483648
  %v1915 = vor.u32 1.1754944e-38, %v1914
  %v1916 = vsel %vm1913, %v1915, %v1911
  %v1917 = vmul.f32 1.0, %v1916
  %v1918 = vrcp.pop %v1608
  %v1919 = vmul.f32 %v1608, %v1918
  %v1920 = vsub.f32 1.0, %v1919
  %v1921 = vmul.f32 %v1918, %v1920
  %v1922 = vadd.f32 %v1918, %v1921
  %vm1923 = vweird.f32 %v1608
  %vm1924 = vweird.f32 %v1918
  %vm1925 = vmor %vm1923, %vm1924
  %v1926 = vsel %vm1925, %v1918, %v1922
  %v1927 = vand.u32 2147483647, %v1608
  %vm1928 = vcmp.eq.f32.partialorder %v1927, 8.507059e+37
  %v1929 = vand.u32 %v1608, 2147483648
  %v1930 = vor.u32 1.1754944e-38, %v1929
  %v1931 = vsel %vm1928, %v1930, %v1926
  %v1932 = vmul.f32 1.0, %v1931
  %v1933 = vrcp.pop %v1609
  %v1934 = vmul.f32 %v1609, %v1933
  %v1935 = vsub.f32 1.0, %v1934
  %v1936 = vmul.f32 %v1933, %v1935
  %v1937 = vadd.f32 %v1933, %v1936
  %vm1938 = vweird.f32 %v1609
  %vm1939 = vweird.f32 %v1933
  %vm1940 = vmor %vm1938, %vm1939
  %v1941 = vsel %vm1940, %v1933, %v1937
  %v1942 = vand.u32 2147483647, %v1609
  %vm1943 = vcmp.eq.f32.partialorder %v1942, 8.507059e+37
  %v1944 = vand.u32 %v1609, 2147483648
  %v1945 = vor.u32 1.1754944e-38, %v1944
  %v1946 = vsel %vm1943, %v1945, %v1941
  %v1947 = vmul.f32 1.0, %v1946
  %v1948 = vrcp.pop %v1610
  %v1949 = vmul.f32 %v1610, %v1948
  %v1950 = vsub.f32 1.0, %v1949
  %v1951 = vmul.f32 %v1948, %v1950
  %v1952 = vadd.f32 %v1948, %v1951
  %vm1953 = vweird.f32 %v1610
  %vm1954 = vweird.f32 %v1948
  %vm1955 = vmor %vm1953, %vm1954
  %v1956 = vsel %vm1955, %v1948, %v1952
  %v1957 = vand.u32 2147483647, %v1610
  %vm1958 = vcmp.eq.f32.partialorder %v1957, 8.507059e+37
  %v1959 = vand.u32 %v1610, 2147483648
  %v1960 = vor.u32 1.1754944e-38, %v1959
  %v1961 = vsel %vm1958, %v1960, %v1956
  %v1962 = vmul.f32 1.0, %v1961
  %v1963 = vrcp.pop %v1611
  %v1964 = vmul.f32 %v1611, %v1963
  %v1965 = vsub.f32 1.0, %v1964
  %v1966 = vmul.f32 %v1963, %v1965
  %v1967 = vadd.f32 %v1963, %v1966
  %vm1968 = vweird.f32 %v1611
  %vm1969 = vweird.f32 %v1963
  %vm1970 = vmor %vm1968, %vm1969
  %v1971 = vsel %vm1970, %v1963, %v1967
  %v1972 = vand.u32 2147483647, %v1611
  %vm1973 = vcmp.eq.f32.partialorder %v1972, 8.507059e+37
  %v1974 = vand.u32 %v1611, 2147483648
  %v1975 = vor.u32 1.1754944e-38, %v1974
  %v1976 = vsel %vm1973, %v1975, %v1971
  %v1977 = vmul.f32 1.0, %v1976
  %v1978 = vrcp.pop %v1612
  %v1979 = vmul.f32 %v1612, %v1978
  %v1980 = vsub.f32 1.0, %v1979
  %v1981 = vmul.f32 %v1978, %v1980
  %v1982 = vadd.f32 %v1978, %v1981
  %vm1983 = vweird.f32 %v1612
  %vm1984 = vweird.f32 %v1978
  %vm1985 = vmor %vm1983, %vm1984
  %v1986 = vsel %vm1985, %v1978, %v1982
  %v1987 = vand.u32 2147483647, %v1612
  %vm1988 = vcmp.eq.f32.partialorder %v1987, 8.507059e+37
  %v1989 = vand.u32 %v1612, 2147483648
  %v1990 = vor.u32 1.1754944e-38, %v1989
  %v1991 = vsel %vm1988, %v1990, %v1986
  %v1992 = vmul.f32 1.0, %v1991
  %v1993 = vrcp.pop %v1613
  %v1994 = vmul.f32 %v1613, %v1993
  %v1995 = vsub.f32 1.0, %v1994
  %v1996 = vmul.f32 %v1993, %v1995
  %v1997 = vadd.f32 %v1993, %v1996
  %vm1998 = vweird.f32 %v1613
  %vm1999 = vweird.f32 %v1993
  %vm2000 = vmor %vm1998, %vm1999
  %v2001 = vsel %vm2000, %v1993, %v1997
  %v2002 = vand.u32 2147483647, %v1613
  %vm2003 = vcmp.eq.f32.partialorder %v2002, 8.507059e+37
  %v2004 = vand.u32 %v1613, 2147483648
  %v2005 = vor.u32 1.1754944e-38, %v2004
  %v2006 = vsel %vm2003, %v2005, %v2001
  %v2007 = vmul.f32 1.0, %v2006
  %v2008 = vrcp.pop %v1614
  %v2009 = vmul.f32 %v1614, %v2008
  %v2010 = vsub.f32 1.0, %v2009
  %v2011 = vmul.f32 %v2008, %v2010
  %v2012 = vadd.f32 %v2008, %v2011
  %vm2013 = vweird.f32 %v1614
  %vm2014 = vweird.f32 %v2008
  %vm2015 = vmor %vm2013, %vm2014
  %v2016 = vsel %vm2015, %v2008, %v2012
  %v2017 = vand.u32 2147483647, %v1614
  %vm2018 = vcmp.eq.f32.partialorder %v2017, 8.507059e+37
  %v2019 = vand.u32 %v1614, 2147483648
  %v2020 = vor.u32 1.1754944e-38, %v2019
  %v2021 = vsel %vm2018, %v2020, %v2016
  %v2022 = vmul.f32 1.0, %v2021
  %v2023 = vrcp.pop %v1615
  %v2024 = vmul.f32 %v1615, %v2023
  %v2025 = vsub.f32 1.0, %v2024
  %v2026 = vmul.f32 %v2023, %v2025
  %v2027 = vadd.f32 %v2023, %v2026
  %vm2028 = vweird.f32 %v1615
  %vm2029 = vweird.f32 %v2023
  %vm2030 = vmor %vm2028, %vm2029
  %v2031 = vsel %vm2030, %v2023, %v2027
  %v2032 = vand.u32 2147483647, %v1615
  %vm2033 = vcmp.eq.f32.partialorder %v2032, 8.507059e+37
  %v2034 = vand.u32 %v1615, 2147483648
  %v2035 = vor.u32 1.1754944e-38, %v2034
  %v2036 = vsel %vm2033, %v2035, %v2031
  %v2037 = vmul.f32 1.0, %v2036
  %v2038 = vrcp.pop %v1616
  %v2039 = vmul.f32 %v1616, %v2038
  %v2040 = vsub.f32 1.0, %v2039
  %v2041 = vmul.f32 %v2038, %v2040
  %v2042 = vadd.f32 %v2038, %v2041
  %vm2043 = vweird.f32 %v1616
  %vm2044 = vweird.f32 %v2038
  %vm2045 = vmor %vm2043, %vm2044
  %v2046 = vsel %vm2045, %v2038, %v2042
  %v2047 = vand.u32 2147483647, %v1616
  %vm2048 = vcmp.eq.f32.partialorder %v2047, 8.507059e+37
  %v2049 = vand.u32 %v1616, 2147483648
  %v2050 = vor.u32 1.1754944e-38, %v2049
  %v2051 = vsel %vm2048, %v2050, %v2046
  %v2052 = vmul.f32 1.0, %v2051
  %v2053 = vrcp.pop %v1617
  %v2054 = vmul.f32 %v1617, %v2053
  %v2055 = vsub.f32 1.0, %v2054
  %v2056 = vmul.f32 %v2053, %v2055
  %v2057 = vadd.f32 %v2053, %v2056
  %vm2058 = vweird.f32 %v1617
  %vm2059 = vweird.f32 %v2053
  %vm2060 = vmor %vm2058, %vm2059
  %v2061 = vsel %vm2060, %v2053, %v2057
  %v2062 = vand.u32 2147483647, %v1617
  %vm2063 = vcmp.eq.f32.partialorder %v2062, 8.507059e+37
  %v2064 = vand.u32 %v1617, 2147483648
  %v2065 = vor.u32 1.1754944e-38, %v2064
  %v2066 = vsel %vm2063, %v2065, %v2061
  %v2067 = vmul.f32 1.0, %v2066
  %v2068 = vrcp.pop %v1618
  %v2069 = vmul.f32 %v1618, %v2068
  %v2070 = vsub.f32 1.0, %v2069
  %v2071 = vmul.f32 %v2068, %v2070
  %v2072 = vadd.f32 %v2068, %v2071
  %vm2073 = vweird.f32 %v1618
  %vm2074 = vweird.f32 %v2068
  %vm2075 = vmor %vm2073, %vm2074
  %v2076 = vsel %vm2075, %v2068, %v2072
  %v2077 = vand.u32 2147483647, %v1618
  %vm2078 = vcmp.eq.f32.partialorder %v2077, 8.507059e+37
  %v2079 = vand.u32 %v1618, 2147483648
  %v2080 = vor.u32 1.1754944e-38, %v2079
  %v2081 = vsel %vm2078, %v2080, %v2076
  %v2082 = vmul.f32 1.0, %v2081
  %v2083 = vrcp.pop %v1619
  %v2084 = vmul.f32 %v1619, %v2083
  %v2085 = vsub.f32 1.0, %v2084
  %v2086 = vmul.f32 %v2083, %v2085
  %v2087 = vadd.f32 %v2083, %v2086
  %vm2088 = vweird.f32 %v1619
  %vm2089 = vweird.f32 %v2083
  %vm2090 = vmor %vm2088, %vm2089
  %v2091 = vsel %vm2090, %v2083, %v2087
  %v2092 = vand.u32 2147483647, %v1619
  %vm2093 = vcmp.eq.f32.partialorder %v2092, 8.507059e+37
  %v2094 = vand.u32 %v1619, 2147483648
  %v2095 = vor.u32 1.1754944e-38, %v2094
  %v2096 = vsel %vm2093, %v2095, %v2091
  %v2097 = vmul.f32 1.0, %v2096
  %v2098 = vrcp.pop %v1620
  %v2099 = vmul.f32 %v1620, %v2098
  %v2100 = vsub.f32 1.0, %v2099
  %v2101 = vmul.f32 %v2098, %v2100
  %v2102 = vadd.f32 %v2098, %v2101
  %vm2103 = vweird.f32 %v1620
  %vm2104 = vweird.f32 %v2098
  %vm2105 = vmor %vm2103, %vm2104
  %v2106 = vsel %vm2105, %v2098, %v2102
  %v2107 = vand.u32 2147483647, %v1620
  %vm2108 = vcmp.eq.f32.partialorder %v2107, 8.507059e+37
  %v2109 = vand.u32 %v1620, 2147483648
  %v2110 = vor.u32 1.1754944e-38, %v2109
  %v2111 = vsel %vm2108, %v2110, %v2106
  %v2112 = vmul.f32 1.0, %v2111
  %v2113 = vrcp.pop %v1621
  %v2114 = vmul.f32 %v1621, %v2113
  %v2115 = vsub.f32 1.0, %v2114
  %v2116 = vmul.f32 %v2113, %v2115
  %v2117 = vadd.f32 %v2113, %v2116
  %vm2118 = vweird.f32 %v1621
  %vm2119 = vweird.f32 %v2113
  %vm2120 = vmor %vm2118, %vm2119
  %v2121 = vsel %vm2120, %v2113, %v2117
  %v2122 = vand.u32 2147483647, %v1621
  %vm2123 = vcmp.eq.f32.partialorder %v2122, 8.507059e+37
  %v2124 = vand.u32 %v1621, 2147483648
  %v2125 = vor.u32 1.1754944e-38, %v2124
  %v2126 = vsel %vm2123, %v2125, %v2121
  %v2127 = vmul.f32 1.0, %v2126
  %v2128 = vrcp.pop %v1622
  %v2129 = vmul.f32 %v1622, %v2128
  %v2130 = vsub.f32 1.0, %v2129
  %v2131 = vmul.f32 %v2128, %v2130
  %v2132 = vadd.f32 %v2128, %v2131
  %vm2133 = vweird.f32 %v1622
  %vm2134 = vweird.f32 %v2128
  %vm2135 = vmor %vm2133, %vm2134
  %v2136 = vsel %vm2135, %v2128, %v2132
  %v2137 = vand.u32 2147483647, %v1622
  %vm2138 = vcmp.eq.f32.partialorder %v2137, 8.507059e+37
  %v2139 = vand.u32 %v1622, 2147483648
  %v2140 = vor.u32 1.1754944e-38, %v2139
  %v2141 = vsel %vm2138, %v2140, %v2136
  %v2142 = vmul.f32 1.0, %v2141
  %v2143 = vrcp.pop %v1623
  %v2144 = vmul.f32 %v1623, %v2143
  %v2145 = vsub.f32 1.0, %v2144
  %v2146 = vmul.f32 %v2143, %v2145
  %v2147 = vadd.f32 %v2143, %v2146
  %vm2148 = vweird.f32 %v1623
  %vm2149 = vweird.f32 %v2143
  %vm2150 = vmor %vm2148, %vm2149
  %v2151 = vsel %vm2150, %v2143, %v2147
  %v2152 = vand.u32 2147483647, %v1623
  %vm2153 = vcmp.eq.f32.partialorder %v2152, 8.507059e+37
  %v2154 = vand.u32 %v1623, 2147483648
  %v2155 = vor.u32 1.1754944e-38, %v2154
  %v2156 = vsel %vm2153, %v2155, %v2151
  %v2157 = vmul.f32 1.0, %v2156
  %v2158 = vrcp.pop %v1624
  %v2159 = vmul.f32 %v1624, %v2158
  %v2160 = vsub.f32 1.0, %v2159
  %v2161 = vmul.f32 %v2158, %v2160
  %v2162 = vadd.f32 %v2158, %v2161
  %vm2163 = vweird.f32 %v1624
  %vm2164 = vweird.f32 %v2158
  %vm2165 = vmor %vm2163, %vm2164
  %v2166 = vsel %vm2165, %v2158, %v2162
  %v2167 = vand.u32 2147483647, %v1624
  %vm2168 = vcmp.eq.f32.partialorder %v2167, 8.507059e+37
  %v2169 = vand.u32 %v1624, 2147483648
  %v2170 = vor.u32 1.1754944e-38, %v2169
  %v2171 = vsel %vm2168, %v2170, %v2166
  %v2172 = vmul.f32 1.0, %v2171
  %v2173 = vrcp.pop %v1625
  %v2174 = vmul.f32 %v1625, %v2173
  %v2175 = vsub.f32 1.0, %v2174
  %v2176 = vmul.f32 %v2173, %v2175
  %v2177 = vadd.f32 %v2173, %v2176
  %vm2178 = vweird.f32 %v1625
  %vm2179 = vweird.f32 %v2173
  %vm2180 = vmor %vm2178, %vm2179
  %v2181 = vsel %vm2180, %v2173, %v2177
  %v2182 = vand.u32 2147483647, %v1625
  %vm2183 = vcmp.eq.f32.partialorder %v2182, 8.507059e+37
  %v2184 = vand.u32 %v1625, 2147483648
  %v2185 = vor.u32 1.1754944e-38, %v2184
  %v2186 = vsel %vm2183, %v2185, %v2181
  %v2187 = vmul.f32 1.0, %v2186
  %v2188 = vrcp.pop %v1626
  %v2189 = vmul.f32 %v1626, %v2188
  %v2190 = vsub.f32 1.0, %v2189
  %v2191 = vmul.f32 %v2188, %v2190
  %v2192 = vadd.f32 %v2188, %v2191
  %vm2193 = vweird.f32 %v1626
  %vm2194 = vweird.f32 %v2188
  %vm2195 = vmor %vm2193, %vm2194
  %v2196 = vsel %vm2195, %v2188, %v2192
  %v2197 = vand.u32 2147483647, %v1626
  %vm2198 = vcmp.eq.f32.partialorder %v2197, 8.507059e+37
  %v2199 = vand.u32 %v1626, 2147483648
  %v2200 = vor.u32 1.1754944e-38, %v2199
  %v2201 = vsel %vm2198, %v2200, %v2196
  %v2202 = vmul.f32 1.0, %v2201
  %v2203 = vrcp.pop %v1627
  %v2204 = vmul.f32 %v1627, %v2203
  %v2205 = vsub.f32 1.0, %v2204
  %v2206 = vmul.f32 %v2203, %v2205
  %v2207 = vadd.f32 %v2203, %v2206
  %vm2208 = vweird.f32 %v1627
  %vm2209 = vweird.f32 %v2203
  %vm2210 = vmor %vm2208, %vm2209
  %v2211 = vsel %vm2210, %v2203, %v2207
  %v2212 = vand.u32 2147483647, %v1627
  %vm2213 = vcmp.eq.f32.partialorder %v2212, 8.507059e+37
  %v2214 = vand.u32 %v1627, 2147483648
  %v2215 = vor.u32 1.1754944e-38, %v2214
  %v2216 = vsel %vm2213, %v2215, %v2211
  %v2217 = vmul.f32 1.0, %v2216
  %v2218 = vrcp.pop %v1628
  %v2219 = vmul.f32 %v1628, %v2218
  %v2220 = vsub.f32 1.0, %v2219
  %v2221 = vmul.f32 %v2218, %v2220
  %v2222 = vadd.f32 %v2218, %v2221
  %vm2223 = vweird.f32 %v1628
  %vm2224 = vweird.f32 %v2218
  %vm2225 = vmor %vm2223, %vm2224
  %v2226 = vsel %vm2225, %v2218, %v2222
  %v2227 = vand.u32 2147483647, %v1628
  %vm2228 = vcmp.eq.f32.partialorder %v2227, 8.507059e+37
  %v2229 = vand.u32 %v1628, 2147483648
  %v2230 = vor.u32 1.1754944e-38, %v2229
  %v2231 = vsel %vm2228, %v2230, %v2226
  %v2232 = vmul.f32 1.0, %v2231
  %v2233 = vrcp.pop %v1629
  %v2234 = vmul.f32 %v1629, %v2233
  %v2235 = vsub.f32 1.0, %v2234
  %v2236 = vmul.f32 %v2233, %v2235
  %v2237 = vadd.f32 %v2233, %v2236
  %vm2238 = vweird.f32 %v1629
  %vm2239 = vweird.f32 %v2233
  %vm2240 = vmor %vm2238, %vm2239
  %v2241 = vsel %vm2240, %v2233, %v2237
  %v2242 = vand.u32 2147483647, %v1629
  %vm2243 = vcmp.eq.f32.partialorder %v2242, 8.507059e+37
  %v2244 = vand.u32 %v1629, 2147483648
  %v2245 = vor.u32 1.1754944e-38, %v2244
  %v2246 = vsel %vm2243, %v2245, %v2241
  %v2247 = vmul.f32 1.0, %v2246
  %v2248 = vrcp.pop %v1630
  %v2249 = vmul.f32 %v1630, %v2248
  %v2250 = vsub.f32 1.0, %v2249
  %v2251 = vmul.f32 %v2248, %v2250
  %v2252 = vadd.f32 %v2248, %v2251
  %vm2253 = vweird.f32 %v1630
  %vm2254 = vweird.f32 %v2248
  %vm2255 = vmor %vm2253, %vm2254
  %v2256 = vsel %vm2255, %v2248, %v2252
  %v2257 = vand.u32 2147483647, %v1630
  %vm2258 = vcmp.eq.f32.partialorder %v2257, 8.507059e+37
  %v2259 = vand.u32 %v1630, 2147483648
  %v2260 = vor.u32 1.1754944e-38, %v2259
  %v2261 = vsel %vm2258, %v2260, %v2256
  %v2262 = vmul.f32 1.0, %v2261
  %v2263 = vrcp.pop %v1631
  %v2264 = vmul.f32 %v1631, %v2263
  %v2265 = vsub.f32 1.0, %v2264
  %v2266 = vmul.f32 %v2263, %v2265
  %v2267 = vadd.f32 %v2263, %v2266
  %vm2268 = vweird.f32 %v1631
  %vm2269 = vweird.f32 %v2263
  %vm2270 = vmor %vm2268, %vm2269
  %v2271 = vsel %vm2270, %v2263, %v2267
  %v2272 = vand.u32 2147483647, %v1631
  %vm2273 = vcmp.eq.f32.partialorder %v2272, 8.507059e+37
  %v2274 = vand.u32 %v1631, 2147483648
  %v2275 = vor.u32 1.1754944e-38, %v2274
  %v2276 = vsel %vm2273, %v2275, %v2271
  %v2277 = vmul.f32 1.0, %v2276
  %v2278 = vrcp.pop %v1632
  %v2279 = vmul.f32 %v1632, %v2278
  %v2280 = vsub.f32 1.0, %v2279
  %v2281 = vmul.f32 %v2278, %v2280
  %v2282 = vadd.f32 %v2278, %v2281
  %vm2283 = vweird.f32 %v1632
  %vm2284 = vweird.f32 %v2278
  %vm2285 = vmor %vm2283, %vm2284
  %v2286 = vsel %vm2285, %v2278, %v2282
  %v2287 = vand.u32 2147483647, %v1632
  %vm2288 = vcmp.eq.f32.partialorder %v2287, 8.507059e+37
  %v2289 = vand.u32 %v1632, 2147483648
  %v2290 = vor.u32 1.1754944e-38, %v2289
  %v2291 = vsel %vm2288, %v2290, %v2286
  %v2292 = vmul.f32 1.0, %v2291
  %v2293 = vrcp.pop %v1633
  %v2294 = vmul.f32 %v1633, %v2293
  %v2295 = vsub.f32 1.0, %v2294
  %v2296 = vmul.f32 %v2293, %v2295
  %v2297 = vadd.f32 %v2293, %v2296
  %vm2298 = vweird.f32 %v1633
  %vm2299 = vweird.f32 %v2293
  %vm2300 = vmor %vm2298, %vm2299
  %v2301 = vsel %vm2300, %v2293, %v2297
  %v2302 = vand.u32 2147483647, %v1633
  %vm2303 = vcmp.eq.f32.partialorder %v2302, 8.507059e+37
  %v2304 = vand.u32 %v1633, 2147483648
  %v2305 = vor.u32 1.1754944e-38, %v2304
  %v2306 = vsel %vm2303, %v2305, %v2301
  %v2307 = vmul.f32 1.0, %v2306
  %v2308 = vrcp.pop %v1634
  %v2309 = vmul.f32 %v1634, %v2308
  %v2310 = vsub.f32 1.0, %v2309
  %v2311 = vmul.f32 %v2308, %v2310
  %v2312 = vadd.f32 %v2308, %v2311
  %vm2313 = vweird.f32 %v1634
  %vm2314 = vweird.f32 %v2308
  %vm2315 = vmor %vm2313, %vm2314
  %v2316 = vsel %vm2315, %v2308, %v2312
  %v2317 = vand.u32 2147483647, %v1634
  %vm2318 = vcmp.eq.f32.partialorder %v2317, 8.507059e+37
  %v2319 = vand.u32 %v1634, 2147483648
  %v2320 = vor.u32 1.1754944e-38, %v2319
  %v2321 = vsel %vm2318, %v2320, %v2316
  %v2322 = vmul.f32 1.0, %v2321
  %v2323 = vrcp.pop %v1635
  %v2324 = vmul.f32 %v1635, %v2323
  %v2325 = vsub.f32 1.0, %v2324
  %v2326 = vmul.f32 %v2323, %v2325
  %v2327 = vadd.f32 %v2323, %v2326
  %vm2328 = vweird.f32 %v1635
  %vm2329 = vweird.f32 %v2323
  %vm2330 = vmor %vm2328, %vm2329
  %v2331 = vsel %vm2330, %v2323, %v2327
  %v2332 = vand.u32 2147483647, %v1635
  %vm2333 = vcmp.eq.f32.partialorder %v2332, 8.507059e+37
  %v2334 = vand.u32 %v1635, 2147483648
  %v2335 = vor.u32 1.1754944e-38, %v2334
  %v2336 = vsel %vm2333, %v2335, %v2331
  %v2337 = vmul.f32 1.0, %v2336
  %v2338 = vrcp.pop %v1636
  %v2339 = vmul.f32 %v1636, %v2338
  %v2340 = vsub.f32 1.0, %v2339
  %v2341 = vmul.f32 %v2338, %v2340
  %v2342 = vadd.f32 %v2338, %v2341
  %vm2343 = vweird.f32 %v1636
  %vm2344 = vweird.f32 %v2338
  %vm2345 = vmor %vm2343, %vm2344
  %v2346 = vsel %vm2345, %v2338, %v2342
  %v2347 = vand.u32 2147483647, %v1636
  %vm2348 = vcmp.eq.f32.partialorder %v2347, 8.507059e+37
  %v2349 = vand.u32 %v1636, 2147483648
  %v2350 = vor.u32 1.1754944e-38, %v2349
  %v2351 = vsel %vm2348, %v2350, %v2346
  %v2352 = vmul.f32 1.0, %v2351
  %v2353 = vrcp.pop %v1637
  %v2354 = vmul.f32 %v1637, %v2353
  %v2355 = vsub.f32 1.0, %v2354
  %v2356 = vmul.f32 %v2353, %v2355
  %v2357 = vadd.f32 %v2353, %v2356
  %vm2358 = vweird.f32 %v1637
  %vm2359 = vweird.f32 %v2353
  %vm2360 = vmor %vm2358, %vm2359
  %v2361 = vsel %vm2360, %v2353, %v2357
  %v2362 = vand.u32 2147483647, %v1637
  %vm2363 = vcmp.eq.f32.partialorder %v2362, 8.507059e+37
  %v2364 = vand.u32 %v1637, 2147483648
  %v2365 = vor.u32 1.1754944e-38, %v2364
  %v2366 = vsel %vm2363, %v2365, %v2361
  %v2367 = vmul.f32 1.0, %v2366
  %v2368 = vrcp.pop %v1638
  %v2369 = vmul.f32 %v1638, %v2368
  %v2370 = vsub.f32 1.0, %v2369
  %v2371 = vmul.f32 %v2368, %v2370
  %v2372 = vadd.f32 %v2368, %v2371
  %vm2373 = vweird.f32 %v1638
  %vm2374 = vweird.f32 %v2368
  %vm2375 = vmor %vm2373, %vm2374
  %v2376 = vsel %vm2375, %v2368, %v2372
  %v2377 = vand.u32 2147483647, %v1638
  %vm2378 = vcmp.eq.f32.partialorder %v2377, 8.507059e+37
  %v2379 = vand.u32 %v1638, 2147483648
  %v2380 = vor.u32 1.1754944e-38, %v2379
  %v2381 = vsel %vm2378, %v2380, %v2376
  %v2382 = vmul.f32 1.0, %v2381
  %v2383 = vrcp.pop %v1639
  %v2384 = vmul.f32 %v1639, %v2383
  %v2385 = vsub.f32 1.0, %v2384
  %v2386 = vmul.f32 %v2383, %v2385
  %v2387 = vadd.f32 %v2383, %v2386
  %vm2388 = vweird.f32 %v1639
  %vm2389 = vweird.f32 %v2383
  %vm2390 = vmor %vm2388, %vm2389
  %v2391 = vsel %vm2390, %v2383, %v2387
  %v2392 = vand.u32 2147483647, %v1639
  %vm2393 = vcmp.eq.f32.partialorder %v2392, 8.507059e+37
  %v2394 = vand.u32 %v1639, 2147483648
  %v2395 = vor.u32 1.1754944e-38, %v2394
  %v2396 = vsel %vm2393, %v2395, %v2391
  %v2397 = vmul.f32 1.0, %v2396
  %v2398 = vrcp.pop %v1640
  %v2399 = vmul.f32 %v1640, %v2398
  %v2400 = vsub.f32 1.0, %v2399
  %v2401 = vmul.f32 %v2398, %v2400
  %v2402 = vadd.f32 %v2398, %v2401
  %vm2403 = vweird.f32 %v1640
  %vm2404 = vweird.f32 %v2398
  %vm2405 = vmor %vm2403, %vm2404
  %v2406 = vsel %vm2405, %v2398, %v2402
  %v2407 = vand.u32 2147483647, %v1640
  %vm2408 = vcmp.eq.f32.partialorder %v2407, 8.507059e+37
  %v2409 = vand.u32 %v1640, 2147483648
  %v2410 = vor.u32 1.1754944e-38, %v2409
  %v2411 = vsel %vm2408, %v2410, %v2406
  %v2412 = vmul.f32 1.0, %v2411
  %v2413 = vrcp.pop %v1641
  %v2414 = vmul.f32 %v1641, %v2413
  %v2415 = vsub.f32 1.0, %v2414
  %v2416 = vmul.f32 %v2413, %v2415
  %v2417 = vadd.f32 %v2413, %v2416
  %vm2418 = vweird.f32 %v1641
  %vm2419 = vweird.f32 %v2413
  %vm2420 = vmor %vm2418, %vm2419
  %v2421 = vsel %vm2420, %v2413, %v2417
  %v2422 = vand.u32 2147483647, %v1641
  %vm2423 = vcmp.eq.f32.partialorder %v2422, 8.507059e+37
  %v2424 = vand.u32 %v1641, 2147483648
  %v2425 = vor.u32 1.1754944e-38, %v2424
  %v2426 = vsel %vm2423, %v2425, %v2421
  %v2427 = vmul.f32 1.0, %v2426
  %v2428 = vrcp.pop %v1642
  %v2429 = vmul.f32 %v1642, %v2428
  %v2430 = vsub.f32 1.0, %v2429
  %v2431 = vmul.f32 %v2428, %v2430
  %v2432 = vadd.f32 %v2428, %v2431
  %vm2433 = vweird.f32 %v1642
  %vm2434 = vweird.f32 %v2428
  %vm2435 = vmor %vm2433, %vm2434
  %v2436 = vsel %vm2435, %v2428, %v2432
  %v2437 = vand.u32 2147483647, %v1642
  %vm2438 = vcmp.eq.f32.partialorder %v2437, 8.507059e+37
  %v2439 = vand.u32 %v1642, 2147483648
  %v2440 = vor.u32 1.1754944e-38, %v2439
  %v2441 = vsel %vm2438, %v2440, %v2436
  %v2442 = vmul.f32 1.0, %v2441
  %v2443 = vrcp.pop %v1643
  %v2444 = vmul.f32 %v1643, %v2443
  %v2445 = vsub.f32 1.0, %v2444
  %v2446 = vmul.f32 %v2443, %v2445
  %v2447 = vadd.f32 %v2443, %v2446
  %vm2448 = vweird.f32 %v1643
  %vm2449 = vweird.f32 %v2443
  %vm2450 = vmor %vm2448, %vm2449
  %v2451 = vsel %vm2450, %v2443, %v2447
  %v2452 = vand.u32 2147483647, %v1643
  %vm2453 = vcmp.eq.f32.partialorder %v2452, 8.507059e+37
  %v2454 = vand.u32 %v1643, 2147483648
  %v2455 = vor.u32 1.1754944e-38, %v2454
  %v2456 = vsel %vm2453, %v2455, %v2451
  %v2457 = vmul.f32 1.0, %v2456
  %v2458 = vrcp.pop %v1644
  %v2459 = vmul.f32 %v1644, %v2458
  %v2460 = vsub.f32 1.0, %v2459
  %v2461 = vmul.f32 %v2458, %v2460
  %v2462 = vadd.f32 %v2458, %v2461
  %vm2463 = vweird.f32 %v1644
  %vm2464 = vweird.f32 %v2458
  %vm2465 = vmor %vm2463, %vm2464
  %v2466 = vsel %vm2465, %v2458, %v2462
  %v2467 = vand.u32 2147483647, %v1644
  %vm2468 = vcmp.eq.f32.partialorder %v2467, 8.507059e+37
  %v2469 = vand.u32 %v1644, 2147483648
  %v2470 = vor.u32 1.1754944e-38, %v2469
  %v2471 = vsel %vm2468, %v2470, %v2466
  %v2472 = vmul.f32 1.0, %v2471
  %v2473 = vrcp.pop %v1645
  %v2474 = vmul.f32 %v1645, %v2473
  %v2475 = vsub.f32 1.0, %v2474
  %v2476 = vmul.f32 %v2473, %v2475
  %v2477 = vadd.f32 %v2473, %v2476
  %vm2478 = vweird.f32 %v1645
  %vm2479 = vweird.f32 %v2473
  %vm2480 = vmor %vm2478, %vm2479
  %v2481 = vsel %vm2480, %v2473, %v2477
  %v2482 = vand.u32 2147483647, %v1645
  %vm2483 = vcmp.eq.f32.partialorder %v2482, 8.507059e+37
  %v2484 = vand.u32 %v1645, 2147483648
  %v2485 = vor.u32 1.1754944e-38, %v2484
  %v2486 = vsel %vm2483, %v2485, %v2481
  %v2487 = vmul.f32 1.0, %v2486
  %v2488 = vrcp.pop %v1646
  %v2489 = vmul.f32 %v1646, %v2488
  %v2490 = vsub.f32 1.0, %v2489
  %v2491 = vmul.f32 %v2488, %v2490
  %v2492 = vadd.f32 %v2488, %v2491
  %vm2493 = vweird.f32 %v1646
  %vm2494 = vweird.f32 %v2488
  %vm2495 = vmor %vm2493, %vm2494
  %v2496 = vsel %vm2495, %v2488, %v2492
  %v2497 = vand.u32 2147483647, %v1646
  %vm2498 = vcmp.eq.f32.partialorder %v2497, 8.507059e+37
  %v2499 = vand.u32 %v1646, 2147483648
  %v2500 = vor.u32 1.1754944e-38, %v2499
  %v2501 = vsel %vm2498, %v2500, %v2496
  %v2502 = vmul.f32 1.0, %v2501
  %v2503 = vrcp.pop %v1647
  %v2504 = vmul.f32 %v1647, %v2503
  %v2505 = vsub.f32 1.0, %v2504
  %v2506 = vmul.f32 %v2503, %v2505
  %v2507 = vadd.f32 %v2503, %v2506
  %vm2508 = vweird.f32 %v1647
  %vm2509 = vweird.f32 %v2503
  %vm2510 = vmor %vm2508, %vm2509
  %v2511 = vsel %vm2510, %v2503, %v2507
  %v2512 = vand.u32 2147483647, %v1647
  %vm2513 = vcmp.eq.f32.partialorder %v2512, 8.507059e+37
  %v2514 = vand.u32 %v1647, 2147483648
  %v2515 = vor.u32 1.1754944e-38, %v2514
  %v2516 = vsel %vm2513, %v2515, %v2511
  %v2517 = vmul.f32 1.0, %v2516
  %v2518 = vrcp.pop %v1648
  %v2519 = vmul.f32 %v1648, %v2518
  %v2520 = vsub.f32 1.0, %v2519
  %v2521 = vmul.f32 %v2518, %v2520
  %v2522 = vadd.f32 %v2518, %v2521
  %vm2523 = vweird.f32 %v1648
  %vm2524 = vweird.f32 %v2518
  %vm2525 = vmor %vm2523, %vm2524
  %v2526 = vsel %vm2525, %v2518, %v2522
  %v2527 = vand.u32 2147483647, %v1648
  %vm2528 = vcmp.eq.f32.partialorder %v2527, 8.507059e+37
  %v2529 = vand.u32 %v1648, 2147483648
  %v2530 = vor.u32 1.1754944e-38, %v2529
  %v2531 = vsel %vm2528, %v2530, %v2526
  %v2532 = vmul.f32 1.0, %v2531
  %v2533 = vrcp.pop %v1649
  %v2534 = vmul.f32 %v1649, %v2533
  %v2535 = vsub.f32 1.0, %v2534
  %v2536 = vmul.f32 %v2533, %v2535
  %v2537 = vadd.f32 %v2533, %v2536
  %vm2538 = vweird.f32 %v1649
  %vm2539 = vweird.f32 %v2533
  %vm2540 = vmor %vm2538, %vm2539
  %v2541 = vsel %vm2540, %v2533, %v2537
  %v2542 = vand.u32 2147483647, %v1649
  %vm2543 = vcmp.eq.f32.partialorder %v2542, 8.507059e+37
  %v2544 = vand.u32 %v1649, 2147483648
  %v2545 = vor.u32 1.1754944e-38, %v2544
  %v2546 = vsel %vm2543, %v2545, %v2541
  %v2547 = vmul.f32 1.0, %v2546
  %v2548 = vrcp.pop %v1650
  %v2549 = vmul.f32 %v1650, %v2548
  %v2550 = vsub.f32 1.0, %v2549
  %v2551 = vmul.f32 %v2548, %v2550
  %v2552 = vadd.f32 %v2548, %v2551
  %vm2553 = vweird.f32 %v1650
  %vm2554 = vweird.f32 %v2548
  %vm2555 = vmor %vm2553, %vm2554
  %v2556 = vsel %vm2555, %v2548, %v2552
  %v2557 = vand.u32 2147483647, %v1650
  %vm2558 = vcmp.eq.f32.partialorder %v2557, 8.507059e+37
  %v2559 = vand.u32 %v1650, 2147483648
  %v2560 = vor.u32 1.1754944e-38, %v2559
  %v2561 = vsel %vm2558, %v2560, %v2556
  %v2562 = vmul.f32 1.0, %v2561
  %v2563 = vrcp.pop %v1651
  %v2564 = vmul.f32 %v1651, %v2563
  %v2565 = vsub.f32 1.0, %v2564
  %v2566 = vmul.f32 %v2563, %v2565
  %v2567 = vadd.f32 %v2563, %v2566
  %vm2568 = vweird.f32 %v1651
  %vm2569 = vweird.f32 %v2563
  %vm2570 = vmor %vm2568, %vm2569
  %v2571 = vsel %vm2570, %v2563, %v2567
  %v2572 = vand.u32 2147483647, %v1651
  %vm2573 = vcmp.eq.f32.partialorder %v2572, 8.507059e+37
  %v2574 = vand.u32 %v1651, 2147483648
  %v2575 = vor.u32 1.1754944e-38, %v2574
  %v2576 = vsel %vm2573, %v2575, %v2571
  %v2577 = vmul.f32 1.0, %v2576
  %v2578 = vrcp.pop %v1652
  %v2579 = vmul.f32 %v1652, %v2578
  %v2580 = vsub.f32 1.0, %v2579
  %v2581 = vmul.f32 %v2578, %v2580
  %v2582 = vadd.f32 %v2578, %v2581
  %vm2583 = vweird.f32 %v1652
  %vm2584 = vweird.f32 %v2578
  %vm2585 = vmor %vm2583, %vm2584
  %v2586 = vsel %vm2585, %v2578, %v2582
  %v2587 = vand.u32 2147483647, %v1652
  %vm2588 = vcmp.eq.f32.partialorder %v2587, 8.507059e+37
  %v2589 = vand.u32 %v1652, 2147483648
  %v2590 = vor.u32 1.1754944e-38, %v2589
  %v2591 = vsel %vm2588, %v2590, %v2586
  %v2592 = vmul.f32 1.0, %v2591
  %v2593 = vrcp.pop %v1653
  %v2594 = vmul.f32 %v1653, %v2593
  %v2595 = vsub.f32 1.0, %v2594
  %v2596 = vmul.f32 %v2593, %v2595
  %v2597 = vadd.f32 %v2593, %v2596
  %vm2598 = vweird.f32 %v1653
  %vm2599 = vweird.f32 %v2593
  %vm2600 = vmor %vm2598, %vm2599
  %v2601 = vsel %vm2600, %v2593, %v2597
  %v2602 = vand.u32 2147483647, %v1653
  %vm2603 = vcmp.eq.f32.partialorder %v2602, 8.507059e+37
  %v2604 = vand.u32 %v1653, 2147483648
  %v2605 = vor.u32 1.1754944e-38, %v2604
  %v2606 = vsel %vm2603, %v2605, %v2601
  %v2607 = vmul.f32 1.0, %v2606
  %v2608 = vrcp.pop %v1654
  %v2609 = vmul.f32 %v1654, %v2608
  %v2610 = vsub.f32 1.0, %v2609
  %v2611 = vmul.f32 %v2608, %v2610
  %v2612 = vadd.f32 %v2608, %v2611
  %vm2613 = vweird.f32 %v1654
  %vm2614 = vweird.f32 %v2608
  %vm2615 = vmor %vm2613, %vm2614
  %v2616 = vsel %vm2615, %v2608, %v2612
  %v2617 = vand.u32 2147483647, %v1654
  %vm2618 = vcmp.eq.f32.partialorder %v2617, 8.507059e+37
  %v2619 = vand.u32 %v1654, 2147483648
  %v2620 = vor.u32 1.1754944e-38, %v2619
  %v2621 = vsel %vm2618, %v2620, %v2616
  %v2622 = vmul.f32 1.0, %v2621
  %v2623 = vrcp.pop %v1655
  %v2624 = vmul.f32 %v1655, %v2623
  %v2625 = vsub.f32 1.0, %v2624
  %v2626 = vmul.f32 %v2623, %v2625
  %v2627 = vadd.f32 %v2623, %v2626
  %vm2628 = vweird.f32 %v1655
  %vm2629 = vweird.f32 %v2623
  %vm2630 = vmor %vm2628, %vm2629
  %v2631 = vsel %vm2630, %v2623, %v2627
  %v2632 = vand.u32 2147483647, %v1655
  %vm2633 = vcmp.eq.f32.partialorder %v2632, 8.507059e+37
  %v2634 = vand.u32 %v1655, 2147483648
  %v2635 = vor.u32 1.1754944e-38, %v2634
  %v2636 = vsel %vm2633, %v2635, %v2631
  %v2637 = vmul.f32 1.0, %v2636
  %v2638 = vrcp.pop %v1656
  %v2639 = vmul.f32 %v1656, %v2638
  %v2640 = vsub.f32 1.0, %v2639
  %v2641 = vmul.f32 %v2638, %v2640
  %v2642 = vadd.f32 %v2638, %v2641
  %vm2643 = vweird.f32 %v1656
  %vm2644 = vweird.f32 %v2638
  %vm2645 = vmor %vm2643, %vm2644
  %v2646 = vsel %vm2645, %v2638, %v2642
  %v2647 = vand.u32 2147483647, %v1656
  %vm2648 = vcmp.eq.f32.partialorder %v2647, 8.507059e+37
  %v2649 = vand.u32 %v1656, 2147483648
  %v2650 = vor.u32 1.1754944e-38, %v2649
  %v2651 = vsel %vm2648, %v2650, %v2646
  %v2652 = vmul.f32 1.0, %v2651
  %v2653 = vrcp.pop %v1657
  %v2654 = vmul.f32 %v1657, %v2653
  %v2655 = vsub.f32 1.0, %v2654
  %v2656 = vmul.f32 %v2653, %v2655
  %v2657 = vadd.f32 %v2653, %v2656
  %vm2658 = vweird.f32 %v1657
  %vm2659 = vweird.f32 %v2653
  %vm2660 = vmor %vm2658, %vm2659
  %v2661 = vsel %vm2660, %v2653, %v2657
  %v2662 = vand.u32 2147483647, %v1657
  %vm2663 = vcmp.eq.f32.partialorder %v2662, 8.507059e+37
  %v2664 = vand.u32 %v1657, 2147483648
  %v2665 = vor.u32 1.1754944e-38, %v2664
  %v2666 = vsel %vm2663, %v2665, %v2661
  %v2667 = vmul.f32 1.0, %v2666
  %v2668 = vrcp.pop %v1658
  %v2669 = vmul.f32 %v1658, %v2668
  %v2670 = vsub.f32 1.0, %v2669
  %v2671 = vmul.f32 %v2668, %v2670
  %v2672 = vadd.f32 %v2668, %v2671
  %vm2673 = vweird.f32 %v1658
  %vm2674 = vweird.f32 %v2668
  %vm2675 = vmor %vm2673, %vm2674
  %v2676 = vsel %vm2675, %v2668, %v2672
  %v2677 = vand.u32 2147483647, %v1658
  %vm2678 = vcmp.eq.f32.partialorder %v2677, 8.507059e+37
  %v2679 = vand.u32 %v1658, 2147483648
  %v2680 = vor.u32 1.1754944e-38, %v2679
  %v2681 = vsel %vm2678, %v2680, %v2676
  %v2682 = vmul.f32 1.0, %v2681
  %v2683 = vrcp.pop %v1659
  %v2684 = vmul.f32 %v1659, %v2683
  %v2685 = vsub.f32 1.0, %v2684
  %v2686 = vmul.f32 %v2683, %v2685
  %v2687 = vadd.f32 %v2683, %v2686
  %vm2688 = vweird.f32 %v1659
  %vm2689 = vweird.f32 %v2683
  %vm2690 = vmor %vm2688, %vm2689
  %v2691 = vsel %vm2690, %v2683, %v2687
  %v2692 = vand.u32 2147483647, %v1659
  %vm2693 = vcmp.eq.f32.partialorder %v2692, 8.507059e+37
  %v2694 = vand.u32 %v1659, 2147483648
  %v2695 = vor.u32 1.1754944e-38, %v2694
  %v2696 = vsel %vm2693, %v2695, %v2691
  %v2697 = vmul.f32 1.0, %v2696
  %v2698 = vrcp.pop %v1660
  %v2699 = vmul.f32 %v1660, %v2698
  %v2700 = vsub.f32 1.0, %v2699
  %v2701 = vmul.f32 %v2698, %v2700
  %v2702 = vadd.f32 %v2698, %v2701
  %vm2703 = vweird.f32 %v1660
  %vm2704 = vweird.f32 %v2698
  %vm2705 = vmor %vm2703, %vm2704
  %v2706 = vsel %vm2705, %v2698, %v2702
  %v2707 = vand.u32 2147483647, %v1660
  %vm2708 = vcmp.eq.f32.partialorder %v2707, 8.507059e+37
  %v2709 = vand.u32 %v1660, 2147483648
  %v2710 = vor.u32 1.1754944e-38, %v2709
  %v2711 = vsel %vm2708, %v2710, %v2706
  %v2712 = vmul.f32 1.0, %v2711
  %v2713 = vrcp.pop %v1661
  %v2714 = vmul.f32 %v1661, %v2713
  %v2715 = vsub.f32 1.0, %v2714
  %v2716 = vmul.f32 %v2713, %v2715
  %v2717 = vadd.f32 %v2713, %v2716
  %vm2718 = vweird.f32 %v1661
  %vm2719 = vweird.f32 %v2713
  %vm2720 = vmor %vm2718, %vm2719
  %v2721 = vsel %vm2720, %v2713, %v2717
  %v2722 = vand.u32 2147483647, %v1661
  %vm2723 = vcmp.eq.f32.partialorder %v2722, 8.507059e+37
  %v2724 = vand.u32 %v1661, 2147483648
  %v2725 = vor.u32 1.1754944e-38, %v2724
  %v2726 = vsel %vm2723, %v2725, %v2721
  %v2727 = vmul.f32 1.0, %v2726
  %v2728 = vrcp.pop %v1662
  %v2729 = vmul.f32 %v1662, %v2728
  %v2730 = vsub.f32 1.0, %v2729
  %v2731 = vmul.f32 %v2728, %v2730
  %v2732 = vadd.f32 %v2728, %v2731
  %vm2733 = vweird.f32 %v1662
  %vm2734 = vweird.f32 %v2728
  %vm2735 = vmor %vm2733, %vm2734
  %v2736 = vsel %vm2735, %v2728, %v2732
  %v2737 = vand.u32 2147483647, %v1662
  %vm2738 = vcmp.eq.f32.partialorder %v2737, 8.507059e+37
  %v2739 = vand.u32 %v1662, 2147483648
  %v2740 = vor.u32 1.1754944e-38, %v2739
  %v2741 = vsel %vm2738, %v2740, %v2736
  %v2742 = vmul.f32 1.0, %v2741
  %v2743 = vmul.f32 %v1115, %v1677
  %v2744 = vmul.f32 %v1214, %v1692
  %v2745 = vmul.f32 %v1117, %v1707
  %v2746 = vmul.f32 %v1216, %v1722
  %v2747 = vmul.f32 %v1120, %v1737
  %v2748 = vmul.f32 %v1219, %v1752
  %v2749 = vmul.f32 %v1122, %v1767
  %v2750 = vmul.f32 %v1221, %v1782
  %v2751 = vmul.f32 %v1125, %v1797
  %v2752 = vmul.f32 %v1224, %v1812
  %v2753 = vmul.f32 %v1127, %v1827
  %v2754 = vmul.f32 %v1226, %v1842
  %v2755 = vmul.f32 %v1130, %v1857
  %v2756 = vmul.f32 %v1229, %v1872
  %v2757 = vmul.f32 %v1132, %v1887
  %v2758 = vmul.f32 %v1231, %v1902
  %v2759 = vmul.f32 %v1135, %v1917
  %v2760 = vmul.f32 %v1234, %v1932
  %v2761 = vmul.f32 %v1137, %v1947
  %v2762 = vmul.f32 %v1236, %v1962
  %v2763 = vmul.f32 %v1140, %v1977
  %v2764 = vmul.f32 %v1239, %v1992
  %v2765 = vmul.f32 %v1142, %v2007
  %v2766 = vmul.f32 %v1241, %v2022
  %v2767 = vmul.f32 %v1145, %v2037
  %v2768 = vmul.f32 %v1244, %v2052
  %v2769 = vmul.f32 %v1147, %v2067
  %v2770 = vmul.f32 %v1246, %v2082
  %v2771 = vmul.f32 %v1150, %v2097
  %v2772 = vmul.f32 %v1249, %v2112
  %v2773 = vmul.f32 %v1152, %v2127
  %v2774 = vmul.f32 %v1251, %v2142
  %v2775 = vmul.f32 %v1155, %v2157
  %v2776 = vmul.f32 %v1254, %v2172
  %v2777 = vmul.f32 %v1157, %v2187
  %v2778 = vmul.f32 %v1256, %v2202
  %v2779 = vmul.f32 %v1160, %v2217
  %v2780 = vmul.f32 %v1259, %v2232
  %v2781 = vmul.f32 %v1162, %v2247
  %v2782 = vmul.f32 %v1261, %v2262
  %v2783 = vmul.f32 %v1165, %v2277
  %v2784 = vmul.f32 %v1264, %v2292
  %v2785 = vmul.f32 %v1167, %v2307
  %v2786 = vmul.f32 %v1266, %v2322
  %v2787 = vmul.f32 %v1170, %v2337
  %v2788 = vmul.f32 %v1269, %v2352
  %v2789 = vmul.f32 %v1172, %v2367
  %v2790 = vmul.f32 %v1271, %v2382
  %v2791 = vmul.f32 %v1175, %v2397
  %v2792 = vmul.f32 %v1274, %v2412
  %v2793 = vmul.f32 %v1177, %v2427
  %v2794 = vmul.f32 %v1276, %v2442
  %v2795 = vmul.f32 %v1180, %v2457
  %v2796 = vmul.f32 %v1279, %v2472
  %v2797 = vmul.f32 %v1182, %v2487
  %v2798 = vmul.f32 %v1281, %v2502
  %v2799 = vmul.f32 %v1185, %v2517
  %v2800 = vmul.f32 %v1284, %v2532
  %v2801 = vmul.f32 %v1187, %v2547
  %v2802 = vmul.f32 %v1286, %v2562
  %v2803 = vmul.f32 %v1190, %v2577
  %v2804 = vmul.f32 %v1289, %v2592
  %v2805 = vmul.f32 %v1192, %v2607
  %v2806 = vmul.f32 %v1291, %v2622
  %v2807 = vmul.f32 %v1195, %v2637
  %v2808 = vmul.f32 %v1294, %v2652
  %v2809 = vmul.f32 %v1197, %v2667
  %v2810 = vmul.f32 %v1296, %v2682
  %v2811 = vmul.f32 %v1200, %v2697
  %v2812 = vmul.f32 %v1299, %v2712
  %v2813 = vmul.f32 %v1202, %v2727
  %v2814 = vmul.f32 %v1301, %v2742
  %v2815 = vpack.c.bf16 %v2745, %v2743
  %v2816 = vpack.c.bf16 %v2746, %v2744
  %v2817 = vpack.c.bf16 %v2749, %v2747
  %v2818 = vpack.c.bf16 %v2750, %v2748
  %v2819 = vpack.c.bf16 %v2753, %v2751
  %v2820 = vpack.c.bf16 %v2754, %v2752
  %v2821 = vpack.c.bf16 %v2757, %v2755
  %v2822 = vpack.c.bf16 %v2758, %v2756
  %v2823 = vpack.c.bf16 %v2761, %v2759
  %v2824 = vpack.c.bf16 %v2762, %v2760
  %v2825 = vpack.c.bf16 %v2765, %v2763
  %v2826 = vpack.c.bf16 %v2766, %v2764
  %v2827 = vpack.c.bf16 %v2769, %v2767
  %v2828 = vpack.c.bf16 %v2770, %v2768
  %v2829 = vpack.c.bf16 %v2773, %v2771
  %v2830 = vpack.c.bf16 %v2774, %v2772
  %v2831 = vpack.c.bf16 %v2777, %v2775
  %v2832 = vpack.c.bf16 %v2778, %v2776
  %v2833 = vpack.c.bf16 %v2781, %v2779
  %v2834 = vpack.c.bf16 %v2782, %v2780
  %v2835 = vpack.c.bf16 %v2785, %v2783
  %v2836 = vpack.c.bf16 %v2786, %v2784
  %v2837 = vpack.c.bf16 %v2789, %v2787
  %v2838 = vpack.c.bf16 %v2790, %v2788
  %v2839 = vpack.c.bf16 %v2793, %v2791
  %v2840 = vpack.c.bf16 %v2794, %v2792
  %v2841 = vpack.c.bf16 %v2797, %v2795
  %v2842 = vpack.c.bf16 %v2798, %v2796
  %v2843 = vpack.c.bf16 %v2801, %v2799
  %v2844 = vpack.c.bf16 %v2802, %v2800
  %v2845 = vpack.c.bf16 %v2805, %v2803
  %v2846 = vpack.c.bf16 %v2806, %v2804
  %v2847 = vpack.c.bf16 %v2809, %v2807
  %v2848 = vpack.c.bf16 %v2810, %v2808
  %v2849 = vpack.c.bf16 %v2813, %v2811
  %v2850 = vpack.c.bf16 %v2814, %v2812
  %v2851 = vld [vmem:[%s5] sm:$0xf]
  %v2852 = vld [vmem:[%s5 + $0x4] sm:$0xf]
  %v2853 = vld [vmem:[%s5 + $0x8] sm:$0xf]
  %v2854 = vld [vmem:[%s5 + $0xc] sm:$0xf]
  %v2855 = vld [vmem:[%s5 + $0x10] sm:$0xf]
  %v2856 = vld [vmem:[%s5 + $0x14] sm:$0xf]
  %v2857 = vld [vmem:[%s5 + $0x18] sm:$0xf]
  %v2858 = vld [vmem:[%s5 + $0x1c] sm:$0xf]
  %v2859 = vld [vmem:[%s5 + $0x20] sm:$0xf]
  %v2860 = vld [vmem:[%s5 + $0x24] sm:$0xf]
  %v2861 = vld [vmem:[%s5 + $0x28] sm:$0xf]
  %v2862 = vld [vmem:[%s5 + $0x2c] sm:$0xf]
  %v2863 = vld [vmem:[%s5 + $0x30] sm:$0xf]
  %v2864 = vld [vmem:[%s5 + $0x34] sm:$0xf]
  %v2865 = vld [vmem:[%s5 + $0x38] sm:$0xf]
  %v2866 = vld [vmem:[%s5 + $0x3c] sm:$0xf]
  %v2867 = vld [vmem:[%s5 + $0x40] sm:$0xf]
  %v2868 = vld [vmem:[%s5 + $0x44] sm:$0xf]
  %v2869 = vld [vmem:[%s5 + $0x48] sm:$0xf]
  %v2870 = vld [vmem:[%s5 + $0x4c] sm:$0xf]
  %v2871 = vld [vmem:[%s5 + $0x50] sm:$0xf]
  %v2872 = vld [vmem:[%s5 + $0x54] sm:$0xf]
  %v2873 = vld [vmem:[%s5 + $0x58] sm:$0xf]
  %v2874 = vld [vmem:[%s5 + $0x5c] sm:$0xf]
  %v2875 = vld [vmem:[%s5 + $0x60] sm:$0xf]
  %v2876 = vld [vmem:[%s5 + $0x64] sm:$0xf]
  %v2877 = vld [vmem:[%s5 + $0x68] sm:$0xf]
  %v2878 = vld [vmem:[%s5 + $0x6c] sm:$0xf]
  %v2879 = vld [vmem:[%s5 + $0x70] sm:$0xf]
  %v2880 = vld [vmem:[%s5 + $0x74] sm:$0xf]
  %v2881 = vld [vmem:[%s5 + $0x78] sm:$0xf]
  %v2882 = vld [vmem:[%s5 + $0x7c] sm:$0xf]
  %v2883 = vld [vmem:[%s6] sm:$0x1]
  %v2885 = vperm.slane %v2883, 0
  %v2919 = vunpack.c.l.b16 %v2851
  %v2920 = vunpack.c.l.b16 %v2852
  %v2921 = vunpack.c.l.b16 %v2853
  %v2922 = vunpack.c.l.b16 %v2854
  %v2923 = vunpack.c.l.b16 %v2855
  %v2924 = vunpack.c.l.b16 %v2856
  %v2925 = vunpack.c.l.b16 %v2857
  %v2926 = vunpack.c.l.b16 %v2858
  %v2927 = vunpack.c.l.b16 %v2859
  %v2928 = vunpack.c.l.b16 %v2860
  %v2929 = vunpack.c.l.b16 %v2861
  %v2930 = vunpack.c.l.b16 %v2862
  %v2931 = vunpack.c.l.b16 %v2863
  %v2932 = vunpack.c.l.b16 %v2864
  %v2933 = vunpack.c.l.b16 %v2865
  %v2934 = vunpack.c.l.b16 %v2866
  %v2935 = vunpack.c.l.b16 %v2867
  %v2936 = vunpack.c.l.b16 %v2868
  %v2937 = vunpack.c.l.b16 %v2869
  %v2938 = vunpack.c.l.b16 %v2870
  %v2939 = vunpack.c.l.b16 %v2871
  %v2940 = vunpack.c.l.b16 %v2872
  %v2941 = vunpack.c.l.b16 %v2873
  %v2942 = vunpack.c.l.b16 %v2874
  %v2943 = vunpack.c.l.b16 %v2875
  %v2944 = vunpack.c.l.b16 %v2876
  %v2945 = vunpack.c.l.b16 %v2877
  %v2946 = vunpack.c.l.b16 %v2878
  %v2947 = vunpack.c.l.b16 %v2879
  %v2948 = vunpack.c.l.b16 %v2880
  %v2949 = vunpack.c.l.b16 %v2881
  %v2950 = vunpack.c.l.b16 %v2882
  %v2951 = vpack.c.b16 %v2920, %v2919
  %v2952 = vpack.c.b16 %v2922, %v2921
  %v2953 = vpack.c.b16 %v2924, %v2923
  %v2954 = vpack.c.b16 %v2926, %v2925
  %v2955 = vpack.c.b16 %v2928, %v2927
  %v2956 = vpack.c.b16 %v2930, %v2929
  %v2957 = vpack.c.b16 %v2932, %v2931
  %v2958 = vpack.c.b16 %v2934, %v2933
  %v2959 = vpack.c.b16 %v2936, %v2935
  %v2960 = vpack.c.b16 %v2938, %v2937
  %v2961 = vpack.c.b16 %v2940, %v2939
  %v2962 = vpack.c.b16 %v2942, %v2941
  %v2963 = vpack.c.b16 %v2944, %v2943
  %v2964 = vpack.c.b16 %v2946, %v2945
  %v2965 = vpack.c.b16 %v2948, %v2947
  %v2966 = vpack.c.b16 %v2950, %v2949
  %2983 = vmatpush.bf16.msra.mxu0 %v2958
  %2984 = vmatpush.bf16.msra.mxu0 %v2957
  %2985 = vmatpush.bf16.msra.mxu0 %v2956
  %2986 = vmatpush.bf16.msra.mxu0 %v2955
  %2987 = vmatpush.bf16.msra.mxu0 %v2954
  %2988 = vmatpush.bf16.msra.mxu0 %v2953
  %2989 = vmatpush.bf16.msra.mxu0 %v2952
  %2990 = vmatpush.bf16.msra.mxu0 %v2951
  %2991 = vmatmul.bf16.gmra.mxu0 %v2815
  %v2992 = vpop.f32.mrf.mxu0
  %v2993 = vadd.f32 %v2885, %v2992
  %v2994 = vpop.f32.mrf.mxu0
  %v2995 = vadd.f32 %v2885, %v2994
  %2996 = vmatmul.bf16.gmra.mxu0 %v2817
  %v2997 = vpop.f32.mrf.mxu0
  %v2998 = vadd.f32 %v2885, %v2997
  %v2999 = vpop.f32.mrf.mxu0
  %v3000 = vadd.f32 %v2885, %v2999
  %3001 = vmatmul.bf16.gmra.mxu0 %v2819
  %v3002 = vpop.f32.mrf.mxu0
  %v3003 = vadd.f32 %v2885, %v3002
  %v3004 = vpop.f32.mrf.mxu0
  %v3005 = vadd.f32 %v2885, %v3004
  %3006 = vmatmul.bf16.gmra.mxu0 %v2821
  %v3007 = vpop.f32.mrf.mxu0
  %v3008 = vadd.f32 %v2885, %v3007
  %v3009 = vpop.f32.mrf.mxu0
  %v3010 = vadd.f32 %v2885, %v3009
  %3011 = vmatmul.bf16.gmra.mxu0 %v2823
  %v3012 = vpop.f32.mrf.mxu0
  %v3013 = vadd.f32 %v2885, %v3012
  %v3014 = vpop.f32.mrf.mxu0
  %v3015 = vadd.f32 %v2885, %v3014
  %3016 = vmatmul.bf16.gmra.mxu0 %v2825
  %v3017 = vpop.f32.mrf.mxu0
  %v3018 = vadd.f32 %v2885, %v3017
  %v3019 = vpop.f32.mrf.mxu0
  %v3020 = vadd.f32 %v2885, %v3019
  %3021 = vmatmul.bf16.gmra.mxu0 %v2827
  %v3022 = vpop.f32.mrf.mxu0
  %v3023 = vadd.f32 %v2885, %v3022
  %v3024 = vpop.f32.mrf.mxu0
  %v3025 = vadd.f32 %v2885, %v3024
  %3026 = vmatmul.bf16.gmra.mxu0 %v2829
  %v3027 = vpop.f32.mrf.mxu0
  %v3028 = vadd.f32 %v2885, %v3027
  %v3029 = vpop.f32.mrf.mxu0
  %v3030 = vadd.f32 %v2885, %v3029
  %3031 = vmatmul.bf16.gmra.mxu0 %v2831
  %v3032 = vpop.f32.mrf.mxu0
  %v3033 = vadd.f32 %v2885, %v3032
  %v3034 = vpop.f32.mrf.mxu0
  %v3035 = vadd.f32 %v2885, %v3034
  %3036 = vmatmul.bf16.gmra.mxu0 %v2833
  %v3037 = vpop.f32.mrf.mxu0
  %v3038 = vadd.f32 %v2885, %v3037
  %v3039 = vpop.f32.mrf.mxu0
  %v3040 = vadd.f32 %v2885, %v3039
  %3041 = vmatmul.bf16.gmra.mxu0 %v2835
  %v3042 = vpop.f32.mrf.mxu0
  %v3043 = vadd.f32 %v2885, %v3042
  %v3044 = vpop.f32.mrf.mxu0
  %v3045 = vadd.f32 %v2885, %v3044
  %3046 = vmatmul.bf16.gmra.mxu0 %v2837
  %v3047 = vpop.f32.mrf.mxu0
  %v3048 = vadd.f32 %v2885, %v3047
  %v3049 = vpop.f32.mrf.mxu0
  %v3050 = vadd.f32 %v2885, %v3049
  %3051 = vmatmul.bf16.gmra.mxu0 %v2839
  %v3052 = vpop.f32.mrf.mxu0
  %v3053 = vadd.f32 %v2885, %v3052
  %v3054 = vpop.f32.mrf.mxu0
  %v3055 = vadd.f32 %v2885, %v3054
  %3056 = vmatmul.bf16.gmra.mxu0 %v2841
  %v3057 = vpop.f32.mrf.mxu0
  %v3058 = vadd.f32 %v2885, %v3057
  %v3059 = vpop.f32.mrf.mxu0
  %v3060 = vadd.f32 %v2885, %v3059
  %3061 = vmatmul.bf16.gmra.mxu0 %v2843
  %v3062 = vpop.f32.mrf.mxu0
  %v3063 = vadd.f32 %v2885, %v3062
  %v3064 = vpop.f32.mrf.mxu0
  %v3065 = vadd.f32 %v2885, %v3064
  %3066 = vmatmul.bf16.gmra.mxu0 %v2845
  %v3067 = vpop.f32.mrf.mxu0
  %v3068 = vadd.f32 %v2885, %v3067
  %v3069 = vpop.f32.mrf.mxu0
  %v3070 = vadd.f32 %v2885, %v3069
  %3071 = vmatmul.bf16.gmra.mxu0 %v2847
  %v3072 = vpop.f32.mrf.mxu0
  %v3073 = vadd.f32 %v2885, %v3072
  %v3074 = vpop.f32.mrf.mxu0
  %v3075 = vadd.f32 %v2885, %v3074
  %3076 = vmatmul.bf16.gmra.mxu0 %v2849
  %v3077 = vpop.f32.mrf.mxu0
  %v3078 = vadd.f32 %v2885, %v3077
  %v3079 = vpop.f32.mrf.mxu0
  %v3080 = vadd.f32 %v2885, %v3079
  %3081 = vdwg.mxu0
  %3082 = vmatpush.bf16.msra.mxu0 %v2966
  %3083 = vmatpush.bf16.msra.mxu0 %v2965
  %3084 = vmatpush.bf16.msra.mxu0 %v2964
  %3085 = vmatpush.bf16.msra.mxu0 %v2963
  %3086 = vmatpush.bf16.msra.mxu0 %v2962
  %3087 = vmatpush.bf16.msra.mxu0 %v2961
  %3088 = vmatpush.bf16.msra.mxu0 %v2960
  %3089 = vmatpush.bf16.msra.mxu0 %v2959
  %3090 = vmatmul.bf16.gmra.mxu0 %v2816
  %v3091 = vpop.f32.mrf.mxu0
  %v3092 = vadd.f32 %v2993, %v3091
  %v3093 = vpop.f32.mrf.mxu0
  %v3094 = vadd.f32 %v2995, %v3093
  %3095 = vmatmul.bf16.gmra.mxu0 %v2818
  %v3096 = vpop.f32.mrf.mxu0
  %v3097 = vadd.f32 %v2998, %v3096
  %v3098 = vpop.f32.mrf.mxu0
  %v3099 = vadd.f32 %v3000, %v3098
  %3100 = vmatmul.bf16.gmra.mxu0 %v2820
  %v3101 = vpop.f32.mrf.mxu0
  %v3102 = vadd.f32 %v3003, %v3101
  %v3103 = vpop.f32.mrf.mxu0
  %v3104 = vadd.f32 %v3005, %v3103
  %3105 = vmatmul.bf16.gmra.mxu0 %v2822
  %v3106 = vpop.f32.mrf.mxu0
  %v3107 = vadd.f32 %v3008, %v3106
  %v3108 = vpop.f32.mrf.mxu0
  %v3109 = vadd.f32 %v3010, %v3108
  %3110 = vmatmul.bf16.gmra.mxu0 %v2824
  %v3111 = vpop.f32.mrf.mxu0
  %v3112 = vadd.f32 %v3013, %v3111
  %v3113 = vpop.f32.mrf.mxu0
  %v3114 = vadd.f32 %v3015, %v3113
  %3115 = vmatmul.bf16.gmra.mxu0 %v2826
  %v3116 = vpop.f32.mrf.mxu0
  %v3117 = vadd.f32 %v3018, %v3116
  %v3118 = vpop.f32.mrf.mxu0
  %v3119 = vadd.f32 %v3020, %v3118
  %3120 = vmatmul.bf16.gmra.mxu0 %v2828
  %v3121 = vpop.f32.mrf.mxu0
  %v3122 = vadd.f32 %v3023, %v3121
  %v3123 = vpop.f32.mrf.mxu0
  %v3124 = vadd.f32 %v3025, %v3123
  %3125 = vmatmul.bf16.gmra.mxu0 %v2830
  %v3126 = vpop.f32.mrf.mxu0
  %v3127 = vadd.f32 %v3028, %v3126
  %v3128 = vpop.f32.mrf.mxu0
  %v3129 = vadd.f32 %v3030, %v3128
  %3130 = vmatmul.bf16.gmra.mxu0 %v2832
  %v3131 = vpop.f32.mrf.mxu0
  %v3132 = vadd.f32 %v3033, %v3131
  %v3133 = vpop.f32.mrf.mxu0
  %v3134 = vadd.f32 %v3035, %v3133
  %3135 = vmatmul.bf16.gmra.mxu0 %v2834
  %v3136 = vpop.f32.mrf.mxu0
  %v3137 = vadd.f32 %v3038, %v3136
  %v3138 = vpop.f32.mrf.mxu0
  %v3139 = vadd.f32 %v3040, %v3138
  %3140 = vmatmul.bf16.gmra.mxu0 %v2836
  %v3141 = vpop.f32.mrf.mxu0
  %v3142 = vadd.f32 %v3043, %v3141
  %v3143 = vpop.f32.mrf.mxu0
  %v3144 = vadd.f32 %v3045, %v3143
  %3145 = vmatmul.bf16.gmra.mxu0 %v2838
  %v3146 = vpop.f32.mrf.mxu0
  %v3147 = vadd.f32 %v3048, %v3146
  %v3148 = vpop.f32.mrf.mxu0
  %v3149 = vadd.f32 %v3050, %v3148
  %3150 = vmatmul.bf16.gmra.mxu0 %v2840
  %v3151 = vpop.f32.mrf.mxu0
  %v3152 = vadd.f32 %v3053, %v3151
  %v3153 = vpop.f32.mrf.mxu0
  %v3154 = vadd.f32 %v3055, %v3153
  %3155 = vmatmul.bf16.gmra.mxu0 %v2842
  %v3156 = vpop.f32.mrf.mxu0
  %v3157 = vadd.f32 %v3058, %v3156
  %v3158 = vpop.f32.mrf.mxu0
  %v3159 = vadd.f32 %v3060, %v3158
  %3160 = vmatmul.bf16.gmra.mxu0 %v2844
  %v3161 = vpop.f32.mrf.mxu0
  %v3162 = vadd.f32 %v3063, %v3161
  %v3163 = vpop.f32.mrf.mxu0
  %v3164 = vadd.f32 %v3065, %v3163
  %3165 = vmatmul.bf16.gmra.mxu0 %v2846
  %v3166 = vpop.f32.mrf.mxu0
  %v3167 = vadd.f32 %v3068, %v3166
  %v3168 = vpop.f32.mrf.mxu0
  %v3169 = vadd.f32 %v3070, %v3168
  %3170 = vmatmul.bf16.gmra.mxu0 %v2848
  %v3171 = vpop.f32.mrf.mxu0
  %v3172 = vadd.f32 %v3073, %v3171
  %v3173 = vpop.f32.mrf.mxu0
  %v3174 = vadd.f32 %v3075, %v3173
  %3175 = vmatmul.bf16.gmra.mxu0 %v2850
  %v3176 = vpop.f32.mrf.mxu0
  %v3177 = vadd.f32 %v3078, %v3176
  %v3178 = vpop.f32.mrf.mxu0
  %v3179 = vadd.f32 %v3080, %v3178
  %3180 = vdwg.mxu0
  %v3181 = vadd.f32 %v63, %v3092
  %v3182 = vadd.f32 %v64, %v3094
  %v3183 = vadd.f32 %v65, %v3097
  %v3184 = vadd.f32 %v66, %v3099
  %v3185 = vadd.f32 %v67, %v3102
  %v3186 = vadd.f32 %v68, %v3104
  %v3187 = vadd.f32 %v69, %v3107
  %v3188 = vadd.f32 %v70, %v3109
  %v3189 = vadd.f32 %v71, %v3112
  %v3190 = vadd.f32 %v72, %v3114
  %v3191 = vadd.f32 %v73, %v3117
  %v3192 = vadd.f32 %v74, %v3119
  %v3193 = vadd.f32 %v75, %v3122
  %v3194 = vadd.f32 %v76, %v3124
  %v3195 = vadd.f32 %v77, %v3127
  %v3196 = vadd.f32 %v78, %v3129
  %v3197 = vadd.f32 %v79, %v3132
  %v3198 = vadd.f32 %v80, %v3134
  %v3199 = vadd.f32 %v81, %v3137
  %v3200 = vadd.f32 %v82, %v3139
  %v3201 = vadd.f32 %v83, %v3142
  %v3202 = vadd.f32 %v84, %v3144
  %v3203 = vadd.f32 %v85, %v3147
  %v3204 = vadd.f32 %v86, %v3149
  %v3205 = vadd.f32 %v87, %v3152
  %v3206 = vadd.f32 %v88, %v3154
  %v3207 = vadd.f32 %v89, %v3157
  %v3208 = vadd.f32 %v90, %v3159
  %v3209 = vadd.f32 %v91, %v3162
  %v3210 = vadd.f32 %v92, %v3164
  %v3211 = vadd.f32 %v93, %v3167
  %v3212 = vadd.f32 %v94, %v3169
  %v3213 = vadd.f32 %v95, %v3172
  %v3214 = vadd.f32 %v96, %v3174
  %v3215 = vadd.f32 %v97, %v3177
  %v3216 = vadd.f32 %v98, %v3179
  %v3217 = vpack.c.bf16 %v3181, %v3181
  %v3218 = vpack.c.bf16 %v3182, %v3182
  %v3219 = vpack.c.bf16 %v3183, %v3183
  %v3220 = vpack.c.bf16 %v3184, %v3184
  %v3221 = vpack.c.bf16 %v3185, %v3185
  %v3222 = vpack.c.bf16 %v3186, %v3186
  %v3223 = vpack.c.bf16 %v3187, %v3187
  %v3224 = vpack.c.bf16 %v3188, %v3188
  %v3225 = vpack.c.bf16 %v3189, %v3189
  %v3226 = vpack.c.bf16 %v3190, %v3190
  %v3227 = vpack.c.bf16 %v3191, %v3191
  %v3228 = vpack.c.bf16 %v3192, %v3192
  %v3229 = vpack.c.bf16 %v3193, %v3193
  %v3230 = vpack.c.bf16 %v3194, %v3194
  %v3231 = vpack.c.bf16 %v3195, %v3195
  %v3232 = vpack.c.bf16 %v3196, %v3196
  %v3233 = vpack.c.bf16 %v3197, %v3197
  %v3234 = vpack.c.bf16 %v3198, %v3198
  %v3235 = vpack.c.bf16 %v3199, %v3199
  %v3236 = vpack.c.bf16 %v3200, %v3200
  %v3237 = vpack.c.bf16 %v3201, %v3201
  %v3238 = vpack.c.bf16 %v3202, %v3202
  %v3239 = vpack.c.bf16 %v3203, %v3203
  %v3240 = vpack.c.bf16 %v3204, %v3204
  %v3241 = vpack.c.bf16 %v3205, %v3205
  %v3242 = vpack.c.bf16 %v3206, %v3206
  %v3243 = vpack.c.bf16 %v3207, %v3207
  %v3244 = vpack.c.bf16 %v3208, %v3208
  %v3245 = vpack.c.bf16 %v3209, %v3209
  %v3246 = vpack.c.bf16 %v3210, %v3210
  %v3247 = vpack.c.bf16 %v3211, %v3211
  %v3248 = vpack.c.bf16 %v3212, %v3212
  %v3249 = vpack.c.bf16 %v3213, %v3213
  %v3250 = vpack.c.bf16 %v3214, %v3214
  %v3251 = vpack.c.bf16 %v3215, %v3215
  %v3252 = vpack.c.bf16 %v3216, %v3216
  %vm3253 = vcmask 519168
  %3254 = vst.msk [vmem:[%s7] sm:$0xf] %vm3253, %v3217
  %3255 = vst.msk [vmem:[%s7 + $0x4] sm:$0xf] %vm3253, %v3218
  %3256 = vst.msk [vmem:[%s7 + $0x8] sm:$0xf] %vm3253, %v3219
  %3257 = vst.msk [vmem:[%s7 + $0xc] sm:$0xf] %vm3253, %v3220
  %3258 = vst.msk [vmem:[%s7 + $0x10] sm:$0xf] %vm3253, %v3221
  %3259 = vst.msk [vmem:[%s7 + $0x14] sm:$0xf] %vm3253, %v3222
  %3260 = vst.msk [vmem:[%s7 + $0x18] sm:$0xf] %vm3253, %v3223
  %3261 = vst.msk [vmem:[%s7 + $0x1c] sm:$0xf] %vm3253, %v3224
  %3262 = vst.msk [vmem:[%s7 + $0x20] sm:$0xf] %vm3253, %v3225
  %3263 = vst.msk [vmem:[%s7 + $0x24] sm:$0xf] %vm3253, %v3226
  %3264 = vst.msk [vmem:[%s7 + $0x28] sm:$0xf] %vm3253, %v3227
  %3265 = vst.msk [vmem:[%s7 + $0x2c] sm:$0xf] %vm3253, %v3228
  %3266 = vst.msk [vmem:[%s7 + $0x30] sm:$0xf] %vm3253, %v3229
  %3267 = vst.msk [vmem:[%s7 + $0x34] sm:$0xf] %vm3253, %v3230
  %3268 = vst.msk [vmem:[%s7 + $0x38] sm:$0xf] %vm3253, %v3231
  %3269 = vst.msk [vmem:[%s7 + $0x3c] sm:$0xf] %vm3253, %v3232
  %3270 = vst.msk [vmem:[%s7 + $0x40] sm:$0xf] %vm3253, %v3233
  %3271 = vst.msk [vmem:[%s7 + $0x44] sm:$0xf] %vm3253, %v3234
  %3272 = vst.msk [vmem:[%s7 + $0x48] sm:$0xf] %vm3253, %v3235
  %3273 = vst.msk [vmem:[%s7 + $0x4c] sm:$0xf] %vm3253, %v3236
  %3274 = vst.msk [vmem:[%s7 + $0x50] sm:$0xf] %vm3253, %v3237
  %3275 = vst.msk [vmem:[%s7 + $0x54] sm:$0xf] %vm3253, %v3238
  %3276 = vst.msk [vmem:[%s7 + $0x58] sm:$0xf] %vm3253, %v3239
  %3277 = vst.msk [vmem:[%s7 + $0x5c] sm:$0xf] %vm3253, %v3240
  %3278 = vst.msk [vmem:[%s7 + $0x60] sm:$0xf] %vm3253, %v3241
  %3279 = vst.msk [vmem:[%s7 + $0x64] sm:$0xf] %vm3253, %v3242
  %3280 = vst.msk [vmem:[%s7 + $0x68] sm:$0xf] %vm3253, %v3243
  %3281 = vst.msk [vmem:[%s7 + $0x6c] sm:$0xf] %vm3253, %v3244
  %3282 = vst.msk [vmem:[%s7 + $0x70] sm:$0xf] %vm3253, %v3245
  %3283 = vst.msk [vmem:[%s7 + $0x74] sm:$0xf] %vm3253, %v3246
  %3284 = vst.msk [vmem:[%s7 + $0x78] sm:$0xf] %vm3253, %v3247
  %3285 = vst.msk [vmem:[%s7 + $0x7c] sm:$0xf] %vm3253, %v3248
  %3286 = vst.msk [vmem:[%s7 + $0x80] sm:$0xf] %vm3253, %v3249
  %3287 = vst.msk [vmem:[%s7 + $0x84] sm:$0xf] %vm3253, %v3250
  %3288 = vst.msk [vmem:[%s7 + $0x88] sm:$0xf] %vm3253, %v3251
  %3289 = vst.msk [vmem:[%s7 + $0x8c] sm:$0xf] %vm3253, %v3252
  // Predicated region
  $region30: #{cross_frame_transformer_forward.13} parent=0 // pred_check
    _
  $region31: #{cross_frame_transformer_forward.13} parent=0 // pred_check_branch
    %3291 = sbr.rel (0) target = $region33
  $region32: #{cross_frame_transformer_forward.13} parent=0 // pred_region
    _
  $region33: #{cross_frame_transformer_forward.13} parent=0 // pred_fallthru
    _
  // Predicated region
  $region34: #{cross_frame_transformer_forward.13} parent=0 // pred_check
    _
  $region35: #{cross_frame_transformer_forward.13} parent=0 // pred_check_branch
    %3293 = sbr.rel (0) target = $region37
  $region36: #{cross_frame_transformer_forward.13} parent=0 // pred_region
    _
  $region37: #{cross_frame_transformer_forward.13} parent=0 // pred_fallthru
    _

</llo_original>
